<compile_context>
chip_gen: v7x
topology: tpu7x:2x2x1
jax: 0.10.0
libtpu: 0.0.40
codegen_flags: <defaults>
</compile_context>

<pallas_src>
import numpy as np

import jax
import jax.numpy as jnp
from jax.experimental import pallas as pl
from jax.experimental.pallas import tpu as pltpu


# ------------------------- host-side weight repacking (one-time) ------------------------- #

def _conv_row_toeplitz(w, w_in, w_out):
    """Width-direction Toeplitz matrices for a conv layer.

    Activation rows are laid out as [h, w_in * C_in] (channels interleaved on lanes), output
    rows as [h_out, w_out * C_out].  For kernel row `di`:
        T[di][(wo + dj) * C_in + ic, wo * C_out + oc] = w[oc, ic, di, dj]
    so that   out_rows[r] = sum_di  in_rows[r + di, :] @ T[di]   (cross-correlation, identical
    to PyTorch Conv2d with stride=1, no padding).
    """
    oc, ic, kh, kw = w.shape
    w = np.asarray(w, np.float32)
    T = np.zeros((kh, w_in * ic, w_out * oc), np.float32)
    for di in range(kh):
        for dj in range(kw):
            wt = w[:, :, di, dj].T                              # [ic, oc]
            for wo in range(w_out):
                r, c = (wo + dj) * ic, wo * oc
                T[di, r:r + ic, c:c + oc] = wt
    return T


def _pool_right(w_in, w_out, c):
    """Horizontal half of AvgPool2d(2) as a right matmul on the [h, w*c] lane layout."""
    PR = np.zeros((w_in * c, w_out * c), np.float32)
    for j in range(w_out):
        for ch in range(c):
            PR[(2 * j) * c + ch, j * c + ch] = 0.5
            PR[(2 * j + 1) * c + ch, j * c + ch] = 0.5
    return PR


def _shift_select(batch, h_out, h_in, kh):
    """Block-diagonal row-selection matrices: (S[di] @ X)[b*h_out+r] = X[b*h_in + r + di]."""
    S = np.zeros((kh, batch * h_out, batch * h_in), np.float32)
    for di in range(kh):
        for b in range(batch):
            for r in range(h_out):
                S[di, b * h_out + r, b * h_in + r + di] = 1.0
    return S


def _shift_pool_select(batch, h_out, h_in, kh):
    """Block-diagonal matrices folding {vertical 2x avg-pool} o {row shift by di} o {batch}:
    (S[di] @ X)[b*h_out+r] = 0.5*(X[b*h_in + 2*(r+di)] + X[b*h_in + 2*(r+di) + 1])."""
    S = np.zeros((kh, batch * h_out, batch * h_in), np.float32)
    for di in range(kh):
        for b in range(batch):
            for r in range(h_out):
                S[di, b * h_out + r, b * h_in + 2 * (r + di)] = 0.5
                S[di, b * h_out + r, b * h_in + 2 * (r + di) + 1] = 0.5
    return S


def prepare_operands(params, H, W, batch_tile):
    """Repack PyTorch-layout weights into the fused kernel's matmul operands."""
    B = batch_tile
    w1 = np.asarray(params["conv1_w"], np.float32); b1 = np.asarray(params["conv1_b"], np.float32)
    w2 = np.asarray(params["conv2_w"], np.float32); b2 = np.asarray(params["conv2_b"], np.float32)
    w3 = np.asarray(params["conv3_w"], np.float32); b3 = np.asarray(params["conv3_b"], np.float32)
    w4 = np.asarray(params["fc1_w"], np.float32);   b4 = np.asarray(params["fc1_b"], np.float32)
    w5 = np.asarray(params["fc2_w"], np.float32);   b5 = np.asarray(params["fc2_b"], np.float32)

    c1, c2, c3 = w1.shape[0], w2.shape[0], w3.shape[0]           # 6, 16, 120
    k = w1.shape[2]                                              # 5
    h1, w1s = H - (k - 1), W - (k - 1)                           # conv1 out  28, 28
    hp1, wp1 = h1 // 2, w1s // 2                                 # pool1 out  14, 14
    h2, w2s = hp1 - (k - 1), wp1 - (k - 1)                       # conv2 out  10, 10
    hp2, wp2 = h2 // 2, w2s // 2                                 # pool2 out   5,  5
    # conv3 (5x5) must collapse the remaining spatial extent to 1x1 (CLASSIFIER_IN = 120).
    assert (hp2, wp2) == (k, k), "fused kernel specialises to 32x32 single-channel inputs"
    assert w4.shape[0] == c3, "classifier_in must equal 120 for 32x32 single-channel inputs"

    T1 = _conv_row_toeplitz(w1, w_in=W,   w_out=w1s)             # [5,  32, 168]
    T2 = _conv_row_toeplitz(w2, w_in=wp1, w_out=w2s)             # [5,  84, 160]
    PR1 = _pool_right(w1s, wp1, c1)                              # [168, 84]
    PR2 = _pool_right(w2s, wp2, c2)                              # [160, 80]

    # Fold the horizontal half of each AvgPool into the NEXT layer's right matrix ...
    T2f = np.einsum("ab,dbc->dac", PR1, T2)                      # [5, 168, 160]
    W3r = np.zeros((hp2, wp2 * c2, c3), np.float32)              # conv3 (1x1 spatial) as FC
    for i in range(hp2):
        for j in range(wp2):
            W3r[i, j * c2:(j + 1) * c2, :] = w3[:, :, i, j].T    # [ic, oc] at rows j*16..
    W3f = np.einsum("ab,ibc->iac", PR2, W3r)                     # [5, 160, 120]

    # ... and the vertical half (plus the conv row shift and the batch stacking) into
    # block-diagonal left matrices, so every layer is an aligned MXU matmul.
    S1 = _shift_select(B, h1, H, k)                              # [5, B*28, B*32]
    S2 = _shift_pool_select(B, h2, h1, k)                        # [5, B*10, B*28]
    G3 = _shift_pool_select(B, 1, h2, k)                         # [5, B,    B*10]

    # All five bias vectors packed into one small operand (row i = layer i's bias broadcast
    # over that layer's lane layout, zero-padded on the right).
    nb = max(w1s * c1, w2s * c2, c3, b4.shape[0], b5.shape[0])   # 168
    bias = np.zeros((5, nb), np.float32)
    bias[0, :w1s * c1] = np.tile(b1, w1s)                        # lane wo*6  + oc
    bias[1, :w2s * c2] = np.tile(b2, w2s)                        # lane wo*16 + oc
    bias[2, :c3] = b3
    bias[3, :b4.shape[0]] = b4
    bias[4, :b5.shape[0]] = b5

    ops = dict(s1=S1, t1=T1, s2=S2, t2=T2f, g3=G3, w3=W3f, bias=bias, w4=w4, w5=w5)
    return {kk: jnp.asarray(v, jnp.float32) for kk, v in ops.items()}


# ------------------------------------ fused kernel --------------------------------------- #

def _lenet5_kernel(x_ref, s1_ref, t1_ref, s2_ref, t2_ref, g3_ref, w3_ref,
                   b_ref, w4_ref, w5_ref, logits_ref):
    f32 = jnp.float32

    def dot(a, b):
        return jnp.dot(a, b, preferred_element_type=f32)

    def stage(act, s_ref, t_ref, bias):
        # pre = sum_di (S[di] @ act) @ T[di] + bias ; ReLU.
        # S folds {batch block-diag, conv row shift, vertical avg-pool}; T folds
        # {horizontal avg-pool, conv width-Toeplitz}.  Everything runs on the MXU, with no
        # sublane-unaligned pl.ds row slices and no VMEM scratch round trips.
        acc = dot(dot(s_ref[0], act), t_ref[0])
        for di in range(1, s_ref.shape[0]):
            acc = acc + dot(dot(s_ref[di], act), t_ref[di])
        return jnp.maximum(acc + bias, 0.0)

    b = b_ref[...]                                                       # [5, 168]
    x = x_ref[...]                                                       # [B*32, 32]
    c1 = stage(x,  s1_ref, t1_ref, b[0:1, :t1_ref.shape[2]])             # conv1+ReLU       [B*28, 168]
    c2 = stage(c1, s2_ref, t2_ref, b[1:2, :t2_ref.shape[2]])             # pool1+conv2+ReLU [B*10, 160]
    h3 = stage(c2, g3_ref, w3_ref, b[2:3, :w3_ref.shape[2]])             # pool2+conv3+ReLU [B,   120]
    # classifier: fc1 + ReLU (Dropout(0.5) is identity at inference), fc2 -> logits.
    h4 = jnp.maximum(dot(h3, w4_ref[...]) + b[3:4, :w4_ref.shape[1]], 0.0)   # [B, 84]
    logits_ref[...] = dot(h4, w5_ref[...]) + b[4:5, :w5_ref.shape[1]]        # [B, 2]


# ------------------------------------- host wrapper -------------------------------------- #

def make_lenet5_forward(params, H=32, W=32, batch_tile=8):
    """Returns a jitted forward(x[N,1,H,W]) -> (logits[N,2], probs[N,2])."""
    B = batch_tile
    assert (B * H) % 8 == 0 and B % 8 == 0, "batch_tile must be a multiple of 8 (sublane tile)"
    ops = prepare_operands(params, H, W, B)
    weight_keys = ("s1", "t1", "s2", "t2", "g3", "w3", "bias", "w4", "w5")
    weights = tuple(ops[k] for k in weight_keys)

    def _const_spec(w):
        zero = (0,) * w.ndim
        return pl.BlockSpec(w.shape, lambda n, _z=zero: _z)

    @jax.jit
    def forward(x_nchw):
        N = x_nchw.shape[0]
        x = x_nchw.reshape(N, H, W).astype(jnp.float32)          # C=1 squeezed away
        n_pad = (-N) % B                                         # pad batch to a tile multiple
        if n_pad:
            x = jnp.concatenate([x, jnp.zeros((n_pad, H, W), jnp.float32)], axis=0)
        Np = N + n_pad
        x_rows = x.reshape(Np * H, W)                            # B images stacked on sublanes
        logits = pl.pallas_call(
            _lenet5_kernel,
            out_shape=jax.ShapeDtypeStruct((Np, 2), jnp.float32),
            grid=(Np // B,),                                     # one image-tile per grid step
            in_specs=[pl.BlockSpec((B * H, W), lambda n: (n, 0))]
                     + [_const_spec(w) for w in weights],
            out_specs=pl.BlockSpec((B, 2), lambda n: (n, 0)),
            compiler_params=pltpu.CompilerParams(
                dimension_semantics=("parallel",)),              # 2-TC sharding on v7x
        )(x_rows, *weights)
        logits = logits[:N]
        probs = jax.nn.softmax(logits, axis=-1)                  # exact softmax in the wrapper
        return logits, probs

    return forward


# -------------------------------- reference & parameters --------------------------------- #

def lenet5_reference(x, params):
    """Pure-JAX (HIGHEST precision) reference of the PyTorch module's forward."""
    hp = jax.lax.Precision.HIGHEST

    def conv(z, w, b):
        y = jax.lax.conv_general_dilated(
            z, w, window_strides=(1, 1), padding="VALID",
            dimension_numbers=("NCHW", "OIHW", "NCHW"), precision=hp)
        return jax.nn.relu(y + b[None, :, None, None])

    def pool(z):
        n, c, h, w = z.shape
        return z.reshape(n, c, h // 2, 2, w // 2, 2).mean(axis=(3, 5))

    y = conv(x, params["conv1_w"], params["conv1_b"]); y = pool(y)
    y = conv(y, params["conv2_w"], params["conv2_b"]); y = pool(y)
    y = conv(y, params["conv3_w"], params["conv3_b"])
    f = y.reshape(x.shape[0], -1)
    h = jax.nn.relu(jnp.dot(f, params["fc1_w"], precision=hp) + params["fc1_b"])
    # Dropout(0.5): identity at inference time.
    logits = jnp.dot(h, params["fc2_w"], precision=hp) + params["fc2_b"]
    probs = jax.nn.softmax(logits, axis=-1)
    return logits, probs


def init_params(key, classifier_in):
    ks = jax.random.split(key, 10)
    s = 0.05
    return {
        "conv1_w": s * jax.random.normal(ks[0], (6, 1, 5, 5), jnp.float32),
        "conv1_b": s * jax.random.normal(ks[1], (6,), jnp.float32),
        "conv2_w": s * jax.random.normal(ks[2], (16, 6, 5, 5), jnp.float32),
        "conv2_b": s * jax.random.normal(ks[3], (16,), jnp.float32),
        "conv3_w": s * jax.random.normal(ks[4], (120, 16, 5, 5), jnp.float32),
        "conv3_b": s * jax.random.normal(ks[5], (120,), jnp.float32),
        "fc1_w": s * jax.random.normal(ks[6], (classifier_in, 84), jnp.float32),
        "fc1_b": s * jax.random.normal(ks[7], (84,), jnp.float32),
        "fc2_w": s * jax.random.normal(ks[8], (84, 2), jnp.float32),
        "fc2_b": s * jax.random.normal(ks[9], (2,), jnp.float32),
    }


if __name__ == "__main__":
    # 32x32 single-channel images:
    #   32 -> conv5 -> 28 -> pool -> 14 -> conv5 -> 10 -> pool -> 5 -> conv5 -> 1
    #   CLASSIFIER_IN = 120 * 1 * 1 = 120
    N, C, H, W = 16, 1, 32, 32          # batch_tile=8 -> grid=(2,), even for v7x's two TCs
    CLASSIFIER_IN = 120

    key = jax.random.PRNGKey(0)
    kx, kp = jax.random.split(key)
    x = jax.random.normal(kx, (N, C, H, W), jnp.float32)
    params = init_params(kp, CLASSIFIER_IN)

    forward = make_lenet5_forward(params, H=H, W=W, batch_tile=8)
    logits, probs = forward(x)
    logits, probs = jax.block_until_ready((logits, probs))

    # cross-check the fused kernel against a pure-JAX reference
    ref_logits, ref_probs = lenet5_reference(x, params)

    assert logits.shape == (N, 2) and probs.shape == (N, 2)
    assert bool(jnp.all(jnp.isfinite(logits))) and bool(jnp.all(jnp.isfinite(probs)))
    assert bool(jnp.allclose(jnp.sum(probs, axis=1), 1.0, atol=1e-4))
    assert bool(jnp.allclose(logits, ref_logits, atol=5e-3))
    assert bool(jnp.allclose(probs, ref_probs, atol=5e-3))
    print("KERNEL_OK")
</pallas_src>

<mosaic_0001>
module attributes {stable_mosaic.version = 11 : i64} {
  func.func @_lenet5_kernel(%arg0: i32, %arg1: memref<256x32xf32, #tpu.memory_space<vmem>>, %arg2: memref<5x224x256xf32, #tpu.memory_space<vmem>>, %arg3: memref<5x32x168xf32, #tpu.memory_space<vmem>>, %arg4: memref<5x80x224xf32, #tpu.memory_space<vmem>>, %arg5: memref<5x168x160xf32, #tpu.memory_space<vmem>>, %arg6: memref<5x8x80xf32, #tpu.memory_space<vmem>>, %arg7: memref<5x160x120xf32, #tpu.memory_space<vmem>>, %arg8: memref<5x168xf32, #tpu.memory_space<vmem>>, %arg9: memref<120x84xf32, #tpu.memory_space<vmem>>, %arg10: memref<84x2xf32, #tpu.memory_space<vmem>>, %arg11: memref<8x2xf32, #tpu.memory_space<vmem>>) attributes {dimension_semantics = [#tpu.dimension_semantics<parallel>], iteration_bounds = array<i64: 2>, scalar_prefetch = 0 : i64, scratch_operands = 0 : i64, tpu.core_type = #tpu.core_type<tc>, window_params = [{transform_indices = @transform_0, window_bounds = array<i64: 256, 32>}, {pipeline_mode = #tpu.pipeline_mode<synchronous>, transform_indices = @transform_1, window_bounds = array<i64: 5, 224, 256>}, {pipeline_mode = #tpu.pipeline_mode<synchronous>, transform_indices = @transform_2, window_bounds = array<i64: 5, 32, 168>}, {pipeline_mode = #tpu.pipeline_mode<synchronous>, transform_indices = @transform_3, window_bounds = array<i64: 5, 80, 224>}, {pipeline_mode = #tpu.pipeline_mode<synchronous>, transform_indices = @transform_4, window_bounds = array<i64: 5, 168, 160>}, {pipeline_mode = #tpu.pipeline_mode<synchronous>, transform_indices = @transform_5, window_bounds = array<i64: 5, 8, 80>}, {pipeline_mode = #tpu.pipeline_mode<synchronous>, transform_indices = @transform_6, window_bounds = array<i64: 5, 160, 120>}, {pipeline_mode = #tpu.pipeline_mode<synchronous>, transform_indices = @transform_7, window_bounds = array<i64: 5, 168>}, {pipeline_mode = #tpu.pipeline_mode<synchronous>, transform_indices = @transform_8, window_bounds = array<i64: 120, 84>}, {pipeline_mode = #tpu.pipeline_mode<synchronous>, transform_indices = @transform_9, window_bounds = array<i64: 84, 2>}, {transform_indices = @transform_10, window_bounds = array<i64: 8, 2>}]} {
    %c0 = arith.constant 0 : index
    %c0_0 = arith.constant 0 : index
    %0 = vector.load %arg8[%c0, %c0_0] : memref<5x168xf32, #tpu.memory_space<vmem>>, vector<5x168xf32>
    %c0_1 = arith.constant 0 : index
    %c0_2 = arith.constant 0 : index
    %1 = vector.load %arg1[%c0_1, %c0_2] : memref<256x32xf32, #tpu.memory_space<vmem>>, vector<256x32xf32>
    %2 = vector.extract_strided_slice %0 {offsets = [0, 0], sizes = [1, 168], strides = [1, 1]} : vector<5x168xf32> to vector<1x168xf32>
    %c0_3 = arith.constant 0 : index
    %c0_4 = arith.constant 0 : index
    %c0_5 = arith.constant 0 : index
    %3 = vector.load %arg2[%c0_3, %c0_4, %c0_5] : memref<5x224x256xf32, #tpu.memory_space<vmem>>, vector<1x224x256xf32>
    %4 = vector.shape_cast %3 : vector<1x224x256xf32> to vector<224x256xf32>
    %cst = arith.constant dense<0.000000e+00> : vector<224x32xf32>
    %5 = tpu.matmul %4, %1, %cst {dimension_numbers = #tpu.dot_dimension_numbers<[1], [0], [0], [1], [0, 0, 1, 1], [], []>} : vector<224x256xf32>, vector<256x32xf32>, vector<224x32xf32> -> vector<224x32xf32>
    %c0_6 = arith.constant 0 : index
    %c0_7 = arith.constant 0 : index
    %c0_8 = arith.constant 0 : index
    %6 = vector.load %arg3[%c0_6, %c0_7, %c0_8] : memref<5x32x168xf32, #tpu.memory_space<vmem>>, vector<1x32x168xf32>
    %7 = vector.shape_cast %6 : vector<1x32x168xf32> to vector<32x168xf32>
    %cst_9 = arith.constant dense<0.000000e+00> : vector<224x168xf32>
    %8 = tpu.matmul %5, %7, %cst_9 {dimension_numbers = #tpu.dot_dimension_numbers<[1], [0], [0], [1], [0, 0, 1, 1], [], []>} : vector<224x32xf32>, vector<32x168xf32>, vector<224x168xf32> -> vector<224x168xf32>
    %c1 = arith.constant 1 : index
    %c0_10 = arith.constant 0 : index
    %c0_11 = arith.constant 0 : index
    %9 = vector.load %arg2[%c1, %c0_10, %c0_11] : memref<5x224x256xf32, #tpu.memory_space<vmem>>, vector<1x224x256xf32>
    %10 = vector.shape_cast %9 : vector<1x224x256xf32> to vector<224x256xf32>
    %cst_12 = arith.constant dense<0.000000e+00> : vector<224x32xf32>
    %11 = tpu.matmul %10, %1, %cst_12 {dimension_numbers = #tpu.dot_dimension_numbers<[1], [0], [0], [1], [0, 0, 1, 1], [], []>} : vector<224x256xf32>, vector<256x32xf32>, vector<224x32xf32> -> vector<224x32xf32>
    %c1_13 = arith.constant 1 : index
    %c0_14 = arith.constant 0 : index
    %c0_15 = arith.constant 0 : index
    %12 = vector.load %arg3[%c1_13, %c0_14, %c0_15] : memref<5x32x168xf32, #tpu.memory_space<vmem>>, vector<1x32x168xf32>
    %13 = vector.shape_cast %12 : vector<1x32x168xf32> to vector<32x168xf32>
    %cst_16 = arith.constant dense<0.000000e+00> : vector<224x168xf32>
    %14 = tpu.matmul %11, %13, %cst_16 {dimension_numbers = #tpu.dot_dimension_numbers<[1], [0], [0], [1], [0, 0, 1, 1], [], []>} : vector<224x32xf32>, vector<32x168xf32>, vector<224x168xf32> -> vector<224x168xf32>
    %15 = arith.addf %8, %14 : vector<224x168xf32>
    %c2 = arith.constant 2 : index
    %c0_17 = arith.constant 0 : index
    %c0_18 = arith.constant 0 : index
    %16 = vector.load %arg2[%c2, %c0_17, %c0_18] : memref<5x224x256xf32, #tpu.memory_space<vmem>>, vector<1x224x256xf32>
    %17 = vector.shape_cast %16 : vector<1x224x256xf32> to vector<224x256xf32>
    %cst_19 = arith.constant dense<0.000000e+00> : vector<224x32xf32>
    %18 = tpu.matmul %17, %1, %cst_19 {dimension_numbers = #tpu.dot_dimension_numbers<[1], [0], [0], [1], [0, 0, 1, 1], [], []>} : vector<224x256xf32>, vector<256x32xf32>, vector<224x32xf32> -> vector<224x32xf32>
    %c2_20 = arith.constant 2 : index
    %c0_21 = arith.constant 0 : index
    %c0_22 = arith.constant 0 : index
    %19 = vector.load %arg3[%c2_20, %c0_21, %c0_22] : memref<5x32x168xf32, #tpu.memory_space<vmem>>, vector<1x32x168xf32>
    %20 = vector.shape_cast %19 : vector<1x32x168xf32> to vector<32x168xf32>
    %cst_23 = arith.constant dense<0.000000e+00> : vector<224x168xf32>
    %21 = tpu.matmul %18, %20, %cst_23 {dimension_numbers = #tpu.dot_dimension_numbers<[1], [0], [0], [1], [0, 0, 1, 1], [], []>} : vector<224x32xf32>, vector<32x168xf32>, vector<224x168xf32> -> vector<224x168xf32>
    %22 = arith.addf %15, %21 : vector<224x168xf32>
    %c3 = arith.constant 3 : index
    %c0_24 = arith.constant 0 : index
    %c0_25 = arith.constant 0 : index
    %23 = vector.load %arg2[%c3, %c0_24, %c0_25] : memref<5x224x256xf32, #tpu.memory_space<vmem>>, vector<1x224x256xf32>
    %24 = vector.shape_cast %23 : vector<1x224x256xf32> to vector<224x256xf32>
    %cst_26 = arith.constant dense<0.000000e+00> : vector<224x32xf32>
    %25 = tpu.matmul %24, %1, %cst_26 {dimension_numbers = #tpu.dot_dimension_numbers<[1], [0], [0], [1], [0, 0, 1, 1], [], []>} : vector<224x256xf32>, vector<256x32xf32>, vector<224x32xf32> -> vector<224x32xf32>
    %c3_27 = arith.constant 3 : index
    %c0_28 = arith.constant 0 : index
    %c0_29 = arith.constant 0 : index
    %26 = vector.load %arg3[%c3_27, %c0_28, %c0_29] : memref<5x32x168xf32, #tpu.memory_space<vmem>>, vector<1x32x168xf32>
    %27 = vector.shape_cast %26 : vector<1x32x168xf32> to vector<32x168xf32>
    %cst_30 = arith.constant dense<0.000000e+00> : vector<224x168xf32>
    %28 = tpu.matmul %25, %27, %cst_30 {dimension_numbers = #tpu.dot_dimension_numbers<[1], [0], [0], [1], [0, 0, 1, 1], [], []>} : vector<224x32xf32>, vector<32x168xf32>, vector<224x168xf32> -> vector<224x168xf32>
    %29 = arith.addf %22, %28 : vector<224x168xf32>
    %c4 = arith.constant 4 : index
    %c0_31 = arith.constant 0 : index
    %c0_32 = arith.constant 0 : index
    %30 = vector.load %arg2[%c4, %c0_31, %c0_32] : memref<5x224x256xf32, #tpu.memory_space<vmem>>, vector<1x224x256xf32>
    %31 = vector.shape_cast %30 : vector<1x224x256xf32> to vector<224x256xf32>
    %cst_33 = arith.constant dense<0.000000e+00> : vector<224x32xf32>
    %32 = tpu.matmul %31, %1, %cst_33 {dimension_numbers = #tpu.dot_dimension_numbers<[1], [0], [0], [1], [0, 0, 1, 1], [], []>} : vector<224x256xf32>, vector<256x32xf32>, vector<224x32xf32> -> vector<224x32xf32>
    %c4_34 = arith.constant 4 : index
    %c0_35 = arith.constant 0 : index
    %c0_36 = arith.constant 0 : index
    %33 = vector.load %arg3[%c4_34, %c0_35, %c0_36] : memref<5x32x168xf32, #tpu.memory_space<vmem>>, vector<1x32x168xf32>
    %34 = vector.shape_cast %33 : vector<1x32x168xf32> to vector<32x168xf32>
    %cst_37 = arith.constant dense<0.000000e+00> : vector<224x168xf32>
    %35 = tpu.matmul %32, %34, %cst_37 {dimension_numbers = #tpu.dot_dimension_numbers<[1], [0], [0], [1], [0, 0, 1, 1], [], []>} : vector<224x32xf32>, vector<32x168xf32>, vector<224x168xf32> -> vector<224x168xf32>
    %36 = arith.addf %29, %35 : vector<224x168xf32>
    %37 = vector.broadcast %2 : vector<1x168xf32> to vector<224x168xf32>
    %38 = arith.addf %36, %37 : vector<224x168xf32>
    %cst_38 = arith.constant 0.000000e+00 : f32
    %39 = vector.broadcast %cst_38 : f32 to vector<224x168xf32>
    %40 = arith.maximumf %38, %39 : vector<224x168xf32>
    %41 = vector.extract_strided_slice %0 {offsets = [1, 0], sizes = [1, 160], strides = [1, 1]} : vector<5x168xf32> to vector<1x160xf32>
    %c0_39 = arith.constant 0 : index
    %c0_40 = arith.constant 0 : index
    %c0_41 = arith.constant 0 : index
    %42 = vector.load %arg4[%c0_39, %c0_40, %c0_41] : memref<5x80x224xf32, #tpu.memory_space<vmem>>, vector<1x80x224xf32>
    %43 = vector.shape_cast %42 : vector<1x80x224xf32> to vector<80x224xf32>
    %cst_42 = arith.constant dense<0.000000e+00> : vector<80x168xf32>
    %44 = tpu.matmul %43, %40, %cst_42 {dimension_numbers = #tpu.dot_dimension_numbers<[1], [0], [0], [1], [0, 0, 1, 1], [], []>} : vector<80x224xf32>, vector<224x168xf32>, vector<80x168xf32> -> vector<80x168xf32>
    %c0_43 = arith.constant 0 : index
    %c0_44 = arith.constant 0 : index
    %c0_45 = arith.constant 0 : index
    %45 = vector.load %arg5[%c0_43, %c0_44, %c0_45] : memref<5x168x160xf32, #tpu.memory_space<vmem>>, vector<1x168x160xf32>
    %46 = vector.shape_cast %45 : vector<1x168x160xf32> to vector<168x160xf32>
    %cst_46 = arith.constant dense<0.000000e+00> : vector<80x160xf32>
    %47 = tpu.matmul %44, %46, %cst_46 {dimension_numbers = #tpu.dot_dimension_numbers<[1], [0], [0], [1], [0, 0, 1, 1], [], []>} : vector<80x168xf32>, vector<168x160xf32>, vector<80x160xf32> -> vector<80x160xf32>
    %c1_47 = arith.constant 1 : index
    %c0_48 = arith.constant 0 : index
    %c0_49 = arith.constant 0 : index
    %48 = vector.load %arg4[%c1_47, %c0_48, %c0_49] : memref<5x80x224xf32, #tpu.memory_space<vmem>>, vector<1x80x224xf32>
    %49 = vector.shape_cast %48 : vector<1x80x224xf32> to vector<80x224xf32>
    %cst_50 = arith.constant dense<0.000000e+00> : vector<80x168xf32>
    %50 = tpu.matmul %49, %40, %cst_50 {dimension_numbers = #tpu.dot_dimension_numbers<[1], [0], [0], [1], [0, 0, 1, 1], [], []>} : vector<80x224xf32>, vector<224x168xf32>, vector<80x168xf32> -> vector<80x168xf32>
    %c1_51 = arith.constant 1 : index
    %c0_52 = arith.constant 0 : index
    %c0_53 = arith.constant 0 : index
    %51 = vector.load %arg5[%c1_51, %c0_52, %c0_53] : memref<5x168x160xf32, #tpu.memory_space<vmem>>, vector<1x168x160xf32>
    %52 = vector.shape_cast %51 : vector<1x168x160xf32> to vector<168x160xf32>
    %cst_54 = arith.constant dense<0.000000e+00> : vector<80x160xf32>
    %53 = tpu.matmul %50, %52, %cst_54 {dimension_numbers = #tpu.dot_dimension_numbers<[1], [0], [0], [1], [0, 0, 1, 1], [], []>} : vector<80x168xf32>, vector<168x160xf32>, vector<80x160xf32> -> vector<80x160xf32>
    %54 = arith.addf %47, %53 : vector<80x160xf32>
    %c2_55 = arith.constant 2 : index
    %c0_56 = arith.constant 0 : index
    %c0_57 = arith.constant 0 : index
    %55 = vector.load %arg4[%c2_55, %c0_56, %c0_57] : memref<5x80x224xf32, #tpu.memory_space<vmem>>, vector<1x80x224xf32>
    %56 = vector.shape_cast %55 : vector<1x80x224xf32> to vector<80x224xf32>
    %cst_58 = arith.constant dense<0.000000e+00> : vector<80x168xf32>
    %57 = tpu.matmul %56, %40, %cst_58 {dimension_numbers = #tpu.dot_dimension_numbers<[1], [0], [0], [1], [0, 0, 1, 1], [], []>} : vector<80x224xf32>, vector<224x168xf32>, vector<80x168xf32> -> vector<80x168xf32>
    %c2_59 = arith.constant 2 : index
    %c0_60 = arith.constant 0 : index
    %c0_61 = arith.constant 0 : index
    %58 = vector.load %arg5[%c2_59, %c0_60, %c0_61] : memref<5x168x160xf32, #tpu.memory_space<vmem>>, vector<1x168x160xf32>
    %59 = vector.shape_cast %58 : vector<1x168x160xf32> to vector<168x160xf32>
    %cst_62 = arith.constant dense<0.000000e+00> : vector<80x160xf32>
    %60 = tpu.matmul %57, %59, %cst_62 {dimension_numbers = #tpu.dot_dimension_numbers<[1], [0], [0], [1], [0, 0, 1, 1], [], []>} : vector<80x168xf32>, vector<168x160xf32>, vector<80x160xf32> -> vector<80x160xf32>
    %61 = arith.addf %54, %60 : vector<80x160xf32>
    %c3_63 = arith.constant 3 : index
    %c0_64 = arith.constant 0 : index
    %c0_65 = arith.constant 0 : index
    %62 = vector.load %arg4[%c3_63, %c0_64, %c0_65] : memref<5x80x224xf32, #tpu.memory_space<vmem>>, vector<1x80x224xf32>
    %63 = vector.shape_cast %62 : vector<1x80x224xf32> to vector<80x224xf32>
    %cst_66 = arith.constant dense<0.000000e+00> : vector<80x168xf32>
    %64 = tpu.matmul %63, %40, %cst_66 {dimension_numbers = #tpu.dot_dimension_numbers<[1], [0], [0], [1], [0, 0, 1, 1], [], []>} : vector<80x224xf32>, vector<224x168xf32>, vector<80x168xf32> -> vector<80x168xf32>
    %c3_67 = arith.constant 3 : index
    %c0_68 = arith.constant 0 : index
    %c0_69 = arith.constant 0 : index
    %65 = vector.load %arg5[%c3_67, %c0_68, %c0_69] : memref<5x168x160xf32, #tpu.memory_space<vmem>>, vector<1x168x160xf32>
    %66 = vector.shape_cast %65 : vector<1x168x160xf32> to vector<168x160xf32>
    %cst_70 = arith.constant dense<0.000000e+00> : vector<80x160xf32>
    %67 = tpu.matmul %64, %66, %cst_70 {dimension_numbers = #tpu.dot_dimension_numbers<[1], [0], [0], [1], [0, 0, 1, 1], [], []>} : vector<80x168xf32>, vector<168x160xf32>, vector<80x160xf32> -> vector<80x160xf32>
    %68 = arith.addf %61, %67 : vector<80x160xf32>
    %c4_71 = arith.constant 4 : index
    %c0_72 = arith.constant 0 : index
    %c0_73 = arith.constant 0 : index
    %69 = vector.load %arg4[%c4_71, %c0_72, %c0_73] : memref<5x80x224xf32, #tpu.memory_space<vmem>>, vector<1x80x224xf32>
    %70 = vector.shape_cast %69 : vector<1x80x224xf32> to vector<80x224xf32>
    %cst_74 = arith.constant dense<0.000000e+00> : vector<80x168xf32>
    %71 = tpu.matmul %70, %40, %cst_74 {dimension_numbers = #tpu.dot_dimension_numbers<[1], [0], [0], [1], [0, 0, 1, 1], [], []>} : vector<80x224xf32>, vector<224x168xf32>, vector<80x168xf32> -> vector<80x168xf32>
    %c4_75 = arith.constant 4 : index
    %c0_76 = arith.constant 0 : index
    %c0_77 = arith.constant 0 : index
    %72 = vector.load %arg5[%c4_75, %c0_76, %c0_77] : memref<5x168x160xf32, #tpu.memory_space<vmem>>, vector<1x168x160xf32>
    %73 = vector.shape_cast %72 : vector<1x168x160xf32> to vector<168x160xf32>
    %cst_78 = arith.constant dense<0.000000e+00> : vector<80x160xf32>
    %74 = tpu.matmul %71, %73, %cst_78 {dimension_numbers = #tpu.dot_dimension_numbers<[1], [0], [0], [1], [0, 0, 1, 1], [], []>} : vector<80x168xf32>, vector<168x160xf32>, vector<80x160xf32> -> vector<80x160xf32>
    %75 = arith.addf %68, %74 : vector<80x160xf32>
    %76 = vector.broadcast %41 : vector<1x160xf32> to vector<80x160xf32>
    %77 = arith.addf %75, %76 : vector<80x160xf32>
    %cst_79 = arith.constant 0.000000e+00 : f32
    %78 = vector.broadcast %cst_79 : f32 to vector<80x160xf32>
    %79 = arith.maximumf %77, %78 : vector<80x160xf32>
    %80 = vector.extract_strided_slice %0 {offsets = [2, 0], sizes = [1, 120], strides = [1, 1]} : vector<5x168xf32> to vector<1x120xf32>
    %c0_80 = arith.constant 0 : index
    %c0_81 = arith.constant 0 : index
    %c0_82 = arith.constant 0 : index
    %81 = vector.load %arg6[%c0_80, %c0_81, %c0_82] : memref<5x8x80xf32, #tpu.memory_space<vmem>>, vector<1x8x80xf32>
    %82 = vector.shape_cast %81 : vector<1x8x80xf32> to vector<8x80xf32>
    %cst_83 = arith.constant dense<0.000000e+00> : vector<8x160xf32>
    %83 = tpu.matmul %82, %79, %cst_83 {dimension_numbers = #tpu.dot_dimension_numbers<[1], [0], [0], [1], [0, 0, 1, 1], [], []>} : vector<8x80xf32>, vector<80x160xf32>, vector<8x160xf32> -> vector<8x160xf32>
    %c0_84 = arith.constant 0 : index
    %c0_85 = arith.constant 0 : index
    %c0_86 = arith.constant 0 : index
    %84 = vector.load %arg7[%c0_84, %c0_85, %c0_86] : memref<5x160x120xf32, #tpu.memory_space<vmem>>, vector<1x160x120xf32>
    %85 = vector.shape_cast %84 : vector<1x160x120xf32> to vector<160x120xf32>
    %cst_87 = arith.constant dense<0.000000e+00> : vector<8x120xf32>
    %86 = tpu.matmul %83, %85, %cst_87 {dimension_numbers = #tpu.dot_dimension_numbers<[1], [0], [0], [1], [0, 0, 1, 1], [], []>} : vector<8x160xf32>, vector<160x120xf32>, vector<8x120xf32> -> vector<8x120xf32>
    %c1_88 = arith.constant 1 : index
    %c0_89 = arith.constant 0 : index
    %c0_90 = arith.constant 0 : index
    %87 = vector.load %arg6[%c1_88, %c0_89, %c0_90] : memref<5x8x80xf32, #tpu.memory_space<vmem>>, vector<1x8x80xf32>
    %88 = vector.shape_cast %87 : vector<1x8x80xf32> to vector<8x80xf32>
    %cst_91 = arith.constant dense<0.000000e+00> : vector<8x160xf32>
    %89 = tpu.matmul %88, %79, %cst_91 {dimension_numbers = #tpu.dot_dimension_numbers<[1], [0], [0], [1], [0, 0, 1, 1], [], []>} : vector<8x80xf32>, vector<80x160xf32>, vector<8x160xf32> -> vector<8x160xf32>
    %c1_92 = arith.constant 1 : index
    %c0_93 = arith.constant 0 : index
    %c0_94 = arith.constant 0 : index
    %90 = vector.load %arg7[%c1_92, %c0_93, %c0_94] : memref<5x160x120xf32, #tpu.memory_space<vmem>>, vector<1x160x120xf32>
    %91 = vector.shape_cast %90 : vector<1x160x120xf32> to vector<160x120xf32>
    %cst_95 = arith.constant dense<0.000000e+00> : vector<8x120xf32>
    %92 = tpu.matmul %89, %91, %cst_95 {dimension_numbers = #tpu.dot_dimension_numbers<[1], [0], [0], [1], [0, 0, 1, 1], [], []>} : vector<8x160xf32>, vector<160x120xf32>, vector<8x120xf32> -> vector<8x120xf32>
    %93 = arith.addf %86, %92 : vector<8x120xf32>
    %c2_96 = arith.constant 2 : index
    %c0_97 = arith.constant 0 : index
    %c0_98 = arith.constant 0 : index
    %94 = vector.load %arg6[%c2_96, %c0_97, %c0_98] : memref<5x8x80xf32, #tpu.memory_space<vmem>>, vector<1x8x80xf32>
    %95 = vector.shape_cast %94 : vector<1x8x80xf32> to vector<8x80xf32>
    %cst_99 = arith.constant dense<0.000000e+00> : vector<8x160xf32>
    %96 = tpu.matmul %95, %79, %cst_99 {dimension_numbers = #tpu.dot_dimension_numbers<[1], [0], [0], [1], [0, 0, 1, 1], [], []>} : vector<8x80xf32>, vector<80x160xf32>, vector<8x160xf32> -> vector<8x160xf32>
    %c2_100 = arith.constant 2 : index
    %c0_101 = arith.constant 0 : index
    %c0_102 = arith.constant 0 : index
    %97 = vector.load %arg7[%c2_100, %c0_101, %c0_102] : memref<5x160x120xf32, #tpu.memory_space<vmem>>, vector<1x160x120xf32>
    %98 = vector.shape_cast %97 : vector<1x160x120xf32> to vector<160x120xf32>
    %cst_103 = arith.constant dense<0.000000e+00> : vector<8x120xf32>
    %99 = tpu.matmul %96, %98, %cst_103 {dimension_numbers = #tpu.dot_dimension_numbers<[1], [0], [0], [1], [0, 0, 1, 1], [], []>} : vector<8x160xf32>, vector<160x120xf32>, vector<8x120xf32> -> vector<8x120xf32>
    %100 = arith.addf %93, %99 : vector<8x120xf32>
    %c3_104 = arith.constant 3 : index
    %c0_105 = arith.constant 0 : index
    %c0_106 = arith.constant 0 : index
    %101 = vector.load %arg6[%c3_104, %c0_105, %c0_106] : memref<5x8x80xf32, #tpu.memory_space<vmem>>, vector<1x8x80xf32>
    %102 = vector.shape_cast %101 : vector<1x8x80xf32> to vector<8x80xf32>
    %cst_107 = arith.constant dense<0.000000e+00> : vector<8x160xf32>
    %103 = tpu.matmul %102, %79, %cst_107 {dimension_numbers = #tpu.dot_dimension_numbers<[1], [0], [0], [1], [0, 0, 1, 1], [], []>} : vector<8x80xf32>, vector<80x160xf32>, vector<8x160xf32> -> vector<8x160xf32>
    %c3_108 = arith.constant 3 : index
    %c0_109 = arith.constant 0 : index
    %c0_110 = arith.constant 0 : index
    %104 = vector.load %arg7[%c3_108, %c0_109, %c0_110] : memref<5x160x120xf32, #tpu.memory_space<vmem>>, vector<1x160x120xf32>
    %105 = vector.shape_cast %104 : vector<1x160x120xf32> to vector<160x120xf32>
    %cst_111 = arith.constant dense<0.000000e+00> : vector<8x120xf32>
    %106 = tpu.matmul %103, %105, %cst_111 {dimension_numbers = #tpu.dot_dimension_numbers<[1], [0], [0], [1], [0, 0, 1, 1], [], []>} : vector<8x160xf32>, vector<160x120xf32>, vector<8x120xf32> -> vector<8x120xf32>
    %107 = arith.addf %100, %106 : vector<8x120xf32>
    %c4_112 = arith.constant 4 : index
    %c0_113 = arith.constant 0 : index
    %c0_114 = arith.constant 0 : index
    %108 = vector.load %arg6[%c4_112, %c0_113, %c0_114] : memref<5x8x80xf32, #tpu.memory_space<vmem>>, vector<1x8x80xf32>
    %109 = vector.shape_cast %108 : vector<1x8x80xf32> to vector<8x80xf32>
    %cst_115 = arith.constant dense<0.000000e+00> : vector<8x160xf32>
    %110 = tpu.matmul %109, %79, %cst_115 {dimension_numbers = #tpu.dot_dimension_numbers<[1], [0], [0], [1], [0, 0, 1, 1], [], []>} : vector<8x80xf32>, vector<80x160xf32>, vector<8x160xf32> -> vector<8x160xf32>
    %c4_116 = arith.constant 4 : index
    %c0_117 = arith.constant 0 : index
    %c0_118 = arith.constant 0 : index
    %111 = vector.load %arg7[%c4_116, %c0_117, %c0_118] : memref<5x160x120xf32, #tpu.memory_space<vmem>>, vector<1x160x120xf32>
    %112 = vector.shape_cast %111 : vector<1x160x120xf32> to vector<160x120xf32>
    %cst_119 = arith.constant dense<0.000000e+00> : vector<8x120xf32>
    %113 = tpu.matmul %110, %112, %cst_119 {dimension_numbers = #tpu.dot_dimension_numbers<[1], [0], [0], [1], [0, 0, 1, 1], [], []>} : vector<8x160xf32>, vector<160x120xf32>, vector<8x120xf32> -> vector<8x120xf32>
    %114 = arith.addf %107, %113 : vector<8x120xf32>
    %115 = vector.broadcast %80 : vector<1x120xf32> to vector<8x120xf32>
    %116 = arith.addf %114, %115 : vector<8x120xf32>
    %cst_120 = arith.constant 0.000000e+00 : f32
    %117 = vector.broadcast %cst_120 : f32 to vector<8x120xf32>
    %118 = arith.maximumf %116, %117 : vector<8x120xf32>
    %c0_121 = arith.constant 0 : index
    %c0_122 = arith.constant 0 : index
    %119 = vector.load %arg9[%c0_121, %c0_122] : memref<120x84xf32, #tpu.memory_space<vmem>>, vector<120x84xf32>
    %cst_123 = arith.constant dense<0.000000e+00> : vector<8x84xf32>
    %120 = tpu.matmul %118, %119, %cst_123 {dimension_numbers = #tpu.dot_dimension_numbers<[1], [0], [0], [1], [0, 0, 1, 1], [], []>} : vector<8x120xf32>, vector<120x84xf32>, vector<8x84xf32> -> vector<8x84xf32>
    %121 = vector.extract_strided_slice %0 {offsets = [3, 0], sizes = [1, 84], strides = [1, 1]} : vector<5x168xf32> to vector<1x84xf32>
    %122 = vector.broadcast %121 : vector<1x84xf32> to vector<8x84xf32>
    %123 = arith.addf %120, %122 : vector<8x84xf32>
    %cst_124 = arith.constant 0.000000e+00 : f32
    %124 = vector.broadcast %cst_124 : f32 to vector<8x84xf32>
    %125 = arith.maximumf %123, %124 : vector<8x84xf32>
    %c0_125 = arith.constant 0 : index
    %c0_126 = arith.constant 0 : index
    %126 = vector.load %arg10[%c0_125, %c0_126] : memref<84x2xf32, #tpu.memory_space<vmem>>, vector<84x2xf32>
    %cst_127 = arith.constant dense<0.000000e+00> : vector<8x2xf32>
    %127 = tpu.matmul %125, %126, %cst_127 {dimension_numbers = #tpu.dot_dimension_numbers<[1], [0], [0], [1], [0, 0, 1, 1], [], []>} : vector<8x84xf32>, vector<84x2xf32>, vector<8x2xf32> -> vector<8x2xf32>
    %128 = vector.extract_strided_slice %0 {offsets = [4, 0], sizes = [1, 2], strides = [1, 1]} : vector<5x168xf32> to vector<1x2xf32>
    %129 = vector.broadcast %128 : vector<1x2xf32> to vector<8x2xf32>
    %130 = arith.addf %127, %129 : vector<8x2xf32>
    %c0_128 = arith.constant 0 : index
    %c0_129 = arith.constant 0 : index
    %131 = vector.load %arg11[%c0_128, %c0_129] : memref<8x2xf32, #tpu.memory_space<vmem>>, vector<8x2xf32>
    tpu.vector_store %arg11[%c0_128, %c0_129], %130 {strides = array<i32>} : memref<8x2xf32, #tpu.memory_space<vmem>>, vector<8x2xf32>,
    return
  }
  func.func @transform_0(%arg0: i32) -> (i32, i32) {
    %c0_i32 = arith.constant 0 : i32
    %c0_i32_0 = arith.constant 0 : i32
    return %arg0, %c0_i32 : i32, i32
  }
  func.func @transform_1(%arg0: i32) -> (i32, i32, i32) {
    %c0_i32 = arith.constant 0 : i32
    %c0_i32_0 = arith.constant 0 : i32
    %c0_i32_1 = arith.constant 0 : i32
    %c0_i32_2 = arith.constant 0 : i32
    return %c0_i32, %c0_i32_0, %c0_i32_1 : i32, i32, i32
  }
  func.func @transform_2(%arg0: i32) -> (i32, i32, i32) {
    %c0_i32 = arith.constant 0 : i32
    %c0_i32_0 = arith.constant 0 : i32
    %c0_i32_1 = arith.constant 0 : i32
    %c0_i32_2 = arith.constant 0 : i32
    return %c0_i32, %c0_i32_0, %c0_i32_1 : i32, i32, i32
  }
  func.func @transform_3(%arg0: i32) -> (i32, i32, i32) {
    %c0_i32 = arith.constant 0 : i32
    %c0_i32_0 = arith.constant 0 : i32
    %c0_i32_1 = arith.constant 0 : i32
    %c0_i32_2 = arith.constant 0 : i32
    return %c0_i32, %c0_i32_0, %c0_i32_1 : i32, i32, i32
  }
  func.func @transform_4(%arg0: i32) -> (i32, i32, i32) {
    %c0_i32 = arith.constant 0 : i32
    %c0_i32_0 = arith.constant 0 : i32
    %c0_i32_1 = arith.constant 0 : i32
    %c0_i32_2 = arith.constant 0 : i32
    return %c0_i32, %c0_i32_0, %c0_i32_1 : i32, i32, i32
  }
  func.func @transform_5(%arg0: i32) -> (i32, i32, i32) {
    %c0_i32 = arith.constant 0 : i32
    %c0_i32_0 = arith.constant 0 : i32
    %c0_i32_1 = arith.constant 0 : i32
    %c0_i32_2 = arith.constant 0 : i32
    return %c0_i32, %c0_i32_0, %c0_i32_1 : i32, i32, i32
  }
  func.func @transform_6(%arg0: i32) -> (i32, i32, i32) {
    %c0_i32 = arith.constant 0 : i32
    %c0_i32_0 = arith.constant 0 : i32
    %c0_i32_1 = arith.constant 0 : i32
    %c0_i32_2 = arith.constant 0 : i32
    return %c0_i32, %c0_i32_0, %c0_i32_1 : i32, i32, i32
  }
  func.func @transform_7(%arg0: i32) -> (i32, i32) {
    %c0_i32 = arith.constant 0 : i32
    %c0_i32_0 = arith.constant 0 : i32
    %c0_i32_1 = arith.constant 0 : i32
    return %c0_i32, %c0_i32_0 : i32, i32
  }
  func.func @transform_8(%arg0: i32) -> (i32, i32) {
    %c0_i32 = arith.constant 0 : i32
    %c0_i32_0 = arith.constant 0 : i32
    %c0_i32_1 = arith.constant 0 : i32
    return %c0_i32, %c0_i32_0 : i32, i32
  }
  func.func @transform_9(%arg0: i32) -> (i32, i32) {
    %c0_i32 = arith.constant 0 : i32
    %c0_i32_0 = arith.constant 0 : i32
    %c0_i32_1 = arith.constant 0 : i32
    return %c0_i32, %c0_i32_0 : i32, i32
  }
  func.func @transform_10(%arg0: i32) -> (i32, i32) {
    %c0_i32 = arith.constant 0 : i32
    %c0_i32_0 = arith.constant 0 : i32
    return %arg0, %c0_i32 : i32, i32
  }
}

</mosaic_0001>

<llo_original>
// kernel: forward.1
$region0: #{forward.1}
  #allocation0 [shape = 'u32[]', space=smem, size = 0x4, offset = 0x4, fixed_abs, tag = 'smem constant byte address 0x4 - core index']
  #allocation1 [shape = 'u32[144,128]{1,0:T(1,128)}', space=vmem, size = 0x12000, scoped, tag = 'internal scratch']
  %s0 = inlined_call_operand.hbm [shape: f32[512,32], index: 0, kind: input, shape index: {}]
  %s1 = inlined_call_operand.hbm [shape: f32[5,224,256], index: 1, kind: input, shape index: {}]
  %s2 = inlined_call_operand.hbm [shape: f32[5,32,168], index: 2, kind: input, shape index: {}]
  %s3 = inlined_call_operand.hbm [shape: f32[5,80,224], index: 3, kind: input, shape index: {}]
  %s4 = inlined_call_operand.hbm [shape: f32[5,168,160], index: 4, kind: input, shape index: {}]
  %s5 = inlined_call_operand.hbm [shape: f32[5,8,80], index: 5, kind: input, shape index: {}]
  %s6 = inlined_call_operand.hbm [shape: f32[5,160,120], index: 6, kind: input, shape index: {}]
  %s7 = inlined_call_operand.hbm [shape: f32[5,168], index: 7, kind: input, shape index: {}]
  %s8 = inlined_call_operand.hbm [shape: f32[120,84], index: 8, kind: input, shape index: {}]
  %s9 = inlined_call_operand.hbm [shape: f32[84,2], index: 9, kind: input, shape index: {}]
  %s10 = inlined_call_operand.vmem [shape: f32[16,2], index: 10, kind: output, shape index: {}]
  %s11 = sld [smem:[#allocation0]]
  $region113: #{forward.1} parent=0
    _
  %s13 = ssub.s32 1, %s11
  %s14 = scalar_select 0, %s13, %s11
  $region1: #{forward.1} parent=0
    #allocation2 [shape = 'u8[262144]{0}', space=vmem, size = 0x40000, scoped, tag = 'input window, operand 0']
    #allocation3 [shape = 's32[2]{0}', space=sflag, size = 0x8, scoped, tag = 'scoped memory for forward.1']
    #allocation4 [shape = 'u8[1146880]{0}', space=vmem, size = 0x118000, scoped, tag = 'input window, operand 1, single buffered']
    #allocation5 [shape = 's32[1]{0}', space=sflag, size = 0x4, scoped, tag = 'scoped memory for forward.1']
    #allocation6 [shape = 'u8[163840]{0}', space=vmem, size = 0x28000, scoped, tag = 'input window, operand 2, single buffered']
    #allocation7 [shape = 'u8[409600]{0}', space=vmem, size = 0x64000, scoped, tag = 'input window, operand 3, single buffered']
    #allocation8 [shape = 's32[1]{0}', space=sflag, size = 0x4, scoped, tag = 'scoped memory for forward.1']
    #allocation9 [shape = 'u8[860160]{0}', space=vmem, size = 0xd2000, scoped, tag = 'input window, operand 4, single buffered']
    #allocation10 [shape = 'u8[20480]{0}', space=vmem, size = 0x5000, scoped, tag = 'input window, operand 5, single buffered']
    #allocation11 [shape = 's32[1]{0}', space=sflag, size = 0x4, scoped, tag = 'scoped memory for forward.1']
    #allocation12 [shape = 'u8[409600]{0}', space=vmem, size = 0x64000, scoped, tag = 'input window, operand 6, single buffered']
    #allocation13 [shape = 'u8[8192]{0}', space=vmem, size = 0x2000, scoped, tag = 'input window, operand 7, single buffered']
    #allocation14 [shape = 's32[1]{0}', space=sflag, size = 0x4, scoped, tag = 'scoped memory for forward.1']
    #allocation15 [shape = 'u8[61440]{0}', space=vmem, size = 0xf000, scoped, tag = 'input window, operand 8, single buffered']
    #allocation16 [shape = 'u8[45056]{0}', space=vmem, size = 0xb000, scoped, tag = 'input window, operand 9, single buffered']
    #allocation17 [shape = 's32[1]{0}', space=sflag, size = 0x4, scoped, tag = 'scoped memory for forward.1']
    %15 = vsyncpa [#allocation3], 0
    %s16 = scalar_lea.sflag [#allocation3], 1
    %17 = vsyncpa %s16, 0
    %18 = vsyncpa [#allocation5], 0
    %19 = vsyncpa [#allocation8], 0
    %20 = vsyncpa [#allocation11], 0
    %21 = vsyncpa [#allocation14], 0
    %22 = vsyncpa [#allocation17], 0
    loop: start=0, step=1, limit=4
    $region2: #{forward.1} parent=1 // loop_pre_header
      _
    $region3: #{forward.1} parent=1 // loop_header
      %s24 = sphi 0, %s28
      %p25 = scmp.ge.s32.totalorder %s24, 4
      %s34 = sphi 0, %s36
      %s37 = sphi 0, %s34
      %s38 = sphi 0, %s37
      %s54 = sphi 0, %s38
      %s58 = sphi 0, %s58
      %s60 = sphi 0, %s58
      %s61 = sphi 0, %s60
      %s75 = sphi 0, %s61
      %s79 = sphi 0, %s79
      %s81 = sphi 0, %s79
      %s82 = sphi 0, %s81
      %s96 = sphi 0, %s82
      %s100 = sphi 0, %s100
      %s102 = sphi 0, %s100
      %s103 = sphi 0, %s102
      %s117 = sphi 0, %s103
      %s121 = sphi 0, %s121
      %s123 = sphi 0, %s121
      %s124 = sphi 0, %s123
      %s138 = sphi 0, %s124
      %s142 = sphi 0, %s142
      %s144 = sphi 0, %s142
      %s145 = sphi 0, %s144
      %s159 = sphi 0, %s145
      %s163 = sphi 0, %s163
      %s165 = sphi 0, %s163
      %s166 = sphi 0, %s165
      %s180 = sphi 0, %s166
      %s184 = sphi 0, %s184
      %s186 = sphi 0, %s184
      %s187 = sphi 0, %s186
      %s201 = sphi 0, %s187
      %s205 = sphi 0, %s205
      %s207 = sphi 0, %s205
      %s208 = sphi 0, %s207
      %s222 = sphi 0, %s208
      %s226 = sphi 0, %s226
      %s228 = sphi 0, %s226
      %s229 = sphi 0, %s228
      %s243 = sphi 0, %s229
      %s249 = sphi 0, %s251
      %s252 = sphi 0, %s249
      %s253 = sphi 0, %s252
      %s269 = sphi 0, %s253
    $region4: #{forward.1} parent=1 // loop_header_branch
      %27 = sbr.rel (%p25) target = $region8
    $region5: #{forward.1} parent=1 // loop_body
      %s29 = ssub.s32 %s24, 1
      %s30 = ssub.s32 %s24, 2
      %s31 = sadd.s32 %s24, 1
      %s32 = ssub.s32 %s24, %s31
      %p33 = scmp.eq.s32.totalorder %s32, 0
      %s35 = sadd.s32 %s34, 1
      %s36 = scalar_select %p33, %s34, %s35
      %p39 = pneg %p33
      %p40 = scmp.eq.s32.totalorder %s24, 1
      %p41 = por %p39, %p40
      %p42 = scmp.ne.s32.totalorder %s34, %s37
      %p43 = scmp.eq.s32.totalorder %s24, 0
      %p44 = por %p42, %p43
      %p45 = scmp.ne.s32.totalorder %s34, %s37
      %p46 = scmp.eq.s32.totalorder %s29, 1
      %p47 = por %p45, %p46
      %p48 = scmp.ne.s32.totalorder %s37, %s38
      %p49 = scmp.eq.s32.totalorder %s29, 0
      %p50 = por %p48, %p49
      %p51 = scmp.ne.s32.totalorder %s37, %s38
      %p52 = scmp.eq.s32.totalorder %s30, 1
      %p53 = por %p51, %p52
      %p55 = scmp.ne.s32.totalorder %s38, %s54
      %p56 = scmp.eq.s32.totalorder %s30, 0
      %p57 = por %p55, %p56
      %s59 = sadd.s32 %s58, 1
      %p62 = scmp.eq.s32.totalorder %s24, 1
      %p63 = scmp.ne.s32.totalorder %s58, %s60
      %p64 = scmp.eq.s32.totalorder %s24, 0
      %p65 = por %p63, %p64
      %p66 = scmp.ne.s32.totalorder %s58, %s60
      %p67 = scmp.eq.s32.totalorder %s29, 1
      %p68 = por %p66, %p67
      %p69 = scmp.ne.s32.totalorder %s60, %s61
      %p70 = scmp.eq.s32.totalorder %s29, 0
      %p71 = por %p69, %p70
      %p72 = scmp.ne.s32.totalorder %s60, %s61
      %p73 = scmp.eq.s32.totalorder %s30, 1
      %p74 = por %p72, %p73
      %p76 = scmp.ne.s32.totalorder %s61, %s75
      %p77 = scmp.eq.s32.totalorder %s30, 0
      %p78 = por %p76, %p77
      %s80 = sadd.s32 %s79, 1
      %p83 = scmp.eq.s32.totalorder %s24, 1
      %p84 = scmp.ne.s32.totalorder %s79, %s81
      %p85 = scmp.eq.s32.totalorder %s24, 0
      %p86 = por %p84, %p85
      %p87 = scmp.ne.s32.totalorder %s79, %s81
      %p88 = scmp.eq.s32.totalorder %s29, 1
      %p89 = por %p87, %p88
      %p90 = scmp.ne.s32.totalorder %s81, %s82
      %p91 = scmp.eq.s32.totalorder %s29, 0
      %p92 = por %p90, %p91
      %p93 = scmp.ne.s32.totalorder %s81, %s82
      %p94 = scmp.eq.s32.totalorder %s30, 1
      %p95 = por %p93, %p94
      %p97 = scmp.ne.s32.totalorder %s82, %s96
      %p98 = scmp.eq.s32.totalorder %s30, 0
      %p99 = por %p97, %p98
      %s101 = sadd.s32 %s100, 1
      %p104 = scmp.eq.s32.totalorder %s24, 1
      %p105 = scmp.ne.s32.totalorder %s100, %s102
      %p106 = scmp.eq.s32.totalorder %s24, 0
      %p107 = por %p105, %p106
      %p108 = scmp.ne.s32.totalorder %s100, %s102
      %p109 = scmp.eq.s32.totalorder %s29, 1
      %p110 = por %p108, %p109
      %p111 = scmp.ne.s32.totalorder %s102, %s103
      %p112 = scmp.eq.s32.totalorder %s29, 0
      %p113 = por %p111, %p112
      %p114 = scmp.ne.s32.totalorder %s102, %s103
      %p115 = scmp.eq.s32.totalorder %s30, 1
      %p116 = por %p114, %p115
      %p118 = scmp.ne.s32.totalorder %s103, %s117
      %p119 = scmp.eq.s32.totalorder %s30, 0
      %p120 = por %p118, %p119
      %s122 = sadd.s32 %s121, 1
      %p125 = scmp.eq.s32.totalorder %s24, 1
      %p126 = scmp.ne.s32.totalorder %s121, %s123
      %p127 = scmp.eq.s32.totalorder %s24, 0
      %p128 = por %p126, %p127
      %p129 = scmp.ne.s32.totalorder %s121, %s123
      %p130 = scmp.eq.s32.totalorder %s29, 1
      %p131 = por %p129, %p130
      %p132 = scmp.ne.s32.totalorder %s123, %s124
      %p133 = scmp.eq.s32.totalorder %s29, 0
      %p134 = por %p132, %p133
      %p135 = scmp.ne.s32.totalorder %s123, %s124
      %p136 = scmp.eq.s32.totalorder %s30, 1
      %p137 = por %p135, %p136
      %p139 = scmp.ne.s32.totalorder %s124, %s138
      %p140 = scmp.eq.s32.totalorder %s30, 0
      %p141 = por %p139, %p140
      %s143 = sadd.s32 %s142, 1
      %p146 = scmp.eq.s32.totalorder %s24, 1
      %p147 = scmp.ne.s32.totalorder %s142, %s144
      %p148 = scmp.eq.s32.totalorder %s24, 0
      %p149 = por %p147, %p148
      %p150 = scmp.ne.s32.totalorder %s142, %s144
      %p151 = scmp.eq.s32.totalorder %s29, 1
      %p152 = por %p150, %p151
      %p153 = scmp.ne.s32.totalorder %s144, %s145
      %p154 = scmp.eq.s32.totalorder %s29, 0
      %p155 = por %p153, %p154
      %p156 = scmp.ne.s32.totalorder %s144, %s145
      %p157 = scmp.eq.s32.totalorder %s30, 1
      %p158 = por %p156, %p157
      %p160 = scmp.ne.s32.totalorder %s145, %s159
      %p161 = scmp.eq.s32.totalorder %s30, 0
      %p162 = por %p160, %p161
      %s164 = sadd.s32 %s163, 1
      %p167 = scmp.eq.s32.totalorder %s24, 1
      %p168 = scmp.ne.s32.totalorder %s163, %s165
      %p169 = scmp.eq.s32.totalorder %s24, 0
      %p170 = por %p168, %p169
      %p171 = scmp.ne.s32.totalorder %s163, %s165
      %p172 = scmp.eq.s32.totalorder %s29, 1
      %p173 = por %p171, %p172
      %p174 = scmp.ne.s32.totalorder %s165, %s166
      %p175 = scmp.eq.s32.totalorder %s29, 0
      %p176 = por %p174, %p175
      %p177 = scmp.ne.s32.totalorder %s165, %s166
      %p178 = scmp.eq.s32.totalorder %s30, 1
      %p179 = por %p177, %p178
      %p181 = scmp.ne.s32.totalorder %s166, %s180
      %p182 = scmp.eq.s32.totalorder %s30, 0
      %p183 = por %p181, %p182
      %s185 = sadd.s32 %s184, 1
      %p188 = scmp.eq.s32.totalorder %s24, 1
      %p189 = scmp.ne.s32.totalorder %s184, %s186
      %p190 = scmp.eq.s32.totalorder %s24, 0
      %p191 = por %p189, %p190
      %p192 = scmp.ne.s32.totalorder %s184, %s186
      %p193 = scmp.eq.s32.totalorder %s29, 1
      %p194 = por %p192, %p193
      %p195 = scmp.ne.s32.totalorder %s186, %s187
      %p196 = scmp.eq.s32.totalorder %s29, 0
      %p197 = por %p195, %p196
      %p198 = scmp.ne.s32.totalorder %s186, %s187
      %p199 = scmp.eq.s32.totalorder %s30, 1
      %p200 = por %p198, %p199
      %p202 = scmp.ne.s32.totalorder %s187, %s201
      %p203 = scmp.eq.s32.totalorder %s30, 0
      %p204 = por %p202, %p203
      %s206 = sadd.s32 %s205, 1
      %p209 = scmp.eq.s32.totalorder %s24, 1
      %p210 = scmp.ne.s32.totalorder %s205, %s207
      %p211 = scmp.eq.s32.totalorder %s24, 0
      %p212 = por %p210, %p211
      %p213 = scmp.ne.s32.totalorder %s205, %s207
      %p214 = scmp.eq.s32.totalorder %s29, 1
      %p215 = por %p213, %p214
      %p216 = scmp.ne.s32.totalorder %s207, %s208
      %p217 = scmp.eq.s32.totalorder %s29, 0
      %p218 = por %p216, %p217
      %p219 = scmp.ne.s32.totalorder %s207, %s208
      %p220 = scmp.eq.s32.totalorder %s30, 1
      %p221 = por %p219, %p220
      %p223 = scmp.ne.s32.totalorder %s208, %s222
      %p224 = scmp.eq.s32.totalorder %s30, 0
      %p225 = por %p223, %p224
      %s227 = sadd.s32 %s226, 1
      %p230 = scmp.eq.s32.totalorder %s24, 1
      %p231 = scmp.ne.s32.totalorder %s226, %s228
      %p232 = scmp.eq.s32.totalorder %s24, 0
      %p233 = por %p231, %p232
      %p234 = scmp.ne.s32.totalorder %s226, %s228
      %p235 = scmp.eq.s32.totalorder %s29, 1
      %p236 = por %p234, %p235
      %p237 = scmp.ne.s32.totalorder %s228, %s229
      %p238 = scmp.eq.s32.totalorder %s29, 0
      %p239 = por %p237, %p238
      %p240 = scmp.ne.s32.totalorder %s228, %s229
      %p241 = scmp.eq.s32.totalorder %s30, 1
      %p242 = por %p240, %p241
      %p244 = scmp.ne.s32.totalorder %s229, %s243
      %p245 = scmp.eq.s32.totalorder %s30, 0
      %p246 = por %p244, %p245
      %s247 = ssub.s32 %s24, %s31
      %p248 = scmp.eq.s32.totalorder %s247, 0
      %s250 = sadd.s32 %s249, 1
      %s251 = scalar_select %p248, %s249, %s250
      %p254 = pneg %p248
      %p255 = scmp.eq.s32.totalorder %s24, 1
      %p256 = por %p254, %p255
      %p257 = scmp.ne.s32.totalorder %s249, %s252
      %p258 = scmp.eq.s32.totalorder %s24, 0
      %p259 = por %p257, %p258
      %p260 = scmp.ne.s32.totalorder %s249, %s252
      %p261 = scmp.eq.s32.totalorder %s29, 1
      %p262 = por %p260, %p261
      %p263 = scmp.ne.s32.totalorder %s252, %s253
      %p264 = scmp.eq.s32.totalorder %s29, 0
      %p265 = por %p263, %p264
      %p266 = scmp.ne.s32.totalorder %s252, %s253
      %p267 = scmp.eq.s32.totalorder %s30, 1
      %p268 = por %p266, %p267
      %p270 = scmp.ne.s32.totalorder %s253, %s269
      %p271 = scmp.eq.s32.totalorder %s30, 0
      %p272 = por %p270, %p271
      %p273 = scmp.le.s32.totalorder 1, %s24
      %p274 = scmp.lt.s32.totalorder %s24, 3
      %p275 = pnand %p273, %p274
      %p276 = pneg %p275
      // Predicated region
      $region9: #{forward.1} parent=5 // pred_check
        _
      $region10: #{forward.1} parent=5 // pred_check_branch
        %278 = sbr.rel (%p275) target = $region12
      $region11: #{forward.1} parent=5 // pred_region
        %s279 = ssub.s32 %s24, 1
        // Predicated region
        $region13: #{forward.1} parent=11 // pred_check
          %p280 = pneg %p71
        $region14: #{forward.1} parent=11 // pred_check_branch
          %282 = sbr.rel (%p280) target = $region16
        $region15: #{forward.1} parent=11 // pred_region
          %s284 = ssub.s32 35840, 35840
          %285 = vsyncadd [#allocation5], %s284
          %s286 = sshll.u32 [#allocation4], 4
          %s287 = int_to_ptr.vmem [resolvable:$true] %s286
          %292 = dma.hbm_to_vmem [thread:$0]  %s1, 35840, %s287, [#allocation5], 256, 256, 16
        $region16: #{forward.1} parent=11 // pred_fallthru
          _
        // Predicated region
        $region17: #{forward.1} parent=11 // pred_check
          %p293 = pneg %p92
        $region18: #{forward.1} parent=11 // pred_check_branch
          %295 = sbr.rel (%p293) target = $region20
        $region19: #{forward.1} parent=11 // pred_region
          %s297 = ssub.s32 5120, 5120
          %298 = vsyncadd [#allocation5], %s297
          %s299 = sshll.u32 [#allocation6], 4
          %s300 = int_to_ptr.vmem [resolvable:$true] %s299
          %305 = dma.hbm_to_vmem [thread:$0]  %s2, 5120, %s300, [#allocation5], 256, 256, 16
        $region20: #{forward.1} parent=11 // pred_fallthru
          _
        // Predicated region
        $region21: #{forward.1} parent=11 // pred_check
          %p306 = pneg %p113
        $region22: #{forward.1} parent=11 // pred_check_branch
          %308 = sbr.rel (%p306) target = $region24
        $region23: #{forward.1} parent=11 // pred_region
          %s310 = ssub.s32 12800, 12800
          %311 = vsyncadd [#allocation8], %s310
          %s312 = sshll.u32 [#allocation7], 4
          %s313 = int_to_ptr.vmem [resolvable:$true] %s312
          %318 = dma.hbm_to_vmem [thread:$0]  %s3, 12800, %s313, [#allocation8], 256, 256, 16
        $region24: #{forward.1} parent=11 // pred_fallthru
          _
        // Predicated region
        $region25: #{forward.1} parent=11 // pred_check
          %p319 = pneg %p134
        $region26: #{forward.1} parent=11 // pred_check_branch
          %321 = sbr.rel (%p319) target = $region28
        $region27: #{forward.1} parent=11 // pred_region
          %s323 = ssub.s32 26880, 26880
          %324 = vsyncadd [#allocation8], %s323
          %s325 = sshll.u32 [#allocation9], 4
          %s326 = int_to_ptr.vmem [resolvable:$true] %s325
          %331 = dma.hbm_to_vmem [thread:$0]  %s4, 26880, %s326, [#allocation8], 256, 256, 16
        $region28: #{forward.1} parent=11 // pred_fallthru
          _
        // Predicated region
        $region29: #{forward.1} parent=11 // pred_check
          %p332 = pneg %p155
        $region30: #{forward.1} parent=11 // pred_check_branch
          %334 = sbr.rel (%p332) target = $region32
        $region31: #{forward.1} parent=11 // pred_region
          %s336 = ssub.s32 640, 640
          %337 = vsyncadd [#allocation11], %s336
          %s338 = sshll.u32 [#allocation10], 4
          %s339 = int_to_ptr.vmem [resolvable:$true] %s338
          %344 = dma.hbm_to_vmem [thread:$0]  %s5, 640, %s339, [#allocation11], 128, 128, 8
        $region32: #{forward.1} parent=11 // pred_fallthru
          _
        // Predicated region
        $region33: #{forward.1} parent=11 // pred_check
          %p345 = pneg %p176
        $region34: #{forward.1} parent=11 // pred_check_branch
          %347 = sbr.rel (%p345) target = $region36
        $region35: #{forward.1} parent=11 // pred_region
          %s349 = ssub.s32 12800, 12800
          %350 = vsyncadd [#allocation11], %s349
          %s351 = sshll.u32 [#allocation12], 4
          %s352 = int_to_ptr.vmem [resolvable:$true] %s351
          %357 = dma.hbm_to_vmem [thread:$0]  %s6, 12800, %s352, [#allocation11], 128, 128, 8
        $region36: #{forward.1} parent=11 // pred_fallthru
          _
        // Predicated region
        $region37: #{forward.1} parent=11 // pred_check
          %p358 = pneg %p197
        $region38: #{forward.1} parent=11 // pred_check_branch
          %360 = sbr.rel (%p358) target = $region40
        $region39: #{forward.1} parent=11 // pred_region
          %s362 = ssub.s32 256, 256
          %363 = vsyncadd [#allocation14], %s362
          %s365 = sshll.u32 [#allocation13], 4
          %s366 = int_to_ptr.vmem [resolvable:$true] %s365
          %368 = dma.hbm_to_vmem [thread:$0]  %s7, 256, %s366, [#allocation14]
        $region40: #{forward.1} parent=11 // pred_fallthru
          _
        // Predicated region
        $region41: #{forward.1} parent=11 // pred_check
          %p369 = pneg %p218
        $region42: #{forward.1} parent=11 // pred_check_branch
          %371 = sbr.rel (%p369) target = $region44
        $region43: #{forward.1} parent=11 // pred_region
          %s373 = ssub.s32 1920, 1920
          %374 = vsyncadd [#allocation14], %s373
          %s375 = sshll.u32 [#allocation15], 4
          %s376 = int_to_ptr.vmem [resolvable:$true] %s375
          %381 = dma.hbm_to_vmem [thread:$0]  %s8, 1920, %s376, [#allocation14], 128, 128, 8
        $region44: #{forward.1} parent=11 // pred_fallthru
          _
        // Predicated region
        $region45: #{forward.1} parent=11 // pred_check
          %p382 = pneg %p239
        $region46: #{forward.1} parent=11 // pred_check_branch
          %384 = sbr.rel (%p382) target = $region48
        $region47: #{forward.1} parent=11 // pred_region
          %s386 = ssub.s32 1408, 1408
          %387 = vsyncadd [#allocation17], %s386
          %s388 = sshll.u32 [#allocation16], 4
          %s389 = int_to_ptr.vmem [resolvable:$true] %s388
          %394 = dma.hbm_to_vmem [thread:$0]  %s9, 1408, %s389, [#allocation17], 128, 128, 8
        $region48: #{forward.1} parent=11 // pred_fallthru
          _
      $region12: #{forward.1} parent=5 // pred_fallthru
        _
      %p395 = scmp.lt.s32.totalorder %s24, 2
      // Predicated region
      $region49: #{forward.1} parent=5 // pred_check
        %p396 = pneg %p395
      $region50: #{forward.1} parent=5 // pred_check_branch
        %398 = sbr.rel (%p396) target = $region52
      $region51: #{forward.1} parent=5 // pred_region
        // Predicated region
        $region53: #{forward.1} parent=51 // pred_check
          %p399 = pneg %p44
        $region54: #{forward.1} parent=51 // pred_check_branch
          %401 = sbr.rel (%p399) target = $region56
        $region55: #{forward.1} parent=51 // pred_region
          %s402 = sand.u32 %s34, 1
          %s403 = scalar_lea.sflag [#allocation3], %s402
          %s404 = sand.u32 %s34, 1
          %s405 = smul.addr %s404, 256
          %s406 = scalar_lea.vmem [#allocation2], %s405
          %s407 = smul.u32 32, %s24
          %s409 = ssub.s32 4096, 4096
          %410 = vsyncadd %s403, %s409
          %s411 = smul.addr %s407, 128
          %s412 = scalar_lea.hbm %s0, %s411
          %s413 = sshll.u32 %s406, 4
          %s414 = int_to_ptr.vmem [resolvable:$true] %s413
          %419 = dma.hbm_to_vmem [thread:$0]  %s412, 4096, %s414, %s403, 128, 128, 8
        $region56: #{forward.1} parent=51 // pred_fallthru
          _
      $region52: #{forward.1} parent=5 // pred_fallthru
        _
      %p420 = scmp.le.s32.totalorder 1, %s24
      %p421 = scmp.lt.s32.totalorder %s24, 3
      %p422 = pnand %p420, %p421
      %p423 = pneg %p422
      // Predicated region
      $region57: #{forward.1} parent=5 // pred_check
        _
      $region58: #{forward.1} parent=5 // pred_check_branch
        %425 = sbr.rel (%p422) target = $region60
      $region59: #{forward.1} parent=5 // pred_region
        %s426 = ssub.s32 %s24, 1
        %s427 = sand.u32 %s37, 1
        %s428 = scalar_lea.sflag [#allocation3], %s427
        %s429 = sand.u32 %s37, 1
        %s430 = smul.addr %s429, 256
        %s431 = scalar_lea.vmem [#allocation2], %s430
        // Predicated region
        $region61: #{forward.1} parent=59 // pred_check
          %p432 = pneg %p50
        $region62: #{forward.1} parent=59 // pred_check_branch
          %434 = sbr.rel (%p432) target = $region64
        $region63: #{forward.1} parent=59 // pred_region
          %435 = dma.done %s428, 4096
        $region64: #{forward.1} parent=59 // pred_fallthru
          _
        // Predicated region
        $region65: #{forward.1} parent=59 // pred_check
          %p436 = pneg %p71
        $region66: #{forward.1} parent=59 // pred_check_branch
          %438 = sbr.rel (%p436) target = $region68
        $region67: #{forward.1} parent=59 // pred_region
          %439 = dma.done [#allocation5], 35840
        $region68: #{forward.1} parent=59 // pred_fallthru
          _
        // Predicated region
        $region69: #{forward.1} parent=59 // pred_check
          %p440 = pneg %p92
        $region70: #{forward.1} parent=59 // pred_check_branch
          %442 = sbr.rel (%p440) target = $region72
        $region71: #{forward.1} parent=59 // pred_region
          %443 = dma.done [#allocation5], 5120
        $region72: #{forward.1} parent=59 // pred_fallthru
          _
        // Predicated region
        $region73: #{forward.1} parent=59 // pred_check
          %p444 = pneg %p113
        $region74: #{forward.1} parent=59 // pred_check_branch
          %446 = sbr.rel (%p444) target = $region76
        $region75: #{forward.1} parent=59 // pred_region
          %447 = dma.done [#allocation8], 12800
        $region76: #{forward.1} parent=59 // pred_fallthru
          _
        // Predicated region
        $region77: #{forward.1} parent=59 // pred_check
          %p448 = pneg %p134
        $region78: #{forward.1} parent=59 // pred_check_branch
          %450 = sbr.rel (%p448) target = $region80
        $region79: #{forward.1} parent=59 // pred_region
          %451 = dma.done [#allocation8], 26880
        $region80: #{forward.1} parent=59 // pred_fallthru
          _
        // Predicated region
        $region81: #{forward.1} parent=59 // pred_check
          %p452 = pneg %p155
        $region82: #{forward.1} parent=59 // pred_check_branch
          %454 = sbr.rel (%p452) target = $region84
        $region83: #{forward.1} parent=59 // pred_region
          %455 = dma.done [#allocation11], 640
        $region84: #{forward.1} parent=59 // pred_fallthru
          _
        // Predicated region
        $region85: #{forward.1} parent=59 // pred_check
          %p456 = pneg %p176
        $region86: #{forward.1} parent=59 // pred_check_branch
          %458 = sbr.rel (%p456) target = $region88
        $region87: #{forward.1} parent=59 // pred_region
          %459 = dma.done [#allocation11], 12800
        $region88: #{forward.1} parent=59 // pred_fallthru
          _
        // Predicated region
        $region89: #{forward.1} parent=59 // pred_check
          %p460 = pneg %p197
        $region90: #{forward.1} parent=59 // pred_check_branch
          %462 = sbr.rel (%p460) target = $region92
        $region91: #{forward.1} parent=59 // pred_region
          %463 = dma.done [#allocation14], 256
        $region92: #{forward.1} parent=59 // pred_fallthru
          _
        // Predicated region
        $region93: #{forward.1} parent=59 // pred_check
          %p464 = pneg %p218
        $region94: #{forward.1} parent=59 // pred_check_branch
          %466 = sbr.rel (%p464) target = $region96
        $region95: #{forward.1} parent=59 // pred_region
          %467 = dma.done [#allocation14], 1920
        $region96: #{forward.1} parent=59 // pred_fallthru
          _
        // Predicated region
        $region97: #{forward.1} parent=59 // pred_check
          %p468 = pneg %p239
        $region98: #{forward.1} parent=59 // pred_check_branch
          %470 = sbr.rel (%p468) target = $region100
        $region99: #{forward.1} parent=59 // pred_region
          %471 = dma.done [#allocation17], 1408
        $region100: #{forward.1} parent=59 // pred_fallthru
          _
        %s472 = sand.u32 %s37, 1
        %s473 = scalar_lea.sflag [#allocation3], %s472
        %s474 = sand.u32 %s37, 1
        %s475 = smul.addr %s474, 256
        %s476 = scalar_lea.vmem [#allocation2], %s475
        %p477 = pneg %p50
        %p478 = pneg %p47
        %p479 = pneg %p71
        %p480 = pneg %p68
        %p481 = pneg %p92
        %p482 = pneg %p89
        %p483 = pneg %p113
        %p484 = pneg %p110
        %p485 = pneg %p134
        %p486 = pneg %p131
        %p487 = pneg %p155
        %p488 = pneg %p152
        %p489 = pneg %p176
        %p490 = pneg %p173
        %p491 = pneg %p197
        %p492 = pneg %p194
        %p493 = pneg %p218
        %p494 = pneg %p215
        %p495 = pneg %p239
        %p496 = pneg %p236
        %p497 = pneg %p265
        %p498 = pneg %p262
        %p499 = scmp.lt.s32.totalorder %s29, 1
        %s500 = scalar_select %p499, %s29, 1
        %s501 = smul.addr %s500, 8
        %s502 = scalar_lea.vmem %s10, %s501
        %s503 = smul.u32 32, %s29
        %p504 = scmp.lt.s32.totalorder %s29, 1
        %s505 = scalar_select %p504, %s29, 1
        %s506 = smul.addr %s505, 8
        %s507 = scalar_lea.vmem %s10, %s506
        %v508 = vld [vmem:[#allocation13] sm:$0x1f]
        %v509 = vld [vmem:[#allocation13 + $0x8] sm:$0x1f]
        %v510 = vld [vmem:[%s431] sm:$0xff]
        %v511 = vld [vmem:[%s431 + $0x8] sm:$0xff]
        %v512 = vld [vmem:[%s431 + $0x10] sm:$0xff]
        %v513 = vld [vmem:[%s431 + $0x18] sm:$0xff]
        %v514 = vld [vmem:[%s431 + $0x20] sm:$0xff]
        %v515 = vld [vmem:[%s431 + $0x28] sm:$0xff]
        %v516 = vld [vmem:[%s431 + $0x30] sm:$0xff]
        %v517 = vld [vmem:[%s431 + $0x38] sm:$0xff]
        %v518 = vld [vmem:[%s431 + $0x40] sm:$0xff]
        %v519 = vld [vmem:[%s431 + $0x48] sm:$0xff]
        %v520 = vld [vmem:[%s431 + $0x50] sm:$0xff]
        %v521 = vld [vmem:[%s431 + $0x58] sm:$0xff]
        %v522 = vld [vmem:[%s431 + $0x60] sm:$0xff]
        %v523 = vld [vmem:[%s431 + $0x68] sm:$0xff]
        %v524 = vld [vmem:[%s431 + $0x70] sm:$0xff]
        %v525 = vld [vmem:[%s431 + $0x78] sm:$0xff]
        %v526 = vld [vmem:[%s431 + $0x80] sm:$0xff]
        %v527 = vld [vmem:[%s431 + $0x88] sm:$0xff]
        %v528 = vld [vmem:[%s431 + $0x90] sm:$0xff]
        %v529 = vld [vmem:[%s431 + $0x98] sm:$0xff]
        %v530 = vld [vmem:[%s431 + $0xa0] sm:$0xff]
        %v531 = vld [vmem:[%s431 + $0xa8] sm:$0xff]
        %v532 = vld [vmem:[%s431 + $0xb0] sm:$0xff]
        %v533 = vld [vmem:[%s431 + $0xb8] sm:$0xff]
        %v534 = vld [vmem:[%s431 + $0xc0] sm:$0xff]
        %v535 = vld [vmem:[%s431 + $0xc8] sm:$0xff]
        %v536 = vld [vmem:[%s431 + $0xd0] sm:$0xff]
        %v537 = vld [vmem:[%s431 + $0xd8] sm:$0xff]
        %v538 = vld [vmem:[%s431 + $0xe0] sm:$0xff]
        %v539 = vld [vmem:[%s431 + $0xe8] sm:$0xff]
        %v540 = vld [vmem:[%s431 + $0xf0] sm:$0xff]
        %v541 = vld [vmem:[%s431 + $0xf8] sm:$0xff]
        %v542 = vld [vmem:[#allocation4] sm:$0xff]
        %v543 = vld [vmem:[#allocation4 + $0x8] sm:$0xff]
        %v544 = vld [vmem:[#allocation4 + $0x10] sm:$0xff]
        %v545 = vld [vmem:[#allocation4 + $0x18] sm:$0xff]
        %v546 = vld [vmem:[#allocation4 + $0x20] sm:$0xff]
        %v547 = vld [vmem:[#allocation4 + $0x28] sm:$0xff]
        %v548 = vld [vmem:[#allocation4 + $0x30] sm:$0xff]
        %v549 = vld [vmem:[#allocation4 + $0x38] sm:$0xff]
        %v550 = vld [vmem:[#allocation4 + $0x40] sm:$0xff]
        %v551 = vld [vmem:[#allocation4 + $0x48] sm:$0xff]
        %v552 = vld [vmem:[#allocation4 + $0x50] sm:$0xff]
        %v553 = vld [vmem:[#allocation4 + $0x58] sm:$0xff]
        %v554 = vld [vmem:[#allocation4 + $0x60] sm:$0xff]
        %v555 = vld [vmem:[#allocation4 + $0x68] sm:$0xff]
        %v556 = vld [vmem:[#allocation4 + $0x70] sm:$0xff]
        %v557 = vld [vmem:[#allocation4 + $0x78] sm:$0xff]
        %v558 = vld [vmem:[#allocation4 + $0x80] sm:$0xff]
        %v559 = vld [vmem:[#allocation4 + $0x88] sm:$0xff]
        %v560 = vld [vmem:[#allocation4 + $0x90] sm:$0xff]
        %v561 = vld [vmem:[#allocation4 + $0x98] sm:$0xff]
        %v562 = vld [vmem:[#allocation4 + $0xa0] sm:$0xff]
        %v563 = vld [vmem:[#allocation4 + $0xa8] sm:$0xff]
        %v564 = vld [vmem:[#allocation4 + $0xb0] sm:$0xff]
        %v565 = vld [vmem:[#allocation4 + $0xb8] sm:$0xff]
        %v566 = vld [vmem:[#allocation4 + $0xc0] sm:$0xff]
        %v567 = vld [vmem:[#allocation4 + $0xc8] sm:$0xff]
        %v568 = vld [vmem:[#allocation4 + $0xd0] sm:$0xff]
        %v569 = vld [vmem:[#allocation4 + $0xd8] sm:$0xff]
        %v570 = vld [vmem:[#allocation4 + $0xe0] sm:$0xff]
        %v571 = vld [vmem:[#allocation4 + $0xe8] sm:$0xff]
        %v572 = vld [vmem:[#allocation4 + $0xf0] sm:$0xff]
        %v573 = vld [vmem:[#allocation4 + $0xf8] sm:$0xff]
        %v574 = vld [vmem:[#allocation4 + $0x100] sm:$0xff]
        %v575 = vld [vmem:[#allocation4 + $0x108] sm:$0xff]
        %v576 = vld [vmem:[#allocation4 + $0x110] sm:$0xff]
        %v577 = vld [vmem:[#allocation4 + $0x118] sm:$0xff]
        %v578 = vld [vmem:[#allocation4 + $0x120] sm:$0xff]
        %v579 = vld [vmem:[#allocation4 + $0x128] sm:$0xff]
        %v580 = vld [vmem:[#allocation4 + $0x130] sm:$0xff]
        %v581 = vld [vmem:[#allocation4 + $0x138] sm:$0xff]
        %v582 = vld [vmem:[#allocation4 + $0x140] sm:$0xff]
        %v583 = vld [vmem:[#allocation4 + $0x148] sm:$0xff]
        %v584 = vld [vmem:[#allocation4 + $0x150] sm:$0xff]
        %v585 = vld [vmem:[#allocation4 + $0x158] sm:$0xff]
        %v586 = vld [vmem:[#allocation4 + $0x160] sm:$0xff]
        %v587 = vld [vmem:[#allocation4 + $0x168] sm:$0xff]
        %v588 = vld [vmem:[#allocation4 + $0x170] sm:$0xff]
        %v589 = vld [vmem:[#allocation4 + $0x178] sm:$0xff]
        %v590 = vld [vmem:[#allocation4 + $0x180] sm:$0xff]
        %v591 = vld [vmem:[#allocation4 + $0x188] sm:$0xff]
        %v592 = vld [vmem:[#allocation4 + $0x190] sm:$0xff]
        %v593 = vld [vmem:[#allocation4 + $0x198] sm:$0xff]
        %v594 = vld [vmem:[#allocation4 + $0x1a0] sm:$0xff]
        %v595 = vld [vmem:[#allocation4 + $0x1a8] sm:$0xff]
        %v596 = vld [vmem:[#allocation4 + $0x1b0] sm:$0xff]
        %v597 = vld [vmem:[#allocation4 + $0x1b8] sm:$0xff]
        %598 = vmatprep.subr.mxu0 0.0
        %599 = vmatpush1.msra.mxu0 %v510
        %600 = vmatprep.subr.mxu0 0.0
        %601 = vmatpush1.msra.mxu0 %v511
        %602 = vmatprep.subr.mxu0 0.0
        %603 = vmatpush1.msra.mxu0 %v512
        %604 = vmatprep.subr.mxu0 0.0
        %605 = vmatpush1.msra.mxu0 %v513
        %606 = vmatprep.subr.mxu0 0.0
        %607 = vmatpush1.msra.mxu0 %v514
        %608 = vmatprep.subr.mxu0 0.0
        %609 = vmatpush1.msra.mxu0 %v515
        %610 = vmatprep.subr.mxu0 0.0
        %611 = vmatpush1.msra.mxu0 %v516
        %612 = vmatprep.subr.mxu0 0.0
        %613 = vmatpush1.msra.mxu0 %v517
        %614 = vmatprep.subr.mxu0 0.0
        %615 = vmatpush1.msra.mxu0 %v518
        %616 = vmatprep.subr.mxu0 0.0
        %617 = vmatpush1.msra.mxu0 %v519
        %618 = vmatprep.subr.mxu0 0.0
        %619 = vmatpush1.msra.mxu0 %v520
        %620 = vmatprep.subr.mxu0 0.0
        %621 = vmatpush1.msra.mxu0 %v521
        %622 = vmatprep.subr.mxu0 0.0
        %623 = vmatpush1.msra.mxu0 %v522
        %624 = vmatprep.subr.mxu0 0.0
        %625 = vmatpush1.msra.mxu0 %v523
        %626 = vmatprep.subr.mxu0 0.0
        %627 = vmatpush1.msra.mxu0 %v524
        %628 = vmatprep.subr.mxu0 0.0
        %629 = vmatpush1.msra.mxu0 %v525
        %630 = vmatprep.subr.mxu0 0.0
        %631 = vmatpush1.msra.mxu0 %v526
        %632 = vmatprep.subr.mxu0 0.0
        %633 = vmatpush1.msra.mxu0 %v527
        %634 = vmatprep.subr.mxu0 0.0
        %635 = vmatpush1.msra.mxu0 %v528
        %636 = vmatprep.subr.mxu0 0.0
        %637 = vmatpush1.msra.mxu0 %v529
        %638 = vmatprep.subr.mxu0 0.0
        %639 = vmatpush1.msra.mxu0 %v530
        %640 = vmatprep.subr.mxu0 0.0
        %641 = vmatpush1.msra.mxu0 %v531
        %642 = vmatprep.subr.mxu0 0.0
        %643 = vmatpush1.msra.mxu0 %v532
        %644 = vmatprep.subr.mxu0 0.0
        %645 = vmatpush1.msra.mxu0 %v533
        %646 = vmatprep.subr.mxu0 0.0
        %647 = vmatpush1.msra.mxu0 %v534
        %648 = vmatprep.subr.mxu0 0.0
        %649 = vmatpush1.msra.mxu0 %v535
        %650 = vmatprep.subr.mxu0 0.0
        %651 = vmatpush1.msra.mxu0 %v536
        %652 = vmatprep.subr.mxu0 0.0
        %653 = vmatpush1.msra.mxu0 %v537
        %654 = vmatprep.subr.mxu0 0.0
        %655 = vmatpush1.msra.mxu0 %v538
        %656 = vmatprep.subr.mxu0 0.0
        %657 = vmatpush1.msra.mxu0 %v539
        %658 = vmatprep.subr.mxu0 0.0
        %659 = vmatpush1.msra.mxu0 %v540
        %660 = vmatprep.subr.mxu0 0.0
        %661 = vmatpush1.msra.mxu0 %v541
        %662 = vmatprep.mubr.f32.mxu0 %v543
        %663 = vmatmul.mubr.f32.gmra.mrb[0].mxu0 %v542
        %v664 = vpop.f32.mrb[0].mxu0
        %v665 = vadd.f32 0.0, %v664
        %v666 = vpop.f32.mrb[0].mxu0
        %667 = vmatprep.mubr.f32.mxu0 %v545
        %668 = vmatmul.mubr.f32.gmra.mrb[0].mxu0 %v544
        %v669 = vpop.f32.mrb[0].mxu0
        %v670 = vadd.f32 0.0, %v669
        %v671 = vpop.f32.mrb[0].mxu0
        %672 = vmatprep.mubr.f32.mxu0 %v547
        %673 = vmatmul.mubr.f32.gmra.mrb[0].mxu0 %v546
        %v674 = vpop.f32.mrb[0].mxu0
        %v675 = vadd.f32 0.0, %v674
        %v676 = vpop.f32.mrb[0].mxu0
        %677 = vmatprep.mubr.f32.mxu0 %v549
        %678 = vmatmul.mubr.f32.gmra.mrb[0].mxu0 %v548
        %v679 = vpop.f32.mrb[0].mxu0
        %v680 = vadd.f32 0.0, %v679
        %v681 = vpop.f32.mrb[0].mxu0
        %682 = vmatprep.mubr.f32.mxu0 %v551
        %683 = vmatmul.mubr.f32.gmra.mrb[0].mxu0 %v550
        %v684 = vpop.f32.mrb[0].mxu0
        %v685 = vadd.f32 0.0, %v684
        %v686 = vpop.f32.mrb[0].mxu0
        %687 = vmatprep.mubr.f32.mxu0 %v553
        %688 = vmatmul.mubr.f32.gmra.mrb[0].mxu0 %v552
        %v689 = vpop.f32.mrb[0].mxu0
        %v690 = vadd.f32 0.0, %v689
        %v691 = vpop.f32.mrb[0].mxu0
        %692 = vmatprep.mubr.f32.mxu0 %v555
        %693 = vmatmul.mubr.f32.gmra.mrb[0].mxu0 %v554
        %v694 = vpop.f32.mrb[0].mxu0
        %v695 = vadd.f32 0.0, %v694
        %v696 = vpop.f32.mrb[0].mxu0
        %697 = vmatprep.mubr.f32.mxu0 %v557
        %698 = vmatmul.mubr.f32.gmra.mrb[0].mxu0 %v556
        %v699 = vpop.f32.mrb[0].mxu0
        %v700 = vadd.f32 0.0, %v699
        %v701 = vpop.f32.mrb[0].mxu0
        %702 = vmatprep.mubr.f32.mxu0 %v559
        %703 = vmatmul.mubr.f32.gmra.mrb[0].mxu0 %v558
        %v704 = vpop.f32.mrb[0].mxu0
        %v705 = vadd.f32 0.0, %v704
        %v706 = vpop.f32.mrb[0].mxu0
        %707 = vmatprep.mubr.f32.mxu0 %v561
        %708 = vmatmul.mubr.f32.gmra.mrb[0].mxu0 %v560
        %v709 = vpop.f32.mrb[0].mxu0
        %v710 = vadd.f32 0.0, %v709
        %v711 = vpop.f32.mrb[0].mxu0
        %712 = vmatprep.mubr.f32.mxu0 %v563
        %713 = vmatmul.mubr.f32.gmra.mrb[0].mxu0 %v562
        %v714 = vpop.f32.mrb[0].mxu0
        %v715 = vadd.f32 0.0, %v714
        %v716 = vpop.f32.mrb[0].mxu0
        %717 = vmatprep.mubr.f32.mxu0 %v565
        %718 = vmatmul.mubr.f32.gmra.mrb[0].mxu0 %v564
        %v719 = vpop.f32.mrb[0].mxu0
        %v720 = vadd.f32 0.0, %v719
        %v721 = vpop.f32.mrb[0].mxu0
        %722 = vmatprep.mubr.f32.mxu0 %v567
        %723 = vmatmul.mubr.f32.gmra.mrb[0].mxu0 %v566
        %v724 = vpop.f32.mrb[0].mxu0
        %v725 = vadd.f32 0.0, %v724
        %v726 = vpop.f32.mrb[0].mxu0
        %727 = vmatprep.mubr.f32.mxu0 %v569
        %728 = vmatmul.mubr.f32.gmra.mrb[0].mxu0 %v568
        %v729 = vpop.f32.mrb[0].mxu0
        %v730 = vadd.f32 0.0, %v729
        %v731 = vpop.f32.mrb[0].mxu0
        %732 = vmatprep.mubr.f32.mxu0 %v571
        %733 = vmatmul.mubr.f32.gmra.mrb[0].mxu0 %v570
        %v734 = vpop.f32.mrb[0].mxu0
        %v735 = vadd.f32 0.0, %v734
        %v736 = vpop.f32.mrb[0].mxu0
        %737 = vmatprep.mubr.f32.mxu0 %v573
        %738 = vmatmul.mubr.f32.gmra.mrb[0].mxu0 %v572
        %v739 = vpop.f32.mrb[0].mxu0
        %v740 = vadd.f32 0.0, %v739
        %v741 = vpop.f32.mrb[0].mxu0
        %742 = vmatprep.mubr.f32.mxu0 %v575
        %743 = vmatmul.mubr.f32.gmra.mrb[0].mxu0 %v574
        %v744 = vpop.f32.mrb[0].mxu0
        %v745 = vadd.f32 0.0, %v744
        %v746 = vpop.f32.mrb[0].mxu0
        %747 = vmatprep.mubr.f32.mxu0 %v577
        %748 = vmatmul.mubr.f32.gmra.mrb[0].mxu0 %v576
        %v749 = vpop.f32.mrb[0].mxu0
        %v750 = vadd.f32 0.0, %v749
        %v751 = vpop.f32.mrb[0].mxu0
        %752 = vmatprep.mubr.f32.mxu0 %v579
        %753 = vmatmul.mubr.f32.gmra.mrb[0].mxu0 %v578
        %v754 = vpop.f32.mrb[0].mxu0
        %v755 = vadd.f32 0.0, %v754
        %v756 = vpop.f32.mrb[0].mxu0
        %757 = vmatprep.mubr.f32.mxu0 %v581
        %758 = vmatmul.mubr.f32.gmra.mrb[0].mxu0 %v580
        %v759 = vpop.f32.mrb[0].mxu0
        %v760 = vadd.f32 0.0, %v759
        %v761 = vpop.f32.mrb[0].mxu0
        %762 = vmatprep.mubr.f32.mxu0 %v583
        %763 = vmatmul.mubr.f32.gmra.mrb[0].mxu0 %v582
        %v764 = vpop.f32.mrb[0].mxu0
        %v765 = vadd.f32 0.0, %v764
        %v766 = vpop.f32.mrb[0].mxu0
        %767 = vmatprep.mubr.f32.mxu0 %v585
        %768 = vmatmul.mubr.f32.gmra.mrb[0].mxu0 %v584
        %v769 = vpop.f32.mrb[0].mxu0
        %v770 = vadd.f32 0.0, %v769
        %v771 = vpop.f32.mrb[0].mxu0
        %772 = vmatprep.mubr.f32.mxu0 %v587
        %773 = vmatmul.mubr.f32.gmra.mrb[0].mxu0 %v586
        %v774 = vpop.f32.mrb[0].mxu0
        %v775 = vadd.f32 0.0, %v774
        %v776 = vpop.f32.mrb[0].mxu0
        %777 = vmatprep.mubr.f32.mxu0 %v589
        %778 = vmatmul.mubr.f32.gmra.mrb[0].mxu0 %v588
        %v779 = vpop.f32.mrb[0].mxu0
        %v780 = vadd.f32 0.0, %v779
        %v781 = vpop.f32.mrb[0].mxu0
        %782 = vmatprep.mubr.f32.mxu0 %v591
        %783 = vmatmul.mubr.f32.gmra.mrb[0].mxu0 %v590
        %v784 = vpop.f32.mrb[0].mxu0
        %v785 = vadd.f32 0.0, %v784
        %v786 = vpop.f32.mrb[0].mxu0
        %787 = vmatprep.mubr.f32.mxu0 %v593
        %788 = vmatmul.mubr.f32.gmra.mrb[0].mxu0 %v592
        %v789 = vpop.f32.mrb[0].mxu0
        %v790 = vadd.f32 0.0, %v789
        %v791 = vpop.f32.mrb[0].mxu0
        %792 = vmatprep.mubr.f32.mxu0 %v595
        %793 = vmatmul.mubr.f32.gmra.mrb[0].mxu0 %v594
        %v794 = vpop.f32.mrb[0].mxu0
        %v795 = vadd.f32 0.0, %v794
        %v796 = vpop.f32.mrb[0].mxu0
        %797 = vmatprep.mubr.f32.mxu0 %v597
        %798 = vmatmul.mubr.f32.gmra.mrb[0].mxu0 %v596
        %v799 = vpop.f32.mrb[0].mxu0
        %v800 = vadd.f32 0.0, %v799
        %v801 = vpop.f32.mrb[0].mxu0
        %802 = vdwg.mxu0
        %v803 = vld [vmem:[#allocation6] sm:$0xff]
        %v804 = vld [vmem:[#allocation6 + $0x8] sm:$0xff]
        %v805 = vld [vmem:[#allocation6 + $0x10] sm:$0xff]
        %v806 = vld [vmem:[#allocation6 + $0x18] sm:$0xff]
        %v807 = vld [vmem:[#allocation6 + $0x20] sm:$0xff]
        %v808 = vld [vmem:[#allocation6 + $0x28] sm:$0xff]
        %v809 = vld [vmem:[#allocation6 + $0x30] sm:$0xff]
        %v810 = vld [vmem:[#allocation6 + $0x38] sm:$0xff]
        %s811 = scalar_lea.vmem [#allocation4], 448
        %v812 = vld [vmem:[%s811] sm:$0xff]
        %v813 = vld [vmem:[%s811 + $0x8] sm:$0xff]
        %v814 = vld [vmem:[%s811 + $0x10] sm:$0xff]
        %v815 = vld [vmem:[%s811 + $0x18] sm:$0xff]
        %v816 = vld [vmem:[%s811 + $0x20] sm:$0xff]
        %v817 = vld [vmem:[%s811 + $0x28] sm:$0xff]
        %v818 = vld [vmem:[%s811 + $0x30] sm:$0xff]
        %v819 = vld [vmem:[%s811 + $0x38] sm:$0xff]
        %v820 = vld [vmem:[%s811 + $0x40] sm:$0xff]
        %v821 = vld [vmem:[%s811 + $0x48] sm:$0xff]
        %v822 = vld [vmem:[%s811 + $0x50] sm:$0xff]
        %v823 = vld [vmem:[%s811 + $0x58] sm:$0xff]
        %v824 = vld [vmem:[%s811 + $0x60] sm:$0xff]
        %v825 = vld [vmem:[%s811 + $0x68] sm:$0xff]
        %v826 = vld [vmem:[%s811 + $0x70] sm:$0xff]
        %v827 = vld [vmem:[%s811 + $0x78] sm:$0xff]
        %v828 = vld [vmem:[%s811 + $0x80] sm:$0xff]
        %v829 = vld [vmem:[%s811 + $0x88] sm:$0xff]
        %v830 = vld [vmem:[%s811 + $0x90] sm:$0xff]
        %v831 = vld [vmem:[%s811 + $0x98] sm:$0xff]
        %v832 = vld [vmem:[%s811 + $0xa0] sm:$0xff]
        %v833 = vld [vmem:[%s811 + $0xa8] sm:$0xff]
        %v834 = vld [vmem:[%s811 + $0xb0] sm:$0xff]
        %v835 = vld [vmem:[%s811 + $0xb8] sm:$0xff]
        %v836 = vld [vmem:[%s811 + $0xc0] sm:$0xff]
        %v837 = vld [vmem:[%s811 + $0xc8] sm:$0xff]
        %v838 = vld [vmem:[%s811 + $0xd0] sm:$0xff]
        %v839 = vld [vmem:[%s811 + $0xd8] sm:$0xff]
        %v840 = vld [vmem:[%s811 + $0xe0] sm:$0xff]
        %v841 = vld [vmem:[%s811 + $0xe8] sm:$0xff]
        %v842 = vld [vmem:[%s811 + $0xf0] sm:$0xff]
        %v843 = vld [vmem:[%s811 + $0xf8] sm:$0xff]
        %v844 = vld [vmem:[%s811 + $0x100] sm:$0xff]
        %v845 = vld [vmem:[%s811 + $0x108] sm:$0xff]
        %v846 = vld [vmem:[%s811 + $0x110] sm:$0xff]
        %v847 = vld [vmem:[%s811 + $0x118] sm:$0xff]
        %v848 = vld [vmem:[%s811 + $0x120] sm:$0xff]
        %v849 = vld [vmem:[%s811 + $0x128] sm:$0xff]
        %v850 = vld [vmem:[%s811 + $0x130] sm:$0xff]
        %v851 = vld [vmem:[%s811 + $0x138] sm:$0xff]
        %v852 = vld [vmem:[%s811 + $0x140] sm:$0xff]
        %v853 = vld [vmem:[%s811 + $0x148] sm:$0xff]
        %v854 = vld [vmem:[%s811 + $0x150] sm:$0xff]
        %v855 = vld [vmem:[%s811 + $0x158] sm:$0xff]
        %v856 = vld [vmem:[%s811 + $0x160] sm:$0xff]
        %v857 = vld [vmem:[%s811 + $0x168] sm:$0xff]
        %v858 = vld [vmem:[%s811 + $0x170] sm:$0xff]
        %v859 = vld [vmem:[%s811 + $0x178] sm:$0xff]
        %v860 = vld [vmem:[%s811 + $0x180] sm:$0xff]
        %v861 = vld [vmem:[%s811 + $0x188] sm:$0xff]
        %v862 = vld [vmem:[%s811 + $0x190] sm:$0xff]
        %v863 = vld [vmem:[%s811 + $0x198] sm:$0xff]
        %v864 = vld [vmem:[%s811 + $0x1a0] sm:$0xff]
        %v865 = vld [vmem:[%s811 + $0x1a8] sm:$0xff]
        %v866 = vld [vmem:[%s811 + $0x1b0] sm:$0xff]
        %v867 = vld [vmem:[%s811 + $0x1b8] sm:$0xff]
        %868 = vmatprep.subr.mxu0 0.0
        %869 = vmatpush1.msra.mxu0 %v510
        %870 = vmatprep.subr.mxu0 0.0
        %871 = vmatpush1.msra.mxu0 %v511
        %872 = vmatprep.subr.mxu0 0.0
        %873 = vmatpush1.msra.mxu0 %v512
        %874 = vmatprep.subr.mxu0 0.0
        %875 = vmatpush1.msra.mxu0 %v513
        %876 = vmatprep.subr.mxu0 0.0
        %877 = vmatpush1.msra.mxu0 %v514
        %878 = vmatprep.subr.mxu0 0.0
        %879 = vmatpush1.msra.mxu0 %v515
        %880 = vmatprep.subr.mxu0 0.0
        %881 = vmatpush1.msra.mxu0 %v516
        %882 = vmatprep.subr.mxu0 0.0
        %883 = vmatpush1.msra.mxu0 %v517
        %884 = vmatprep.subr.mxu0 0.0
        %885 = vmatpush1.msra.mxu0 %v518
        %886 = vmatprep.subr.mxu0 0.0
        %887 = vmatpush1.msra.mxu0 %v519
        %888 = vmatprep.subr.mxu0 0.0
        %889 = vmatpush1.msra.mxu0 %v520
        %890 = vmatprep.subr.mxu0 0.0
        %891 = vmatpush1.msra.mxu0 %v521
        %892 = vmatprep.subr.mxu0 0.0
        %893 = vmatpush1.msra.mxu0 %v522
        %894 = vmatprep.subr.mxu0 0.0
        %895 = vmatpush1.msra.mxu0 %v523
        %896 = vmatprep.subr.mxu0 0.0
        %897 = vmatpush1.msra.mxu0 %v524
        %898 = vmatprep.subr.mxu0 0.0
        %899 = vmatpush1.msra.mxu0 %v525
        %900 = vmatprep.subr.mxu0 0.0
        %901 = vmatpush1.msra.mxu0 %v526
        %902 = vmatprep.subr.mxu0 0.0
        %903 = vmatpush1.msra.mxu0 %v527
        %904 = vmatprep.subr.mxu0 0.0
        %905 = vmatpush1.msra.mxu0 %v528
        %906 = vmatprep.subr.mxu0 0.0
        %907 = vmatpush1.msra.mxu0 %v529
        %908 = vmatprep.subr.mxu0 0.0
        %909 = vmatpush1.msra.mxu0 %v530
        %910 = vmatprep.subr.mxu0 0.0
        %911 = vmatpush1.msra.mxu0 %v531
        %912 = vmatprep.subr.mxu0 0.0
        %913 = vmatpush1.msra.mxu0 %v532
        %914 = vmatprep.subr.mxu0 0.0
        %915 = vmatpush1.msra.mxu0 %v533
        %916 = vmatprep.subr.mxu0 0.0
        %917 = vmatpush1.msra.mxu0 %v534
        %918 = vmatprep.subr.mxu0 0.0
        %919 = vmatpush1.msra.mxu0 %v535
        %920 = vmatprep.subr.mxu0 0.0
        %921 = vmatpush1.msra.mxu0 %v536
        %922 = vmatprep.subr.mxu0 0.0
        %923 = vmatpush1.msra.mxu0 %v537
        %924 = vmatprep.subr.mxu0 0.0
        %925 = vmatpush1.msra.mxu0 %v538
        %926 = vmatprep.subr.mxu0 0.0
        %927 = vmatpush1.msra.mxu0 %v539
        %928 = vmatprep.subr.mxu0 0.0
        %929 = vmatpush1.msra.mxu0 %v540
        %930 = vmatprep.subr.mxu0 0.0
        %931 = vmatpush1.msra.mxu0 %v541
        %932 = vmatprep.mubr.f32.mxu0 %v813
        %933 = vmatmul.mubr.f32.gmra.mrb[0].mxu0 %v812
        %v934 = vpop.f32.mrb[0].mxu0
        %v935 = vadd.f32 0.0, %v934
        %v936 = vpop.f32.mrb[0].mxu0
        %937 = vmatprep.mubr.f32.mxu0 %v815
        %938 = vmatmul.mubr.f32.gmra.mrb[0].mxu0 %v814
        %v939 = vpop.f32.mrb[0].mxu0
        %v940 = vadd.f32 0.0, %v939
        %v941 = vpop.f32.mrb[0].mxu0
        %942 = vmatprep.mubr.f32.mxu0 %v817
        %943 = vmatmul.mubr.f32.gmra.mrb[0].mxu0 %v816
        %v944 = vpop.f32.mrb[0].mxu0
        %v945 = vadd.f32 0.0, %v944
        %v946 = vpop.f32.mrb[0].mxu0
        %947 = vmatprep.mubr.f32.mxu0 %v819
        %948 = vmatmul.mubr.f32.gmra.mrb[0].mxu0 %v818
        %v949 = vpop.f32.mrb[0].mxu0
        %v950 = vadd.f32 0.0, %v949
        %v951 = vpop.f32.mrb[0].mxu0
        %952 = vmatprep.mubr.f32.mxu0 %v821
        %953 = vmatmul.mubr.f32.gmra.mrb[0].mxu0 %v820
        %v954 = vpop.f32.mrb[0].mxu0
        %v955 = vadd.f32 0.0, %v954
        %v956 = vpop.f32.mrb[0].mxu0
        %957 = vmatprep.mubr.f32.mxu0 %v823
        %958 = vmatmul.mubr.f32.gmra.mrb[0].mxu0 %v822
        %v959 = vpop.f32.mrb[0].mxu0
        %v960 = vadd.f32 0.0, %v959
        %v961 = vpop.f32.mrb[0].mxu0
        %962 = vmatprep.mubr.f32.mxu0 %v825
        %963 = vmatmul.mubr.f32.gmra.mrb[0].mxu0 %v824
        %v964 = vpop.f32.mrb[0].mxu0
        %v965 = vadd.f32 0.0, %v964
        %v966 = vpop.f32.mrb[0].mxu0
        %967 = vmatprep.mubr.f32.mxu0 %v827
        %968 = vmatmul.mubr.f32.gmra.mrb[0].mxu0 %v826
        %v969 = vpop.f32.mrb[0].mxu0
        %v970 = vadd.f32 0.0, %v969
        %v971 = vpop.f32.mrb[0].mxu0
        %972 = vmatprep.mubr.f32.mxu0 %v829
        %973 = vmatmul.mubr.f32.gmra.mrb[0].mxu0 %v828
        %v974 = vpop.f32.mrb[0].mxu0
        %v975 = vadd.f32 0.0, %v974
        %v976 = vpop.f32.mrb[0].mxu0
        %977 = vmatprep.mubr.f32.mxu0 %v831
        %978 = vmatmul.mubr.f32.gmra.mrb[0].mxu0 %v830
        %v979 = vpop.f32.mrb[0].mxu0
        %v980 = vadd.f32 0.0, %v979
        %v981 = vpop.f32.mrb[0].mxu0
        %982 = vmatprep.mubr.f32.mxu0 %v833
        %983 = vmatmul.mubr.f32.gmra.mrb[0].mxu0 %v832
        %v984 = vpop.f32.mrb[0].mxu0
        %v985 = vadd.f32 0.0, %v984
        %v986 = vpop.f32.mrb[0].mxu0
        %987 = vmatprep.mubr.f32.mxu0 %v835
        %988 = vmatmul.mubr.f32.gmra.mrb[0].mxu0 %v834
        %v989 = vpop.f32.mrb[0].mxu0
        %v990 = vadd.f32 0.0, %v989
        %v991 = vpop.f32.mrb[0].mxu0
        %992 = vmatprep.mubr.f32.mxu0 %v837
        %993 = vmatmul.mubr.f32.gmra.mrb[0].mxu0 %v836
        %v994 = vpop.f32.mrb[0].mxu0
        %v995 = vadd.f32 0.0, %v994
        %v996 = vpop.f32.mrb[0].mxu0
        %997 = vmatprep.mubr.f32.mxu0 %v839
        %998 = vmatmul.mubr.f32.gmra.mrb[0].mxu0 %v838
        %v999 = vpop.f32.mrb[0].mxu0
        %v1000 = vadd.f32 0.0, %v999
        %v1001 = vpop.f32.mrb[0].mxu0
        %1002 = vmatprep.mubr.f32.mxu0 %v841
        %1003 = vmatmul.mubr.f32.gmra.mrb[0].mxu0 %v840
        %v1004 = vpop.f32.mrb[0].mxu0
        %v1005 = vadd.f32 0.0, %v1004
        %v1006 = vpop.f32.mrb[0].mxu0
        %1007 = vmatprep.mubr.f32.mxu0 %v843
        %1008 = vmatmul.mubr.f32.gmra.mrb[0].mxu0 %v842
        %v1009 = vpop.f32.mrb[0].mxu0
        %v1010 = vadd.f32 0.0, %v1009
        %v1011 = vpop.f32.mrb[0].mxu0
        %1012 = vmatprep.mubr.f32.mxu0 %v845
        %1013 = vmatmul.mubr.f32.gmra.mrb[0].mxu0 %v844
        %v1014 = vpop.f32.mrb[0].mxu0
        %v1015 = vadd.f32 0.0, %v1014
        %v1016 = vpop.f32.mrb[0].mxu0
        %1017 = vmatprep.mubr.f32.mxu0 %v847
        %1018 = vmatmul.mubr.f32.gmra.mrb[0].mxu0 %v846
        %v1019 = vpop.f32.mrb[0].mxu0
        %v1020 = vadd.f32 0.0, %v1019
        %v1021 = vpop.f32.mrb[0].mxu0
        %1022 = vmatprep.mubr.f32.mxu0 %v849
        %1023 = vmatmul.mubr.f32.gmra.mrb[0].mxu0 %v848
        %v1024 = vpop.f32.mrb[0].mxu0
        %v1025 = vadd.f32 0.0, %v1024
        %v1026 = vpop.f32.mrb[0].mxu0
        %1027 = vmatprep.mubr.f32.mxu0 %v851
        %1028 = vmatmul.mubr.f32.gmra.mrb[0].mxu0 %v850
        %v1029 = vpop.f32.mrb[0].mxu0
        %v1030 = vadd.f32 0.0, %v1029
        %v1031 = vpop.f32.mrb[0].mxu0
        %1032 = vmatprep.mubr.f32.mxu0 %v853
        %1033 = vmatmul.mubr.f32.gmra.mrb[0].mxu0 %v852
        %v1034 = vpop.f32.mrb[0].mxu0
        %v1035 = vadd.f32 0.0, %v1034
        %v1036 = vpop.f32.mrb[0].mxu0
        %1037 = vmatprep.mubr.f32.mxu0 %v855
        %1038 = vmatmul.mubr.f32.gmra.mrb[0].mxu0 %v854
        %v1039 = vpop.f32.mrb[0].mxu0
        %v1040 = vadd.f32 0.0, %v1039
        %v1041 = vpop.f32.mrb[0].mxu0
        %1042 = vmatprep.mubr.f32.mxu0 %v857
        %1043 = vmatmul.mubr.f32.gmra.mrb[0].mxu0 %v856
        %v1044 = vpop.f32.mrb[0].mxu0
        %v1045 = vadd.f32 0.0, %v1044
        %v1046 = vpop.f32.mrb[0].mxu0
        %1047 = vmatprep.mubr.f32.mxu0 %v859
        %1048 = vmatmul.mubr.f32.gmra.mrb[0].mxu0 %v858
        %v1049 = vpop.f32.mrb[0].mxu0
        %v1050 = vadd.f32 0.0, %v1049
        %v1051 = vpop.f32.mrb[0].mxu0
        %1052 = vmatprep.mubr.f32.mxu0 %v861
        %1053 = vmatmul.mubr.f32.gmra.mrb[0].mxu0 %v860
        %v1054 = vpop.f32.mrb[0].mxu0
        %v1055 = vadd.f32 0.0, %v1054
        %v1056 = vpop.f32.mrb[0].mxu0
        %1057 = vmatprep.mubr.f32.mxu0 %v863
        %1058 = vmatmul.mubr.f32.gmra.mrb[0].mxu0 %v862
        %v1059 = vpop.f32.mrb[0].mxu0
        %v1060 = vadd.f32 0.0, %v1059
        %v1061 = vpop.f32.mrb[0].mxu0
        %1062 = vmatprep.mubr.f32.mxu0 %v865
        %1063 = vmatmul.mubr.f32.gmra.mrb[0].mxu0 %v864
        %v1064 = vpop.f32.mrb[0].mxu0
        %v1065 = vadd.f32 0.0, %v1064
        %v1066 = vpop.f32.mrb[0].mxu0
        %1067 = vmatprep.mubr.f32.mxu0 %v867
        %1068 = vmatmul.mubr.f32.gmra.mrb[0].mxu0 %v866
        %v1069 = vpop.f32.mrb[0].mxu0
        %v1070 = vadd.f32 0.0, %v1069
        %v1071 = vpop.f32.mrb[0].mxu0
        %1072 = vdwg.mxu0
        %s1073 = scalar_lea.vmem [#allocation6], 64
        %v1074 = vld [vmem:[%s1073] sm:$0xff]
        %v1075 = vld [vmem:[%s1073 + $0x8] sm:$0xff]
        %v1076 = vld [vmem:[%s1073 + $0x10] sm:$0xff]
        %v1077 = vld [vmem:[%s1073 + $0x18] sm:$0xff]
        %v1078 = vld [vmem:[%s1073 + $0x20] sm:$0xff]
        %v1079 = vld [vmem:[%s1073 + $0x28] sm:$0xff]
        %v1080 = vld [vmem:[%s1073 + $0x30] sm:$0xff]
        %v1081 = vld [vmem:[%s1073 + $0x38] sm:$0xff]
        %vm1082 = vcmask 261120
        %v1084 = vsel %vm1082, %v935, 0
        %v1087 = vsel %vm1082, %v940, 0
        %v1090 = vsel %vm1082, %v945, 0
        %v1093 = vsel %vm1082, %v950, 0
        %v1096 = vsel %vm1082, %v955, 0
        %v1099 = vsel %vm1082, %v960, 0
        %v1102 = vsel %vm1082, %v965, 0
        %v1105 = vsel %vm1082, %v970, 0
        %v1108 = vsel %vm1082, %v975, 0
        %v1111 = vsel %vm1082, %v980, 0
        %v1114 = vsel %vm1082, %v985, 0
        %v1117 = vsel %vm1082, %v990, 0
        %v1120 = vsel %vm1082, %v995, 0
        %v1123 = vsel %vm1082, %v1000, 0
        %v1126 = vsel %vm1082, %v1005, 0
        %v1129 = vsel %vm1082, %v1010, 0
        %v1132 = vsel %vm1082, %v1015, 0
        %v1135 = vsel %vm1082, %v1020, 0
        %v1138 = vsel %vm1082, %v1025, 0
        %v1141 = vsel %vm1082, %v1030, 0
        %v1144 = vsel %vm1082, %v1035, 0
        %v1147 = vsel %vm1082, %v1040, 0
        %v1150 = vsel %vm1082, %v1045, 0
        %v1153 = vsel %vm1082, %v1050, 0
        %v1156 = vsel %vm1082, %v1055, 0
        %v1159 = vsel %vm1082, %v1060, 0
        %v1162 = vsel %vm1082, %v1065, 0
        %v1165 = vsel %vm1082, %v1070, 0
        %1167 = vmatprep.subr.mxu0 %v1075
        %1168 = vmatpush1.msra.mxu0 %v1074
        %1169 = vmatprep.subr.mxu0 %v1077
        %1170 = vmatpush1.msra.mxu0 %v1076
        %1171 = vmatprep.subr.mxu0 %v1079
        %1172 = vmatpush1.msra.mxu0 %v1078
        %1173 = vmatprep.subr.mxu0 %v1081
        %1174 = vmatpush1.msra.mxu0 %v1080
        %1175 = vmatprep.subr.mxu0 0.0
        %1176 = vmatpush1.msra.mxu0 0.0
        %1177 = vmatprep.subr.mxu0 0.0
        %1178 = vmatpush1.msra.mxu0 0.0
        %1179 = vmatprep.subr.mxu0 0.0
        %1180 = vmatpush1.msra.mxu0 0.0
        %1181 = vmatprep.subr.mxu0 0.0
        %1182 = vmatpush1.msra.mxu0 0.0
        %1183 = vmatprep.subr.mxu0 0.0
        %1184 = vmatpush1.msra.mxu0 0.0
        %1185 = vmatprep.subr.mxu0 0.0
        %1186 = vmatpush1.msra.mxu0 0.0
        %1187 = vmatprep.subr.mxu0 0.0
        %1188 = vmatpush1.msra.mxu0 0.0
        %1189 = vmatprep.subr.mxu0 0.0
        %1190 = vmatpush1.msra.mxu0 0.0
        %1191 = vmatprep.subr.mxu0 0.0
        %1192 = vmatpush1.msra.mxu0 0.0
        %1193 = vmatprep.subr.mxu0 0.0
        %1194 = vmatpush1.msra.mxu0 0.0
        %1195 = vmatprep.subr.mxu0 0.0
        %1196 = vmatpush1.msra.mxu0 0.0
        %1197 = vmatprep.subr.mxu0 0.0
        %1198 = vmatpush1.msra.mxu0 0.0
        %1199 = vmatprep.subr.mxu0 0.0
        %1200 = vmatpush1.msra.mxu0 0.0
        %1201 = vmatprep.subr.mxu0 0.0
        %1202 = vmatpush1.msra.mxu0 0.0
        %1203 = vmatprep.subr.mxu0 0.0
        %1204 = vmatpush1.msra.mxu0 0.0
        %1205 = vmatprep.subr.mxu0 0.0
        %1206 = vmatpush1.msra.mxu0 0.0
        %1207 = vmatprep.subr.mxu0 0.0
        %1208 = vmatpush1.msra.mxu0 0.0
        %1209 = vmatprep.subr.mxu0 0.0
        %1210 = vmatpush1.msra.mxu0 0.0
        %1211 = vmatprep.subr.mxu0 0.0
        %1212 = vmatpush1.msra.mxu0 0.0
        %1213 = vmatprep.subr.mxu0 0.0
        %1214 = vmatpush1.msra.mxu0 0.0
        %1215 = vmatprep.subr.mxu0 0.0
        %1216 = vmatpush1.msra.mxu0 0.0
        %1217 = vmatprep.subr.mxu0 0.0
        %1218 = vmatpush1.msra.mxu0 0.0
        %1219 = vmatprep.subr.mxu0 0.0
        %1220 = vmatpush1.msra.mxu0 0.0
        %1221 = vmatprep.subr.mxu0 0.0
        %1222 = vmatpush1.msra.mxu0 0.0
        %1223 = vmatprep.subr.mxu0 0.0
        %1224 = vmatpush1.msra.mxu0 0.0
        %1225 = vmatprep.subr.mxu0 0.0
        %1226 = vmatpush1.msra.mxu0 0.0
        %1227 = vmatprep.subr.mxu0 0.0
        %1228 = vmatpush1.msra.mxu0 0.0
        %1229 = vmatprep.subr.mxu0 0.0
        %1230 = vmatpush1.msra.mxu0 0.0
        %1231 = vmatprep.mubr.f32.mxu0 0.0
        %1232 = vmatmul.mubr.f32.gmra.mrb[0].mxu0 %v1084
        %v1233 = vpop.f32.mrb[0].mxu0
        %v1234 = vadd.f32 0.0, %v1233
        %v1235 = vpop.f32.mrb[0].mxu0
        %v1236 = vadd.f32 0.0, %v1235
        %1237 = vmatprep.mubr.f32.mxu0 0.0
        %1238 = vmatmul.mubr.f32.gmra.mrb[0].mxu0 %v1087
        %v1239 = vpop.f32.mrb[0].mxu0
        %v1240 = vadd.f32 0.0, %v1239
        %v1241 = vpop.f32.mrb[0].mxu0
        %v1242 = vadd.f32 0.0, %v1241
        %1243 = vmatprep.mubr.f32.mxu0 0.0
        %1244 = vmatmul.mubr.f32.gmra.mrb[0].mxu0 %v1090
        %v1245 = vpop.f32.mrb[0].mxu0
        %v1246 = vadd.f32 0.0, %v1245
        %v1247 = vpop.f32.mrb[0].mxu0
        %v1248 = vadd.f32 0.0, %v1247
        %1249 = vmatprep.mubr.f32.mxu0 0.0
        %1250 = vmatmul.mubr.f32.gmra.mrb[0].mxu0 %v1093
        %v1251 = vpop.f32.mrb[0].mxu0
        %v1252 = vadd.f32 0.0, %v1251
        %v1253 = vpop.f32.mrb[0].mxu0
        %v1254 = vadd.f32 0.0, %v1253
        %1255 = vmatprep.mubr.f32.mxu0 0.0
        %1256 = vmatmul.mubr.f32.gmra.mrb[0].mxu0 %v1096
        %v1257 = vpop.f32.mrb[0].mxu0
        %v1258 = vadd.f32 0.0, %v1257
        %v1259 = vpop.f32.mrb[0].mxu0
        %v1260 = vadd.f32 0.0, %v1259
        %1261 = vmatprep.mubr.f32.mxu0 0.0
        %1262 = vmatmul.mubr.f32.gmra.mrb[0].mxu0 %v1099
        %v1263 = vpop.f32.mrb[0].mxu0
        %v1264 = vadd.f32 0.0, %v1263
        %v1265 = vpop.f32.mrb[0].mxu0
        %v1266 = vadd.f32 0.0, %v1265
        %1267 = vmatprep.mubr.f32.mxu0 0.0
        %1268 = vmatmul.mubr.f32.gmra.mrb[0].mxu0 %v1102
        %v1269 = vpop.f32.mrb[0].mxu0
        %v1270 = vadd.f32 0.0, %v1269
        %v1271 = vpop.f32.mrb[0].mxu0
        %v1272 = vadd.f32 0.0, %v1271
        %1273 = vmatprep.mubr.f32.mxu0 0.0
        %1274 = vmatmul.mubr.f32.gmra.mrb[0].mxu0 %v1105
        %v1275 = vpop.f32.mrb[0].mxu0
        %v1276 = vadd.f32 0.0, %v1275
        %v1277 = vpop.f32.mrb[0].mxu0
        %v1278 = vadd.f32 0.0, %v1277
        %1279 = vmatprep.mubr.f32.mxu0 0.0
        %1280 = vmatmul.mubr.f32.gmra.mrb[0].mxu0 %v1108
        %v1281 = vpop.f32.mrb[0].mxu0
        %v1282 = vadd.f32 0.0, %v1281
        %v1283 = vpop.f32.mrb[0].mxu0
        %v1284 = vadd.f32 0.0, %v1283
        %1285 = vmatprep.mubr.f32.mxu0 0.0
        %1286 = vmatmul.mubr.f32.gmra.mrb[0].mxu0 %v1111
        %v1287 = vpop.f32.mrb[0].mxu0
        %v1288 = vadd.f32 0.0, %v1287
        %v1289 = vpop.f32.mrb[0].mxu0
        %v1290 = vadd.f32 0.0, %v1289
        %1291 = vmatprep.mubr.f32.mxu0 0.0
        %1292 = vmatmul.mubr.f32.gmra.mrb[0].mxu0 %v1114
        %v1293 = vpop.f32.mrb[0].mxu0
        %v1294 = vadd.f32 0.0, %v1293
        %v1295 = vpop.f32.mrb[0].mxu0
        %v1296 = vadd.f32 0.0, %v1295
        %1297 = vmatprep.mubr.f32.mxu0 0.0
        %1298 = vmatmul.mubr.f32.gmra.mrb[0].mxu0 %v1117
        %v1299 = vpop.f32.mrb[0].mxu0
        %v1300 = vadd.f32 0.0, %v1299
        %v1301 = vpop.f32.mrb[0].mxu0
        %v1302 = vadd.f32 0.0, %v1301
        %1303 = vmatprep.mubr.f32.mxu0 0.0
        %1304 = vmatmul.mubr.f32.gmra.mrb[0].mxu0 %v1120
        %v1305 = vpop.f32.mrb[0].mxu0
        %v1306 = vadd.f32 0.0, %v1305
        %v1307 = vpop.f32.mrb[0].mxu0
        %v1308 = vadd.f32 0.0, %v1307
        %1309 = vmatprep.mubr.f32.mxu0 0.0
        %1310 = vmatmul.mubr.f32.gmra.mrb[0].mxu0 %v1123
        %v1311 = vpop.f32.mrb[0].mxu0
        %v1312 = vadd.f32 0.0, %v1311
        %v1313 = vpop.f32.mrb[0].mxu0
        %v1314 = vadd.f32 0.0, %v1313
        %1315 = vmatprep.mubr.f32.mxu0 0.0
        %1316 = vmatmul.mubr.f32.gmra.mrb[0].mxu0 %v1126
        %v1317 = vpop.f32.mrb[0].mxu0
        %v1318 = vadd.f32 0.0, %v1317
        %v1319 = vpop.f32.mrb[0].mxu0
        %v1320 = vadd.f32 0.0, %v1319
        %1321 = vmatprep.mubr.f32.mxu0 0.0
        %1322 = vmatmul.mubr.f32.gmra.mrb[0].mxu0 %v1129
        %v1323 = vpop.f32.mrb[0].mxu0
        %v1324 = vadd.f32 0.0, %v1323
        %v1325 = vpop.f32.mrb[0].mxu0
        %v1326 = vadd.f32 0.0, %v1325
        %1327 = vmatprep.mubr.f32.mxu0 0.0
        %1328 = vmatmul.mubr.f32.gmra.mrb[0].mxu0 %v1132
        %v1329 = vpop.f32.mrb[0].mxu0
        %v1330 = vadd.f32 0.0, %v1329
        %v1331 = vpop.f32.mrb[0].mxu0
        %v1332 = vadd.f32 0.0, %v1331
        %1333 = vmatprep.mubr.f32.mxu0 0.0
        %1334 = vmatmul.mubr.f32.gmra.mrb[0].mxu0 %v1135
        %v1335 = vpop.f32.mrb[0].mxu0
        %v1336 = vadd.f32 0.0, %v1335
        %v1337 = vpop.f32.mrb[0].mxu0
        %v1338 = vadd.f32 0.0, %v1337
        %1339 = vmatprep.mubr.f32.mxu0 0.0
        %1340 = vmatmul.mubr.f32.gmra.mrb[0].mxu0 %v1138
        %v1341 = vpop.f32.mrb[0].mxu0
        %v1342 = vadd.f32 0.0, %v1341
        %v1343 = vpop.f32.mrb[0].mxu0
        %v1344 = vadd.f32 0.0, %v1343
        %1345 = vmatprep.mubr.f32.mxu0 0.0
        %1346 = vmatmul.mubr.f32.gmra.mrb[0].mxu0 %v1141
        %v1347 = vpop.f32.mrb[0].mxu0
        %v1348 = vadd.f32 0.0, %v1347
        %v1349 = vpop.f32.mrb[0].mxu0
        %v1350 = vadd.f32 0.0, %v1349
        %1351 = vmatprep.mubr.f32.mxu0 0.0
        %1352 = vmatmul.mubr.f32.gmra.mrb[0].mxu0 %v1144
        %v1353 = vpop.f32.mrb[0].mxu0
        %v1354 = vadd.f32 0.0, %v1353
        %v1355 = vpop.f32.mrb[0].mxu0
        %v1356 = vadd.f32 0.0, %v1355
        %1357 = vmatprep.mubr.f32.mxu0 0.0
        %1358 = vmatmul.mubr.f32.gmra.mrb[0].mxu0 %v1147
        %v1359 = vpop.f32.mrb[0].mxu0
        %v1360 = vadd.f32 0.0, %v1359
        %v1361 = vpop.f32.mrb[0].mxu0
        %v1362 = vadd.f32 0.0, %v1361
        %1363 = vmatprep.mubr.f32.mxu0 0.0
        %1364 = vmatmul.mubr.f32.gmra.mrb[0].mxu0 %v1150
        %v1365 = vpop.f32.mrb[0].mxu0
        %v1366 = vadd.f32 0.0, %v1365
        %v1367 = vpop.f32.mrb[0].mxu0
        %v1368 = vadd.f32 0.0, %v1367
        %1369 = vmatprep.mubr.f32.mxu0 0.0
        %1370 = vmatmul.mubr.f32.gmra.mrb[0].mxu0 %v1153
        %v1371 = vpop.f32.mrb[0].mxu0
        %v1372 = vadd.f32 0.0, %v1371
        %v1373 = vpop.f32.mrb[0].mxu0
        %v1374 = vadd.f32 0.0, %v1373
        %1375 = vmatprep.mubr.f32.mxu0 0.0
        %1376 = vmatmul.mubr.f32.gmra.mrb[0].mxu0 %v1156
        %v1377 = vpop.f32.mrb[0].mxu0
        %v1378 = vadd.f32 0.0, %v1377
        %v1379 = vpop.f32.mrb[0].mxu0
        %v1380 = vadd.f32 0.0, %v1379
        %1381 = vmatprep.mubr.f32.mxu0 0.0
        %1382 = vmatmul.mubr.f32.gmra.mrb[0].mxu0 %v1159
        %v1383 = vpop.f32.mrb[0].mxu0
        %v1384 = vadd.f32 0.0, %v1383
        %v1385 = vpop.f32.mrb[0].mxu0
        %v1386 = vadd.f32 0.0, %v1385
        %1387 = vmatprep.mubr.f32.mxu0 0.0
        %1388 = vmatmul.mubr.f32.gmra.mrb[0].mxu0 %v1162
        %v1389 = vpop.f32.mrb[0].mxu0
        %v1390 = vadd.f32 0.0, %v1389
        %v1391 = vpop.f32.mrb[0].mxu0
        %v1392 = vadd.f32 0.0, %v1391
        %1393 = vmatprep.mubr.f32.mxu0 0.0
        %1394 = vmatmul.mubr.f32.gmra.mrb[0].mxu0 %v1165
        %v1395 = vpop.f32.mrb[0].mxu0
        %v1396 = vadd.f32 0.0, %v1395
        %v1397 = vpop.f32.mrb[0].mxu0
        %v1398 = vadd.f32 0.0, %v1397
        %1399 = vdwg.mxu0
        %v1401 = vsel %vm1082, %v665, 0
        %v1404 = vsel %vm1082, %v670, 0
        %v1407 = vsel %vm1082, %v675, 0
        %v1410 = vsel %vm1082, %v680, 0
        %v1413 = vsel %vm1082, %v685, 0
        %v1416 = vsel %vm1082, %v690, 0
        %v1419 = vsel %vm1082, %v695, 0
        %v1422 = vsel %vm1082, %v700, 0
        %v1425 = vsel %vm1082, %v705, 0
        %v1428 = vsel %vm1082, %v710, 0
        %v1431 = vsel %vm1082, %v715, 0
        %v1434 = vsel %vm1082, %v720, 0
        %v1437 = vsel %vm1082, %v725, 0
        %v1440 = vsel %vm1082, %v730, 0
        %v1443 = vsel %vm1082, %v735, 0
        %v1446 = vsel %vm1082, %v740, 0
        %v1449 = vsel %vm1082, %v745, 0
        %v1452 = vsel %vm1082, %v750, 0
        %v1455 = vsel %vm1082, %v755, 0
        %v1458 = vsel %vm1082, %v760, 0
        %v1461 = vsel %vm1082, %v765, 0
        %v1464 = vsel %vm1082, %v770, 0
        %v1467 = vsel %vm1082, %v775, 0
        %v1470 = vsel %vm1082, %v780, 0
        %v1473 = vsel %vm1082, %v785, 0
        %v1476 = vsel %vm1082, %v790, 0
        %v1479 = vsel %vm1082, %v795, 0
        %v1482 = vsel %vm1082, %v800, 0
        %1484 = vmatprep.subr.mxu0 %v804
        %1485 = vmatpush1.msra.mxu0 %v803
        %1486 = vmatprep.subr.mxu0 %v806
        %1487 = vmatpush1.msra.mxu0 %v805
        %1488 = vmatprep.subr.mxu0 %v808
        %1489 = vmatpush1.msra.mxu0 %v807
        %1490 = vmatprep.subr.mxu0 %v810
        %1491 = vmatpush1.msra.mxu0 %v809
        %1492 = vmatprep.subr.mxu0 0.0
        %1493 = vmatpush1.msra.mxu0 0.0
        %1494 = vmatprep.subr.mxu0 0.0
        %1495 = vmatpush1.msra.mxu0 0.0
        %1496 = vmatprep.subr.mxu0 0.0
        %1497 = vmatpush1.msra.mxu0 0.0
        %1498 = vmatprep.subr.mxu0 0.0
        %1499 = vmatpush1.msra.mxu0 0.0
        %1500 = vmatprep.subr.mxu0 0.0
        %1501 = vmatpush1.msra.mxu0 0.0
        %1502 = vmatprep.subr.mxu0 0.0
        %1503 = vmatpush1.msra.mxu0 0.0
        %1504 = vmatprep.subr.mxu0 0.0
        %1505 = vmatpush1.msra.mxu0 0.0
        %1506 = vmatprep.subr.mxu0 0.0
        %1507 = vmatpush1.msra.mxu0 0.0
        %1508 = vmatprep.subr.mxu0 0.0
        %1509 = vmatpush1.msra.mxu0 0.0
        %1510 = vmatprep.subr.mxu0 0.0
        %1511 = vmatpush1.msra.mxu0 0.0
        %1512 = vmatprep.subr.mxu0 0.0
        %1513 = vmatpush1.msra.mxu0 0.0
        %1514 = vmatprep.subr.mxu0 0.0
        %1515 = vmatpush1.msra.mxu0 0.0
        %1516 = vmatprep.subr.mxu0 0.0
        %1517 = vmatpush1.msra.mxu0 0.0
        %1518 = vmatprep.subr.mxu0 0.0
        %1519 = vmatpush1.msra.mxu0 0.0
        %1520 = vmatprep.subr.mxu0 0.0
        %1521 = vmatpush1.msra.mxu0 0.0
        %1522 = vmatprep.subr.mxu0 0.0
        %1523 = vmatpush1.msra.mxu0 0.0
        %1524 = vmatprep.subr.mxu0 0.0
        %1525 = vmatpush1.msra.mxu0 0.0
        %1526 = vmatprep.subr.mxu0 0.0
        %1527 = vmatpush1.msra.mxu0 0.0
        %1528 = vmatprep.subr.mxu0 0.0
        %1529 = vmatpush1.msra.mxu0 0.0
        %1530 = vmatprep.subr.mxu0 0.0
        %1531 = vmatpush1.msra.mxu0 0.0
        %1532 = vmatprep.subr.mxu0 0.0
        %1533 = vmatpush1.msra.mxu0 0.0
        %1534 = vmatprep.subr.mxu0 0.0
        %1535 = vmatpush1.msra.mxu0 0.0
        %1536 = vmatprep.subr.mxu0 0.0
        %1537 = vmatpush1.msra.mxu0 0.0
        %1538 = vmatprep.subr.mxu0 0.0
        %1539 = vmatpush1.msra.mxu0 0.0
        %1540 = vmatprep.subr.mxu0 0.0
        %1541 = vmatpush1.msra.mxu0 0.0
        %1542 = vmatprep.subr.mxu0 0.0
        %1543 = vmatpush1.msra.mxu0 0.0
        %1544 = vmatprep.subr.mxu0 0.0
        %1545 = vmatpush1.msra.mxu0 0.0
        %1546 = vmatprep.subr.mxu0 0.0
        %1547 = vmatpush1.msra.mxu0 0.0
        %1548 = vmatprep.mubr.f32.mxu0 0.0
        %1549 = vmatmul.mubr.f32.gmra.mrb[0].mxu0 %v1401
        %v1550 = vpop.f32.mrb[0].mxu0
        %v1551 = vadd.f32 %v1234, %v1550
        %v1552 = vpop.f32.mrb[0].mxu0
        %v1553 = vadd.f32 %v1236, %v1552
        %1554 = vmatprep.mubr.f32.mxu0 0.0
        %1555 = vmatmul.mubr.f32.gmra.mrb[0].mxu0 %v1404
        %v1556 = vpop.f32.mrb[0].mxu0
        %v1557 = vadd.f32 %v1240, %v1556
        %v1558 = vpop.f32.mrb[0].mxu0
        %v1559 = vadd.f32 %v1242, %v1558
        %1560 = vmatprep.mubr.f32.mxu0 0.0
        %1561 = vmatmul.mubr.f32.gmra.mrb[0].mxu0 %v1407
        %v1562 = vpop.f32.mrb[0].mxu0
        %v1563 = vadd.f32 %v1246, %v1562
        %v1564 = vpop.f32.mrb[0].mxu0
        %v1565 = vadd.f32 %v1248, %v1564
        %1566 = vmatprep.mubr.f32.mxu0 0.0
        %1567 = vmatmul.mubr.f32.gmra.mrb[0].mxu0 %v1410
        %v1568 = vpop.f32.mrb[0].mxu0
        %v1569 = vadd.f32 %v1252, %v1568
        %v1570 = vpop.f32.mrb[0].mxu0
        %v1571 = vadd.f32 %v1254, %v1570
        %1572 = vmatprep.mubr.f32.mxu0 0.0
        %1573 = vmatmul.mubr.f32.gmra.mrb[0].mxu0 %v1413
        %v1574 = vpop.f32.mrb[0].mxu0
        %v1575 = vadd.f32 %v1258, %v1574
        %v1576 = vpop.f32.mrb[0].mxu0
        %v1577 = vadd.f32 %v1260, %v1576
        %1578 = vmatprep.mubr.f32.mxu0 0.0
        %1579 = vmatmul.mubr.f32.gmra.mrb[0].mxu0 %v1416
        %v1580 = vpop.f32.mrb[0].mxu0
        %v1581 = vadd.f32 %v1264, %v1580
        %v1582 = vpop.f32.mrb[0].mxu0
        %v1583 = vadd.f32 %v1266, %v1582
        %1584 = vmatprep.mubr.f32.mxu0 0.0
        %1585 = vmatmul.mubr.f32.gmra.mrb[0].mxu0 %v1419
        %v1586 = vpop.f32.mrb[0].mxu0
        %v1587 = vadd.f32 %v1270, %v1586
        %v1588 = vpop.f32.mrb[0].mxu0
        %v1589 = vadd.f32 %v1272, %v1588
        %1590 = vmatprep.mubr.f32.mxu0 0.0
        %1591 = vmatmul.mubr.f32.gmra.mrb[0].mxu0 %v1422
        %v1592 = vpop.f32.mrb[0].mxu0
        %v1593 = vadd.f32 %v1276, %v1592
        %v1594 = vpop.f32.mrb[0].mxu0
        %v1595 = vadd.f32 %v1278, %v1594
        %1596 = vmatprep.mubr.f32.mxu0 0.0
        %1597 = vmatmul.mubr.f32.gmra.mrb[0].mxu0 %v1425
        %v1598 = vpop.f32.mrb[0].mxu0
        %v1599 = vadd.f32 %v1282, %v1598
        %v1600 = vpop.f32.mrb[0].mxu0
        %v1601 = vadd.f32 %v1284, %v1600
        %1602 = vmatprep.mubr.f32.mxu0 0.0
        %1603 = vmatmul.mubr.f32.gmra.mrb[0].mxu0 %v1428
        %v1604 = vpop.f32.mrb[0].mxu0
        %v1605 = vadd.f32 %v1288, %v1604
        %v1606 = vpop.f32.mrb[0].mxu0
        %v1607 = vadd.f32 %v1290, %v1606
        %1608 = vmatprep.mubr.f32.mxu0 0.0
        %1609 = vmatmul.mubr.f32.gmra.mrb[0].mxu0 %v1431
        %v1610 = vpop.f32.mrb[0].mxu0
        %v1611 = vadd.f32 %v1294, %v1610
        %v1612 = vpop.f32.mrb[0].mxu0
        %v1613 = vadd.f32 %v1296, %v1612
        %1614 = vmatprep.mubr.f32.mxu0 0.0
        %1615 = vmatmul.mubr.f32.gmra.mrb[0].mxu0 %v1434
        %v1616 = vpop.f32.mrb[0].mxu0
        %v1617 = vadd.f32 %v1300, %v1616
        %v1618 = vpop.f32.mrb[0].mxu0
        %v1619 = vadd.f32 %v1302, %v1618
        %1620 = vmatprep.mubr.f32.mxu0 0.0
        %1621 = vmatmul.mubr.f32.gmra.mrb[0].mxu0 %v1437
        %v1622 = vpop.f32.mrb[0].mxu0
        %v1623 = vadd.f32 %v1306, %v1622
        %v1624 = vpop.f32.mrb[0].mxu0
        %v1625 = vadd.f32 %v1308, %v1624
        %1626 = vmatprep.mubr.f32.mxu0 0.0
        %1627 = vmatmul.mubr.f32.gmra.mrb[0].mxu0 %v1440
        %v1628 = vpop.f32.mrb[0].mxu0
        %v1629 = vadd.f32 %v1312, %v1628
        %v1630 = vpop.f32.mrb[0].mxu0
        %v1631 = vadd.f32 %v1314, %v1630
        %1632 = vmatprep.mubr.f32.mxu0 0.0
        %1633 = vmatmul.mubr.f32.gmra.mrb[0].mxu0 %v1443
        %v1634 = vpop.f32.mrb[0].mxu0
        %v1635 = vadd.f32 %v1318, %v1634
        %v1636 = vpop.f32.mrb[0].mxu0
        %v1637 = vadd.f32 %v1320, %v1636
        %1638 = vmatprep.mubr.f32.mxu0 0.0
        %1639 = vmatmul.mubr.f32.gmra.mrb[0].mxu0 %v1446
        %v1640 = vpop.f32.mrb[0].mxu0
        %v1641 = vadd.f32 %v1324, %v1640
        %v1642 = vpop.f32.mrb[0].mxu0
        %v1643 = vadd.f32 %v1326, %v1642
        %1644 = vmatprep.mubr.f32.mxu0 0.0
        %1645 = vmatmul.mubr.f32.gmra.mrb[0].mxu0 %v1449
        %v1646 = vpop.f32.mrb[0].mxu0
        %v1647 = vadd.f32 %v1330, %v1646
        %v1648 = vpop.f32.mrb[0].mxu0
        %v1649 = vadd.f32 %v1332, %v1648
        %1650 = vmatprep.mubr.f32.mxu0 0.0
        %1651 = vmatmul.mubr.f32.gmra.mrb[0].mxu0 %v1452
        %v1652 = vpop.f32.mrb[0].mxu0
        %v1653 = vadd.f32 %v1336, %v1652
        %v1654 = vpop.f32.mrb[0].mxu0
        %v1655 = vadd.f32 %v1338, %v1654
        %1656 = vmatprep.mubr.f32.mxu0 0.0
        %1657 = vmatmul.mubr.f32.gmra.mrb[0].mxu0 %v1455
        %v1658 = vpop.f32.mrb[0].mxu0
        %v1659 = vadd.f32 %v1342, %v1658
        %v1660 = vpop.f32.mrb[0].mxu0
        %v1661 = vadd.f32 %v1344, %v1660
        %1662 = vmatprep.mubr.f32.mxu0 0.0
        %1663 = vmatmul.mubr.f32.gmra.mrb[0].mxu0 %v1458
        %v1664 = vpop.f32.mrb[0].mxu0
        %v1665 = vadd.f32 %v1348, %v1664
        %v1666 = vpop.f32.mrb[0].mxu0
        %v1667 = vadd.f32 %v1350, %v1666
        %1668 = vmatprep.mubr.f32.mxu0 0.0
        %1669 = vmatmul.mubr.f32.gmra.mrb[0].mxu0 %v1461
        %v1670 = vpop.f32.mrb[0].mxu0
        %v1671 = vadd.f32 %v1354, %v1670
        %v1672 = vpop.f32.mrb[0].mxu0
        %v1673 = vadd.f32 %v1356, %v1672
        %1674 = vmatprep.mubr.f32.mxu0 0.0
        %1675 = vmatmul.mubr.f32.gmra.mrb[0].mxu0 %v1464
        %v1676 = vpop.f32.mrb[0].mxu0
        %v1677 = vadd.f32 %v1360, %v1676
        %v1678 = vpop.f32.mrb[0].mxu0
        %v1679 = vadd.f32 %v1362, %v1678
        %1680 = vmatprep.mubr.f32.mxu0 0.0
        %1681 = vmatmul.mubr.f32.gmra.mrb[0].mxu0 %v1467
        %v1682 = vpop.f32.mrb[0].mxu0
        %v1683 = vadd.f32 %v1366, %v1682
        %v1684 = vpop.f32.mrb[0].mxu0
        %v1685 = vadd.f32 %v1368, %v1684
        %1686 = vmatprep.mubr.f32.mxu0 0.0
        %1687 = vmatmul.mubr.f32.gmra.mrb[0].mxu0 %v1470
        %v1688 = vpop.f32.mrb[0].mxu0
        %v1689 = vadd.f32 %v1372, %v1688
        %v1690 = vpop.f32.mrb[0].mxu0
        %v1691 = vadd.f32 %v1374, %v1690
        %1692 = vmatprep.mubr.f32.mxu0 0.0
        %1693 = vmatmul.mubr.f32.gmra.mrb[0].mxu0 %v1473
        %v1694 = vpop.f32.mrb[0].mxu0
        %v1695 = vadd.f32 %v1378, %v1694
        %v1696 = vpop.f32.mrb[0].mxu0
        %v1697 = vadd.f32 %v1380, %v1696
        %1698 = vmatprep.mubr.f32.mxu0 0.0
        %1699 = vmatmul.mubr.f32.gmra.mrb[0].mxu0 %v1476
        %v1700 = vpop.f32.mrb[0].mxu0
        %v1701 = vadd.f32 %v1384, %v1700
        %v1702 = vpop.f32.mrb[0].mxu0
        %v1703 = vadd.f32 %v1386, %v1702
        %1704 = vmatprep.mubr.f32.mxu0 0.0
        %1705 = vmatmul.mubr.f32.gmra.mrb[0].mxu0 %v1479
        %v1706 = vpop.f32.mrb[0].mxu0
        %v1707 = vadd.f32 %v1390, %v1706
        %v1708 = vpop.f32.mrb[0].mxu0
        %v1709 = vadd.f32 %v1392, %v1708
        %1710 = vmatprep.mubr.f32.mxu0 0.0
        %1711 = vmatmul.mubr.f32.gmra.mrb[0].mxu0 %v1482
        %v1712 = vpop.f32.mrb[0].mxu0
        %v1713 = vadd.f32 %v1396, %v1712
        %v1714 = vpop.f32.mrb[0].mxu0
        %v1715 = vadd.f32 %v1398, %v1714
        %1716 = vdwg.mxu0
        %s1717 = scalar_lea.vmem [#allocation4], 896
        %v1718 = vld [vmem:[%s1717] sm:$0xff]
        %v1719 = vld [vmem:[%s1717 + $0x8] sm:$0xff]
        %v1720 = vld [vmem:[%s1717 + $0x10] sm:$0xff]
        %v1721 = vld [vmem:[%s1717 + $0x18] sm:$0xff]
        %v1722 = vld [vmem:[%s1717 + $0x20] sm:$0xff]
        %v1723 = vld [vmem:[%s1717 + $0x28] sm:$0xff]
        %v1724 = vld [vmem:[%s1717 + $0x30] sm:$0xff]
        %v1725 = vld [vmem:[%s1717 + $0x38] sm:$0xff]
        %v1726 = vld [vmem:[%s1717 + $0x40] sm:$0xff]
        %v1727 = vld [vmem:[%s1717 + $0x48] sm:$0xff]
        %v1728 = vld [vmem:[%s1717 + $0x50] sm:$0xff]
        %v1729 = vld [vmem:[%s1717 + $0x58] sm:$0xff]
        %v1730 = vld [vmem:[%s1717 + $0x60] sm:$0xff]
        %v1731 = vld [vmem:[%s1717 + $0x68] sm:$0xff]
        %v1732 = vld [vmem:[%s1717 + $0x70] sm:$0xff]
        %v1733 = vld [vmem:[%s1717 + $0x78] sm:$0xff]
        %v1734 = vld [vmem:[%s1717 + $0x80] sm:$0xff]
        %v1735 = vld [vmem:[%s1717 + $0x88] sm:$0xff]
        %v1736 = vld [vmem:[%s1717 + $0x90] sm:$0xff]
        %v1737 = vld [vmem:[%s1717 + $0x98] sm:$0xff]
        %v1738 = vld [vmem:[%s1717 + $0xa0] sm:$0xff]
        %v1739 = vld [vmem:[%s1717 + $0xa8] sm:$0xff]
        %v1740 = vld [vmem:[%s1717 + $0xb0] sm:$0xff]
        %v1741 = vld [vmem:[%s1717 + $0xb8] sm:$0xff]
        %v1742 = vld [vmem:[%s1717 + $0xc0] sm:$0xff]
        %v1743 = vld [vmem:[%s1717 + $0xc8] sm:$0xff]
        %v1744 = vld [vmem:[%s1717 + $0xd0] sm:$0xff]
        %v1745 = vld [vmem:[%s1717 + $0xd8] sm:$0xff]
        %v1746 = vld [vmem:[%s1717 + $0xe0] sm:$0xff]
        %v1747 = vld [vmem:[%s1717 + $0xe8] sm:$0xff]
        %v1748 = vld [vmem:[%s1717 + $0xf0] sm:$0xff]
        %v1749 = vld [vmem:[%s1717 + $0xf8] sm:$0xff]
        %v1750 = vld [vmem:[%s1717 + $0x100] sm:$0xff]
        %v1751 = vld [vmem:[%s1717 + $0x108] sm:$0xff]
        %v1752 = vld [vmem:[%s1717 + $0x110] sm:$0xff]
        %v1753 = vld [vmem:[%s1717 + $0x118] sm:$0xff]
        %v1754 = vld [vmem:[%s1717 + $0x120] sm:$0xff]
        %v1755 = vld [vmem:[%s1717 + $0x128] sm:$0xff]
        %v1756 = vld [vmem:[%s1717 + $0x130] sm:$0xff]
        %v1757 = vld [vmem:[%s1717 + $0x138] sm:$0xff]
        %v1758 = vld [vmem:[%s1717 + $0x140] sm:$0xff]
        %v1759 = vld [vmem:[%s1717 + $0x148] sm:$0xff]
        %v1760 = vld [vmem:[%s1717 + $0x150] sm:$0xff]
        %v1761 = vld [vmem:[%s1717 + $0x158] sm:$0xff]
        %v1762 = vld [vmem:[%s1717 + $0x160] sm:$0xff]
        %v1763 = vld [vmem:[%s1717 + $0x168] sm:$0xff]
        %v1764 = vld [vmem:[%s1717 + $0x170] sm:$0xff]
        %v1765 = vld [vmem:[%s1717 + $0x178] sm:$0xff]
        %v1766 = vld [vmem:[%s1717 + $0x180] sm:$0xff]
        %v1767 = vld [vmem:[%s1717 + $0x188] sm:$0xff]
        %v1768 = vld [vmem:[%s1717 + $0x190] sm:$0xff]
        %v1769 = vld [vmem:[%s1717 + $0x198] sm:$0xff]
        %v1770 = vld [vmem:[%s1717 + $0x1a0] sm:$0xff]
        %v1771 = vld [vmem:[%s1717 + $0x1a8] sm:$0xff]
        %v1772 = vld [vmem:[%s1717 + $0x1b0] sm:$0xff]
        %v1773 = vld [vmem:[%s1717 + $0x1b8] sm:$0xff]
        %1774 = vmatprep.subr.mxu0 0.0
        %1775 = vmatpush1.msra.mxu0 %v510
        %1776 = vmatprep.subr.mxu0 0.0
        %1777 = vmatpush1.msra.mxu0 %v511
        %1778 = vmatprep.subr.mxu0 0.0
        %1779 = vmatpush1.msra.mxu0 %v512
        %1780 = vmatprep.subr.mxu0 0.0
        %1781 = vmatpush1.msra.mxu0 %v513
        %1782 = vmatprep.subr.mxu0 0.0
        %1783 = vmatpush1.msra.mxu0 %v514
        %1784 = vmatprep.subr.mxu0 0.0
        %1785 = vmatpush1.msra.mxu0 %v515
        %1786 = vmatprep.subr.mxu0 0.0
        %1787 = vmatpush1.msra.mxu0 %v516
        %1788 = vmatprep.subr.mxu0 0.0
        %1789 = vmatpush1.msra.mxu0 %v517
        %1790 = vmatprep.subr.mxu0 0.0
        %1791 = vmatpush1.msra.mxu0 %v518
        %1792 = vmatprep.subr.mxu0 0.0
        %1793 = vmatpush1.msra.mxu0 %v519
        %1794 = vmatprep.subr.mxu0 0.0
        %1795 = vmatpush1.msra.mxu0 %v520
        %1796 = vmatprep.subr.mxu0 0.0
        %1797 = vmatpush1.msra.mxu0 %v521
        %1798 = vmatprep.subr.mxu0 0.0
        %1799 = vmatpush1.msra.mxu0 %v522
        %1800 = vmatprep.subr.mxu0 0.0
        %1801 = vmatpush1.msra.mxu0 %v523
        %1802 = vmatprep.subr.mxu0 0.0
        %1803 = vmatpush1.msra.mxu0 %v524
        %1804 = vmatprep.subr.mxu0 0.0
        %1805 = vmatpush1.msra.mxu0 %v525
        %1806 = vmatprep.subr.mxu0 0.0
        %1807 = vmatpush1.msra.mxu0 %v526
        %1808 = vmatprep.subr.mxu0 0.0
        %1809 = vmatpush1.msra.mxu0 %v527
        %1810 = vmatprep.subr.mxu0 0.0
        %1811 = vmatpush1.msra.mxu0 %v528
        %1812 = vmatprep.subr.mxu0 0.0
        %1813 = vmatpush1.msra.mxu0 %v529
        %1814 = vmatprep.subr.mxu0 0.0
        %1815 = vmatpush1.msra.mxu0 %v530
        %1816 = vmatprep.subr.mxu0 0.0
        %1817 = vmatpush1.msra.mxu0 %v531
        %1818 = vmatprep.subr.mxu0 0.0
        %1819 = vmatpush1.msra.mxu0 %v532
        %1820 = vmatprep.subr.mxu0 0.0
        %1821 = vmatpush1.msra.mxu0 %v533
        %1822 = vmatprep.subr.mxu0 0.0
        %1823 = vmatpush1.msra.mxu0 %v534
        %1824 = vmatprep.subr.mxu0 0.0
        %1825 = vmatpush1.msra.mxu0 %v535
        %1826 = vmatprep.subr.mxu0 0.0
        %1827 = vmatpush1.msra.mxu0 %v536
        %1828 = vmatprep.subr.mxu0 0.0
        %1829 = vmatpush1.msra.mxu0 %v537
        %1830 = vmatprep.subr.mxu0 0.0
        %1831 = vmatpush1.msra.mxu0 %v538
        %1832 = vmatprep.subr.mxu0 0.0
        %1833 = vmatpush1.msra.mxu0 %v539
        %1834 = vmatprep.subr.mxu0 0.0
        %1835 = vmatpush1.msra.mxu0 %v540
        %1836 = vmatprep.subr.mxu0 0.0
        %1837 = vmatpush1.msra.mxu0 %v541
        %1838 = vmatprep.mubr.f32.mxu0 %v1719
        %1839 = vmatmul.mubr.f32.gmra.mrb[0].mxu0 %v1718
        %v1840 = vpop.f32.mrb[0].mxu0
        %v1841 = vadd.f32 0.0, %v1840
        %v1842 = vpop.f32.mrb[0].mxu0
        %1843 = vmatprep.mubr.f32.mxu0 %v1721
        %1844 = vmatmul.mubr.f32.gmra.mrb[0].mxu0 %v1720
        %v1845 = vpop.f32.mrb[0].mxu0
        %v1846 = vadd.f32 0.0, %v1845
        %v1847 = vpop.f32.mrb[0].mxu0
        %1848 = vmatprep.mubr.f32.mxu0 %v1723
        %1849 = vmatmul.mubr.f32.gmra.mrb[0].mxu0 %v1722
        %v1850 = vpop.f32.mrb[0].mxu0
        %v1851 = vadd.f32 0.0, %v1850
        %v1852 = vpop.f32.mrb[0].mxu0
        %1853 = vmatprep.mubr.f32.mxu0 %v1725
        %1854 = vmatmul.mubr.f32.gmra.mrb[0].mxu0 %v1724
        %v1855 = vpop.f32.mrb[0].mxu0
        %v1856 = vadd.f32 0.0, %v1855
        %v1857 = vpop.f32.mrb[0].mxu0
        %1858 = vmatprep.mubr.f32.mxu0 %v1727
        %1859 = vmatmul.mubr.f32.gmra.mrb[0].mxu0 %v1726
        %v1860 = vpop.f32.mrb[0].mxu0
        %v1861 = vadd.f32 0.0, %v1860
        %v1862 = vpop.f32.mrb[0].mxu0
        %1863 = vmatprep.mubr.f32.mxu0 %v1729
        %1864 = vmatmul.mubr.f32.gmra.mrb[0].mxu0 %v1728
        %v1865 = vpop.f32.mrb[0].mxu0
        %v1866 = vadd.f32 0.0, %v1865
        %v1867 = vpop.f32.mrb[0].mxu0
        %1868 = vmatprep.mubr.f32.mxu0 %v1731
        %1869 = vmatmul.mubr.f32.gmra.mrb[0].mxu0 %v1730
        %v1870 = vpop.f32.mrb[0].mxu0
        %v1871 = vadd.f32 0.0, %v1870
        %v1872 = vpop.f32.mrb[0].mxu0
        %1873 = vmatprep.mubr.f32.mxu0 %v1733
        %1874 = vmatmul.mubr.f32.gmra.mrb[0].mxu0 %v1732
        %v1875 = vpop.f32.mrb[0].mxu0
        %v1876 = vadd.f32 0.0, %v1875
        %v1877 = vpop.f32.mrb[0].mxu0
        %1878 = vmatprep.mubr.f32.mxu0 %v1735
        %1879 = vmatmul.mubr.f32.gmra.mrb[0].mxu0 %v1734
        %v1880 = vpop.f32.mrb[0].mxu0
        %v1881 = vadd.f32 0.0, %v1880
        %v1882 = vpop.f32.mrb[0].mxu0
        %1883 = vmatprep.mubr.f32.mxu0 %v1737
        %1884 = vmatmul.mubr.f32.gmra.mrb[0].mxu0 %v1736
        %v1885 = vpop.f32.mrb[0].mxu0
        %v1886 = vadd.f32 0.0, %v1885
        %v1887 = vpop.f32.mrb[0].mxu0
        %1888 = vmatprep.mubr.f32.mxu0 %v1739
        %1889 = vmatmul.mubr.f32.gmra.mrb[0].mxu0 %v1738
        %v1890 = vpop.f32.mrb[0].mxu0
        %v1891 = vadd.f32 0.0, %v1890
        %v1892 = vpop.f32.mrb[0].mxu0
        %1893 = vmatprep.mubr.f32.mxu0 %v1741
        %1894 = vmatmul.mubr.f32.gmra.mrb[0].mxu0 %v1740
        %v1895 = vpop.f32.mrb[0].mxu0
        %v1896 = vadd.f32 0.0, %v1895
        %v1897 = vpop.f32.mrb[0].mxu0
        %1898 = vmatprep.mubr.f32.mxu0 %v1743
        %1899 = vmatmul.mubr.f32.gmra.mrb[0].mxu0 %v1742
        %v1900 = vpop.f32.mrb[0].mxu0
        %v1901 = vadd.f32 0.0, %v1900
        %v1902 = vpop.f32.mrb[0].mxu0
        %1903 = vmatprep.mubr.f32.mxu0 %v1745
        %1904 = vmatmul.mubr.f32.gmra.mrb[0].mxu0 %v1744
        %v1905 = vpop.f32.mrb[0].mxu0
        %v1906 = vadd.f32 0.0, %v1905
        %v1907 = vpop.f32.mrb[0].mxu0
        %1908 = vmatprep.mubr.f32.mxu0 %v1747
        %1909 = vmatmul.mubr.f32.gmra.mrb[0].mxu0 %v1746
        %v1910 = vpop.f32.mrb[0].mxu0
        %v1911 = vadd.f32 0.0, %v1910
        %v1912 = vpop.f32.mrb[0].mxu0
        %1913 = vmatprep.mubr.f32.mxu0 %v1749
        %1914 = vmatmul.mubr.f32.gmra.mrb[0].mxu0 %v1748
        %v1915 = vpop.f32.mrb[0].mxu0
        %v1916 = vadd.f32 0.0, %v1915
        %v1917 = vpop.f32.mrb[0].mxu0
        %1918 = vmatprep.mubr.f32.mxu0 %v1751
        %1919 = vmatmul.mubr.f32.gmra.mrb[0].mxu0 %v1750
        %v1920 = vpop.f32.mrb[0].mxu0
        %v1921 = vadd.f32 0.0, %v1920
        %v1922 = vpop.f32.mrb[0].mxu0
        %1923 = vmatprep.mubr.f32.mxu0 %v1753
        %1924 = vmatmul.mubr.f32.gmra.mrb[0].mxu0 %v1752
        %v1925 = vpop.f32.mrb[0].mxu0
        %v1926 = vadd.f32 0.0, %v1925
        %v1927 = vpop.f32.mrb[0].mxu0
        %1928 = vmatprep.mubr.f32.mxu0 %v1755
        %1929 = vmatmul.mubr.f32.gmra.mrb[0].mxu0 %v1754
        %v1930 = vpop.f32.mrb[0].mxu0
        %v1931 = vadd.f32 0.0, %v1930
        %v1932 = vpop.f32.mrb[0].mxu0
        %1933 = vmatprep.mubr.f32.mxu0 %v1757
        %1934 = vmatmul.mubr.f32.gmra.mrb[0].mxu0 %v1756
        %v1935 = vpop.f32.mrb[0].mxu0
        %v1936 = vadd.f32 0.0, %v1935
        %v1937 = vpop.f32.mrb[0].mxu0
        %1938 = vmatprep.mubr.f32.mxu0 %v1759
        %1939 = vmatmul.mubr.f32.gmra.mrb[0].mxu0 %v1758
        %v1940 = vpop.f32.mrb[0].mxu0
        %v1941 = vadd.f32 0.0, %v1940
        %v1942 = vpop.f32.mrb[0].mxu0
        %1943 = vmatprep.mubr.f32.mxu0 %v1761
        %1944 = vmatmul.mubr.f32.gmra.mrb[0].mxu0 %v1760
        %v1945 = vpop.f32.mrb[0].mxu0
        %v1946 = vadd.f32 0.0, %v1945
        %v1947 = vpop.f32.mrb[0].mxu0
        %1948 = vmatprep.mubr.f32.mxu0 %v1763
        %1949 = vmatmul.mubr.f32.gmra.mrb[0].mxu0 %v1762
        %v1950 = vpop.f32.mrb[0].mxu0
        %v1951 = vadd.f32 0.0, %v1950
        %v1952 = vpop.f32.mrb[0].mxu0
        %1953 = vmatprep.mubr.f32.mxu0 %v1765
        %1954 = vmatmul.mubr.f32.gmra.mrb[0].mxu0 %v1764
        %v1955 = vpop.f32.mrb[0].mxu0
        %v1956 = vadd.f32 0.0, %v1955
        %v1957 = vpop.f32.mrb[0].mxu0
        %1958 = vmatprep.mubr.f32.mxu0 %v1767
        %1959 = vmatmul.mubr.f32.gmra.mrb[0].mxu0 %v1766
        %v1960 = vpop.f32.mrb[0].mxu0
        %v1961 = vadd.f32 0.0, %v1960
        %v1962 = vpop.f32.mrb[0].mxu0
        %1963 = vmatprep.mubr.f32.mxu0 %v1769
        %1964 = vmatmul.mubr.f32.gmra.mrb[0].mxu0 %v1768
        %v1965 = vpop.f32.mrb[0].mxu0
        %v1966 = vadd.f32 0.0, %v1965
        %v1967 = vpop.f32.mrb[0].mxu0
        %1968 = vmatprep.mubr.f32.mxu0 %v1771
        %1969 = vmatmul.mubr.f32.gmra.mrb[0].mxu0 %v1770
        %v1970 = vpop.f32.mrb[0].mxu0
        %v1971 = vadd.f32 0.0, %v1970
        %v1972 = vpop.f32.mrb[0].mxu0
        %1973 = vmatprep.mubr.f32.mxu0 %v1773
        %1974 = vmatmul.mubr.f32.gmra.mrb[0].mxu0 %v1772
        %v1975 = vpop.f32.mrb[0].mxu0
        %v1976 = vadd.f32 0.0, %v1975
        %v1977 = vpop.f32.mrb[0].mxu0
        %1978 = vdwg.mxu0
        %s1979 = scalar_lea.vmem [#allocation6], 128
        %v1980 = vld [vmem:[%s1979] sm:$0xff]
        %v1981 = vld [vmem:[%s1979 + $0x8] sm:$0xff]
        %v1982 = vld [vmem:[%s1979 + $0x10] sm:$0xff]
        %v1983 = vld [vmem:[%s1979 + $0x18] sm:$0xff]
        %v1984 = vld [vmem:[%s1979 + $0x20] sm:$0xff]
        %v1985 = vld [vmem:[%s1979 + $0x28] sm:$0xff]
        %v1986 = vld [vmem:[%s1979 + $0x30] sm:$0xff]
        %v1987 = vld [vmem:[%s1979 + $0x38] sm:$0xff]
        %v1989 = vsel %vm1082, %v1841, 0
        %v1992 = vsel %vm1082, %v1846, 0
        %v1995 = vsel %vm1082, %v1851, 0
        %v1998 = vsel %vm1082, %v1856, 0
        %v2001 = vsel %vm1082, %v1861, 0
        %v2004 = vsel %vm1082, %v1866, 0
        %v2007 = vsel %vm1082, %v1871, 0
        %v2010 = vsel %vm1082, %v1876, 0
        %v2013 = vsel %vm1082, %v1881, 0
        %v2016 = vsel %vm1082, %v1886, 0
        %v2019 = vsel %vm1082, %v1891, 0
        %v2022 = vsel %vm1082, %v1896, 0
        %v2025 = vsel %vm1082, %v1901, 0
        %v2028 = vsel %vm1082, %v1906, 0
        %v2031 = vsel %vm1082, %v1911, 0
        %v2034 = vsel %vm1082, %v1916, 0
        %v2037 = vsel %vm1082, %v1921, 0
        %v2040 = vsel %vm1082, %v1926, 0
        %v2043 = vsel %vm1082, %v1931, 0
        %v2046 = vsel %vm1082, %v1936, 0
        %v2049 = vsel %vm1082, %v1941, 0
        %v2052 = vsel %vm1082, %v1946, 0
        %v2055 = vsel %vm1082, %v1951, 0
        %v2058 = vsel %vm1082, %v1956, 0
        %v2061 = vsel %vm1082, %v1961, 0
        %v2064 = vsel %vm1082, %v1966, 0
        %v2067 = vsel %vm1082, %v1971, 0
        %v2070 = vsel %vm1082, %v1976, 0
        %2072 = vmatprep.subr.mxu0 %v1981
        %2073 = vmatpush1.msra.mxu0 %v1980
        %2074 = vmatprep.subr.mxu0 %v1983
        %2075 = vmatpush1.msra.mxu0 %v1982
        %2076 = vmatprep.subr.mxu0 %v1985
        %2077 = vmatpush1.msra.mxu0 %v1984
        %2078 = vmatprep.subr.mxu0 %v1987
        %2079 = vmatpush1.msra.mxu0 %v1986
        %2080 = vmatprep.subr.mxu0 0.0
        %2081 = vmatpush1.msra.mxu0 0.0
        %2082 = vmatprep.subr.mxu0 0.0
        %2083 = vmatpush1.msra.mxu0 0.0
        %2084 = vmatprep.subr.mxu0 0.0
        %2085 = vmatpush1.msra.mxu0 0.0
        %2086 = vmatprep.subr.mxu0 0.0
        %2087 = vmatpush1.msra.mxu0 0.0
        %2088 = vmatprep.subr.mxu0 0.0
        %2089 = vmatpush1.msra.mxu0 0.0
        %2090 = vmatprep.subr.mxu0 0.0
        %2091 = vmatpush1.msra.mxu0 0.0
        %2092 = vmatprep.subr.mxu0 0.0
        %2093 = vmatpush1.msra.mxu0 0.0
        %2094 = vmatprep.subr.mxu0 0.0
        %2095 = vmatpush1.msra.mxu0 0.0
        %2096 = vmatprep.subr.mxu0 0.0
        %2097 = vmatpush1.msra.mxu0 0.0
        %2098 = vmatprep.subr.mxu0 0.0
        %2099 = vmatpush1.msra.mxu0 0.0
        %2100 = vmatprep.subr.mxu0 0.0
        %2101 = vmatpush1.msra.mxu0 0.0
        %2102 = vmatprep.subr.mxu0 0.0
        %2103 = vmatpush1.msra.mxu0 0.0
        %2104 = vmatprep.subr.mxu0 0.0
        %2105 = vmatpush1.msra.mxu0 0.0
        %2106 = vmatprep.subr.mxu0 0.0
        %2107 = vmatpush1.msra.mxu0 0.0
        %2108 = vmatprep.subr.mxu0 0.0
        %2109 = vmatpush1.msra.mxu0 0.0
        %2110 = vmatprep.subr.mxu0 0.0
        %2111 = vmatpush1.msra.mxu0 0.0
        %2112 = vmatprep.subr.mxu0 0.0
        %2113 = vmatpush1.msra.mxu0 0.0
        %2114 = vmatprep.subr.mxu0 0.0
        %2115 = vmatpush1.msra.mxu0 0.0
        %2116 = vmatprep.subr.mxu0 0.0
        %2117 = vmatpush1.msra.mxu0 0.0
        %2118 = vmatprep.subr.mxu0 0.0
        %2119 = vmatpush1.msra.mxu0 0.0
        %2120 = vmatprep.subr.mxu0 0.0
        %2121 = vmatpush1.msra.mxu0 0.0
        %2122 = vmatprep.subr.mxu0 0.0
        %2123 = vmatpush1.msra.mxu0 0.0
        %2124 = vmatprep.subr.mxu0 0.0
        %2125 = vmatpush1.msra.mxu0 0.0
        %2126 = vmatprep.subr.mxu0 0.0
        %2127 = vmatpush1.msra.mxu0 0.0
        %2128 = vmatprep.subr.mxu0 0.0
        %2129 = vmatpush1.msra.mxu0 0.0
        %2130 = vmatprep.subr.mxu0 0.0
        %2131 = vmatpush1.msra.mxu0 0.0
        %2132 = vmatprep.subr.mxu0 0.0
        %2133 = vmatpush1.msra.mxu0 0.0
        %2134 = vmatprep.subr.mxu0 0.0
        %2135 = vmatpush1.msra.mxu0 0.0
        %2136 = vmatprep.mubr.f32.mxu0 0.0
        %2137 = vmatmul.mubr.f32.gmra.mrb[0].mxu0 %v1989
        %v2138 = vpop.f32.mrb[0].mxu0
        %v2139 = vadd.f32 0.0, %v2138
        %v2140 = vpop.f32.mrb[0].mxu0
        %v2141 = vadd.f32 0.0, %v2140
        %2142 = vmatprep.mubr.f32.mxu0 0.0
        %2143 = vmatmul.mubr.f32.gmra.mrb[0].mxu0 %v1992
        %v2144 = vpop.f32.mrb[0].mxu0
        %v2145 = vadd.f32 0.0, %v2144
        %v2146 = vpop.f32.mrb[0].mxu0
        %v2147 = vadd.f32 0.0, %v2146
        %2148 = vmatprep.mubr.f32.mxu0 0.0
        %2149 = vmatmul.mubr.f32.gmra.mrb[0].mxu0 %v1995
        %v2150 = vpop.f32.mrb[0].mxu0
        %v2151 = vadd.f32 0.0, %v2150
        %v2152 = vpop.f32.mrb[0].mxu0
        %v2153 = vadd.f32 0.0, %v2152
        %2154 = vmatprep.mubr.f32.mxu0 0.0
        %2155 = vmatmul.mubr.f32.gmra.mrb[0].mxu0 %v1998
        %v2156 = vpop.f32.mrb[0].mxu0
        %v2157 = vadd.f32 0.0, %v2156
        %v2158 = vpop.f32.mrb[0].mxu0
        %v2159 = vadd.f32 0.0, %v2158
        %2160 = vmatprep.mubr.f32.mxu0 0.0
        %2161 = vmatmul.mubr.f32.gmra.mrb[0].mxu0 %v2001
        %v2162 = vpop.f32.mrb[0].mxu0
        %v2163 = vadd.f32 0.0, %v2162
        %v2164 = vpop.f32.mrb[0].mxu0
        %v2165 = vadd.f32 0.0, %v2164
        %2166 = vmatprep.mubr.f32.mxu0 0.0
        %2167 = vmatmul.mubr.f32.gmra.mrb[0].mxu0 %v2004
        %v2168 = vpop.f32.mrb[0].mxu0
        %v2169 = vadd.f32 0.0, %v2168
        %v2170 = vpop.f32.mrb[0].mxu0
        %v2171 = vadd.f32 0.0, %v2170
        %2172 = vmatprep.mubr.f32.mxu0 0.0
        %2173 = vmatmul.mubr.f32.gmra.mrb[0].mxu0 %v2007
        %v2174 = vpop.f32.mrb[0].mxu0
        %v2175 = vadd.f32 0.0, %v2174
        %v2176 = vpop.f32.mrb[0].mxu0
        %v2177 = vadd.f32 0.0, %v2176
        %2178 = vmatprep.mubr.f32.mxu0 0.0
        %2179 = vmatmul.mubr.f32.gmra.mrb[0].mxu0 %v2010
        %v2180 = vpop.f32.mrb[0].mxu0
        %v2181 = vadd.f32 0.0, %v2180
        %v2182 = vpop.f32.mrb[0].mxu0
        %v2183 = vadd.f32 0.0, %v2182
        %2184 = vmatprep.mubr.f32.mxu0 0.0
        %2185 = vmatmul.mubr.f32.gmra.mrb[0].mxu0 %v2013
        %v2186 = vpop.f32.mrb[0].mxu0
        %v2187 = vadd.f32 0.0, %v2186
        %v2188 = vpop.f32.mrb[0].mxu0
        %v2189 = vadd.f32 0.0, %v2188
        %2190 = vmatprep.mubr.f32.mxu0 0.0
        %2191 = vmatmul.mubr.f32.gmra.mrb[0].mxu0 %v2016
        %v2192 = vpop.f32.mrb[0].mxu0
        %v2193 = vadd.f32 0.0, %v2192
        %v2194 = vpop.f32.mrb[0].mxu0
        %v2195 = vadd.f32 0.0, %v2194
        %2196 = vmatprep.mubr.f32.mxu0 0.0
        %2197 = vmatmul.mubr.f32.gmra.mrb[0].mxu0 %v2019
        %v2198 = vpop.f32.mrb[0].mxu0
        %v2199 = vadd.f32 0.0, %v2198
        %v2200 = vpop.f32.mrb[0].mxu0
        %v2201 = vadd.f32 0.0, %v2200
        %2202 = vmatprep.mubr.f32.mxu0 0.0
        %2203 = vmatmul.mubr.f32.gmra.mrb[0].mxu0 %v2022
        %v2204 = vpop.f32.mrb[0].mxu0
        %v2205 = vadd.f32 0.0, %v2204
        %v2206 = vpop.f32.mrb[0].mxu0
        %v2207 = vadd.f32 0.0, %v2206
        %2208 = vmatprep.mubr.f32.mxu0 0.0
        %2209 = vmatmul.mubr.f32.gmra.mrb[0].mxu0 %v2025
        %v2210 = vpop.f32.mrb[0].mxu0
        %v2211 = vadd.f32 0.0, %v2210
        %v2212 = vpop.f32.mrb[0].mxu0
        %v2213 = vadd.f32 0.0, %v2212
        %2214 = vmatprep.mubr.f32.mxu0 0.0
        %2215 = vmatmul.mubr.f32.gmra.mrb[0].mxu0 %v2028
        %v2216 = vpop.f32.mrb[0].mxu0
        %v2217 = vadd.f32 0.0, %v2216
        %v2218 = vpop.f32.mrb[0].mxu0
        %v2219 = vadd.f32 0.0, %v2218
        %2220 = vmatprep.mubr.f32.mxu0 0.0
        %2221 = vmatmul.mubr.f32.gmra.mrb[0].mxu0 %v2031
        %v2222 = vpop.f32.mrb[0].mxu0
        %v2223 = vadd.f32 0.0, %v2222
        %v2224 = vpop.f32.mrb[0].mxu0
        %v2225 = vadd.f32 0.0, %v2224
        %2226 = vmatprep.mubr.f32.mxu0 0.0
        %2227 = vmatmul.mubr.f32.gmra.mrb[0].mxu0 %v2034
        %v2228 = vpop.f32.mrb[0].mxu0
        %v2229 = vadd.f32 0.0, %v2228
        %v2230 = vpop.f32.mrb[0].mxu0
        %v2231 = vadd.f32 0.0, %v2230
        %2232 = vmatprep.mubr.f32.mxu0 0.0
        %2233 = vmatmul.mubr.f32.gmra.mrb[0].mxu0 %v2037
        %v2234 = vpop.f32.mrb[0].mxu0
        %v2235 = vadd.f32 0.0, %v2234
        %v2236 = vpop.f32.mrb[0].mxu0
        %v2237 = vadd.f32 0.0, %v2236
        %2238 = vmatprep.mubr.f32.mxu0 0.0
        %2239 = vmatmul.mubr.f32.gmra.mrb[0].mxu0 %v2040
        %v2240 = vpop.f32.mrb[0].mxu0
        %v2241 = vadd.f32 0.0, %v2240
        %v2242 = vpop.f32.mrb[0].mxu0
        %v2243 = vadd.f32 0.0, %v2242
        %2244 = vmatprep.mubr.f32.mxu0 0.0
        %2245 = vmatmul.mubr.f32.gmra.mrb[0].mxu0 %v2043
        %v2246 = vpop.f32.mrb[0].mxu0
        %v2247 = vadd.f32 0.0, %v2246
        %v2248 = vpop.f32.mrb[0].mxu0
        %v2249 = vadd.f32 0.0, %v2248
        %2250 = vmatprep.mubr.f32.mxu0 0.0
        %2251 = vmatmul.mubr.f32.gmra.mrb[0].mxu0 %v2046
        %v2252 = vpop.f32.mrb[0].mxu0
        %v2253 = vadd.f32 0.0, %v2252
        %v2254 = vpop.f32.mrb[0].mxu0
        %v2255 = vadd.f32 0.0, %v2254
        %2256 = vmatprep.mubr.f32.mxu0 0.0
        %2257 = vmatmul.mubr.f32.gmra.mrb[0].mxu0 %v2049
        %v2258 = vpop.f32.mrb[0].mxu0
        %v2259 = vadd.f32 0.0, %v2258
        %v2260 = vpop.f32.mrb[0].mxu0
        %v2261 = vadd.f32 0.0, %v2260
        %2262 = vmatprep.mubr.f32.mxu0 0.0
        %2263 = vmatmul.mubr.f32.gmra.mrb[0].mxu0 %v2052
        %v2264 = vpop.f32.mrb[0].mxu0
        %v2265 = vadd.f32 0.0, %v2264
        %v2266 = vpop.f32.mrb[0].mxu0
        %v2267 = vadd.f32 0.0, %v2266
        %2268 = vmatprep.mubr.f32.mxu0 0.0
        %2269 = vmatmul.mubr.f32.gmra.mrb[0].mxu0 %v2055
        %v2270 = vpop.f32.mrb[0].mxu0
        %v2271 = vadd.f32 0.0, %v2270
        %v2272 = vpop.f32.mrb[0].mxu0
        %v2273 = vadd.f32 0.0, %v2272
        %2274 = vmatprep.mubr.f32.mxu0 0.0
        %2275 = vmatmul.mubr.f32.gmra.mrb[0].mxu0 %v2058
        %v2276 = vpop.f32.mrb[0].mxu0
        %v2277 = vadd.f32 0.0, %v2276
        %v2278 = vpop.f32.mrb[0].mxu0
        %v2279 = vadd.f32 0.0, %v2278
        %2280 = vmatprep.mubr.f32.mxu0 0.0
        %2281 = vmatmul.mubr.f32.gmra.mrb[0].mxu0 %v2061
        %v2282 = vpop.f32.mrb[0].mxu0
        %v2283 = vadd.f32 0.0, %v2282
        %v2284 = vpop.f32.mrb[0].mxu0
        %v2285 = vadd.f32 0.0, %v2284
        %2286 = vmatprep.mubr.f32.mxu0 0.0
        %2287 = vmatmul.mubr.f32.gmra.mrb[0].mxu0 %v2064
        %v2288 = vpop.f32.mrb[0].mxu0
        %v2289 = vadd.f32 0.0, %v2288
        %v2290 = vpop.f32.mrb[0].mxu0
        %v2291 = vadd.f32 0.0, %v2290
        %2292 = vmatprep.mubr.f32.mxu0 0.0
        %2293 = vmatmul.mubr.f32.gmra.mrb[0].mxu0 %v2067
        %v2294 = vpop.f32.mrb[0].mxu0
        %v2295 = vadd.f32 0.0, %v2294
        %v2296 = vpop.f32.mrb[0].mxu0
        %v2297 = vadd.f32 0.0, %v2296
        %2298 = vmatprep.mubr.f32.mxu0 0.0
        %2299 = vmatmul.mubr.f32.gmra.mrb[0].mxu0 %v2070
        %v2300 = vpop.f32.mrb[0].mxu0
        %v2301 = vadd.f32 0.0, %v2300
        %v2302 = vpop.f32.mrb[0].mxu0
        %v2303 = vadd.f32 0.0, %v2302
        %2304 = vdwg.mxu0
        %v2305 = vadd.f32 %v1551, %v2139
        %v2306 = vadd.f32 %v1553, %v2141
        %v2307 = vadd.f32 %v1557, %v2145
        %v2308 = vadd.f32 %v1559, %v2147
        %v2309 = vadd.f32 %v1563, %v2151
        %v2310 = vadd.f32 %v1565, %v2153
        %v2311 = vadd.f32 %v1569, %v2157
        %v2312 = vadd.f32 %v1571, %v2159
        %v2313 = vadd.f32 %v1575, %v2163
        %v2314 = vadd.f32 %v1577, %v2165
        %v2315 = vadd.f32 %v1581, %v2169
        %v2316 = vadd.f32 %v1583, %v2171
        %v2317 = vadd.f32 %v1587, %v2175
        %v2318 = vadd.f32 %v1589, %v2177
        %v2319 = vadd.f32 %v1593, %v2181
        %v2320 = vadd.f32 %v1595, %v2183
        %v2321 = vadd.f32 %v1599, %v2187
        %v2322 = vadd.f32 %v1601, %v2189
        %v2323 = vadd.f32 %v1605, %v2193
        %v2324 = vadd.f32 %v1607, %v2195
        %v2325 = vadd.f32 %v1611, %v2199
        %v2326 = vadd.f32 %v1613, %v2201
        %v2327 = vadd.f32 %v1617, %v2205
        %v2328 = vadd.f32 %v1619, %v2207
        %v2329 = vadd.f32 %v1623, %v2211
        %v2330 = vadd.f32 %v1625, %v2213
        %v2331 = vadd.f32 %v1629, %v2217
        %v2332 = vadd.f32 %v1631, %v2219
        %v2333 = vadd.f32 %v1635, %v2223
        %v2334 = vadd.f32 %v1637, %v2225
        %v2335 = vadd.f32 %v1641, %v2229
        %v2336 = vadd.f32 %v1643, %v2231
        %v2337 = vadd.f32 %v1647, %v2235
        %v2338 = vadd.f32 %v1649, %v2237
        %v2339 = vadd.f32 %v1653, %v2241
        %v2340 = vadd.f32 %v1655, %v2243
        %v2341 = vadd.f32 %v1659, %v2247
        %v2342 = vadd.f32 %v1661, %v2249
        %v2343 = vadd.f32 %v1665, %v2253
        %v2344 = vadd.f32 %v1667, %v2255
        %v2345 = vadd.f32 %v1671, %v2259
        %v2346 = vadd.f32 %v1673, %v2261
        %v2347 = vadd.f32 %v1677, %v2265
        %v2348 = vadd.f32 %v1679, %v2267
        %v2349 = vadd.f32 %v1683, %v2271
        %v2350 = vadd.f32 %v1685, %v2273
        %v2351 = vadd.f32 %v1689, %v2277
        %v2352 = vadd.f32 %v1691, %v2279
        %v2353 = vadd.f32 %v1695, %v2283
        %v2354 = vadd.f32 %v1697, %v2285
        %v2355 = vadd.f32 %v1701, %v2289
        %v2356 = vadd.f32 %v1703, %v2291
        %v2357 = vadd.f32 %v1707, %v2295
        %v2358 = vadd.f32 %v1709, %v2297
        %v2359 = vadd.f32 %v1713, %v2301
        %v2360 = vadd.f32 %v1715, %v2303
        %s2361 = scalar_lea.vmem [#allocation4], 1344
        %v2362 = vld [vmem:[%s2361] sm:$0xff]
        %v2363 = vld [vmem:[%s2361 + $0x8] sm:$0xff]
        %v2364 = vld [vmem:[%s2361 + $0x10] sm:$0xff]
        %v2365 = vld [vmem:[%s2361 + $0x18] sm:$0xff]
        %v2366 = vld [vmem:[%s2361 + $0x20] sm:$0xff]
        %v2367 = vld [vmem:[%s2361 + $0x28] sm:$0xff]
        %v2368 = vld [vmem:[%s2361 + $0x30] sm:$0xff]
        %v2369 = vld [vmem:[%s2361 + $0x38] sm:$0xff]
        %v2370 = vld [vmem:[%s2361 + $0x40] sm:$0xff]
        %v2371 = vld [vmem:[%s2361 + $0x48] sm:$0xff]
        %v2372 = vld [vmem:[%s2361 + $0x50] sm:$0xff]
        %v2373 = vld [vmem:[%s2361 + $0x58] sm:$0xff]
        %v2374 = vld [vmem:[%s2361 + $0x60] sm:$0xff]
        %v2375 = vld [vmem:[%s2361 + $0x68] sm:$0xff]
        %v2376 = vld [vmem:[%s2361 + $0x70] sm:$0xff]
        %v2377 = vld [vmem:[%s2361 + $0x78] sm:$0xff]
        %v2378 = vld [vmem:[%s2361 + $0x80] sm:$0xff]
        %v2379 = vld [vmem:[%s2361 + $0x88] sm:$0xff]
        %v2380 = vld [vmem:[%s2361 + $0x90] sm:$0xff]
        %v2381 = vld [vmem:[%s2361 + $0x98] sm:$0xff]
        %v2382 = vld [vmem:[%s2361 + $0xa0] sm:$0xff]
        %v2383 = vld [vmem:[%s2361 + $0xa8] sm:$0xff]
        %v2384 = vld [vmem:[%s2361 + $0xb0] sm:$0xff]
        %v2385 = vld [vmem:[%s2361 + $0xb8] sm:$0xff]
        %v2386 = vld [vmem:[%s2361 + $0xc0] sm:$0xff]
        %v2387 = vld [vmem:[%s2361 + $0xc8] sm:$0xff]
        %v2388 = vld [vmem:[%s2361 + $0xd0] sm:$0xff]
        %v2389 = vld [vmem:[%s2361 + $0xd8] sm:$0xff]
        %v2390 = vld [vmem:[%s2361 + $0xe0] sm:$0xff]
        %v2391 = vld [vmem:[%s2361 + $0xe8] sm:$0xff]
        %v2392 = vld [vmem:[%s2361 + $0xf0] sm:$0xff]
        %v2393 = vld [vmem:[%s2361 + $0xf8] sm:$0xff]
        %v2394 = vld [vmem:[%s2361 + $0x100] sm:$0xff]
        %v2395 = vld [vmem:[%s2361 + $0x108] sm:$0xff]
        %v2396 = vld [vmem:[%s2361 + $0x110] sm:$0xff]
        %v2397 = vld [vmem:[%s2361 + $0x118] sm:$0xff]
        %v2398 = vld [vmem:[%s2361 + $0x120] sm:$0xff]
        %v2399 = vld [vmem:[%s2361 + $0x128] sm:$0xff]
        %v2400 = vld [vmem:[%s2361 + $0x130] sm:$0xff]
        %v2401 = vld [vmem:[%s2361 + $0x138] sm:$0xff]
        %v2402 = vld [vmem:[%s2361 + $0x140] sm:$0xff]
        %v2403 = vld [vmem:[%s2361 + $0x148] sm:$0xff]
        %v2404 = vld [vmem:[%s2361 + $0x150] sm:$0xff]
        %v2405 = vld [vmem:[%s2361 + $0x158] sm:$0xff]
        %v2406 = vld [vmem:[%s2361 + $0x160] sm:$0xff]
        %v2407 = vld [vmem:[%s2361 + $0x168] sm:$0xff]
        %v2408 = vld [vmem:[%s2361 + $0x170] sm:$0xff]
        %v2409 = vld [vmem:[%s2361 + $0x178] sm:$0xff]
        %v2410 = vld [vmem:[%s2361 + $0x180] sm:$0xff]
        %v2411 = vld [vmem:[%s2361 + $0x188] sm:$0xff]
        %v2412 = vld [vmem:[%s2361 + $0x190] sm:$0xff]
        %v2413 = vld [vmem:[%s2361 + $0x198] sm:$0xff]
        %v2414 = vld [vmem:[%s2361 + $0x1a0] sm:$0xff]
        %v2415 = vld [vmem:[%s2361 + $0x1a8] sm:$0xff]
        %v2416 = vld [vmem:[%s2361 + $0x1b0] sm:$0xff]
        %v2417 = vld [vmem:[%s2361 + $0x1b8] sm:$0xff]
        %2418 = vmatprep.subr.mxu0 0.0
        %2419 = vmatpush1.msra.mxu0 %v510
        %2420 = vmatprep.subr.mxu0 0.0
        %2421 = vmatpush1.msra.mxu0 %v511
        %2422 = vmatprep.subr.mxu0 0.0
        %2423 = vmatpush1.msra.mxu0 %v512
        %2424 = vmatprep.subr.mxu0 0.0
        %2425 = vmatpush1.msra.mxu0 %v513
        %2426 = vmatprep.subr.mxu0 0.0
        %2427 = vmatpush1.msra.mxu0 %v514
        %2428 = vmatprep.subr.mxu0 0.0
        %2429 = vmatpush1.msra.mxu0 %v515
        %2430 = vmatprep.subr.mxu0 0.0
        %2431 = vmatpush1.msra.mxu0 %v516
        %2432 = vmatprep.subr.mxu0 0.0
        %2433 = vmatpush1.msra.mxu0 %v517
        %2434 = vmatprep.subr.mxu0 0.0
        %2435 = vmatpush1.msra.mxu0 %v518
        %2436 = vmatprep.subr.mxu0 0.0
        %2437 = vmatpush1.msra.mxu0 %v519
        %2438 = vmatprep.subr.mxu0 0.0
        %2439 = vmatpush1.msra.mxu0 %v520
        %2440 = vmatprep.subr.mxu0 0.0
        %2441 = vmatpush1.msra.mxu0 %v521
        %2442 = vmatprep.subr.mxu0 0.0
        %2443 = vmatpush1.msra.mxu0 %v522
        %2444 = vmatprep.subr.mxu0 0.0
        %2445 = vmatpush1.msra.mxu0 %v523
        %2446 = vmatprep.subr.mxu0 0.0
        %2447 = vmatpush1.msra.mxu0 %v524
        %2448 = vmatprep.subr.mxu0 0.0
        %2449 = vmatpush1.msra.mxu0 %v525
        %2450 = vmatprep.subr.mxu0 0.0
        %2451 = vmatpush1.msra.mxu0 %v526
        %2452 = vmatprep.subr.mxu0 0.0
        %2453 = vmatpush1.msra.mxu0 %v527
        %2454 = vmatprep.subr.mxu0 0.0
        %2455 = vmatpush1.msra.mxu0 %v528
        %2456 = vmatprep.subr.mxu0 0.0
        %2457 = vmatpush1.msra.mxu0 %v529
        %2458 = vmatprep.subr.mxu0 0.0
        %2459 = vmatpush1.msra.mxu0 %v530
        %2460 = vmatprep.subr.mxu0 0.0
        %2461 = vmatpush1.msra.mxu0 %v531
        %2462 = vmatprep.subr.mxu0 0.0
        %2463 = vmatpush1.msra.mxu0 %v532
        %2464 = vmatprep.subr.mxu0 0.0
        %2465 = vmatpush1.msra.mxu0 %v533
        %2466 = vmatprep.subr.mxu0 0.0
        %2467 = vmatpush1.msra.mxu0 %v534
        %2468 = vmatprep.subr.mxu0 0.0
        %2469 = vmatpush1.msra.mxu0 %v535
        %2470 = vmatprep.subr.mxu0 0.0
        %2471 = vmatpush1.msra.mxu0 %v536
        %2472 = vmatprep.subr.mxu0 0.0
        %2473 = vmatpush1.msra.mxu0 %v537
        %2474 = vmatprep.subr.mxu0 0.0
        %2475 = vmatpush1.msra.mxu0 %v538
        %2476 = vmatprep.subr.mxu0 0.0
        %2477 = vmatpush1.msra.mxu0 %v539
        %2478 = vmatprep.subr.mxu0 0.0
        %2479 = vmatpush1.msra.mxu0 %v540
        %2480 = vmatprep.subr.mxu0 0.0
        %2481 = vmatpush1.msra.mxu0 %v541
        %2482 = vmatprep.mubr.f32.mxu0 %v2363
        %2483 = vmatmul.mubr.f32.gmra.mrb[0].mxu0 %v2362
        %v2484 = vpop.f32.mrb[0].mxu0
        %v2485 = vadd.f32 0.0, %v2484
        %v2486 = vpop.f32.mrb[0].mxu0
        %2487 = vmatprep.mubr.f32.mxu0 %v2365
        %2488 = vmatmul.mubr.f32.gmra.mrb[0].mxu0 %v2364
        %v2489 = vpop.f32.mrb[0].mxu0
        %v2490 = vadd.f32 0.0, %v2489
        %v2491 = vpop.f32.mrb[0].mxu0
        %2492 = vmatprep.mubr.f32.mxu0 %v2367
        %2493 = vmatmul.mubr.f32.gmra.mrb[0].mxu0 %v2366
        %v2494 = vpop.f32.mrb[0].mxu0
        %v2495 = vadd.f32 0.0, %v2494
        %v2496 = vpop.f32.mrb[0].mxu0
        %2497 = vmatprep.mubr.f32.mxu0 %v2369
        %2498 = vmatmul.mubr.f32.gmra.mrb[0].mxu0 %v2368
        %v2499 = vpop.f32.mrb[0].mxu0
        %v2500 = vadd.f32 0.0, %v2499
        %v2501 = vpop.f32.mrb[0].mxu0
        %2502 = vmatprep.mubr.f32.mxu0 %v2371
        %2503 = vmatmul.mubr.f32.gmra.mrb[0].mxu0 %v2370
        %v2504 = vpop.f32.mrb[0].mxu0
        %v2505 = vadd.f32 0.0, %v2504
        %v2506 = vpop.f32.mrb[0].mxu0
        %2507 = vmatprep.mubr.f32.mxu0 %v2373
        %2508 = vmatmul.mubr.f32.gmra.mrb[0].mxu0 %v2372
        %v2509 = vpop.f32.mrb[0].mxu0
        %v2510 = vadd.f32 0.0, %v2509
        %v2511 = vpop.f32.mrb[0].mxu0
        %2512 = vmatprep.mubr.f32.mxu0 %v2375
        %2513 = vmatmul.mubr.f32.gmra.mrb[0].mxu0 %v2374
        %v2514 = vpop.f32.mrb[0].mxu0
        %v2515 = vadd.f32 0.0, %v2514
        %v2516 = vpop.f32.mrb[0].mxu0
        %2517 = vmatprep.mubr.f32.mxu0 %v2377
        %2518 = vmatmul.mubr.f32.gmra.mrb[0].mxu0 %v2376
        %v2519 = vpop.f32.mrb[0].mxu0
        %v2520 = vadd.f32 0.0, %v2519
        %v2521 = vpop.f32.mrb[0].mxu0
        %2522 = vmatprep.mubr.f32.mxu0 %v2379
        %2523 = vmatmul.mubr.f32.gmra.mrb[0].mxu0 %v2378
        %v2524 = vpop.f32.mrb[0].mxu0
        %v2525 = vadd.f32 0.0, %v2524
        %v2526 = vpop.f32.mrb[0].mxu0
        %2527 = vmatprep.mubr.f32.mxu0 %v2381
        %2528 = vmatmul.mubr.f32.gmra.mrb[0].mxu0 %v2380
        %v2529 = vpop.f32.mrb[0].mxu0
        %v2530 = vadd.f32 0.0, %v2529
        %v2531 = vpop.f32.mrb[0].mxu0
        %2532 = vmatprep.mubr.f32.mxu0 %v2383
        %2533 = vmatmul.mubr.f32.gmra.mrb[0].mxu0 %v2382
        %v2534 = vpop.f32.mrb[0].mxu0
        %v2535 = vadd.f32 0.0, %v2534
        %v2536 = vpop.f32.mrb[0].mxu0
        %2537 = vmatprep.mubr.f32.mxu0 %v2385
        %2538 = vmatmul.mubr.f32.gmra.mrb[0].mxu0 %v2384
        %v2539 = vpop.f32.mrb[0].mxu0
        %v2540 = vadd.f32 0.0, %v2539
        %v2541 = vpop.f32.mrb[0].mxu0
        %2542 = vmatprep.mubr.f32.mxu0 %v2387
        %2543 = vmatmul.mubr.f32.gmra.mrb[0].mxu0 %v2386
        %v2544 = vpop.f32.mrb[0].mxu0
        %v2545 = vadd.f32 0.0, %v2544
        %v2546 = vpop.f32.mrb[0].mxu0
        %2547 = vmatprep.mubr.f32.mxu0 %v2389
        %2548 = vmatmul.mubr.f32.gmra.mrb[0].mxu0 %v2388
        %v2549 = vpop.f32.mrb[0].mxu0
        %v2550 = vadd.f32 0.0, %v2549
        %v2551 = vpop.f32.mrb[0].mxu0
        %2552 = vmatprep.mubr.f32.mxu0 %v2391
        %2553 = vmatmul.mubr.f32.gmra.mrb[0].mxu0 %v2390
        %v2554 = vpop.f32.mrb[0].mxu0
        %v2555 = vadd.f32 0.0, %v2554
        %v2556 = vpop.f32.mrb[0].mxu0
        %2557 = vmatprep.mubr.f32.mxu0 %v2393
        %2558 = vmatmul.mubr.f32.gmra.mrb[0].mxu0 %v2392
        %v2559 = vpop.f32.mrb[0].mxu0
        %v2560 = vadd.f32 0.0, %v2559
        %v2561 = vpop.f32.mrb[0].mxu0
        %2562 = vmatprep.mubr.f32.mxu0 %v2395
        %2563 = vmatmul.mubr.f32.gmra.mrb[0].mxu0 %v2394
        %v2564 = vpop.f32.mrb[0].mxu0
        %v2565 = vadd.f32 0.0, %v2564
        %v2566 = vpop.f32.mrb[0].mxu0
        %2567 = vmatprep.mubr.f32.mxu0 %v2397
        %2568 = vmatmul.mubr.f32.gmra.mrb[0].mxu0 %v2396
        %v2569 = vpop.f32.mrb[0].mxu0
        %v2570 = vadd.f32 0.0, %v2569
        %v2571 = vpop.f32.mrb[0].mxu0
        %2572 = vmatprep.mubr.f32.mxu0 %v2399
        %2573 = vmatmul.mubr.f32.gmra.mrb[0].mxu0 %v2398
        %v2574 = vpop.f32.mrb[0].mxu0
        %v2575 = vadd.f32 0.0, %v2574
        %v2576 = vpop.f32.mrb[0].mxu0
        %2577 = vmatprep.mubr.f32.mxu0 %v2401
        %2578 = vmatmul.mubr.f32.gmra.mrb[0].mxu0 %v2400
        %v2579 = vpop.f32.mrb[0].mxu0
        %v2580 = vadd.f32 0.0, %v2579
        %v2581 = vpop.f32.mrb[0].mxu0
        %2582 = vmatprep.mubr.f32.mxu0 %v2403
        %2583 = vmatmul.mubr.f32.gmra.mrb[0].mxu0 %v2402
        %v2584 = vpop.f32.mrb[0].mxu0
        %v2585 = vadd.f32 0.0, %v2584
        %v2586 = vpop.f32.mrb[0].mxu0
        %2587 = vmatprep.mubr.f32.mxu0 %v2405
        %2588 = vmatmul.mubr.f32.gmra.mrb[0].mxu0 %v2404
        %v2589 = vpop.f32.mrb[0].mxu0
        %v2590 = vadd.f32 0.0, %v2589
        %v2591 = vpop.f32.mrb[0].mxu0
        %2592 = vmatprep.mubr.f32.mxu0 %v2407
        %2593 = vmatmul.mubr.f32.gmra.mrb[0].mxu0 %v2406
        %v2594 = vpop.f32.mrb[0].mxu0
        %v2595 = vadd.f32 0.0, %v2594
        %v2596 = vpop.f32.mrb[0].mxu0
        %2597 = vmatprep.mubr.f32.mxu0 %v2409
        %2598 = vmatmul.mubr.f32.gmra.mrb[0].mxu0 %v2408
        %v2599 = vpop.f32.mrb[0].mxu0
        %v2600 = vadd.f32 0.0, %v2599
        %v2601 = vpop.f32.mrb[0].mxu0
        %2602 = vmatprep.mubr.f32.mxu0 %v2411
        %2603 = vmatmul.mubr.f32.gmra.mrb[0].mxu0 %v2410
        %v2604 = vpop.f32.mrb[0].mxu0
        %v2605 = vadd.f32 0.0, %v2604
        %v2606 = vpop.f32.mrb[0].mxu0
        %2607 = vmatprep.mubr.f32.mxu0 %v2413
        %2608 = vmatmul.mubr.f32.gmra.mrb[0].mxu0 %v2412
        %v2609 = vpop.f32.mrb[0].mxu0
        %v2610 = vadd.f32 0.0, %v2609
        %v2611 = vpop.f32.mrb[0].mxu0
        %2612 = vmatprep.mubr.f32.mxu0 %v2415
        %2613 = vmatmul.mubr.f32.gmra.mrb[0].mxu0 %v2414
        %v2614 = vpop.f32.mrb[0].mxu0
        %v2615 = vadd.f32 0.0, %v2614
        %v2616 = vpop.f32.mrb[0].mxu0
        %2617 = vmatprep.mubr.f32.mxu0 %v2417
        %2618 = vmatmul.mubr.f32.gmra.mrb[0].mxu0 %v2416
        %v2619 = vpop.f32.mrb[0].mxu0
        %v2620 = vadd.f32 0.0, %v2619
        %v2621 = vpop.f32.mrb[0].mxu0
        %2622 = vdwg.mxu0
        %s2623 = scalar_lea.vmem [#allocation6], 192
        %v2624 = vld [vmem:[%s2623] sm:$0xff]
        %v2625 = vld [vmem:[%s2623 + $0x8] sm:$0xff]
        %v2626 = vld [vmem:[%s2623 + $0x10] sm:$0xff]
        %v2627 = vld [vmem:[%s2623 + $0x18] sm:$0xff]
        %v2628 = vld [vmem:[%s2623 + $0x20] sm:$0xff]
        %v2629 = vld [vmem:[%s2623 + $0x28] sm:$0xff]
        %v2630 = vld [vmem:[%s2623 + $0x30] sm:$0xff]
        %v2631 = vld [vmem:[%s2623 + $0x38] sm:$0xff]
        %v2633 = vsel %vm1082, %v2485, 0
        %v2636 = vsel %vm1082, %v2490, 0
        %v2639 = vsel %vm1082, %v2495, 0
        %v2642 = vsel %vm1082, %v2500, 0
        %v2645 = vsel %vm1082, %v2505, 0
        %v2648 = vsel %vm1082, %v2510, 0
        %v2651 = vsel %vm1082, %v2515, 0
        %v2654 = vsel %vm1082, %v2520, 0
        %v2657 = vsel %vm1082, %v2525, 0
        %v2660 = vsel %vm1082, %v2530, 0
        %v2663 = vsel %vm1082, %v2535, 0
        %v2666 = vsel %vm1082, %v2540, 0
        %v2669 = vsel %vm1082, %v2545, 0
        %v2672 = vsel %vm1082, %v2550, 0
        %v2675 = vsel %vm1082, %v2555, 0
        %v2678 = vsel %vm1082, %v2560, 0
        %v2681 = vsel %vm1082, %v2565, 0
        %v2684 = vsel %vm1082, %v2570, 0
        %v2687 = vsel %vm1082, %v2575, 0
        %v2690 = vsel %vm1082, %v2580, 0
        %v2693 = vsel %vm1082, %v2585, 0
        %v2696 = vsel %vm1082, %v2590, 0
        %v2699 = vsel %vm1082, %v2595, 0
        %v2702 = vsel %vm1082, %v2600, 0
        %v2705 = vsel %vm1082, %v2605, 0
        %v2708 = vsel %vm1082, %v2610, 0
        %v2711 = vsel %vm1082, %v2615, 0
        %v2714 = vsel %vm1082, %v2620, 0
        %2716 = vmatprep.subr.mxu0 %v2625
        %2717 = vmatpush1.msra.mxu0 %v2624
        %2718 = vmatprep.subr.mxu0 %v2627
        %2719 = vmatpush1.msra.mxu0 %v2626
        %2720 = vmatprep.subr.mxu0 %v2629
        %2721 = vmatpush1.msra.mxu0 %v2628
        %2722 = vmatprep.subr.mxu0 %v2631
        %2723 = vmatpush1.msra.mxu0 %v2630
        %2724 = vmatprep.subr.mxu0 0.0
        %2725 = vmatpush1.msra.mxu0 0.0
        %2726 = vmatprep.subr.mxu0 0.0
        %2727 = vmatpush1.msra.mxu0 0.0
        %2728 = vmatprep.subr.mxu0 0.0
        %2729 = vmatpush1.msra.mxu0 0.0
        %2730 = vmatprep.subr.mxu0 0.0
        %2731 = vmatpush1.msra.mxu0 0.0
        %2732 = vmatprep.subr.mxu0 0.0
        %2733 = vmatpush1.msra.mxu0 0.0
        %2734 = vmatprep.subr.mxu0 0.0
        %2735 = vmatpush1.msra.mxu0 0.0
        %2736 = vmatprep.subr.mxu0 0.0
        %2737 = vmatpush1.msra.mxu0 0.0
        %2738 = vmatprep.subr.mxu0 0.0
        %2739 = vmatpush1.msra.mxu0 0.0
        %2740 = vmatprep.subr.mxu0 0.0
        %2741 = vmatpush1.msra.mxu0 0.0
        %2742 = vmatprep.subr.mxu0 0.0
        %2743 = vmatpush1.msra.mxu0 0.0
        %2744 = vmatprep.subr.mxu0 0.0
        %2745 = vmatpush1.msra.mxu0 0.0
        %2746 = vmatprep.subr.mxu0 0.0
        %2747 = vmatpush1.msra.mxu0 0.0
        %2748 = vmatprep.subr.mxu0 0.0
        %2749 = vmatpush1.msra.mxu0 0.0
        %2750 = vmatprep.subr.mxu0 0.0
        %2751 = vmatpush1.msra.mxu0 0.0
        %2752 = vmatprep.subr.mxu0 0.0
        %2753 = vmatpush1.msra.mxu0 0.0
        %2754 = vmatprep.subr.mxu0 0.0
        %2755 = vmatpush1.msra.mxu0 0.0
        %2756 = vmatprep.subr.mxu0 0.0
        %2757 = vmatpush1.msra.mxu0 0.0
        %2758 = vmatprep.subr.mxu0 0.0
        %2759 = vmatpush1.msra.mxu0 0.0
        %2760 = vmatprep.subr.mxu0 0.0
        %2761 = vmatpush1.msra.mxu0 0.0
        %2762 = vmatprep.subr.mxu0 0.0
        %2763 = vmatpush1.msra.mxu0 0.0
        %2764 = vmatprep.subr.mxu0 0.0
        %2765 = vmatpush1.msra.mxu0 0.0
        %2766 = vmatprep.subr.mxu0 0.0
        %2767 = vmatpush1.msra.mxu0 0.0
        %2768 = vmatprep.subr.mxu0 0.0
        %2769 = vmatpush1.msra.mxu0 0.0
        %2770 = vmatprep.subr.mxu0 0.0
        %2771 = vmatpush1.msra.mxu0 0.0
        %2772 = vmatprep.subr.mxu0 0.0
        %2773 = vmatpush1.msra.mxu0 0.0
        %2774 = vmatprep.subr.mxu0 0.0
        %2775 = vmatpush1.msra.mxu0 0.0
        %2776 = vmatprep.subr.mxu0 0.0
        %2777 = vmatpush1.msra.mxu0 0.0
        %2778 = vmatprep.subr.mxu0 0.0
        %2779 = vmatpush1.msra.mxu0 0.0
        %2780 = vmatprep.mubr.f32.mxu0 0.0
        %2781 = vmatmul.mubr.f32.gmra.mrb[0].mxu0 %v2633
        %v2782 = vpop.f32.mrb[0].mxu0
        %v2783 = vadd.f32 0.0, %v2782
        %v2784 = vpop.f32.mrb[0].mxu0
        %v2785 = vadd.f32 0.0, %v2784
        %2786 = vmatprep.mubr.f32.mxu0 0.0
        %2787 = vmatmul.mubr.f32.gmra.mrb[0].mxu0 %v2636
        %v2788 = vpop.f32.mrb[0].mxu0
        %v2789 = vadd.f32 0.0, %v2788
        %v2790 = vpop.f32.mrb[0].mxu0
        %v2791 = vadd.f32 0.0, %v2790
        %2792 = vmatprep.mubr.f32.mxu0 0.0
        %2793 = vmatmul.mubr.f32.gmra.mrb[0].mxu0 %v2639
        %v2794 = vpop.f32.mrb[0].mxu0
        %v2795 = vadd.f32 0.0, %v2794
        %v2796 = vpop.f32.mrb[0].mxu0
        %v2797 = vadd.f32 0.0, %v2796
        %2798 = vmatprep.mubr.f32.mxu0 0.0
        %2799 = vmatmul.mubr.f32.gmra.mrb[0].mxu0 %v2642
        %v2800 = vpop.f32.mrb[0].mxu0
        %v2801 = vadd.f32 0.0, %v2800
        %v2802 = vpop.f32.mrb[0].mxu0
        %v2803 = vadd.f32 0.0, %v2802
        %2804 = vmatprep.mubr.f32.mxu0 0.0
        %2805 = vmatmul.mubr.f32.gmra.mrb[0].mxu0 %v2645
        %v2806 = vpop.f32.mrb[0].mxu0
        %v2807 = vadd.f32 0.0, %v2806
        %v2808 = vpop.f32.mrb[0].mxu0
        %v2809 = vadd.f32 0.0, %v2808
        %2810 = vmatprep.mubr.f32.mxu0 0.0
        %2811 = vmatmul.mubr.f32.gmra.mrb[0].mxu0 %v2648
        %v2812 = vpop.f32.mrb[0].mxu0
        %v2813 = vadd.f32 0.0, %v2812
        %v2814 = vpop.f32.mrb[0].mxu0
        %v2815 = vadd.f32 0.0, %v2814
        %2816 = vmatprep.mubr.f32.mxu0 0.0
        %2817 = vmatmul.mubr.f32.gmra.mrb[0].mxu0 %v2651
        %v2818 = vpop.f32.mrb[0].mxu0
        %v2819 = vadd.f32 0.0, %v2818
        %v2820 = vpop.f32.mrb[0].mxu0
        %v2821 = vadd.f32 0.0, %v2820
        %2822 = vmatprep.mubr.f32.mxu0 0.0
        %2823 = vmatmul.mubr.f32.gmra.mrb[0].mxu0 %v2654
        %v2824 = vpop.f32.mrb[0].mxu0
        %v2825 = vadd.f32 0.0, %v2824
        %v2826 = vpop.f32.mrb[0].mxu0
        %v2827 = vadd.f32 0.0, %v2826
        %2828 = vmatprep.mubr.f32.mxu0 0.0
        %2829 = vmatmul.mubr.f32.gmra.mrb[0].mxu0 %v2657
        %v2830 = vpop.f32.mrb[0].mxu0
        %v2831 = vadd.f32 0.0, %v2830
        %v2832 = vpop.f32.mrb[0].mxu0
        %v2833 = vadd.f32 0.0, %v2832
        %2834 = vmatprep.mubr.f32.mxu0 0.0
        %2835 = vmatmul.mubr.f32.gmra.mrb[0].mxu0 %v2660
        %v2836 = vpop.f32.mrb[0].mxu0
        %v2837 = vadd.f32 0.0, %v2836
        %v2838 = vpop.f32.mrb[0].mxu0
        %v2839 = vadd.f32 0.0, %v2838
        %2840 = vmatprep.mubr.f32.mxu0 0.0
        %2841 = vmatmul.mubr.f32.gmra.mrb[0].mxu0 %v2663
        %v2842 = vpop.f32.mrb[0].mxu0
        %v2843 = vadd.f32 0.0, %v2842
        %v2844 = vpop.f32.mrb[0].mxu0
        %v2845 = vadd.f32 0.0, %v2844
        %2846 = vmatprep.mubr.f32.mxu0 0.0
        %2847 = vmatmul.mubr.f32.gmra.mrb[0].mxu0 %v2666
        %v2848 = vpop.f32.mrb[0].mxu0
        %v2849 = vadd.f32 0.0, %v2848
        %v2850 = vpop.f32.mrb[0].mxu0
        %v2851 = vadd.f32 0.0, %v2850
        %2852 = vmatprep.mubr.f32.mxu0 0.0
        %2853 = vmatmul.mubr.f32.gmra.mrb[0].mxu0 %v2669
        %v2854 = vpop.f32.mrb[0].mxu0
        %v2855 = vadd.f32 0.0, %v2854
        %v2856 = vpop.f32.mrb[0].mxu0
        %v2857 = vadd.f32 0.0, %v2856
        %2858 = vmatprep.mubr.f32.mxu0 0.0
        %2859 = vmatmul.mubr.f32.gmra.mrb[0].mxu0 %v2672
        %v2860 = vpop.f32.mrb[0].mxu0
        %v2861 = vadd.f32 0.0, %v2860
        %v2862 = vpop.f32.mrb[0].mxu0
        %v2863 = vadd.f32 0.0, %v2862
        %2864 = vmatprep.mubr.f32.mxu0 0.0
        %2865 = vmatmul.mubr.f32.gmra.mrb[0].mxu0 %v2675
        %v2866 = vpop.f32.mrb[0].mxu0
        %v2867 = vadd.f32 0.0, %v2866
        %v2868 = vpop.f32.mrb[0].mxu0
        %v2869 = vadd.f32 0.0, %v2868
        %2870 = vmatprep.mubr.f32.mxu0 0.0
        %2871 = vmatmul.mubr.f32.gmra.mrb[0].mxu0 %v2678
        %v2872 = vpop.f32.mrb[0].mxu0
        %v2873 = vadd.f32 0.0, %v2872
        %v2874 = vpop.f32.mrb[0].mxu0
        %v2875 = vadd.f32 0.0, %v2874
        %2876 = vmatprep.mubr.f32.mxu0 0.0
        %2877 = vmatmul.mubr.f32.gmra.mrb[0].mxu0 %v2681
        %v2878 = vpop.f32.mrb[0].mxu0
        %v2879 = vadd.f32 0.0, %v2878
        %v2880 = vpop.f32.mrb[0].mxu0
        %v2881 = vadd.f32 0.0, %v2880
        %2882 = vmatprep.mubr.f32.mxu0 0.0
        %2883 = vmatmul.mubr.f32.gmra.mrb[0].mxu0 %v2684
        %v2884 = vpop.f32.mrb[0].mxu0
        %v2885 = vadd.f32 0.0, %v2884
        %v2886 = vpop.f32.mrb[0].mxu0
        %v2887 = vadd.f32 0.0, %v2886
        %2888 = vmatprep.mubr.f32.mxu0 0.0
        %2889 = vmatmul.mubr.f32.gmra.mrb[0].mxu0 %v2687
        %v2890 = vpop.f32.mrb[0].mxu0
        %v2891 = vadd.f32 0.0, %v2890
        %v2892 = vpop.f32.mrb[0].mxu0
        %v2893 = vadd.f32 0.0, %v2892
        %2894 = vmatprep.mubr.f32.mxu0 0.0
        %2895 = vmatmul.mubr.f32.gmra.mrb[0].mxu0 %v2690
        %v2896 = vpop.f32.mrb[0].mxu0
        %v2897 = vadd.f32 0.0, %v2896
        %v2898 = vpop.f32.mrb[0].mxu0
        %v2899 = vadd.f32 0.0, %v2898
        %2900 = vmatprep.mubr.f32.mxu0 0.0
        %2901 = vmatmul.mubr.f32.gmra.mrb[0].mxu0 %v2693
        %v2902 = vpop.f32.mrb[0].mxu0
        %v2903 = vadd.f32 0.0, %v2902
        %v2904 = vpop.f32.mrb[0].mxu0
        %v2905 = vadd.f32 0.0, %v2904
        %2906 = vmatprep.mubr.f32.mxu0 0.0
        %2907 = vmatmul.mubr.f32.gmra.mrb[0].mxu0 %v2696
        %v2908 = vpop.f32.mrb[0].mxu0
        %v2909 = vadd.f32 0.0, %v2908
        %v2910 = vpop.f32.mrb[0].mxu0
        %v2911 = vadd.f32 0.0, %v2910
        %2912 = vmatprep.mubr.f32.mxu0 0.0
        %2913 = vmatmul.mubr.f32.gmra.mrb[0].mxu0 %v2699
        %v2914 = vpop.f32.mrb[0].mxu0
        %v2915 = vadd.f32 0.0, %v2914
        %v2916 = vpop.f32.mrb[0].mxu0
        %v2917 = vadd.f32 0.0, %v2916
        %2918 = vmatprep.mubr.f32.mxu0 0.0
        %2919 = vmatmul.mubr.f32.gmra.mrb[0].mxu0 %v2702
        %v2920 = vpop.f32.mrb[0].mxu0
        %v2921 = vadd.f32 0.0, %v2920
        %v2922 = vpop.f32.mrb[0].mxu0
        %v2923 = vadd.f32 0.0, %v2922
        %2924 = vmatprep.mubr.f32.mxu0 0.0
        %2925 = vmatmul.mubr.f32.gmra.mrb[0].mxu0 %v2705
        %v2926 = vpop.f32.mrb[0].mxu0
        %v2927 = vadd.f32 0.0, %v2926
        %v2928 = vpop.f32.mrb[0].mxu0
        %v2929 = vadd.f32 0.0, %v2928
        %2930 = vmatprep.mubr.f32.mxu0 0.0
        %2931 = vmatmul.mubr.f32.gmra.mrb[0].mxu0 %v2708
        %v2932 = vpop.f32.mrb[0].mxu0
        %v2933 = vadd.f32 0.0, %v2932
        %v2934 = vpop.f32.mrb[0].mxu0
        %v2935 = vadd.f32 0.0, %v2934
        %2936 = vmatprep.mubr.f32.mxu0 0.0
        %2937 = vmatmul.mubr.f32.gmra.mrb[0].mxu0 %v2711
        %v2938 = vpop.f32.mrb[0].mxu0
        %v2939 = vadd.f32 0.0, %v2938
        %v2940 = vpop.f32.mrb[0].mxu0
        %v2941 = vadd.f32 0.0, %v2940
        %2942 = vmatprep.mubr.f32.mxu0 0.0
        %2943 = vmatmul.mubr.f32.gmra.mrb[0].mxu0 %v2714
        %v2944 = vpop.f32.mrb[0].mxu0
        %v2945 = vadd.f32 0.0, %v2944
        %v2946 = vpop.f32.mrb[0].mxu0
        %v2947 = vadd.f32 0.0, %v2946
        %2948 = vdwg.mxu0
        %v2949 = vadd.f32 %v2305, %v2783
        %v2950 = vadd.f32 %v2306, %v2785
        %v2951 = vadd.f32 %v2307, %v2789
        %v2952 = vadd.f32 %v2308, %v2791
        %v2953 = vadd.f32 %v2309, %v2795
        %v2954 = vadd.f32 %v2310, %v2797
        %v2955 = vadd.f32 %v2311, %v2801
        %v2956 = vadd.f32 %v2312, %v2803
        %v2957 = vadd.f32 %v2313, %v2807
        %v2958 = vadd.f32 %v2314, %v2809
        %v2959 = vadd.f32 %v2315, %v2813
        %v2960 = vadd.f32 %v2316, %v2815
        %v2961 = vadd.f32 %v2317, %v2819
        %v2962 = vadd.f32 %v2318, %v2821
        %v2963 = vadd.f32 %v2319, %v2825
        %v2964 = vadd.f32 %v2320, %v2827
        %v2965 = vadd.f32 %v2321, %v2831
        %v2966 = vadd.f32 %v2322, %v2833
        %v2967 = vadd.f32 %v2323, %v2837
        %v2968 = vadd.f32 %v2324, %v2839
        %v2969 = vadd.f32 %v2325, %v2843
        %v2970 = vadd.f32 %v2326, %v2845
        %v2971 = vadd.f32 %v2327, %v2849
        %v2972 = vadd.f32 %v2328, %v2851
        %v2973 = vadd.f32 %v2329, %v2855
        %v2974 = vadd.f32 %v2330, %v2857
        %v2975 = vadd.f32 %v2331, %v2861
        %v2976 = vadd.f32 %v2332, %v2863
        %v2977 = vadd.f32 %v2333, %v2867
        %v2978 = vadd.f32 %v2334, %v2869
        %v2979 = vadd.f32 %v2335, %v2873
        %v2980 = vadd.f32 %v2336, %v2875
        %v2981 = vadd.f32 %v2337, %v2879
        %v2982 = vadd.f32 %v2338, %v2881
        %v2983 = vadd.f32 %v2339, %v2885
        %v2984 = vadd.f32 %v2340, %v2887
        %v2985 = vadd.f32 %v2341, %v2891
        %v2986 = vadd.f32 %v2342, %v2893
        %v2987 = vadd.f32 %v2343, %v2897
        %v2988 = vadd.f32 %v2344, %v2899
        %v2989 = vadd.f32 %v2345, %v2903
        %v2990 = vadd.f32 %v2346, %v2905
        %v2991 = vadd.f32 %v2347, %v2909
        %v2992 = vadd.f32 %v2348, %v2911
        %v2993 = vadd.f32 %v2349, %v2915
        %v2994 = vadd.f32 %v2350, %v2917
        %v2995 = vadd.f32 %v2351, %v2921
        %v2996 = vadd.f32 %v2352, %v2923
        %v2997 = vadd.f32 %v2353, %v2927
        %v2998 = vadd.f32 %v2354, %v2929
        %v2999 = vadd.f32 %v2355, %v2933
        %v3000 = vadd.f32 %v2356, %v2935
        %v3001 = vadd.f32 %v2357, %v2939
        %v3002 = vadd.f32 %v2358, %v2941
        %v3003 = vadd.f32 %v2359, %v2945
        %v3004 = vadd.f32 %v2360, %v2947
        %s3005 = scalar_lea.vmem [#allocation4], 1792
        %v3006 = vld [vmem:[%s3005] sm:$0xff]
        %v3007 = vld [vmem:[%s3005 + $0x8] sm:$0xff]
        %v3008 = vld [vmem:[%s3005 + $0x10] sm:$0xff]
        %v3009 = vld [vmem:[%s3005 + $0x18] sm:$0xff]
        %v3010 = vld [vmem:[%s3005 + $0x20] sm:$0xff]
        %v3011 = vld [vmem:[%s3005 + $0x28] sm:$0xff]
        %v3012 = vld [vmem:[%s3005 + $0x30] sm:$0xff]
        %v3013 = vld [vmem:[%s3005 + $0x38] sm:$0xff]
        %v3014 = vld [vmem:[%s3005 + $0x40] sm:$0xff]
        %v3015 = vld [vmem:[%s3005 + $0x48] sm:$0xff]
        %v3016 = vld [vmem:[%s3005 + $0x50] sm:$0xff]
        %v3017 = vld [vmem:[%s3005 + $0x58] sm:$0xff]
        %v3018 = vld [vmem:[%s3005 + $0x60] sm:$0xff]
        %v3019 = vld [vmem:[%s3005 + $0x68] sm:$0xff]
        %v3020 = vld [vmem:[%s3005 + $0x70] sm:$0xff]
        %v3021 = vld [vmem:[%s3005 + $0x78] sm:$0xff]
        %v3022 = vld [vmem:[%s3005 + $0x80] sm:$0xff]
        %v3023 = vld [vmem:[%s3005 + $0x88] sm:$0xff]
        %v3024 = vld [vmem:[%s3005 + $0x90] sm:$0xff]
        %v3025 = vld [vmem:[%s3005 + $0x98] sm:$0xff]
        %v3026 = vld [vmem:[%s3005 + $0xa0] sm:$0xff]
        %v3027 = vld [vmem:[%s3005 + $0xa8] sm:$0xff]
        %v3028 = vld [vmem:[%s3005 + $0xb0] sm:$0xff]
        %v3029 = vld [vmem:[%s3005 + $0xb8] sm:$0xff]
        %v3030 = vld [vmem:[%s3005 + $0xc0] sm:$0xff]
        %v3031 = vld [vmem:[%s3005 + $0xc8] sm:$0xff]
        %v3032 = vld [vmem:[%s3005 + $0xd0] sm:$0xff]
        %v3033 = vld [vmem:[%s3005 + $0xd8] sm:$0xff]
        %v3034 = vld [vmem:[%s3005 + $0xe0] sm:$0xff]
        %v3035 = vld [vmem:[%s3005 + $0xe8] sm:$0xff]
        %v3036 = vld [vmem:[%s3005 + $0xf0] sm:$0xff]
        %v3037 = vld [vmem:[%s3005 + $0xf8] sm:$0xff]
        %v3038 = vld [vmem:[%s3005 + $0x100] sm:$0xff]
        %v3039 = vld [vmem:[%s3005 + $0x108] sm:$0xff]
        %v3040 = vld [vmem:[%s3005 + $0x110] sm:$0xff]
        %v3041 = vld [vmem:[%s3005 + $0x118] sm:$0xff]
        %v3042 = vld [vmem:[%s3005 + $0x120] sm:$0xff]
        %v3043 = vld [vmem:[%s3005 + $0x128] sm:$0xff]
        %v3044 = vld [vmem:[%s3005 + $0x130] sm:$0xff]
        %v3045 = vld [vmem:[%s3005 + $0x138] sm:$0xff]
        %v3046 = vld [vmem:[%s3005 + $0x140] sm:$0xff]
        %v3047 = vld [vmem:[%s3005 + $0x148] sm:$0xff]
        %v3048 = vld [vmem:[%s3005 + $0x150] sm:$0xff]
        %v3049 = vld [vmem:[%s3005 + $0x158] sm:$0xff]
        %v3050 = vld [vmem:[%s3005 + $0x160] sm:$0xff]
        %v3051 = vld [vmem:[%s3005 + $0x168] sm:$0xff]
        %v3052 = vld [vmem:[%s3005 + $0x170] sm:$0xff]
        %v3053 = vld [vmem:[%s3005 + $0x178] sm:$0xff]
        %v3054 = vld [vmem:[%s3005 + $0x180] sm:$0xff]
        %v3055 = vld [vmem:[%s3005 + $0x188] sm:$0xff]
        %v3056 = vld [vmem:[%s3005 + $0x190] sm:$0xff]
        %v3057 = vld [vmem:[%s3005 + $0x198] sm:$0xff]
        %v3058 = vld [vmem:[%s3005 + $0x1a0] sm:$0xff]
        %v3059 = vld [vmem:[%s3005 + $0x1a8] sm:$0xff]
        %v3060 = vld [vmem:[%s3005 + $0x1b0] sm:$0xff]
        %v3061 = vld [vmem:[%s3005 + $0x1b8] sm:$0xff]
        %3062 = vmatprep.subr.mxu0 0.0
        %3063 = vmatpush1.msra.mxu0 %v510
        %3064 = vmatprep.subr.mxu0 0.0
        %3065 = vmatpush1.msra.mxu0 %v511
        %3066 = vmatprep.subr.mxu0 0.0
        %3067 = vmatpush1.msra.mxu0 %v512
        %3068 = vmatprep.subr.mxu0 0.0
        %3069 = vmatpush1.msra.mxu0 %v513
        %3070 = vmatprep.subr.mxu0 0.0
        %3071 = vmatpush1.msra.mxu0 %v514
        %3072 = vmatprep.subr.mxu0 0.0
        %3073 = vmatpush1.msra.mxu0 %v515
        %3074 = vmatprep.subr.mxu0 0.0
        %3075 = vmatpush1.msra.mxu0 %v516
        %3076 = vmatprep.subr.mxu0 0.0
        %3077 = vmatpush1.msra.mxu0 %v517
        %3078 = vmatprep.subr.mxu0 0.0
        %3079 = vmatpush1.msra.mxu0 %v518
        %3080 = vmatprep.subr.mxu0 0.0
        %3081 = vmatpush1.msra.mxu0 %v519
        %3082 = vmatprep.subr.mxu0 0.0
        %3083 = vmatpush1.msra.mxu0 %v520
        %3084 = vmatprep.subr.mxu0 0.0
        %3085 = vmatpush1.msra.mxu0 %v521
        %3086 = vmatprep.subr.mxu0 0.0
        %3087 = vmatpush1.msra.mxu0 %v522
        %3088 = vmatprep.subr.mxu0 0.0
        %3089 = vmatpush1.msra.mxu0 %v523
        %3090 = vmatprep.subr.mxu0 0.0
        %3091 = vmatpush1.msra.mxu0 %v524
        %3092 = vmatprep.subr.mxu0 0.0
        %3093 = vmatpush1.msra.mxu0 %v525
        %3094 = vmatprep.subr.mxu0 0.0
        %3095 = vmatpush1.msra.mxu0 %v526
        %3096 = vmatprep.subr.mxu0 0.0
        %3097 = vmatpush1.msra.mxu0 %v527
        %3098 = vmatprep.subr.mxu0 0.0
        %3099 = vmatpush1.msra.mxu0 %v528
        %3100 = vmatprep.subr.mxu0 0.0
        %3101 = vmatpush1.msra.mxu0 %v529
        %3102 = vmatprep.subr.mxu0 0.0
        %3103 = vmatpush1.msra.mxu0 %v530
        %3104 = vmatprep.subr.mxu0 0.0
        %3105 = vmatpush1.msra.mxu0 %v531
        %3106 = vmatprep.subr.mxu0 0.0
        %3107 = vmatpush1.msra.mxu0 %v532
        %3108 = vmatprep.subr.mxu0 0.0
        %3109 = vmatpush1.msra.mxu0 %v533
        %3110 = vmatprep.subr.mxu0 0.0
        %3111 = vmatpush1.msra.mxu0 %v534
        %3112 = vmatprep.subr.mxu0 0.0
        %3113 = vmatpush1.msra.mxu0 %v535
        %3114 = vmatprep.subr.mxu0 0.0
        %3115 = vmatpush1.msra.mxu0 %v536
        %3116 = vmatprep.subr.mxu0 0.0
        %3117 = vmatpush1.msra.mxu0 %v537
        %3118 = vmatprep.subr.mxu0 0.0
        %3119 = vmatpush1.msra.mxu0 %v538
        %3120 = vmatprep.subr.mxu0 0.0
        %3121 = vmatpush1.msra.mxu0 %v539
        %3122 = vmatprep.subr.mxu0 0.0
        %3123 = vmatpush1.msra.mxu0 %v540
        %3124 = vmatprep.subr.mxu0 0.0
        %3125 = vmatpush1.msra.mxu0 %v541
        %3126 = vmatprep.mubr.f32.mxu0 %v3007
        %3127 = vmatmul.mubr.f32.gmra.mrb[0].mxu0 %v3006
        %v3128 = vpop.f32.mrb[0].mxu0
        %v3129 = vadd.f32 0.0, %v3128
        %v3130 = vpop.f32.mrb[0].mxu0
        %3131 = vmatprep.mubr.f32.mxu0 %v3009
        %3132 = vmatmul.mubr.f32.gmra.mrb[0].mxu0 %v3008
        %v3133 = vpop.f32.mrb[0].mxu0
        %v3134 = vadd.f32 0.0, %v3133
        %v3135 = vpop.f32.mrb[0].mxu0
        %3136 = vmatprep.mubr.f32.mxu0 %v3011
        %3137 = vmatmul.mubr.f32.gmra.mrb[0].mxu0 %v3010
        %v3138 = vpop.f32.mrb[0].mxu0
        %v3139 = vadd.f32 0.0, %v3138
        %v3140 = vpop.f32.mrb[0].mxu0
        %3141 = vmatprep.mubr.f32.mxu0 %v3013
        %3142 = vmatmul.mubr.f32.gmra.mrb[0].mxu0 %v3012
        %v3143 = vpop.f32.mrb[0].mxu0
        %v3144 = vadd.f32 0.0, %v3143
        %v3145 = vpop.f32.mrb[0].mxu0
        %3146 = vmatprep.mubr.f32.mxu0 %v3015
        %3147 = vmatmul.mubr.f32.gmra.mrb[0].mxu0 %v3014
        %v3148 = vpop.f32.mrb[0].mxu0
        %v3149 = vadd.f32 0.0, %v3148
        %v3150 = vpop.f32.mrb[0].mxu0
        %3151 = vmatprep.mubr.f32.mxu0 %v3017
        %3152 = vmatmul.mubr.f32.gmra.mrb[0].mxu0 %v3016
        %v3153 = vpop.f32.mrb[0].mxu0
        %v3154 = vadd.f32 0.0, %v3153
        %v3155 = vpop.f32.mrb[0].mxu0
        %3156 = vmatprep.mubr.f32.mxu0 %v3019
        %3157 = vmatmul.mubr.f32.gmra.mrb[0].mxu0 %v3018
        %v3158 = vpop.f32.mrb[0].mxu0
        %v3159 = vadd.f32 0.0, %v3158
        %v3160 = vpop.f32.mrb[0].mxu0
        %3161 = vmatprep.mubr.f32.mxu0 %v3021
        %3162 = vmatmul.mubr.f32.gmra.mrb[0].mxu0 %v3020
        %v3163 = vpop.f32.mrb[0].mxu0
        %v3164 = vadd.f32 0.0, %v3163
        %v3165 = vpop.f32.mrb[0].mxu0
        %3166 = vmatprep.mubr.f32.mxu0 %v3023
        %3167 = vmatmul.mubr.f32.gmra.mrb[0].mxu0 %v3022
        %v3168 = vpop.f32.mrb[0].mxu0
        %v3169 = vadd.f32 0.0, %v3168
        %v3170 = vpop.f32.mrb[0].mxu0
        %3171 = vmatprep.mubr.f32.mxu0 %v3025
        %3172 = vmatmul.mubr.f32.gmra.mrb[0].mxu0 %v3024
        %v3173 = vpop.f32.mrb[0].mxu0
        %v3174 = vadd.f32 0.0, %v3173
        %v3175 = vpop.f32.mrb[0].mxu0
        %3176 = vmatprep.mubr.f32.mxu0 %v3027
        %3177 = vmatmul.mubr.f32.gmra.mrb[0].mxu0 %v3026
        %v3178 = vpop.f32.mrb[0].mxu0
        %v3179 = vadd.f32 0.0, %v3178
        %v3180 = vpop.f32.mrb[0].mxu0
        %3181 = vmatprep.mubr.f32.mxu0 %v3029
        %3182 = vmatmul.mubr.f32.gmra.mrb[0].mxu0 %v3028
        %v3183 = vpop.f32.mrb[0].mxu0
        %v3184 = vadd.f32 0.0, %v3183
        %v3185 = vpop.f32.mrb[0].mxu0
        %3186 = vmatprep.mubr.f32.mxu0 %v3031
        %3187 = vmatmul.mubr.f32.gmra.mrb[0].mxu0 %v3030
        %v3188 = vpop.f32.mrb[0].mxu0
        %v3189 = vadd.f32 0.0, %v3188
        %v3190 = vpop.f32.mrb[0].mxu0
        %3191 = vmatprep.mubr.f32.mxu0 %v3033
        %3192 = vmatmul.mubr.f32.gmra.mrb[0].mxu0 %v3032
        %v3193 = vpop.f32.mrb[0].mxu0
        %v3194 = vadd.f32 0.0, %v3193
        %v3195 = vpop.f32.mrb[0].mxu0
        %3196 = vmatprep.mubr.f32.mxu0 %v3035
        %3197 = vmatmul.mubr.f32.gmra.mrb[0].mxu0 %v3034
        %v3198 = vpop.f32.mrb[0].mxu0
        %v3199 = vadd.f32 0.0, %v3198
        %v3200 = vpop.f32.mrb[0].mxu0
        %3201 = vmatprep.mubr.f32.mxu0 %v3037
        %3202 = vmatmul.mubr.f32.gmra.mrb[0].mxu0 %v3036
        %v3203 = vpop.f32.mrb[0].mxu0
        %v3204 = vadd.f32 0.0, %v3203
        %v3205 = vpop.f32.mrb[0].mxu0
        %3206 = vmatprep.mubr.f32.mxu0 %v3039
        %3207 = vmatmul.mubr.f32.gmra.mrb[0].mxu0 %v3038
        %v3208 = vpop.f32.mrb[0].mxu0
        %v3209 = vadd.f32 0.0, %v3208
        %v3210 = vpop.f32.mrb[0].mxu0
        %3211 = vmatprep.mubr.f32.mxu0 %v3041
        %3212 = vmatmul.mubr.f32.gmra.mrb[0].mxu0 %v3040
        %v3213 = vpop.f32.mrb[0].mxu0
        %v3214 = vadd.f32 0.0, %v3213
        %v3215 = vpop.f32.mrb[0].mxu0
        %3216 = vmatprep.mubr.f32.mxu0 %v3043
        %3217 = vmatmul.mubr.f32.gmra.mrb[0].mxu0 %v3042
        %v3218 = vpop.f32.mrb[0].mxu0
        %v3219 = vadd.f32 0.0, %v3218
        %v3220 = vpop.f32.mrb[0].mxu0
        %3221 = vmatprep.mubr.f32.mxu0 %v3045
        %3222 = vmatmul.mubr.f32.gmra.mrb[0].mxu0 %v3044
        %v3223 = vpop.f32.mrb[0].mxu0
        %v3224 = vadd.f32 0.0, %v3223
        %v3225 = vpop.f32.mrb[0].mxu0
        %3226 = vmatprep.mubr.f32.mxu0 %v3047
        %3227 = vmatmul.mubr.f32.gmra.mrb[0].mxu0 %v3046
        %v3228 = vpop.f32.mrb[0].mxu0
        %v3229 = vadd.f32 0.0, %v3228
        %v3230 = vpop.f32.mrb[0].mxu0
        %3231 = vmatprep.mubr.f32.mxu0 %v3049
        %3232 = vmatmul.mubr.f32.gmra.mrb[0].mxu0 %v3048
        %v3233 = vpop.f32.mrb[0].mxu0
        %v3234 = vadd.f32 0.0, %v3233
        %v3235 = vpop.f32.mrb[0].mxu0
        %3236 = vmatprep.mubr.f32.mxu0 %v3051
        %3237 = vmatmul.mubr.f32.gmra.mrb[0].mxu0 %v3050
        %v3238 = vpop.f32.mrb[0].mxu0
        %v3239 = vadd.f32 0.0, %v3238
        %v3240 = vpop.f32.mrb[0].mxu0
        %3241 = vmatprep.mubr.f32.mxu0 %v3053
        %3242 = vmatmul.mubr.f32.gmra.mrb[0].mxu0 %v3052
        %v3243 = vpop.f32.mrb[0].mxu0
        %v3244 = vadd.f32 0.0, %v3243
        %v3245 = vpop.f32.mrb[0].mxu0
        %3246 = vmatprep.mubr.f32.mxu0 %v3055
        %3247 = vmatmul.mubr.f32.gmra.mrb[0].mxu0 %v3054
        %v3248 = vpop.f32.mrb[0].mxu0
        %v3249 = vadd.f32 0.0, %v3248
        %v3250 = vpop.f32.mrb[0].mxu0
        %3251 = vmatprep.mubr.f32.mxu0 %v3057
        %3252 = vmatmul.mubr.f32.gmra.mrb[0].mxu0 %v3056
        %v3253 = vpop.f32.mrb[0].mxu0
        %v3254 = vadd.f32 0.0, %v3253
        %v3255 = vpop.f32.mrb[0].mxu0
        %3256 = vmatprep.mubr.f32.mxu0 %v3059
        %3257 = vmatmul.mubr.f32.gmra.mrb[0].mxu0 %v3058
        %v3258 = vpop.f32.mrb[0].mxu0
        %v3259 = vadd.f32 0.0, %v3258
        %v3260 = vpop.f32.mrb[0].mxu0
        %3261 = vmatprep.mubr.f32.mxu0 %v3061
        %3262 = vmatmul.mubr.f32.gmra.mrb[0].mxu0 %v3060
        %v3263 = vpop.f32.mrb[0].mxu0
        %v3264 = vadd.f32 0.0, %v3263
        %v3265 = vpop.f32.mrb[0].mxu0
        %3266 = vdwg.mxu0
        %s3267 = scalar_lea.vmem [#allocation6], 256
        %v3268 = vld [vmem:[%s3267] sm:$0xff]
        %v3269 = vld [vmem:[%s3267 + $0x8] sm:$0xff]
        %v3270 = vld [vmem:[%s3267 + $0x10] sm:$0xff]
        %v3271 = vld [vmem:[%s3267 + $0x18] sm:$0xff]
        %v3272 = vld [vmem:[%s3267 + $0x20] sm:$0xff]
        %v3273 = vld [vmem:[%s3267 + $0x28] sm:$0xff]
        %v3274 = vld [vmem:[%s3267 + $0x30] sm:$0xff]
        %v3275 = vld [vmem:[%s3267 + $0x38] sm:$0xff]
        %v3277 = vsel %vm1082, %v3129, 0
        %v3280 = vsel %vm1082, %v3134, 0
        %v3283 = vsel %vm1082, %v3139, 0
        %v3286 = vsel %vm1082, %v3144, 0
        %v3289 = vsel %vm1082, %v3149, 0
        %v3292 = vsel %vm1082, %v3154, 0
        %v3295 = vsel %vm1082, %v3159, 0
        %v3298 = vsel %vm1082, %v3164, 0
        %v3301 = vsel %vm1082, %v3169, 0
        %v3304 = vsel %vm1082, %v3174, 0
        %v3307 = vsel %vm1082, %v3179, 0
        %v3310 = vsel %vm1082, %v3184, 0
        %v3313 = vsel %vm1082, %v3189, 0
        %v3316 = vsel %vm1082, %v3194, 0
        %v3319 = vsel %vm1082, %v3199, 0
        %v3322 = vsel %vm1082, %v3204, 0
        %v3325 = vsel %vm1082, %v3209, 0
        %v3328 = vsel %vm1082, %v3214, 0
        %v3331 = vsel %vm1082, %v3219, 0
        %v3334 = vsel %vm1082, %v3224, 0
        %v3337 = vsel %vm1082, %v3229, 0
        %v3340 = vsel %vm1082, %v3234, 0
        %v3343 = vsel %vm1082, %v3239, 0
        %v3346 = vsel %vm1082, %v3244, 0
        %v3349 = vsel %vm1082, %v3249, 0
        %v3352 = vsel %vm1082, %v3254, 0
        %v3355 = vsel %vm1082, %v3259, 0
        %v3358 = vsel %vm1082, %v3264, 0
        %3360 = vmatprep.subr.mxu0 %v3269
        %3361 = vmatpush1.msra.mxu0 %v3268
        %3362 = vmatprep.subr.mxu0 %v3271
        %3363 = vmatpush1.msra.mxu0 %v3270
        %3364 = vmatprep.subr.mxu0 %v3273
        %3365 = vmatpush1.msra.mxu0 %v3272
        %3366 = vmatprep.subr.mxu0 %v3275
        %3367 = vmatpush1.msra.mxu0 %v3274
        %3368 = vmatprep.subr.mxu0 0.0
        %3369 = vmatpush1.msra.mxu0 0.0
        %3370 = vmatprep.subr.mxu0 0.0
        %3371 = vmatpush1.msra.mxu0 0.0
        %3372 = vmatprep.subr.mxu0 0.0
        %3373 = vmatpush1.msra.mxu0 0.0
        %3374 = vmatprep.subr.mxu0 0.0
        %3375 = vmatpush1.msra.mxu0 0.0
        %3376 = vmatprep.subr.mxu0 0.0
        %3377 = vmatpush1.msra.mxu0 0.0
        %3378 = vmatprep.subr.mxu0 0.0
        %3379 = vmatpush1.msra.mxu0 0.0
        %3380 = vmatprep.subr.mxu0 0.0
        %3381 = vmatpush1.msra.mxu0 0.0
        %3382 = vmatprep.subr.mxu0 0.0
        %3383 = vmatpush1.msra.mxu0 0.0
        %3384 = vmatprep.subr.mxu0 0.0
        %3385 = vmatpush1.msra.mxu0 0.0
        %3386 = vmatprep.subr.mxu0 0.0
        %3387 = vmatpush1.msra.mxu0 0.0
        %3388 = vmatprep.subr.mxu0 0.0
        %3389 = vmatpush1.msra.mxu0 0.0
        %3390 = vmatprep.subr.mxu0 0.0
        %3391 = vmatpush1.msra.mxu0 0.0
        %3392 = vmatprep.subr.mxu0 0.0
        %3393 = vmatpush1.msra.mxu0 0.0
        %3394 = vmatprep.subr.mxu0 0.0
        %3395 = vmatpush1.msra.mxu0 0.0
        %3396 = vmatprep.subr.mxu0 0.0
        %3397 = vmatpush1.msra.mxu0 0.0
        %3398 = vmatprep.subr.mxu0 0.0
        %3399 = vmatpush1.msra.mxu0 0.0
        %3400 = vmatprep.subr.mxu0 0.0
        %3401 = vmatpush1.msra.mxu0 0.0
        %3402 = vmatprep.subr.mxu0 0.0
        %3403 = vmatpush1.msra.mxu0 0.0
        %3404 = vmatprep.subr.mxu0 0.0
        %3405 = vmatpush1.msra.mxu0 0.0
        %3406 = vmatprep.subr.mxu0 0.0
        %3407 = vmatpush1.msra.mxu0 0.0
        %3408 = vmatprep.subr.mxu0 0.0
        %3409 = vmatpush1.msra.mxu0 0.0
        %3410 = vmatprep.subr.mxu0 0.0
        %3411 = vmatpush1.msra.mxu0 0.0
        %3412 = vmatprep.subr.mxu0 0.0
        %3413 = vmatpush1.msra.mxu0 0.0
        %3414 = vmatprep.subr.mxu0 0.0
        %3415 = vmatpush1.msra.mxu0 0.0
        %3416 = vmatprep.subr.mxu0 0.0
        %3417 = vmatpush1.msra.mxu0 0.0
        %3418 = vmatprep.subr.mxu0 0.0
        %3419 = vmatpush1.msra.mxu0 0.0
        %3420 = vmatprep.subr.mxu0 0.0
        %3421 = vmatpush1.msra.mxu0 0.0
        %3422 = vmatprep.subr.mxu0 0.0
        %3423 = vmatpush1.msra.mxu0 0.0
        %3424 = vmatprep.mubr.f32.mxu0 0.0
        %3425 = vmatmul.mubr.f32.gmra.mrb[0].mxu0 %v3277
        %v3426 = vpop.f32.mrb[0].mxu0
        %v3427 = vadd.f32 0.0, %v3426
        %v3428 = vpop.f32.mrb[0].mxu0
        %v3429 = vadd.f32 0.0, %v3428
        %3430 = vmatprep.mubr.f32.mxu0 0.0
        %3431 = vmatmul.mubr.f32.gmra.mrb[0].mxu0 %v3280
        %v3432 = vpop.f32.mrb[0].mxu0
        %v3433 = vadd.f32 0.0, %v3432
        %v3434 = vpop.f32.mrb[0].mxu0
        %v3435 = vadd.f32 0.0, %v3434
        %3436 = vmatprep.mubr.f32.mxu0 0.0
        %3437 = vmatmul.mubr.f32.gmra.mrb[0].mxu0 %v3283
        %v3438 = vpop.f32.mrb[0].mxu0
        %v3439 = vadd.f32 0.0, %v3438
        %v3440 = vpop.f32.mrb[0].mxu0
        %v3441 = vadd.f32 0.0, %v3440
        %3442 = vmatprep.mubr.f32.mxu0 0.0
        %3443 = vmatmul.mubr.f32.gmra.mrb[0].mxu0 %v3286
        %v3444 = vpop.f32.mrb[0].mxu0
        %v3445 = vadd.f32 0.0, %v3444
        %v3446 = vpop.f32.mrb[0].mxu0
        %v3447 = vadd.f32 0.0, %v3446
        %3448 = vmatprep.mubr.f32.mxu0 0.0
        %3449 = vmatmul.mubr.f32.gmra.mrb[0].mxu0 %v3289
        %v3450 = vpop.f32.mrb[0].mxu0
        %v3451 = vadd.f32 0.0, %v3450
        %v3452 = vpop.f32.mrb[0].mxu0
        %v3453 = vadd.f32 0.0, %v3452
        %3454 = vmatprep.mubr.f32.mxu0 0.0
        %3455 = vmatmul.mubr.f32.gmra.mrb[0].mxu0 %v3292
        %v3456 = vpop.f32.mrb[0].mxu0
        %v3457 = vadd.f32 0.0, %v3456
        %v3458 = vpop.f32.mrb[0].mxu0
        %v3459 = vadd.f32 0.0, %v3458
        %3460 = vmatprep.mubr.f32.mxu0 0.0
        %3461 = vmatmul.mubr.f32.gmra.mrb[0].mxu0 %v3295
        %v3462 = vpop.f32.mrb[0].mxu0
        %v3463 = vadd.f32 0.0, %v3462
        %v3464 = vpop.f32.mrb[0].mxu0
        %v3465 = vadd.f32 0.0, %v3464
        %3466 = vmatprep.mubr.f32.mxu0 0.0
        %3467 = vmatmul.mubr.f32.gmra.mrb[0].mxu0 %v3298
        %v3468 = vpop.f32.mrb[0].mxu0
        %v3469 = vadd.f32 0.0, %v3468
        %v3470 = vpop.f32.mrb[0].mxu0
        %v3471 = vadd.f32 0.0, %v3470
        %3472 = vmatprep.mubr.f32.mxu0 0.0
        %3473 = vmatmul.mubr.f32.gmra.mrb[0].mxu0 %v3301
        %v3474 = vpop.f32.mrb[0].mxu0
        %v3475 = vadd.f32 0.0, %v3474
        %v3476 = vpop.f32.mrb[0].mxu0
        %v3477 = vadd.f32 0.0, %v3476
        %3478 = vmatprep.mubr.f32.mxu0 0.0
        %3479 = vmatmul.mubr.f32.gmra.mrb[0].mxu0 %v3304
        %v3480 = vpop.f32.mrb[0].mxu0
        %v3481 = vadd.f32 0.0, %v3480
        %v3482 = vpop.f32.mrb[0].mxu0
        %v3483 = vadd.f32 0.0, %v3482
        %3484 = vmatprep.mubr.f32.mxu0 0.0
        %3485 = vmatmul.mubr.f32.gmra.mrb[0].mxu0 %v3307
        %v3486 = vpop.f32.mrb[0].mxu0
        %v3487 = vadd.f32 0.0, %v3486
        %v3488 = vpop.f32.mrb[0].mxu0
        %v3489 = vadd.f32 0.0, %v3488
        %3490 = vmatprep.mubr.f32.mxu0 0.0
        %3491 = vmatmul.mubr.f32.gmra.mrb[0].mxu0 %v3310
        %v3492 = vpop.f32.mrb[0].mxu0
        %v3493 = vadd.f32 0.0, %v3492
        %v3494 = vpop.f32.mrb[0].mxu0
        %v3495 = vadd.f32 0.0, %v3494
        %3496 = vmatprep.mubr.f32.mxu0 0.0
        %3497 = vmatmul.mubr.f32.gmra.mrb[0].mxu0 %v3313
        %v3498 = vpop.f32.mrb[0].mxu0
        %v3499 = vadd.f32 0.0, %v3498
        %v3500 = vpop.f32.mrb[0].mxu0
        %v3501 = vadd.f32 0.0, %v3500
        %3502 = vmatprep.mubr.f32.mxu0 0.0
        %3503 = vmatmul.mubr.f32.gmra.mrb[0].mxu0 %v3316
        %v3504 = vpop.f32.mrb[0].mxu0
        %v3505 = vadd.f32 0.0, %v3504
        %v3506 = vpop.f32.mrb[0].mxu0
        %v3507 = vadd.f32 0.0, %v3506
        %3508 = vmatprep.mubr.f32.mxu0 0.0
        %3509 = vmatmul.mubr.f32.gmra.mrb[0].mxu0 %v3319
        %v3510 = vpop.f32.mrb[0].mxu0
        %v3511 = vadd.f32 0.0, %v3510
        %v3512 = vpop.f32.mrb[0].mxu0
        %v3513 = vadd.f32 0.0, %v3512
        %3514 = vmatprep.mubr.f32.mxu0 0.0
        %3515 = vmatmul.mubr.f32.gmra.mrb[0].mxu0 %v3322
        %v3516 = vpop.f32.mrb[0].mxu0
        %v3517 = vadd.f32 0.0, %v3516
        %v3518 = vpop.f32.mrb[0].mxu0
        %v3519 = vadd.f32 0.0, %v3518
        %3520 = vmatprep.mubr.f32.mxu0 0.0
        %3521 = vmatmul.mubr.f32.gmra.mrb[0].mxu0 %v3325
        %v3522 = vpop.f32.mrb[0].mxu0
        %v3523 = vadd.f32 0.0, %v3522
        %v3524 = vpop.f32.mrb[0].mxu0
        %v3525 = vadd.f32 0.0, %v3524
        %3526 = vmatprep.mubr.f32.mxu0 0.0
        %3527 = vmatmul.mubr.f32.gmra.mrb[0].mxu0 %v3328
        %v3528 = vpop.f32.mrb[0].mxu0
        %v3529 = vadd.f32 0.0, %v3528
        %v3530 = vpop.f32.mrb[0].mxu0
        %v3531 = vadd.f32 0.0, %v3530
        %3532 = vmatprep.mubr.f32.mxu0 0.0
        %3533 = vmatmul.mubr.f32.gmra.mrb[0].mxu0 %v3331
        %v3534 = vpop.f32.mrb[0].mxu0
        %v3535 = vadd.f32 0.0, %v3534
        %v3536 = vpop.f32.mrb[0].mxu0
        %v3537 = vadd.f32 0.0, %v3536
        %3538 = vmatprep.mubr.f32.mxu0 0.0
        %3539 = vmatmul.mubr.f32.gmra.mrb[0].mxu0 %v3334
        %v3540 = vpop.f32.mrb[0].mxu0
        %v3541 = vadd.f32 0.0, %v3540
        %v3542 = vpop.f32.mrb[0].mxu0
        %v3543 = vadd.f32 0.0, %v3542
        %3544 = vmatprep.mubr.f32.mxu0 0.0
        %3545 = vmatmul.mubr.f32.gmra.mrb[0].mxu0 %v3337
        %v3546 = vpop.f32.mrb[0].mxu0
        %v3547 = vadd.f32 0.0, %v3546
        %v3548 = vpop.f32.mrb[0].mxu0
        %v3549 = vadd.f32 0.0, %v3548
        %3550 = vmatprep.mubr.f32.mxu0 0.0
        %3551 = vmatmul.mubr.f32.gmra.mrb[0].mxu0 %v3340
        %v3552 = vpop.f32.mrb[0].mxu0
        %v3553 = vadd.f32 0.0, %v3552
        %v3554 = vpop.f32.mrb[0].mxu0
        %v3555 = vadd.f32 0.0, %v3554
        %3556 = vmatprep.mubr.f32.mxu0 0.0
        %3557 = vmatmul.mubr.f32.gmra.mrb[0].mxu0 %v3343
        %v3558 = vpop.f32.mrb[0].mxu0
        %v3559 = vadd.f32 0.0, %v3558
        %v3560 = vpop.f32.mrb[0].mxu0
        %v3561 = vadd.f32 0.0, %v3560
        %3562 = vmatprep.mubr.f32.mxu0 0.0
        %3563 = vmatmul.mubr.f32.gmra.mrb[0].mxu0 %v3346
        %v3564 = vpop.f32.mrb[0].mxu0
        %v3565 = vadd.f32 0.0, %v3564
        %v3566 = vpop.f32.mrb[0].mxu0
        %v3567 = vadd.f32 0.0, %v3566
        %3568 = vmatprep.mubr.f32.mxu0 0.0
        %3569 = vmatmul.mubr.f32.gmra.mrb[0].mxu0 %v3349
        %v3570 = vpop.f32.mrb[0].mxu0
        %v3571 = vadd.f32 0.0, %v3570
        %v3572 = vpop.f32.mrb[0].mxu0
        %v3573 = vadd.f32 0.0, %v3572
        %3574 = vmatprep.mubr.f32.mxu0 0.0
        %3575 = vmatmul.mubr.f32.gmra.mrb[0].mxu0 %v3352
        %v3576 = vpop.f32.mrb[0].mxu0
        %v3577 = vadd.f32 0.0, %v3576
        %v3578 = vpop.f32.mrb[0].mxu0
        %v3579 = vadd.f32 0.0, %v3578
        %3580 = vmatprep.mubr.f32.mxu0 0.0
        %3581 = vmatmul.mubr.f32.gmra.mrb[0].mxu0 %v3355
        %v3582 = vpop.f32.mrb[0].mxu0
        %v3583 = vadd.f32 0.0, %v3582
        %v3584 = vpop.f32.mrb[0].mxu0
        %v3585 = vadd.f32 0.0, %v3584
        %3586 = vmatprep.mubr.f32.mxu0 0.0
        %3587 = vmatmul.mubr.f32.gmra.mrb[0].mxu0 %v3358
        %v3588 = vpop.f32.mrb[0].mxu0
        %v3589 = vadd.f32 0.0, %v3588
        %v3590 = vpop.f32.mrb[0].mxu0
        %v3591 = vadd.f32 0.0, %v3590
        %3592 = vdwg.mxu0
        %v3593 = vadd.f32 %v2949, %v3427
        %v3594 = vadd.f32 %v2950, %v3429
        %v3595 = vadd.f32 %v2951, %v3433
        %v3596 = vadd.f32 %v2952, %v3435
        %v3597 = vadd.f32 %v2953, %v3439
        %v3598 = vadd.f32 %v2954, %v3441
        %v3599 = vadd.f32 %v2955, %v3445
        %v3600 = vadd.f32 %v2956, %v3447
        %v3601 = vadd.f32 %v2957, %v3451
        %v3602 = vadd.f32 %v2958, %v3453
        %v3603 = vadd.f32 %v2959, %v3457
        %v3604 = vadd.f32 %v2960, %v3459
        %v3605 = vadd.f32 %v2961, %v3463
        %v3606 = vadd.f32 %v2962, %v3465
        %v3607 = vadd.f32 %v2963, %v3469
        %v3608 = vadd.f32 %v2964, %v3471
        %v3609 = vadd.f32 %v2965, %v3475
        %v3610 = vadd.f32 %v2966, %v3477
        %v3611 = vadd.f32 %v2967, %v3481
        %v3612 = vadd.f32 %v2968, %v3483
        %v3613 = vadd.f32 %v2969, %v3487
        %v3614 = vadd.f32 %v2970, %v3489
        %v3615 = vadd.f32 %v2971, %v3493
        %v3616 = vadd.f32 %v2972, %v3495
        %v3617 = vadd.f32 %v2973, %v3499
        %v3618 = vadd.f32 %v2974, %v3501
        %v3619 = vadd.f32 %v2975, %v3505
        %v3620 = vadd.f32 %v2976, %v3507
        %v3621 = vadd.f32 %v2977, %v3511
        %v3622 = vadd.f32 %v2978, %v3513
        %v3623 = vadd.f32 %v2979, %v3517
        %v3624 = vadd.f32 %v2980, %v3519
        %v3625 = vadd.f32 %v2981, %v3523
        %v3626 = vadd.f32 %v2982, %v3525
        %v3627 = vadd.f32 %v2983, %v3529
        %v3628 = vadd.f32 %v2984, %v3531
        %v3629 = vadd.f32 %v2985, %v3535
        %v3630 = vadd.f32 %v2986, %v3537
        %v3631 = vadd.f32 %v2987, %v3541
        %v3632 = vadd.f32 %v2988, %v3543
        %v3633 = vadd.f32 %v2989, %v3547
        %v3634 = vadd.f32 %v2990, %v3549
        %v3635 = vadd.f32 %v2991, %v3553
        %v3636 = vadd.f32 %v2992, %v3555
        %v3637 = vadd.f32 %v2993, %v3559
        %v3638 = vadd.f32 %v2994, %v3561
        %v3639 = vadd.f32 %v2995, %v3565
        %v3640 = vadd.f32 %v2996, %v3567
        %v3641 = vadd.f32 %v2997, %v3571
        %v3642 = vadd.f32 %v2998, %v3573
        %v3643 = vadd.f32 %v2999, %v3577
        %v3644 = vadd.f32 %v3000, %v3579
        %v3645 = vadd.f32 %v3001, %v3583
        %v3646 = vadd.f32 %v3002, %v3585
        %v3647 = vadd.f32 %v3003, %v3589
        %v3648 = vadd.f32 %v3004, %v3591
        %v3649 = vlaneseq
        %v3650 = vshrl.u32 %v3649, 7
        %v3651 = vsub.s32 0, %v3650
        %v3652 = vrot.slane %v508, %v3651
        %v3653 = vlaneseq
        %v3654 = vshrl.u32 %v3653, 7
        %v3655 = vsub.s32 0, %v3654
        %v3656 = vrot.slane %v509, %v3655
        %v3657 = vadd.f32 %v3593, %v3652
        %v3658 = vadd.f32 %v3594, %v3656
        %v3659 = vadd.f32 %v3595, %v3652
        %v3660 = vadd.f32 %v3596, %v3656
        %v3661 = vadd.f32 %v3597, %v3652
        %v3662 = vadd.f32 %v3598, %v3656
        %v3663 = vadd.f32 %v3599, %v3652
        %v3664 = vadd.f32 %v3600, %v3656
        %v3665 = vadd.f32 %v3601, %v3652
        %v3666 = vadd.f32 %v3602, %v3656
        %v3667 = vadd.f32 %v3603, %v3652
        %v3668 = vadd.f32 %v3604, %v3656
        %v3669 = vadd.f32 %v3605, %v3652
        %v3670 = vadd.f32 %v3606, %v3656
        %v3671 = vadd.f32 %v3607, %v3652
        %v3672 = vadd.f32 %v3608, %v3656
        %v3673 = vadd.f32 %v3609, %v3652
        %v3674 = vadd.f32 %v3610, %v3656
        %v3675 = vadd.f32 %v3611, %v3652
        %v3676 = vadd.f32 %v3612, %v3656
        %v3677 = vadd.f32 %v3613, %v3652
        %v3678 = vadd.f32 %v3614, %v3656
        %v3679 = vadd.f32 %v3615, %v3652
        %v3680 = vadd.f32 %v3616, %v3656
        %v3681 = vadd.f32 %v3617, %v3652
        %v3682 = vadd.f32 %v3618, %v3656
        %v3683 = vadd.f32 %v3619, %v3652
        %v3684 = vadd.f32 %v3620, %v3656
        %v3685 = vadd.f32 %v3621, %v3652
        %v3686 = vadd.f32 %v3622, %v3656
        %v3687 = vadd.f32 %v3623, %v3652
        %v3688 = vadd.f32 %v3624, %v3656
        %v3689 = vadd.f32 %v3625, %v3652
        %v3690 = vadd.f32 %v3626, %v3656
        %v3691 = vadd.f32 %v3627, %v3652
        %v3692 = vadd.f32 %v3628, %v3656
        %v3693 = vadd.f32 %v3629, %v3652
        %v3694 = vadd.f32 %v3630, %v3656
        %v3695 = vadd.f32 %v3631, %v3652
        %v3696 = vadd.f32 %v3632, %v3656
        %v3697 = vadd.f32 %v3633, %v3652
        %v3698 = vadd.f32 %v3634, %v3656
        %v3699 = vadd.f32 %v3635, %v3652
        %v3700 = vadd.f32 %v3636, %v3656
        %v3701 = vadd.f32 %v3637, %v3652
        %v3702 = vadd.f32 %v3638, %v3656
        %v3703 = vadd.f32 %v3639, %v3652
        %v3704 = vadd.f32 %v3640, %v3656
        %v3705 = vadd.f32 %v3641, %v3652
        %v3706 = vadd.f32 %v3642, %v3656
        %v3707 = vadd.f32 %v3643, %v3652
        %v3708 = vadd.f32 %v3644, %v3656
        %v3709 = vadd.f32 %v3645, %v3652
        %v3710 = vadd.f32 %v3646, %v3656
        %v3711 = vadd.f32 %v3647, %v3652
        %v3712 = vadd.f32 %v3648, %v3656
        %v3713 = vmax.f32 %v3657, 0.0
        %v3714 = vmax.f32 %v3658, 0.0
        %v3715 = vmax.f32 %v3659, 0.0
        %v3716 = vmax.f32 %v3660, 0.0
        %v3717 = vmax.f32 %v3661, 0.0
        %v3718 = vmax.f32 %v3662, 0.0
        %v3719 = vmax.f32 %v3663, 0.0
        %v3720 = vmax.f32 %v3664, 0.0
        %v3721 = vmax.f32 %v3665, 0.0
        %v3722 = vmax.f32 %v3666, 0.0
        %v3723 = vmax.f32 %v3667, 0.0
        %v3724 = vmax.f32 %v3668, 0.0
        %v3725 = vmax.f32 %v3669, 0.0
        %v3726 = vmax.f32 %v3670, 0.0
        %v3727 = vmax.f32 %v3671, 0.0
        %v3728 = vmax.f32 %v3672, 0.0
        %v3729 = vmax.f32 %v3673, 0.0
        %v3730 = vmax.f32 %v3674, 0.0
        %v3731 = vmax.f32 %v3675, 0.0
        %v3732 = vmax.f32 %v3676, 0.0
        %v3733 = vmax.f32 %v3677, 0.0
        %v3734 = vmax.f32 %v3678, 0.0
        %v3735 = vmax.f32 %v3679, 0.0
        %v3736 = vmax.f32 %v3680, 0.0
        %v3737 = vmax.f32 %v3681, 0.0
        %v3738 = vmax.f32 %v3682, 0.0
        %v3739 = vmax.f32 %v3683, 0.0
        %v3740 = vmax.f32 %v3684, 0.0
        %v3741 = vmax.f32 %v3685, 0.0
        %v3742 = vmax.f32 %v3686, 0.0
        %v3743 = vmax.f32 %v3687, 0.0
        %v3744 = vmax.f32 %v3688, 0.0
        %v3745 = vmax.f32 %v3689, 0.0
        %v3746 = vmax.f32 %v3690, 0.0
        %v3747 = vmax.f32 %v3691, 0.0
        %v3748 = vmax.f32 %v3692, 0.0
        %v3749 = vmax.f32 %v3693, 0.0
        %v3750 = vmax.f32 %v3694, 0.0
        %v3751 = vmax.f32 %v3695, 0.0
        %v3752 = vmax.f32 %v3696, 0.0
        %v3753 = vmax.f32 %v3697, 0.0
        %v3754 = vmax.f32 %v3698, 0.0
        %v3755 = vmax.f32 %v3699, 0.0
        %v3756 = vmax.f32 %v3700, 0.0
        %v3757 = vmax.f32 %v3701, 0.0
        %v3758 = vmax.f32 %v3702, 0.0
        %v3759 = vmax.f32 %v3703, 0.0
        %v3760 = vmax.f32 %v3704, 0.0
        %v3761 = vmax.f32 %v3705, 0.0
        %v3762 = vmax.f32 %v3706, 0.0
        %v3763 = vmax.f32 %v3707, 0.0
        %v3764 = vmax.f32 %v3708, 0.0
        %v3765 = vmax.f32 %v3709, 0.0
        %v3766 = vmax.f32 %v3710, 0.0
        %v3767 = vmax.f32 %v3711, 0.0
        %v3768 = vmax.f32 %v3712, 0.0
        %v3769 = vld [vmem:[#allocation7] sm:$0xff]
        %v3770 = vld [vmem:[#allocation7 + $0x8] sm:$0xff]
        %v3771 = vld [vmem:[#allocation7 + $0x10] sm:$0xff]
        %v3772 = vld [vmem:[#allocation7 + $0x18] sm:$0xff]
        %v3773 = vld [vmem:[#allocation7 + $0x20] sm:$0xff]
        %v3774 = vld [vmem:[#allocation7 + $0x28] sm:$0xff]
        %v3775 = vld [vmem:[#allocation7 + $0x30] sm:$0xff]
        %v3776 = vld [vmem:[#allocation7 + $0x38] sm:$0xff]
        %v3777 = vld [vmem:[#allocation7 + $0x40] sm:$0xff]
        %v3778 = vld [vmem:[#allocation7 + $0x48] sm:$0xff]
        %v3779 = vld [vmem:[#allocation7 + $0x50] sm:$0xff]
        %v3780 = vld [vmem:[#allocation7 + $0x58] sm:$0xff]
        %v3781 = vld [vmem:[#allocation7 + $0x60] sm:$0xff]
        %v3782 = vld [vmem:[#allocation7 + $0x68] sm:$0xff]
        %v3783 = vld [vmem:[#allocation7 + $0x70] sm:$0xff]
        %v3784 = vld [vmem:[#allocation7 + $0x78] sm:$0xff]
        %v3785 = vld [vmem:[#allocation7 + $0x80] sm:$0xff]
        %v3786 = vld [vmem:[#allocation7 + $0x88] sm:$0xff]
        %v3787 = vld [vmem:[#allocation7 + $0x90] sm:$0xff]
        %v3788 = vld [vmem:[#allocation7 + $0x98] sm:$0xff]
        %vm3789 = vcmask 785408
        %v3791 = vsel %vm3789, %v3770, 0
        %v3794 = vsel %vm3789, %v3772, 0
        %v3797 = vsel %vm3789, %v3774, 0
        %v3800 = vsel %vm3789, %v3776, 0
        %v3803 = vsel %vm3789, %v3778, 0
        %v3806 = vsel %vm3789, %v3780, 0
        %v3809 = vsel %vm3789, %v3782, 0
        %v3812 = vsel %vm3789, %v3784, 0
        %v3815 = vsel %vm3789, %v3786, 0
        %v3818 = vsel %vm3789, %v3788, 0
        %3820 = vmatprep.subr.mxu0 %v3714
        %3821 = vmatpush1.msra.mxu0 %v3713
        %3822 = vmatprep.subr.mxu0 %v3716
        %3823 = vmatpush1.msra.mxu0 %v3715
        %3824 = vmatprep.subr.mxu0 %v3718
        %3825 = vmatpush1.msra.mxu0 %v3717
        %3826 = vmatprep.subr.mxu0 %v3720
        %3827 = vmatpush1.msra.mxu0 %v3719
        %3828 = vmatprep.subr.mxu0 %v3722
        %3829 = vmatpush1.msra.mxu0 %v3721
        %3830 = vmatprep.subr.mxu0 %v3724
        %3831 = vmatpush1.msra.mxu0 %v3723
        %3832 = vmatprep.subr.mxu0 %v3726
        %3833 = vmatpush1.msra.mxu0 %v3725
        %3834 = vmatprep.subr.mxu0 %v3728
        %3835 = vmatpush1.msra.mxu0 %v3727
        %3836 = vmatprep.subr.mxu0 %v3730
        %3837 = vmatpush1.msra.mxu0 %v3729
        %3838 = vmatprep.subr.mxu0 %v3732
        %3839 = vmatpush1.msra.mxu0 %v3731
        %3840 = vmatprep.subr.mxu0 %v3734
        %3841 = vmatpush1.msra.mxu0 %v3733
        %3842 = vmatprep.subr.mxu0 %v3736
        %3843 = vmatpush1.msra.mxu0 %v3735
        %3844 = vmatprep.subr.mxu0 %v3738
        %3845 = vmatpush1.msra.mxu0 %v3737
        %3846 = vmatprep.subr.mxu0 %v3740
        %3847 = vmatpush1.msra.mxu0 %v3739
        %3848 = vmatprep.subr.mxu0 %v3742
        %3849 = vmatpush1.msra.mxu0 %v3741
        %3850 = vmatprep.subr.mxu0 %v3744
        %3851 = vmatpush1.msra.mxu0 %v3743
        %3852 = vmatprep.subr.mxu0 %v3746
        %3853 = vmatpush1.msra.mxu0 %v3745
        %3854 = vmatprep.subr.mxu0 %v3748
        %3855 = vmatpush1.msra.mxu0 %v3747
        %3856 = vmatprep.subr.mxu0 %v3750
        %3857 = vmatpush1.msra.mxu0 %v3749
        %3858 = vmatprep.subr.mxu0 %v3752
        %3859 = vmatpush1.msra.mxu0 %v3751
        %3860 = vmatprep.subr.mxu0 %v3754
        %3861 = vmatpush1.msra.mxu0 %v3753
        %3862 = vmatprep.subr.mxu0 %v3756
        %3863 = vmatpush1.msra.mxu0 %v3755
        %3864 = vmatprep.subr.mxu0 %v3758
        %3865 = vmatpush1.msra.mxu0 %v3757
        %3866 = vmatprep.subr.mxu0 %v3760
        %3867 = vmatpush1.msra.mxu0 %v3759
        %3868 = vmatprep.subr.mxu0 %v3762
        %3869 = vmatpush1.msra.mxu0 %v3761
        %3870 = vmatprep.subr.mxu0 %v3764
        %3871 = vmatpush1.msra.mxu0 %v3763
        %3872 = vmatprep.subr.mxu0 %v3766
        %3873 = vmatpush1.msra.mxu0 %v3765
        %3874 = vmatprep.subr.mxu0 %v3768
        %3875 = vmatpush1.msra.mxu0 %v3767
        %3876 = vmatprep.subr.mxu0 0.0
        %3877 = vmatpush1.msra.mxu0 0.0
        %3878 = vmatprep.subr.mxu0 0.0
        %3879 = vmatpush1.msra.mxu0 0.0
        %3880 = vmatprep.subr.mxu0 0.0
        %3881 = vmatpush1.msra.mxu0 0.0
        %3882 = vmatprep.subr.mxu0 0.0
        %3883 = vmatpush1.msra.mxu0 0.0
        %3884 = vmatprep.mubr.f32.mxu0 %v3791
        %3885 = vmatmul.mubr.f32.gmra.mrb[0].mxu0 %v3769
        %v3886 = vpop.f32.mrb[0].mxu0
        %v3887 = vadd.f32 0.0, %v3886
        %v3888 = vpop.f32.mrb[0].mxu0
        %v3889 = vadd.f32 0.0, %v3888
        %3890 = vmatprep.mubr.f32.mxu0 %v3794
        %3891 = vmatmul.mubr.f32.gmra.mrb[0].mxu0 %v3771
        %v3892 = vpop.f32.mrb[0].mxu0
        %v3893 = vadd.f32 0.0, %v3892
        %v3894 = vpop.f32.mrb[0].mxu0
        %v3895 = vadd.f32 0.0, %v3894
        %3896 = vmatprep.mubr.f32.mxu0 %v3797
        %3897 = vmatmul.mubr.f32.gmra.mrb[0].mxu0 %v3773
        %v3898 = vpop.f32.mrb[0].mxu0
        %v3899 = vadd.f32 0.0, %v3898
        %v3900 = vpop.f32.mrb[0].mxu0
        %v3901 = vadd.f32 0.0, %v3900
        %3902 = vmatprep.mubr.f32.mxu0 %v3800
        %3903 = vmatmul.mubr.f32.gmra.mrb[0].mxu0 %v3775
        %v3904 = vpop.f32.mrb[0].mxu0
        %v3905 = vadd.f32 0.0, %v3904
        %v3906 = vpop.f32.mrb[0].mxu0
        %v3907 = vadd.f32 0.0, %v3906
        %3908 = vmatprep.mubr.f32.mxu0 %v3803
        %3909 = vmatmul.mubr.f32.gmra.mrb[0].mxu0 %v3777
        %v3910 = vpop.f32.mrb[0].mxu0
        %v3911 = vadd.f32 0.0, %v3910
        %v3912 = vpop.f32.mrb[0].mxu0
        %v3913 = vadd.f32 0.0, %v3912
        %3914 = vmatprep.mubr.f32.mxu0 %v3806
        %3915 = vmatmul.mubr.f32.gmra.mrb[0].mxu0 %v3779
        %v3916 = vpop.f32.mrb[0].mxu0
        %v3917 = vadd.f32 0.0, %v3916
        %v3918 = vpop.f32.mrb[0].mxu0
        %v3919 = vadd.f32 0.0, %v3918
        %3920 = vmatprep.mubr.f32.mxu0 %v3809
        %3921 = vmatmul.mubr.f32.gmra.mrb[0].mxu0 %v3781
        %v3922 = vpop.f32.mrb[0].mxu0
        %v3923 = vadd.f32 0.0, %v3922
        %v3924 = vpop.f32.mrb[0].mxu0
        %v3925 = vadd.f32 0.0, %v3924
        %3926 = vmatprep.mubr.f32.mxu0 %v3812
        %3927 = vmatmul.mubr.f32.gmra.mrb[0].mxu0 %v3783
        %v3928 = vpop.f32.mrb[0].mxu0
        %v3929 = vadd.f32 0.0, %v3928
        %v3930 = vpop.f32.mrb[0].mxu0
        %v3931 = vadd.f32 0.0, %v3930
        %3932 = vmatprep.mubr.f32.mxu0 %v3815
        %3933 = vmatmul.mubr.f32.gmra.mrb[0].mxu0 %v3785
        %v3934 = vpop.f32.mrb[0].mxu0
        %v3935 = vadd.f32 0.0, %v3934
        %v3936 = vpop.f32.mrb[0].mxu0
        %v3937 = vadd.f32 0.0, %v3936
        %3938 = vmatprep.mubr.f32.mxu0 %v3818
        %3939 = vmatmul.mubr.f32.gmra.mrb[0].mxu0 %v3787
        %v3940 = vpop.f32.mrb[0].mxu0
        %v3941 = vadd.f32 0.0, %v3940
        %v3942 = vpop.f32.mrb[0].mxu0
        %v3943 = vadd.f32 0.0, %v3942
        %3944 = vdwg.mxu0
        %v3945 = vld [vmem:[#allocation9] sm:$0xff]
        %v3946 = vld [vmem:[#allocation9 + $0x8] sm:$0xff]
        %v3947 = vld [vmem:[#allocation9 + $0x10] sm:$0xff]
        %v3948 = vld [vmem:[#allocation9 + $0x18] sm:$0xff]
        %v3949 = vld [vmem:[#allocation9 + $0x20] sm:$0xff]
        %v3950 = vld [vmem:[#allocation9 + $0x28] sm:$0xff]
        %v3951 = vld [vmem:[#allocation9 + $0x30] sm:$0xff]
        %v3952 = vld [vmem:[#allocation9 + $0x38] sm:$0xff]
        %v3953 = vld [vmem:[#allocation9 + $0x40] sm:$0xff]
        %v3954 = vld [vmem:[#allocation9 + $0x48] sm:$0xff]
        %v3955 = vld [vmem:[#allocation9 + $0x50] sm:$0xff]
        %v3956 = vld [vmem:[#allocation9 + $0x58] sm:$0xff]
        %v3957 = vld [vmem:[#allocation9 + $0x60] sm:$0xff]
        %v3958 = vld [vmem:[#allocation9 + $0x68] sm:$0xff]
        %v3959 = vld [vmem:[#allocation9 + $0x70] sm:$0xff]
        %v3960 = vld [vmem:[#allocation9 + $0x78] sm:$0xff]
        %v3961 = vld [vmem:[#allocation9 + $0x80] sm:$0xff]
        %v3962 = vld [vmem:[#allocation9 + $0x88] sm:$0xff]
        %v3963 = vld [vmem:[#allocation9 + $0x90] sm:$0xff]
        %v3964 = vld [vmem:[#allocation9 + $0x98] sm:$0xff]
        %v3965 = vld [vmem:[#allocation9 + $0xa0] sm:$0xff]
        %v3966 = vld [vmem:[#allocation9 + $0xa8] sm:$0xff]
        %v3967 = vld [vmem:[#allocation9 + $0xb0] sm:$0xff]
        %v3968 = vld [vmem:[#allocation9 + $0xb8] sm:$0xff]
        %v3969 = vld [vmem:[#allocation9 + $0xc0] sm:$0xff]
        %v3970 = vld [vmem:[#allocation9 + $0xc8] sm:$0xff]
        %v3971 = vld [vmem:[#allocation9 + $0xd0] sm:$0xff]
        %v3972 = vld [vmem:[#allocation9 + $0xd8] sm:$0xff]
        %v3973 = vld [vmem:[#allocation9 + $0xe0] sm:$0xff]
        %v3974 = vld [vmem:[#allocation9 + $0xe8] sm:$0xff]
        %v3975 = vld [vmem:[#allocation9 + $0xf0] sm:$0xff]
        %v3976 = vld [vmem:[#allocation9 + $0xf8] sm:$0xff]
        %v3977 = vld [vmem:[#allocation9 + $0x100] sm:$0xff]
        %v3978 = vld [vmem:[#allocation9 + $0x108] sm:$0xff]
        %v3979 = vld [vmem:[#allocation9 + $0x110] sm:$0xff]
        %v3980 = vld [vmem:[#allocation9 + $0x118] sm:$0xff]
        %v3981 = vld [vmem:[#allocation9 + $0x120] sm:$0xff]
        %v3982 = vld [vmem:[#allocation9 + $0x128] sm:$0xff]
        %v3983 = vld [vmem:[#allocation9 + $0x130] sm:$0xff]
        %v3984 = vld [vmem:[#allocation9 + $0x138] sm:$0xff]
        %v3985 = vld [vmem:[#allocation9 + $0x140] sm:$0xff]
        %v3986 = vld [vmem:[#allocation9 + $0x148] sm:$0xff]
        %s3987 = scalar_lea.vmem [#allocation7], 160
        %v3988 = vld [vmem:[%s3987] sm:$0xff]
        %v3989 = vld [vmem:[%s3987 + $0x8] sm:$0xff]
        %v3990 = vld [vmem:[%s3987 + $0x10] sm:$0xff]
        %v3991 = vld [vmem:[%s3987 + $0x18] sm:$0xff]
        %v3992 = vld [vmem:[%s3987 + $0x20] sm:$0xff]
        %v3993 = vld [vmem:[%s3987 + $0x28] sm:$0xff]
        %v3994 = vld [vmem:[%s3987 + $0x30] sm:$0xff]
        %v3995 = vld [vmem:[%s3987 + $0x38] sm:$0xff]
        %v3996 = vld [vmem:[%s3987 + $0x40] sm:$0xff]
        %v3997 = vld [vmem:[%s3987 + $0x48] sm:$0xff]
        %v3998 = vld [vmem:[%s3987 + $0x50] sm:$0xff]
        %v3999 = vld [vmem:[%s3987 + $0x58] sm:$0xff]
        %v4000 = vld [vmem:[%s3987 + $0x60] sm:$0xff]
        %v4001 = vld [vmem:[%s3987 + $0x68] sm:$0xff]
        %v4002 = vld [vmem:[%s3987 + $0x70] sm:$0xff]
        %v4003 = vld [vmem:[%s3987 + $0x78] sm:$0xff]
        %v4004 = vld [vmem:[%s3987 + $0x80] sm:$0xff]
        %v4005 = vld [vmem:[%s3987 + $0x88] sm:$0xff]
        %v4006 = vld [vmem:[%s3987 + $0x90] sm:$0xff]
        %v4007 = vld [vmem:[%s3987 + $0x98] sm:$0xff]
        %v4009 = vsel %vm3789, %v3989, 0
        %v4012 = vsel %vm3789, %v3991, 0
        %v4015 = vsel %vm3789, %v3993, 0
        %v4018 = vsel %vm3789, %v3995, 0
        %v4021 = vsel %vm3789, %v3997, 0
        %v4024 = vsel %vm3789, %v3999, 0
        %v4027 = vsel %vm3789, %v4001, 0
        %v4030 = vsel %vm3789, %v4003, 0
        %v4033 = vsel %vm3789, %v4005, 0
        %v4036 = vsel %vm3789, %v4007, 0
        %4038 = vmatprep.subr.mxu0 %v3714
        %4039 = vmatpush1.msra.mxu0 %v3713
        %4040 = vmatprep.subr.mxu0 %v3716
        %4041 = vmatpush1.msra.mxu0 %v3715
        %4042 = vmatprep.subr.mxu0 %v3718
        %4043 = vmatpush1.msra.mxu0 %v3717
        %4044 = vmatprep.subr.mxu0 %v3720
        %4045 = vmatpush1.msra.mxu0 %v3719
        %4046 = vmatprep.subr.mxu0 %v3722
        %4047 = vmatpush1.msra.mxu0 %v3721
        %4048 = vmatprep.subr.mxu0 %v3724
        %4049 = vmatpush1.msra.mxu0 %v3723
        %4050 = vmatprep.subr.mxu0 %v3726
        %4051 = vmatpush1.msra.mxu0 %v3725
        %4052 = vmatprep.subr.mxu0 %v3728
        %4053 = vmatpush1.msra.mxu0 %v3727
        %4054 = vmatprep.subr.mxu0 %v3730
        %4055 = vmatpush1.msra.mxu0 %v3729
        %4056 = vmatprep.subr.mxu0 %v3732
        %4057 = vmatpush1.msra.mxu0 %v3731
        %4058 = vmatprep.subr.mxu0 %v3734
        %4059 = vmatpush1.msra.mxu0 %v3733
        %4060 = vmatprep.subr.mxu0 %v3736
        %4061 = vmatpush1.msra.mxu0 %v3735
        %4062 = vmatprep.subr.mxu0 %v3738
        %4063 = vmatpush1.msra.mxu0 %v3737
        %4064 = vmatprep.subr.mxu0 %v3740
        %4065 = vmatpush1.msra.mxu0 %v3739
        %4066 = vmatprep.subr.mxu0 %v3742
        %4067 = vmatpush1.msra.mxu0 %v3741
        %4068 = vmatprep.subr.mxu0 %v3744
        %4069 = vmatpush1.msra.mxu0 %v3743
        %4070 = vmatprep.subr.mxu0 %v3746
        %4071 = vmatpush1.msra.mxu0 %v3745
        %4072 = vmatprep.subr.mxu0 %v3748
        %4073 = vmatpush1.msra.mxu0 %v3747
        %4074 = vmatprep.subr.mxu0 %v3750
        %4075 = vmatpush1.msra.mxu0 %v3749
        %4076 = vmatprep.subr.mxu0 %v3752
        %4077 = vmatpush1.msra.mxu0 %v3751
        %4078 = vmatprep.subr.mxu0 %v3754
        %4079 = vmatpush1.msra.mxu0 %v3753
        %4080 = vmatprep.subr.mxu0 %v3756
        %4081 = vmatpush1.msra.mxu0 %v3755
        %4082 = vmatprep.subr.mxu0 %v3758
        %4083 = vmatpush1.msra.mxu0 %v3757
        %4084 = vmatprep.subr.mxu0 %v3760
        %4085 = vmatpush1.msra.mxu0 %v3759
        %4086 = vmatprep.subr.mxu0 %v3762
        %4087 = vmatpush1.msra.mxu0 %v3761
        %4088 = vmatprep.subr.mxu0 %v3764
        %4089 = vmatpush1.msra.mxu0 %v3763
        %4090 = vmatprep.subr.mxu0 %v3766
        %4091 = vmatpush1.msra.mxu0 %v3765
        %4092 = vmatprep.subr.mxu0 %v3768
        %4093 = vmatpush1.msra.mxu0 %v3767
        %4094 = vmatprep.subr.mxu0 0.0
        %4095 = vmatpush1.msra.mxu0 0.0
        %4096 = vmatprep.subr.mxu0 0.0
        %4097 = vmatpush1.msra.mxu0 0.0
        %4098 = vmatprep.subr.mxu0 0.0
        %4099 = vmatpush1.msra.mxu0 0.0
        %4100 = vmatprep.subr.mxu0 0.0
        %4101 = vmatpush1.msra.mxu0 0.0
        %4102 = vmatprep.mubr.f32.mxu0 %v4009
        %4103 = vmatmul.mubr.f32.gmra.mrb[0].mxu0 %v3988
        %v4104 = vpop.f32.mrb[0].mxu0
        %v4105 = vadd.f32 0.0, %v4104
        %v4106 = vpop.f32.mrb[0].mxu0
        %v4107 = vadd.f32 0.0, %v4106
        %4108 = vmatprep.mubr.f32.mxu0 %v4012
        %4109 = vmatmul.mubr.f32.gmra.mrb[0].mxu0 %v3990
        %v4110 = vpop.f32.mrb[0].mxu0
        %v4111 = vadd.f32 0.0, %v4110
        %v4112 = vpop.f32.mrb[0].mxu0
        %v4113 = vadd.f32 0.0, %v4112
        %4114 = vmatprep.mubr.f32.mxu0 %v4015
        %4115 = vmatmul.mubr.f32.gmra.mrb[0].mxu0 %v3992
        %v4116 = vpop.f32.mrb[0].mxu0
        %v4117 = vadd.f32 0.0, %v4116
        %v4118 = vpop.f32.mrb[0].mxu0
        %v4119 = vadd.f32 0.0, %v4118
        %4120 = vmatprep.mubr.f32.mxu0 %v4018
        %4121 = vmatmul.mubr.f32.gmra.mrb[0].mxu0 %v3994
        %v4122 = vpop.f32.mrb[0].mxu0
        %v4123 = vadd.f32 0.0, %v4122
        %v4124 = vpop.f32.mrb[0].mxu0
        %v4125 = vadd.f32 0.0, %v4124
        %4126 = vmatprep.mubr.f32.mxu0 %v4021
        %4127 = vmatmul.mubr.f32.gmra.mrb[0].mxu0 %v3996
        %v4128 = vpop.f32.mrb[0].mxu0
        %v4129 = vadd.f32 0.0, %v4128
        %v4130 = vpop.f32.mrb[0].mxu0
        %v4131 = vadd.f32 0.0, %v4130
        %4132 = vmatprep.mubr.f32.mxu0 %v4024
        %4133 = vmatmul.mubr.f32.gmra.mrb[0].mxu0 %v3998
        %v4134 = vpop.f32.mrb[0].mxu0
        %v4135 = vadd.f32 0.0, %v4134
        %v4136 = vpop.f32.mrb[0].mxu0
        %v4137 = vadd.f32 0.0, %v4136
        %4138 = vmatprep.mubr.f32.mxu0 %v4027
        %4139 = vmatmul.mubr.f32.gmra.mrb[0].mxu0 %v4000
        %v4140 = vpop.f32.mrb[0].mxu0
        %v4141 = vadd.f32 0.0, %v4140
        %v4142 = vpop.f32.mrb[0].mxu0
        %v4143 = vadd.f32 0.0, %v4142
        %4144 = vmatprep.mubr.f32.mxu0 %v4030
        %4145 = vmatmul.mubr.f32.gmra.mrb[0].mxu0 %v4002
        %v4146 = vpop.f32.mrb[0].mxu0
        %v4147 = vadd.f32 0.0, %v4146
        %v4148 = vpop.f32.mrb[0].mxu0
        %v4149 = vadd.f32 0.0, %v4148
        %4150 = vmatprep.mubr.f32.mxu0 %v4033
        %4151 = vmatmul.mubr.f32.gmra.mrb[0].mxu0 %v4004
        %v4152 = vpop.f32.mrb[0].mxu0
        %v4153 = vadd.f32 0.0, %v4152
        %v4154 = vpop.f32.mrb[0].mxu0
        %v4155 = vadd.f32 0.0, %v4154
        %4156 = vmatprep.mubr.f32.mxu0 %v4036
        %4157 = vmatmul.mubr.f32.gmra.mrb[0].mxu0 %v4006
        %v4158 = vpop.f32.mrb[0].mxu0
        %v4159 = vadd.f32 0.0, %v4158
        %v4160 = vpop.f32.mrb[0].mxu0
        %v4161 = vadd.f32 0.0, %v4160
        %4162 = vdwg.mxu0
        %s4163 = scalar_lea.vmem [#allocation9], 336
        %v4164 = vld [vmem:[%s4163] sm:$0xff]
        %v4165 = vld [vmem:[%s4163 + $0x8] sm:$0xff]
        %v4166 = vld [vmem:[%s4163 + $0x10] sm:$0xff]
        %v4167 = vld [vmem:[%s4163 + $0x18] sm:$0xff]
        %v4168 = vld [vmem:[%s4163 + $0x20] sm:$0xff]
        %v4169 = vld [vmem:[%s4163 + $0x28] sm:$0xff]
        %v4170 = vld [vmem:[%s4163 + $0x30] sm:$0xff]
        %v4171 = vld [vmem:[%s4163 + $0x38] sm:$0xff]
        %v4172 = vld [vmem:[%s4163 + $0x40] sm:$0xff]
        %v4173 = vld [vmem:[%s4163 + $0x48] sm:$0xff]
        %v4174 = vld [vmem:[%s4163 + $0x50] sm:$0xff]
        %v4175 = vld [vmem:[%s4163 + $0x58] sm:$0xff]
        %v4176 = vld [vmem:[%s4163 + $0x60] sm:$0xff]
        %v4177 = vld [vmem:[%s4163 + $0x68] sm:$0xff]
        %v4178 = vld [vmem:[%s4163 + $0x70] sm:$0xff]
        %v4179 = vld [vmem:[%s4163 + $0x78] sm:$0xff]
        %v4180 = vld [vmem:[%s4163 + $0x80] sm:$0xff]
        %v4181 = vld [vmem:[%s4163 + $0x88] sm:$0xff]
        %v4182 = vld [vmem:[%s4163 + $0x90] sm:$0xff]
        %v4183 = vld [vmem:[%s4163 + $0x98] sm:$0xff]
        %v4184 = vld [vmem:[%s4163 + $0xa0] sm:$0xff]
        %v4185 = vld [vmem:[%s4163 + $0xa8] sm:$0xff]
        %v4186 = vld [vmem:[%s4163 + $0xb0] sm:$0xff]
        %v4187 = vld [vmem:[%s4163 + $0xb8] sm:$0xff]
        %v4188 = vld [vmem:[%s4163 + $0xc0] sm:$0xff]
        %v4189 = vld [vmem:[%s4163 + $0xc8] sm:$0xff]
        %v4190 = vld [vmem:[%s4163 + $0xd0] sm:$0xff]
        %v4191 = vld [vmem:[%s4163 + $0xd8] sm:$0xff]
        %v4192 = vld [vmem:[%s4163 + $0xe0] sm:$0xff]
        %v4193 = vld [vmem:[%s4163 + $0xe8] sm:$0xff]
        %v4194 = vld [vmem:[%s4163 + $0xf0] sm:$0xff]
        %v4195 = vld [vmem:[%s4163 + $0xf8] sm:$0xff]
        %v4196 = vld [vmem:[%s4163 + $0x100] sm:$0xff]
        %v4197 = vld [vmem:[%s4163 + $0x108] sm:$0xff]
        %v4198 = vld [vmem:[%s4163 + $0x110] sm:$0xff]
        %v4199 = vld [vmem:[%s4163 + $0x118] sm:$0xff]
        %v4200 = vld [vmem:[%s4163 + $0x120] sm:$0xff]
        %v4201 = vld [vmem:[%s4163 + $0x128] sm:$0xff]
        %v4202 = vld [vmem:[%s4163 + $0x130] sm:$0xff]
        %v4203 = vld [vmem:[%s4163 + $0x138] sm:$0xff]
        %v4204 = vld [vmem:[%s4163 + $0x140] sm:$0xff]
        %v4205 = vld [vmem:[%s4163 + $0x148] sm:$0xff]
        %vm4206 = vcmask 326656
        %v4208 = vsel %vm4206, %v4107, 0
        %v4211 = vsel %vm4206, %v4113, 0
        %v4214 = vsel %vm4206, %v4119, 0
        %v4217 = vsel %vm4206, %v4125, 0
        %v4220 = vsel %vm4206, %v4131, 0
        %v4223 = vsel %vm4206, %v4137, 0
        %v4226 = vsel %vm4206, %v4143, 0
        %v4229 = vsel %vm4206, %v4149, 0
        %v4232 = vsel %vm4206, %v4155, 0
        %v4235 = vsel %vm4206, %v4161, 0
        %4237 = vmatprep.subr.mxu0 %v4165
        %4238 = vmatpush1.msra.mxu0 %v4164
        %4239 = vmatprep.subr.mxu0 %v4167
        %4240 = vmatpush1.msra.mxu0 %v4166
        %4241 = vmatprep.subr.mxu0 %v4169
        %4242 = vmatpush1.msra.mxu0 %v4168
        %4243 = vmatprep.subr.mxu0 %v4171
        %4244 = vmatpush1.msra.mxu0 %v4170
        %4245 = vmatprep.subr.mxu0 %v4173
        %4246 = vmatpush1.msra.mxu0 %v4172
        %4247 = vmatprep.subr.mxu0 %v4175
        %4248 = vmatpush1.msra.mxu0 %v4174
        %4249 = vmatprep.subr.mxu0 %v4177
        %4250 = vmatpush1.msra.mxu0 %v4176
        %4251 = vmatprep.subr.mxu0 %v4179
        %4252 = vmatpush1.msra.mxu0 %v4178
        %4253 = vmatprep.subr.mxu0 %v4181
        %4254 = vmatpush1.msra.mxu0 %v4180
        %4255 = vmatprep.subr.mxu0 %v4183
        %4256 = vmatpush1.msra.mxu0 %v4182
        %4257 = vmatprep.subr.mxu0 %v4185
        %4258 = vmatpush1.msra.mxu0 %v4184
        %4259 = vmatprep.subr.mxu0 %v4187
        %4260 = vmatpush1.msra.mxu0 %v4186
        %4261 = vmatprep.subr.mxu0 %v4189
        %4262 = vmatpush1.msra.mxu0 %v4188
        %4263 = vmatprep.subr.mxu0 %v4191
        %4264 = vmatpush1.msra.mxu0 %v4190
        %4265 = vmatprep.subr.mxu0 %v4193
        %4266 = vmatpush1.msra.mxu0 %v4192
        %4267 = vmatprep.subr.mxu0 %v4195
        %4268 = vmatpush1.msra.mxu0 %v4194
        %4269 = vmatprep.subr.mxu0 %v4197
        %4270 = vmatpush1.msra.mxu0 %v4196
        %4271 = vmatprep.subr.mxu0 %v4199
        %4272 = vmatpush1.msra.mxu0 %v4198
        %4273 = vmatprep.subr.mxu0 %v4201
        %4274 = vmatpush1.msra.mxu0 %v4200
        %4275 = vmatprep.subr.mxu0 %v4203
        %4276 = vmatpush1.msra.mxu0 %v4202
        %4277 = vmatprep.subr.mxu0 %v4205
        %4278 = vmatpush1.msra.mxu0 %v4204
        %4279 = vmatprep.subr.mxu0 0.0
        %4280 = vmatpush1.msra.mxu0 0.0
        %4281 = vmatprep.subr.mxu0 0.0
        %4282 = vmatpush1.msra.mxu0 0.0
        %4283 = vmatprep.subr.mxu0 0.0
        %4284 = vmatpush1.msra.mxu0 0.0
        %4285 = vmatprep.subr.mxu0 0.0
        %4286 = vmatpush1.msra.mxu0 0.0
        %4287 = vmatprep.subr.mxu0 0.0
        %4288 = vmatpush1.msra.mxu0 0.0
        %4289 = vmatprep.subr.mxu0 0.0
        %4290 = vmatpush1.msra.mxu0 0.0
        %4291 = vmatprep.subr.mxu0 0.0
        %4292 = vmatpush1.msra.mxu0 0.0
        %4293 = vmatprep.subr.mxu0 0.0
        %4294 = vmatpush1.msra.mxu0 0.0
        %4295 = vmatprep.subr.mxu0 0.0
        %4296 = vmatpush1.msra.mxu0 0.0
        %4297 = vmatprep.subr.mxu0 0.0
        %4298 = vmatpush1.msra.mxu0 0.0
        %4299 = vmatprep.subr.mxu0 0.0
        %4300 = vmatpush1.msra.mxu0 0.0
        %4301 = vmatprep.mubr.f32.mxu0 %v4208
        %4302 = vmatmul.mubr.f32.gmra.mrb[0].mxu0 %v4105
        %v4303 = vpop.f32.mrb[0].mxu0
        %v4304 = vadd.f32 0.0, %v4303
        %v4305 = vpop.f32.mrb[0].mxu0
        %v4306 = vadd.f32 0.0, %v4305
        %4307 = vmatprep.mubr.f32.mxu0 %v4211
        %4308 = vmatmul.mubr.f32.gmra.mrb[0].mxu0 %v4111
        %v4309 = vpop.f32.mrb[0].mxu0
        %v4310 = vadd.f32 0.0, %v4309
        %v4311 = vpop.f32.mrb[0].mxu0
        %v4312 = vadd.f32 0.0, %v4311
        %4313 = vmatprep.mubr.f32.mxu0 %v4214
        %4314 = vmatmul.mubr.f32.gmra.mrb[0].mxu0 %v4117
        %v4315 = vpop.f32.mrb[0].mxu0
        %v4316 = vadd.f32 0.0, %v4315
        %v4317 = vpop.f32.mrb[0].mxu0
        %v4318 = vadd.f32 0.0, %v4317
        %4319 = vmatprep.mubr.f32.mxu0 %v4217
        %4320 = vmatmul.mubr.f32.gmra.mrb[0].mxu0 %v4123
        %v4321 = vpop.f32.mrb[0].mxu0
        %v4322 = vadd.f32 0.0, %v4321
        %v4323 = vpop.f32.mrb[0].mxu0
        %v4324 = vadd.f32 0.0, %v4323
        %4325 = vmatprep.mubr.f32.mxu0 %v4220
        %4326 = vmatmul.mubr.f32.gmra.mrb[0].mxu0 %v4129
        %v4327 = vpop.f32.mrb[0].mxu0
        %v4328 = vadd.f32 0.0, %v4327
        %v4329 = vpop.f32.mrb[0].mxu0
        %v4330 = vadd.f32 0.0, %v4329
        %4331 = vmatprep.mubr.f32.mxu0 %v4223
        %4332 = vmatmul.mubr.f32.gmra.mrb[0].mxu0 %v4135
        %v4333 = vpop.f32.mrb[0].mxu0
        %v4334 = vadd.f32 0.0, %v4333
        %v4335 = vpop.f32.mrb[0].mxu0
        %v4336 = vadd.f32 0.0, %v4335
        %4337 = vmatprep.mubr.f32.mxu0 %v4226
        %4338 = vmatmul.mubr.f32.gmra.mrb[0].mxu0 %v4141
        %v4339 = vpop.f32.mrb[0].mxu0
        %v4340 = vadd.f32 0.0, %v4339
        %v4341 = vpop.f32.mrb[0].mxu0
        %v4342 = vadd.f32 0.0, %v4341
        %4343 = vmatprep.mubr.f32.mxu0 %v4229
        %4344 = vmatmul.mubr.f32.gmra.mrb[0].mxu0 %v4147
        %v4345 = vpop.f32.mrb[0].mxu0
        %v4346 = vadd.f32 0.0, %v4345
        %v4347 = vpop.f32.mrb[0].mxu0
        %v4348 = vadd.f32 0.0, %v4347
        %4349 = vmatprep.mubr.f32.mxu0 %v4232
        %4350 = vmatmul.mubr.f32.gmra.mrb[0].mxu0 %v4153
        %v4351 = vpop.f32.mrb[0].mxu0
        %v4352 = vadd.f32 0.0, %v4351
        %v4353 = vpop.f32.mrb[0].mxu0
        %v4354 = vadd.f32 0.0, %v4353
        %4355 = vmatprep.mubr.f32.mxu0 %v4235
        %4356 = vmatmul.mubr.f32.gmra.mrb[0].mxu0 %v4159
        %v4357 = vpop.f32.mrb[0].mxu0
        %v4358 = vadd.f32 0.0, %v4357
        %v4359 = vpop.f32.mrb[0].mxu0
        %v4360 = vadd.f32 0.0, %v4359
        %4361 = vdwg.mxu0
        %v4363 = vsel %vm4206, %v3889, 0
        %v4366 = vsel %vm4206, %v3895, 0
        %v4369 = vsel %vm4206, %v3901, 0
        %v4372 = vsel %vm4206, %v3907, 0
        %v4375 = vsel %vm4206, %v3913, 0
        %v4378 = vsel %vm4206, %v3919, 0
        %v4381 = vsel %vm4206, %v3925, 0
        %v4384 = vsel %vm4206, %v3931, 0
        %v4387 = vsel %vm4206, %v3937, 0
        %v4390 = vsel %vm4206, %v3943, 0
        %4392 = vmatprep.subr.mxu0 %v3946
        %4393 = vmatpush1.msra.mxu0 %v3945
        %4394 = vmatprep.subr.mxu0 %v3948
        %4395 = vmatpush1.msra.mxu0 %v3947
        %4396 = vmatprep.subr.mxu0 %v3950
        %4397 = vmatpush1.msra.mxu0 %v3949
        %4398 = vmatprep.subr.mxu0 %v3952
        %4399 = vmatpush1.msra.mxu0 %v3951
        %4400 = vmatprep.subr.mxu0 %v3954
        %4401 = vmatpush1.msra.mxu0 %v3953
        %4402 = vmatprep.subr.mxu0 %v3956
        %4403 = vmatpush1.msra.mxu0 %v3955
        %4404 = vmatprep.subr.mxu0 %v3958
        %4405 = vmatpush1.msra.mxu0 %v3957
        %4406 = vmatprep.subr.mxu0 %v3960
        %4407 = vmatpush1.msra.mxu0 %v3959
        %4408 = vmatprep.subr.mxu0 %v3962
        %4409 = vmatpush1.msra.mxu0 %v3961
        %4410 = vmatprep.subr.mxu0 %v3964
        %4411 = vmatpush1.msra.mxu0 %v3963
        %4412 = vmatprep.subr.mxu0 %v3966
        %4413 = vmatpush1.msra.mxu0 %v3965
        %4414 = vmatprep.subr.mxu0 %v3968
        %4415 = vmatpush1.msra.mxu0 %v3967
        %4416 = vmatprep.subr.mxu0 %v3970
        %4417 = vmatpush1.msra.mxu0 %v3969
        %4418 = vmatprep.subr.mxu0 %v3972
        %4419 = vmatpush1.msra.mxu0 %v3971
        %4420 = vmatprep.subr.mxu0 %v3974
        %4421 = vmatpush1.msra.mxu0 %v3973
        %4422 = vmatprep.subr.mxu0 %v3976
        %4423 = vmatpush1.msra.mxu0 %v3975
        %4424 = vmatprep.subr.mxu0 %v3978
        %4425 = vmatpush1.msra.mxu0 %v3977
        %4426 = vmatprep.subr.mxu0 %v3980
        %4427 = vmatpush1.msra.mxu0 %v3979
        %4428 = vmatprep.subr.mxu0 %v3982
        %4429 = vmatpush1.msra.mxu0 %v3981
        %4430 = vmatprep.subr.mxu0 %v3984
        %4431 = vmatpush1.msra.mxu0 %v3983
        %4432 = vmatprep.subr.mxu0 %v3986
        %4433 = vmatpush1.msra.mxu0 %v3985
        %4434 = vmatprep.subr.mxu0 0.0
        %4435 = vmatpush1.msra.mxu0 0.0
        %4436 = vmatprep.subr.mxu0 0.0
        %4437 = vmatpush1.msra.mxu0 0.0
        %4438 = vmatprep.subr.mxu0 0.0
        %4439 = vmatpush1.msra.mxu0 0.0
        %4440 = vmatprep.subr.mxu0 0.0
        %4441 = vmatpush1.msra.mxu0 0.0
        %4442 = vmatprep.subr.mxu0 0.0
        %4443 = vmatpush1.msra.mxu0 0.0
        %4444 = vmatprep.subr.mxu0 0.0
        %4445 = vmatpush1.msra.mxu0 0.0
        %4446 = vmatprep.subr.mxu0 0.0
        %4447 = vmatpush1.msra.mxu0 0.0
        %4448 = vmatprep.subr.mxu0 0.0
        %4449 = vmatpush1.msra.mxu0 0.0
        %4450 = vmatprep.subr.mxu0 0.0
        %4451 = vmatpush1.msra.mxu0 0.0
        %4452 = vmatprep.subr.mxu0 0.0
        %4453 = vmatpush1.msra.mxu0 0.0
        %4454 = vmatprep.subr.mxu0 0.0
        %4455 = vmatpush1.msra.mxu0 0.0
        %4456 = vmatprep.mubr.f32.mxu0 %v4363
        %4457 = vmatmul.mubr.f32.gmra.mrb[0].mxu0 %v3887
        %v4458 = vpop.f32.mrb[0].mxu0
        %v4459 = vadd.f32 %v4304, %v4458
        %v4460 = vpop.f32.mrb[0].mxu0
        %v4461 = vadd.f32 %v4306, %v4460
        %4462 = vmatprep.mubr.f32.mxu0 %v4366
        %4463 = vmatmul.mubr.f32.gmra.mrb[0].mxu0 %v3893
        %v4464 = vpop.f32.mrb[0].mxu0
        %v4465 = vadd.f32 %v4310, %v4464
        %v4466 = vpop.f32.mrb[0].mxu0
        %v4467 = vadd.f32 %v4312, %v4466
        %4468 = vmatprep.mubr.f32.mxu0 %v4369
        %4469 = vmatmul.mubr.f32.gmra.mrb[0].mxu0 %v3899
        %v4470 = vpop.f32.mrb[0].mxu0
        %v4471 = vadd.f32 %v4316, %v4470
        %v4472 = vpop.f32.mrb[0].mxu0
        %v4473 = vadd.f32 %v4318, %v4472
        %4474 = vmatprep.mubr.f32.mxu0 %v4372
        %4475 = vmatmul.mubr.f32.gmra.mrb[0].mxu0 %v3905
        %v4476 = vpop.f32.mrb[0].mxu0
        %v4477 = vadd.f32 %v4322, %v4476
        %v4478 = vpop.f32.mrb[0].mxu0
        %v4479 = vadd.f32 %v4324, %v4478
        %4480 = vmatprep.mubr.f32.mxu0 %v4375
        %4481 = vmatmul.mubr.f32.gmra.mrb[0].mxu0 %v3911
        %v4482 = vpop.f32.mrb[0].mxu0
        %v4483 = vadd.f32 %v4328, %v4482
        %v4484 = vpop.f32.mrb[0].mxu0
        %v4485 = vadd.f32 %v4330, %v4484
        %4486 = vmatprep.mubr.f32.mxu0 %v4378
        %4487 = vmatmul.mubr.f32.gmra.mrb[0].mxu0 %v3917
        %v4488 = vpop.f32.mrb[0].mxu0
        %v4489 = vadd.f32 %v4334, %v4488
        %v4490 = vpop.f32.mrb[0].mxu0
        %v4491 = vadd.f32 %v4336, %v4490
        %4492 = vmatprep.mubr.f32.mxu0 %v4381
        %4493 = vmatmul.mubr.f32.gmra.mrb[0].mxu0 %v3923
        %v4494 = vpop.f32.mrb[0].mxu0
        %v4495 = vadd.f32 %v4340, %v4494
        %v4496 = vpop.f32.mrb[0].mxu0
        %v4497 = vadd.f32 %v4342, %v4496
        %4498 = vmatprep.mubr.f32.mxu0 %v4384
        %4499 = vmatmul.mubr.f32.gmra.mrb[0].mxu0 %v3929
        %v4500 = vpop.f32.mrb[0].mxu0
        %v4501 = vadd.f32 %v4346, %v4500
        %v4502 = vpop.f32.mrb[0].mxu0
        %v4503 = vadd.f32 %v4348, %v4502
        %4504 = vmatprep.mubr.f32.mxu0 %v4387
        %4505 = vmatmul.mubr.f32.gmra.mrb[0].mxu0 %v3935
        %v4506 = vpop.f32.mrb[0].mxu0
        %v4507 = vadd.f32 %v4352, %v4506
        %v4508 = vpop.f32.mrb[0].mxu0
        %v4509 = vadd.f32 %v4354, %v4508
        %4510 = vmatprep.mubr.f32.mxu0 %v4390
        %4511 = vmatmul.mubr.f32.gmra.mrb[0].mxu0 %v3941
        %v4512 = vpop.f32.mrb[0].mxu0
        %v4513 = vadd.f32 %v4358, %v4512
        %v4514 = vpop.f32.mrb[0].mxu0
        %v4515 = vadd.f32 %v4360, %v4514
        %4516 = vdwg.mxu0
        %s4517 = scalar_lea.vmem [#allocation7], 320
        %v4518 = vld [vmem:[%s4517] sm:$0xff]
        %v4519 = vld [vmem:[%s4517 + $0x8] sm:$0xff]
        %v4520 = vld [vmem:[%s4517 + $0x10] sm:$0xff]
        %v4521 = vld [vmem:[%s4517 + $0x18] sm:$0xff]
        %v4522 = vld [vmem:[%s4517 + $0x20] sm:$0xff]
        %v4523 = vld [vmem:[%s4517 + $0x28] sm:$0xff]
        %v4524 = vld [vmem:[%s4517 + $0x30] sm:$0xff]
        %v4525 = vld [vmem:[%s4517 + $0x38] sm:$0xff]
        %v4526 = vld [vmem:[%s4517 + $0x40] sm:$0xff]
        %v4527 = vld [vmem:[%s4517 + $0x48] sm:$0xff]
        %v4528 = vld [vmem:[%s4517 + $0x50] sm:$0xff]
        %v4529 = vld [vmem:[%s4517 + $0x58] sm:$0xff]
        %v4530 = vld [vmem:[%s4517 + $0x60] sm:$0xff]
        %v4531 = vld [vmem:[%s4517 + $0x68] sm:$0xff]
        %v4532 = vld [vmem:[%s4517 + $0x70] sm:$0xff]
        %v4533 = vld [vmem:[%s4517 + $0x78] sm:$0xff]
        %v4534 = vld [vmem:[%s4517 + $0x80] sm:$0xff]
        %v4535 = vld [vmem:[%s4517 + $0x88] sm:$0xff]
        %v4536 = vld [vmem:[%s4517 + $0x90] sm:$0xff]
        %v4537 = vld [vmem:[%s4517 + $0x98] sm:$0xff]
        %v4539 = vsel %vm3789, %v4519, 0
        %v4542 = vsel %vm3789, %v4521, 0
        %v4545 = vsel %vm3789, %v4523, 0
        %v4548 = vsel %vm3789, %v4525, 0
        %v4551 = vsel %vm3789, %v4527, 0
        %v4554 = vsel %vm3789, %v4529, 0
        %v4557 = vsel %vm3789, %v4531, 0
        %v4560 = vsel %vm3789, %v4533, 0
        %v4563 = vsel %vm3789, %v4535, 0
        %v4566 = vsel %vm3789, %v4537, 0
        %4568 = vmatprep.subr.mxu0 %v3714
        %4569 = vmatpush1.msra.mxu0 %v3713
        %4570 = vmatprep.subr.mxu0 %v3716
        %4571 = vmatpush1.msra.mxu0 %v3715
        %4572 = vmatprep.subr.mxu0 %v3718
        %4573 = vmatpush1.msra.mxu0 %v3717
        %4574 = vmatprep.subr.mxu0 %v3720
        %4575 = vmatpush1.msra.mxu0 %v3719
        %4576 = vmatprep.subr.mxu0 %v3722
        %4577 = vmatpush1.msra.mxu0 %v3721
        %4578 = vmatprep.subr.mxu0 %v3724
        %4579 = vmatpush1.msra.mxu0 %v3723
        %4580 = vmatprep.subr.mxu0 %v3726
        %4581 = vmatpush1.msra.mxu0 %v3725
        %4582 = vmatprep.subr.mxu0 %v3728
        %4583 = vmatpush1.msra.mxu0 %v3727
        %4584 = vmatprep.subr.mxu0 %v3730
        %4585 = vmatpush1.msra.mxu0 %v3729
        %4586 = vmatprep.subr.mxu0 %v3732
        %4587 = vmatpush1.msra.mxu0 %v3731
        %4588 = vmatprep.subr.mxu0 %v3734
        %4589 = vmatpush1.msra.mxu0 %v3733
        %4590 = vmatprep.subr.mxu0 %v3736
        %4591 = vmatpush1.msra.mxu0 %v3735
        %4592 = vmatprep.subr.mxu0 %v3738
        %4593 = vmatpush1.msra.mxu0 %v3737
        %4594 = vmatprep.subr.mxu0 %v3740
        %4595 = vmatpush1.msra.mxu0 %v3739
        %4596 = vmatprep.subr.mxu0 %v3742
        %4597 = vmatpush1.msra.mxu0 %v3741
        %4598 = vmatprep.subr.mxu0 %v3744
        %4599 = vmatpush1.msra.mxu0 %v3743
        %4600 = vmatprep.subr.mxu0 %v3746
        %4601 = vmatpush1.msra.mxu0 %v3745
        %4602 = vmatprep.subr.mxu0 %v3748
        %4603 = vmatpush1.msra.mxu0 %v3747
        %4604 = vmatprep.subr.mxu0 %v3750
        %4605 = vmatpush1.msra.mxu0 %v3749
        %4606 = vmatprep.subr.mxu0 %v3752
        %4607 = vmatpush1.msra.mxu0 %v3751
        %4608 = vmatprep.subr.mxu0 %v3754
        %4609 = vmatpush1.msra.mxu0 %v3753
        %4610 = vmatprep.subr.mxu0 %v3756
        %4611 = vmatpush1.msra.mxu0 %v3755
        %4612 = vmatprep.subr.mxu0 %v3758
        %4613 = vmatpush1.msra.mxu0 %v3757
        %4614 = vmatprep.subr.mxu0 %v3760
        %4615 = vmatpush1.msra.mxu0 %v3759
        %4616 = vmatprep.subr.mxu0 %v3762
        %4617 = vmatpush1.msra.mxu0 %v3761
        %4618 = vmatprep.subr.mxu0 %v3764
        %4619 = vmatpush1.msra.mxu0 %v3763
        %4620 = vmatprep.subr.mxu0 %v3766
        %4621 = vmatpush1.msra.mxu0 %v3765
        %4622 = vmatprep.subr.mxu0 %v3768
        %4623 = vmatpush1.msra.mxu0 %v3767
        %4624 = vmatprep.subr.mxu0 0.0
        %4625 = vmatpush1.msra.mxu0 0.0
        %4626 = vmatprep.subr.mxu0 0.0
        %4627 = vmatpush1.msra.mxu0 0.0
        %4628 = vmatprep.subr.mxu0 0.0
        %4629 = vmatpush1.msra.mxu0 0.0
        %4630 = vmatprep.subr.mxu0 0.0
        %4631 = vmatpush1.msra.mxu0 0.0
        %4632 = vmatprep.mubr.f32.mxu0 %v4539
        %4633 = vmatmul.mubr.f32.gmra.mrb[0].mxu0 %v4518
        %v4634 = vpop.f32.mrb[0].mxu0
        %v4635 = vadd.f32 0.0, %v4634
        %v4636 = vpop.f32.mrb[0].mxu0
        %v4637 = vadd.f32 0.0, %v4636
        %4638 = vmatprep.mubr.f32.mxu0 %v4542
        %4639 = vmatmul.mubr.f32.gmra.mrb[0].mxu0 %v4520
        %v4640 = vpop.f32.mrb[0].mxu0
        %v4641 = vadd.f32 0.0, %v4640
        %v4642 = vpop.f32.mrb[0].mxu0
        %v4643 = vadd.f32 0.0, %v4642
        %4644 = vmatprep.mubr.f32.mxu0 %v4545
        %4645 = vmatmul.mubr.f32.gmra.mrb[0].mxu0 %v4522
        %v4646 = vpop.f32.mrb[0].mxu0
        %v4647 = vadd.f32 0.0, %v4646
        %v4648 = vpop.f32.mrb[0].mxu0
        %v4649 = vadd.f32 0.0, %v4648
        %4650 = vmatprep.mubr.f32.mxu0 %v4548
        %4651 = vmatmul.mubr.f32.gmra.mrb[0].mxu0 %v4524
        %v4652 = vpop.f32.mrb[0].mxu0
        %v4653 = vadd.f32 0.0, %v4652
        %v4654 = vpop.f32.mrb[0].mxu0
        %v4655 = vadd.f32 0.0, %v4654
        %4656 = vmatprep.mubr.f32.mxu0 %v4551
        %4657 = vmatmul.mubr.f32.gmra.mrb[0].mxu0 %v4526
        %v4658 = vpop.f32.mrb[0].mxu0
        %v4659 = vadd.f32 0.0, %v4658
        %v4660 = vpop.f32.mrb[0].mxu0
        %v4661 = vadd.f32 0.0, %v4660
        %4662 = vmatprep.mubr.f32.mxu0 %v4554
        %4663 = vmatmul.mubr.f32.gmra.mrb[0].mxu0 %v4528
        %v4664 = vpop.f32.mrb[0].mxu0
        %v4665 = vadd.f32 0.0, %v4664
        %v4666 = vpop.f32.mrb[0].mxu0
        %v4667 = vadd.f32 0.0, %v4666
        %4668 = vmatprep.mubr.f32.mxu0 %v4557
        %4669 = vmatmul.mubr.f32.gmra.mrb[0].mxu0 %v4530
        %v4670 = vpop.f32.mrb[0].mxu0
        %v4671 = vadd.f32 0.0, %v4670
        %v4672 = vpop.f32.mrb[0].mxu0
        %v4673 = vadd.f32 0.0, %v4672
        %4674 = vmatprep.mubr.f32.mxu0 %v4560
        %4675 = vmatmul.mubr.f32.gmra.mrb[0].mxu0 %v4532
        %v4676 = vpop.f32.mrb[0].mxu0
        %v4677 = vadd.f32 0.0, %v4676
        %v4678 = vpop.f32.mrb[0].mxu0
        %v4679 = vadd.f32 0.0, %v4678
        %4680 = vmatprep.mubr.f32.mxu0 %v4563
        %4681 = vmatmul.mubr.f32.gmra.mrb[0].mxu0 %v4534
        %v4682 = vpop.f32.mrb[0].mxu0
        %v4683 = vadd.f32 0.0, %v4682
        %v4684 = vpop.f32.mrb[0].mxu0
        %v4685 = vadd.f32 0.0, %v4684
        %4686 = vmatprep.mubr.f32.mxu0 %v4566
        %4687 = vmatmul.mubr.f32.gmra.mrb[0].mxu0 %v4536
        %v4688 = vpop.f32.mrb[0].mxu0
        %v4689 = vadd.f32 0.0, %v4688
        %v4690 = vpop.f32.mrb[0].mxu0
        %v4691 = vadd.f32 0.0, %v4690
        %4692 = vdwg.mxu0
        %s4693 = scalar_lea.vmem [#allocation9], 672
        %v4694 = vld [vmem:[%s4693] sm:$0xff]
        %v4695 = vld [vmem:[%s4693 + $0x8] sm:$0xff]
        %v4696 = vld [vmem:[%s4693 + $0x10] sm:$0xff]
        %v4697 = vld [vmem:[%s4693 + $0x18] sm:$0xff]
        %v4698 = vld [vmem:[%s4693 + $0x20] sm:$0xff]
        %v4699 = vld [vmem:[%s4693 + $0x28] sm:$0xff]
        %v4700 = vld [vmem:[%s4693 + $0x30] sm:$0xff]
        %v4701 = vld [vmem:[%s4693 + $0x38] sm:$0xff]
        %v4702 = vld [vmem:[%s4693 + $0x40] sm:$0xff]
        %v4703 = vld [vmem:[%s4693 + $0x48] sm:$0xff]
        %v4704 = vld [vmem:[%s4693 + $0x50] sm:$0xff]
        %v4705 = vld [vmem:[%s4693 + $0x58] sm:$0xff]
        %v4706 = vld [vmem:[%s4693 + $0x60] sm:$0xff]
        %v4707 = vld [vmem:[%s4693 + $0x68] sm:$0xff]
        %v4708 = vld [vmem:[%s4693 + $0x70] sm:$0xff]
        %v4709 = vld [vmem:[%s4693 + $0x78] sm:$0xff]
        %v4710 = vld [vmem:[%s4693 + $0x80] sm:$0xff]
        %v4711 = vld [vmem:[%s4693 + $0x88] sm:$0xff]
        %v4712 = vld [vmem:[%s4693 + $0x90] sm:$0xff]
        %v4713 = vld [vmem:[%s4693 + $0x98] sm:$0xff]
        %v4714 = vld [vmem:[%s4693 + $0xa0] sm:$0xff]
        %v4715 = vld [vmem:[%s4693 + $0xa8] sm:$0xff]
        %v4716 = vld [vmem:[%s4693 + $0xb0] sm:$0xff]
        %v4717 = vld [vmem:[%s4693 + $0xb8] sm:$0xff]
        %v4718 = vld [vmem:[%s4693 + $0xc0] sm:$0xff]
        %v4719 = vld [vmem:[%s4693 + $0xc8] sm:$0xff]
        %v4720 = vld [vmem:[%s4693 + $0xd0] sm:$0xff]
        %v4721 = vld [vmem:[%s4693 + $0xd8] sm:$0xff]
        %v4722 = vld [vmem:[%s4693 + $0xe0] sm:$0xff]
        %v4723 = vld [vmem:[%s4693 + $0xe8] sm:$0xff]
        %v4724 = vld [vmem:[%s4693 + $0xf0] sm:$0xff]
        %v4725 = vld [vmem:[%s4693 + $0xf8] sm:$0xff]
        %v4726 = vld [vmem:[%s4693 + $0x100] sm:$0xff]
        %v4727 = vld [vmem:[%s4693 + $0x108] sm:$0xff]
        %v4728 = vld [vmem:[%s4693 + $0x110] sm:$0xff]
        %v4729 = vld [vmem:[%s4693 + $0x118] sm:$0xff]
        %v4730 = vld [vmem:[%s4693 + $0x120] sm:$0xff]
        %v4731 = vld [vmem:[%s4693 + $0x128] sm:$0xff]
        %v4732 = vld [vmem:[%s4693 + $0x130] sm:$0xff]
        %v4733 = vld [vmem:[%s4693 + $0x138] sm:$0xff]
        %v4734 = vld [vmem:[%s4693 + $0x140] sm:$0xff]
        %v4735 = vld [vmem:[%s4693 + $0x148] sm:$0xff]
        %v4737 = vsel %vm4206, %v4637, 0
        %v4740 = vsel %vm4206, %v4643, 0
        %v4743 = vsel %vm4206, %v4649, 0
        %v4746 = vsel %vm4206, %v4655, 0
        %v4749 = vsel %vm4206, %v4661, 0
        %v4752 = vsel %vm4206, %v4667, 0
        %v4755 = vsel %vm4206, %v4673, 0
        %v4758 = vsel %vm4206, %v4679, 0
        %v4761 = vsel %vm4206, %v4685, 0
        %v4764 = vsel %vm4206, %v4691, 0
        %4766 = vmatprep.subr.mxu0 %v4695
        %4767 = vmatpush1.msra.mxu0 %v4694
        %4768 = vmatprep.subr.mxu0 %v4697
        %4769 = vmatpush1.msra.mxu0 %v4696
        %4770 = vmatprep.subr.mxu0 %v4699
        %4771 = vmatpush1.msra.mxu0 %v4698
        %4772 = vmatprep.subr.mxu0 %v4701
        %4773 = vmatpush1.msra.mxu0 %v4700
        %4774 = vmatprep.subr.mxu0 %v4703
        %4775 = vmatpush1.msra.mxu0 %v4702
        %4776 = vmatprep.subr.mxu0 %v4705
        %4777 = vmatpush1.msra.mxu0 %v4704
        %4778 = vmatprep.subr.mxu0 %v4707
        %4779 = vmatpush1.msra.mxu0 %v4706
        %4780 = vmatprep.subr.mxu0 %v4709
        %4781 = vmatpush1.msra.mxu0 %v4708
        %4782 = vmatprep.subr.mxu0 %v4711
        %4783 = vmatpush1.msra.mxu0 %v4710
        %4784 = vmatprep.subr.mxu0 %v4713
        %4785 = vmatpush1.msra.mxu0 %v4712
        %4786 = vmatprep.subr.mxu0 %v4715
        %4787 = vmatpush1.msra.mxu0 %v4714
        %4788 = vmatprep.subr.mxu0 %v4717
        %4789 = vmatpush1.msra.mxu0 %v4716
        %4790 = vmatprep.subr.mxu0 %v4719
        %4791 = vmatpush1.msra.mxu0 %v4718
        %4792 = vmatprep.subr.mxu0 %v4721
        %4793 = vmatpush1.msra.mxu0 %v4720
        %4794 = vmatprep.subr.mxu0 %v4723
        %4795 = vmatpush1.msra.mxu0 %v4722
        %4796 = vmatprep.subr.mxu0 %v4725
        %4797 = vmatpush1.msra.mxu0 %v4724
        %4798 = vmatprep.subr.mxu0 %v4727
        %4799 = vmatpush1.msra.mxu0 %v4726
        %4800 = vmatprep.subr.mxu0 %v4729
        %4801 = vmatpush1.msra.mxu0 %v4728
        %4802 = vmatprep.subr.mxu0 %v4731
        %4803 = vmatpush1.msra.mxu0 %v4730
        %4804 = vmatprep.subr.mxu0 %v4733
        %4805 = vmatpush1.msra.mxu0 %v4732
        %4806 = vmatprep.subr.mxu0 %v4735
        %4807 = vmatpush1.msra.mxu0 %v4734
        %4808 = vmatprep.subr.mxu0 0.0
        %4809 = vmatpush1.msra.mxu0 0.0
        %4810 = vmatprep.subr.mxu0 0.0
        %4811 = vmatpush1.msra.mxu0 0.0
        %4812 = vmatprep.subr.mxu0 0.0
        %4813 = vmatpush1.msra.mxu0 0.0
        %4814 = vmatprep.subr.mxu0 0.0
        %4815 = vmatpush1.msra.mxu0 0.0
        %4816 = vmatprep.subr.mxu0 0.0
        %4817 = vmatpush1.msra.mxu0 0.0
        %4818 = vmatprep.subr.mxu0 0.0
        %4819 = vmatpush1.msra.mxu0 0.0
        %4820 = vmatprep.subr.mxu0 0.0
        %4821 = vmatpush1.msra.mxu0 0.0
        %4822 = vmatprep.subr.mxu0 0.0
        %4823 = vmatpush1.msra.mxu0 0.0
        %4824 = vmatprep.subr.mxu0 0.0
        %4825 = vmatpush1.msra.mxu0 0.0
        %4826 = vmatprep.subr.mxu0 0.0
        %4827 = vmatpush1.msra.mxu0 0.0
        %4828 = vmatprep.subr.mxu0 0.0
        %4829 = vmatpush1.msra.mxu0 0.0
        %4830 = vmatprep.mubr.f32.mxu0 %v4737
        %4831 = vmatmul.mubr.f32.gmra.mrb[0].mxu0 %v4635
        %v4832 = vpop.f32.mrb[0].mxu0
        %v4833 = vadd.f32 0.0, %v4832
        %v4834 = vpop.f32.mrb[0].mxu0
        %v4835 = vadd.f32 0.0, %v4834
        %4836 = vmatprep.mubr.f32.mxu0 %v4740
        %4837 = vmatmul.mubr.f32.gmra.mrb[0].mxu0 %v4641
        %v4838 = vpop.f32.mrb[0].mxu0
        %v4839 = vadd.f32 0.0, %v4838
        %v4840 = vpop.f32.mrb[0].mxu0
        %v4841 = vadd.f32 0.0, %v4840
        %4842 = vmatprep.mubr.f32.mxu0 %v4743
        %4843 = vmatmul.mubr.f32.gmra.mrb[0].mxu0 %v4647
        %v4844 = vpop.f32.mrb[0].mxu0
        %v4845 = vadd.f32 0.0, %v4844
        %v4846 = vpop.f32.mrb[0].mxu0
        %v4847 = vadd.f32 0.0, %v4846
        %4848 = vmatprep.mubr.f32.mxu0 %v4746
        %4849 = vmatmul.mubr.f32.gmra.mrb[0].mxu0 %v4653
        %v4850 = vpop.f32.mrb[0].mxu0
        %v4851 = vadd.f32 0.0, %v4850
        %v4852 = vpop.f32.mrb[0].mxu0
        %v4853 = vadd.f32 0.0, %v4852
        %4854 = vmatprep.mubr.f32.mxu0 %v4749
        %4855 = vmatmul.mubr.f32.gmra.mrb[0].mxu0 %v4659
        %v4856 = vpop.f32.mrb[0].mxu0
        %v4857 = vadd.f32 0.0, %v4856
        %v4858 = vpop.f32.mrb[0].mxu0
        %v4859 = vadd.f32 0.0, %v4858
        %4860 = vmatprep.mubr.f32.mxu0 %v4752
        %4861 = vmatmul.mubr.f32.gmra.mrb[0].mxu0 %v4665
        %v4862 = vpop.f32.mrb[0].mxu0
        %v4863 = vadd.f32 0.0, %v4862
        %v4864 = vpop.f32.mrb[0].mxu0
        %v4865 = vadd.f32 0.0, %v4864
        %4866 = vmatprep.mubr.f32.mxu0 %v4755
        %4867 = vmatmul.mubr.f32.gmra.mrb[0].mxu0 %v4671
        %v4868 = vpop.f32.mrb[0].mxu0
        %v4869 = vadd.f32 0.0, %v4868
        %v4870 = vpop.f32.mrb[0].mxu0
        %v4871 = vadd.f32 0.0, %v4870
        %4872 = vmatprep.mubr.f32.mxu0 %v4758
        %4873 = vmatmul.mubr.f32.gmra.mrb[0].mxu0 %v4677
        %v4874 = vpop.f32.mrb[0].mxu0
        %v4875 = vadd.f32 0.0, %v4874
        %v4876 = vpop.f32.mrb[0].mxu0
        %v4877 = vadd.f32 0.0, %v4876
        %4878 = vmatprep.mubr.f32.mxu0 %v4761
        %4879 = vmatmul.mubr.f32.gmra.mrb[0].mxu0 %v4683
        %v4880 = vpop.f32.mrb[0].mxu0
        %v4881 = vadd.f32 0.0, %v4880
        %v4882 = vpop.f32.mrb[0].mxu0
        %v4883 = vadd.f32 0.0, %v4882
        %4884 = vmatprep.mubr.f32.mxu0 %v4764
        %4885 = vmatmul.mubr.f32.gmra.mrb[0].mxu0 %v4689
        %v4886 = vpop.f32.mrb[0].mxu0
        %v4887 = vadd.f32 0.0, %v4886
        %v4888 = vpop.f32.mrb[0].mxu0
        %v4889 = vadd.f32 0.0, %v4888
        %4890 = vdwg.mxu0
        %v4891 = vadd.f32 %v4459, %v4833
        %v4892 = vadd.f32 %v4461, %v4835
        %v4893 = vadd.f32 %v4465, %v4839
        %v4894 = vadd.f32 %v4467, %v4841
        %v4895 = vadd.f32 %v4471, %v4845
        %v4896 = vadd.f32 %v4473, %v4847
        %v4897 = vadd.f32 %v4477, %v4851
        %v4898 = vadd.f32 %v4479, %v4853
        %v4899 = vadd.f32 %v4483, %v4857
        %v4900 = vadd.f32 %v4485, %v4859
        %v4901 = vadd.f32 %v4489, %v4863
        %v4902 = vadd.f32 %v4491, %v4865
        %v4903 = vadd.f32 %v4495, %v4869
        %v4904 = vadd.f32 %v4497, %v4871
        %v4905 = vadd.f32 %v4501, %v4875
        %v4906 = vadd.f32 %v4503, %v4877
        %v4907 = vadd.f32 %v4507, %v4881
        %v4908 = vadd.f32 %v4509, %v4883
        %v4909 = vadd.f32 %v4513, %v4887
        %v4910 = vadd.f32 %v4515, %v4889
        %s4911 = scalar_lea.vmem [#allocation7], 480
        %v4912 = vld [vmem:[%s4911] sm:$0xff]
        %v4913 = vld [vmem:[%s4911 + $0x8] sm:$0xff]
        %v4914 = vld [vmem:[%s4911 + $0x10] sm:$0xff]
        %v4915 = vld [vmem:[%s4911 + $0x18] sm:$0xff]
        %v4916 = vld [vmem:[%s4911 + $0x20] sm:$0xff]
        %v4917 = vld [vmem:[%s4911 + $0x28] sm:$0xff]
        %v4918 = vld [vmem:[%s4911 + $0x30] sm:$0xff]
        %v4919 = vld [vmem:[%s4911 + $0x38] sm:$0xff]
        %v4920 = vld [vmem:[%s4911 + $0x40] sm:$0xff]
        %v4921 = vld [vmem:[%s4911 + $0x48] sm:$0xff]
        %v4922 = vld [vmem:[%s4911 + $0x50] sm:$0xff]
        %v4923 = vld [vmem:[%s4911 + $0x58] sm:$0xff]
        %v4924 = vld [vmem:[%s4911 + $0x60] sm:$0xff]
        %v4925 = vld [vmem:[%s4911 + $0x68] sm:$0xff]
        %v4926 = vld [vmem:[%s4911 + $0x70] sm:$0xff]
        %v4927 = vld [vmem:[%s4911 + $0x78] sm:$0xff]
        %v4928 = vld [vmem:[%s4911 + $0x80] sm:$0xff]
        %v4929 = vld [vmem:[%s4911 + $0x88] sm:$0xff]
        %v4930 = vld [vmem:[%s4911 + $0x90] sm:$0xff]
        %v4931 = vld [vmem:[%s4911 + $0x98] sm:$0xff]
        %v4933 = vsel %vm3789, %v4913, 0
        %v4936 = vsel %vm3789, %v4915, 0
        %v4939 = vsel %vm3789, %v4917, 0
        %v4942 = vsel %vm3789, %v4919, 0
        %v4945 = vsel %vm3789, %v4921, 0
        %v4948 = vsel %vm3789, %v4923, 0
        %v4951 = vsel %vm3789, %v4925, 0
        %v4954 = vsel %vm3789, %v4927, 0
        %v4957 = vsel %vm3789, %v4929, 0
        %v4960 = vsel %vm3789, %v4931, 0
        %4962 = vmatprep.subr.mxu0 %v3714
        %4963 = vmatpush1.msra.mxu0 %v3713
        %4964 = vmatprep.subr.mxu0 %v3716
        %4965 = vmatpush1.msra.mxu0 %v3715
        %4966 = vmatprep.subr.mxu0 %v3718
        %4967 = vmatpush1.msra.mxu0 %v3717
        %4968 = vmatprep.subr.mxu0 %v3720
        %4969 = vmatpush1.msra.mxu0 %v3719
        %4970 = vmatprep.subr.mxu0 %v3722
        %4971 = vmatpush1.msra.mxu0 %v3721
        %4972 = vmatprep.subr.mxu0 %v3724
        %4973 = vmatpush1.msra.mxu0 %v3723
        %4974 = vmatprep.subr.mxu0 %v3726
        %4975 = vmatpush1.msra.mxu0 %v3725
        %4976 = vmatprep.subr.mxu0 %v3728
        %4977 = vmatpush1.msra.mxu0 %v3727
        %4978 = vmatprep.subr.mxu0 %v3730
        %4979 = vmatpush1.msra.mxu0 %v3729
        %4980 = vmatprep.subr.mxu0 %v3732
        %4981 = vmatpush1.msra.mxu0 %v3731
        %4982 = vmatprep.subr.mxu0 %v3734
        %4983 = vmatpush1.msra.mxu0 %v3733
        %4984 = vmatprep.subr.mxu0 %v3736
        %4985 = vmatpush1.msra.mxu0 %v3735
        %4986 = vmatprep.subr.mxu0 %v3738
        %4987 = vmatpush1.msra.mxu0 %v3737
        %4988 = vmatprep.subr.mxu0 %v3740
        %4989 = vmatpush1.msra.mxu0 %v3739
        %4990 = vmatprep.subr.mxu0 %v3742
        %4991 = vmatpush1.msra.mxu0 %v3741
        %4992 = vmatprep.subr.mxu0 %v3744
        %4993 = vmatpush1.msra.mxu0 %v3743
        %4994 = vmatprep.subr.mxu0 %v3746
        %4995 = vmatpush1.msra.mxu0 %v3745
        %4996 = vmatprep.subr.mxu0 %v3748
        %4997 = vmatpush1.msra.mxu0 %v3747
        %4998 = vmatprep.subr.mxu0 %v3750
        %4999 = vmatpush1.msra.mxu0 %v3749
        %5000 = vmatprep.subr.mxu0 %v3752
        %5001 = vmatpush1.msra.mxu0 %v3751
        %5002 = vmatprep.subr.mxu0 %v3754
        %5003 = vmatpush1.msra.mxu0 %v3753
        %5004 = vmatprep.subr.mxu0 %v3756
        %5005 = vmatpush1.msra.mxu0 %v3755
        %5006 = vmatprep.subr.mxu0 %v3758
        %5007 = vmatpush1.msra.mxu0 %v3757
        %5008 = vmatprep.subr.mxu0 %v3760
        %5009 = vmatpush1.msra.mxu0 %v3759
        %5010 = vmatprep.subr.mxu0 %v3762
        %5011 = vmatpush1.msra.mxu0 %v3761
        %5012 = vmatprep.subr.mxu0 %v3764
        %5013 = vmatpush1.msra.mxu0 %v3763
        %5014 = vmatprep.subr.mxu0 %v3766
        %5015 = vmatpush1.msra.mxu0 %v3765
        %5016 = vmatprep.subr.mxu0 %v3768
        %5017 = vmatpush1.msra.mxu0 %v3767
        %5018 = vmatprep.subr.mxu0 0.0
        %5019 = vmatpush1.msra.mxu0 0.0
        %5020 = vmatprep.subr.mxu0 0.0
        %5021 = vmatpush1.msra.mxu0 0.0
        %5022 = vmatprep.subr.mxu0 0.0
        %5023 = vmatpush1.msra.mxu0 0.0
        %5024 = vmatprep.subr.mxu0 0.0
        %5025 = vmatpush1.msra.mxu0 0.0
        %5026 = vmatprep.mubr.f32.mxu0 %v4933
        %5027 = vmatmul.mubr.f32.gmra.mrb[0].mxu0 %v4912
        %v5028 = vpop.f32.mrb[0].mxu0
        %v5029 = vadd.f32 0.0, %v5028
        %v5030 = vpop.f32.mrb[0].mxu0
        %v5031 = vadd.f32 0.0, %v5030
        %5032 = vmatprep.mubr.f32.mxu0 %v4936
        %5033 = vmatmul.mubr.f32.gmra.mrb[0].mxu0 %v4914
        %v5034 = vpop.f32.mrb[0].mxu0
        %v5035 = vadd.f32 0.0, %v5034
        %v5036 = vpop.f32.mrb[0].mxu0
        %v5037 = vadd.f32 0.0, %v5036
        %5038 = vmatprep.mubr.f32.mxu0 %v4939
        %5039 = vmatmul.mubr.f32.gmra.mrb[0].mxu0 %v4916
        %v5040 = vpop.f32.mrb[0].mxu0
        %v5041 = vadd.f32 0.0, %v5040
        %v5042 = vpop.f32.mrb[0].mxu0
        %v5043 = vadd.f32 0.0, %v5042
        %5044 = vmatprep.mubr.f32.mxu0 %v4942
        %5045 = vmatmul.mubr.f32.gmra.mrb[0].mxu0 %v4918
        %v5046 = vpop.f32.mrb[0].mxu0
        %v5047 = vadd.f32 0.0, %v5046
        %v5048 = vpop.f32.mrb[0].mxu0
        %v5049 = vadd.f32 0.0, %v5048
        %5050 = vmatprep.mubr.f32.mxu0 %v4945
        %5051 = vmatmul.mubr.f32.gmra.mrb[0].mxu0 %v4920
        %v5052 = vpop.f32.mrb[0].mxu0
        %v5053 = vadd.f32 0.0, %v5052
        %v5054 = vpop.f32.mrb[0].mxu0
        %v5055 = vadd.f32 0.0, %v5054
        %5056 = vmatprep.mubr.f32.mxu0 %v4948
        %5057 = vmatmul.mubr.f32.gmra.mrb[0].mxu0 %v4922
        %v5058 = vpop.f32.mrb[0].mxu0
        %v5059 = vadd.f32 0.0, %v5058
        %v5060 = vpop.f32.mrb[0].mxu0
        %v5061 = vadd.f32 0.0, %v5060
        %5062 = vmatprep.mubr.f32.mxu0 %v4951
        %5063 = vmatmul.mubr.f32.gmra.mrb[0].mxu0 %v4924
        %v5064 = vpop.f32.mrb[0].mxu0
        %v5065 = vadd.f32 0.0, %v5064
        %v5066 = vpop.f32.mrb[0].mxu0
        %v5067 = vadd.f32 0.0, %v5066
        %5068 = vmatprep.mubr.f32.mxu0 %v4954
        %5069 = vmatmul.mubr.f32.gmra.mrb[0].mxu0 %v4926
        %v5070 = vpop.f32.mrb[0].mxu0
        %v5071 = vadd.f32 0.0, %v5070
        %v5072 = vpop.f32.mrb[0].mxu0
        %v5073 = vadd.f32 0.0, %v5072
        %5074 = vmatprep.mubr.f32.mxu0 %v4957
        %5075 = vmatmul.mubr.f32.gmra.mrb[0].mxu0 %v4928
        %v5076 = vpop.f32.mrb[0].mxu0
        %v5077 = vadd.f32 0.0, %v5076
        %v5078 = vpop.f32.mrb[0].mxu0
        %v5079 = vadd.f32 0.0, %v5078
        %5080 = vmatprep.mubr.f32.mxu0 %v4960
        %5081 = vmatmul.mubr.f32.gmra.mrb[0].mxu0 %v4930
        %v5082 = vpop.f32.mrb[0].mxu0
        %v5083 = vadd.f32 0.0, %v5082
        %v5084 = vpop.f32.mrb[0].mxu0
        %v5085 = vadd.f32 0.0, %v5084
        %5086 = vdwg.mxu0
        %s5087 = scalar_lea.vmem [#allocation9], 1008
        %v5088 = vld [vmem:[%s5087] sm:$0xff]
        %v5089 = vld [vmem:[%s5087 + $0x8] sm:$0xff]
        %v5090 = vld [vmem:[%s5087 + $0x10] sm:$0xff]
        %v5091 = vld [vmem:[%s5087 + $0x18] sm:$0xff]
        %v5092 = vld [vmem:[%s5087 + $0x20] sm:$0xff]
        %v5093 = vld [vmem:[%s5087 + $0x28] sm:$0xff]
        %v5094 = vld [vmem:[%s5087 + $0x30] sm:$0xff]
        %v5095 = vld [vmem:[%s5087 + $0x38] sm:$0xff]
        %v5096 = vld [vmem:[%s5087 + $0x40] sm:$0xff]
        %v5097 = vld [vmem:[%s5087 + $0x48] sm:$0xff]
        %v5098 = vld [vmem:[%s5087 + $0x50] sm:$0xff]
        %v5099 = vld [vmem:[%s5087 + $0x58] sm:$0xff]
        %v5100 = vld [vmem:[%s5087 + $0x60] sm:$0xff]
        %v5101 = vld [vmem:[%s5087 + $0x68] sm:$0xff]
        %v5102 = vld [vmem:[%s5087 + $0x70] sm:$0xff]
        %v5103 = vld [vmem:[%s5087 + $0x78] sm:$0xff]
        %v5104 = vld [vmem:[%s5087 + $0x80] sm:$0xff]
        %v5105 = vld [vmem:[%s5087 + $0x88] sm:$0xff]
        %v5106 = vld [vmem:[%s5087 + $0x90] sm:$0xff]
        %v5107 = vld [vmem:[%s5087 + $0x98] sm:$0xff]
        %v5108 = vld [vmem:[%s5087 + $0xa0] sm:$0xff]
        %v5109 = vld [vmem:[%s5087 + $0xa8] sm:$0xff]
        %v5110 = vld [vmem:[%s5087 + $0xb0] sm:$0xff]
        %v5111 = vld [vmem:[%s5087 + $0xb8] sm:$0xff]
        %v5112 = vld [vmem:[%s5087 + $0xc0] sm:$0xff]
        %v5113 = vld [vmem:[%s5087 + $0xc8] sm:$0xff]
        %v5114 = vld [vmem:[%s5087 + $0xd0] sm:$0xff]
        %v5115 = vld [vmem:[%s5087 + $0xd8] sm:$0xff]
        %v5116 = vld [vmem:[%s5087 + $0xe0] sm:$0xff]
        %v5117 = vld [vmem:[%s5087 + $0xe8] sm:$0xff]
        %v5118 = vld [vmem:[%s5087 + $0xf0] sm:$0xff]
        %v5119 = vld [vmem:[%s5087 + $0xf8] sm:$0xff]
        %v5120 = vld [vmem:[%s5087 + $0x100] sm:$0xff]
        %v5121 = vld [vmem:[%s5087 + $0x108] sm:$0xff]
        %v5122 = vld [vmem:[%s5087 + $0x110] sm:$0xff]
        %v5123 = vld [vmem:[%s5087 + $0x118] sm:$0xff]
        %v5124 = vld [vmem:[%s5087 + $0x120] sm:$0xff]
        %v5125 = vld [vmem:[%s5087 + $0x128] sm:$0xff]
        %v5126 = vld [vmem:[%s5087 + $0x130] sm:$0xff]
        %v5127 = vld [vmem:[%s5087 + $0x138] sm:$0xff]
        %v5128 = vld [vmem:[%s5087 + $0x140] sm:$0xff]
        %v5129 = vld [vmem:[%s5087 + $0x148] sm:$0xff]
        %v5131 = vsel %vm4206, %v5031, 0
        %v5134 = vsel %vm4206, %v5037, 0
        %v5137 = vsel %vm4206, %v5043, 0
        %v5140 = vsel %vm4206, %v5049, 0
        %v5143 = vsel %vm4206, %v5055, 0
        %v5146 = vsel %vm4206, %v5061, 0
        %v5149 = vsel %vm4206, %v5067, 0
        %v5152 = vsel %vm4206, %v5073, 0
        %v5155 = vsel %vm4206, %v5079, 0
        %v5158 = vsel %vm4206, %v5085, 0
        %5160 = vmatprep.subr.mxu0 %v5089
        %5161 = vmatpush1.msra.mxu0 %v5088
        %5162 = vmatprep.subr.mxu0 %v5091
        %5163 = vmatpush1.msra.mxu0 %v5090
        %5164 = vmatprep.subr.mxu0 %v5093
        %5165 = vmatpush1.msra.mxu0 %v5092
        %5166 = vmatprep.subr.mxu0 %v5095
        %5167 = vmatpush1.msra.mxu0 %v5094
        %5168 = vmatprep.subr.mxu0 %v5097
        %5169 = vmatpush1.msra.mxu0 %v5096
        %5170 = vmatprep.subr.mxu0 %v5099
        %5171 = vmatpush1.msra.mxu0 %v5098
        %5172 = vmatprep.subr.mxu0 %v5101
        %5173 = vmatpush1.msra.mxu0 %v5100
        %5174 = vmatprep.subr.mxu0 %v5103
        %5175 = vmatpush1.msra.mxu0 %v5102
        %5176 = vmatprep.subr.mxu0 %v5105
        %5177 = vmatpush1.msra.mxu0 %v5104
        %5178 = vmatprep.subr.mxu0 %v5107
        %5179 = vmatpush1.msra.mxu0 %v5106
        %5180 = vmatprep.subr.mxu0 %v5109
        %5181 = vmatpush1.msra.mxu0 %v5108
        %5182 = vmatprep.subr.mxu0 %v5111
        %5183 = vmatpush1.msra.mxu0 %v5110
        %5184 = vmatprep.subr.mxu0 %v5113
        %5185 = vmatpush1.msra.mxu0 %v5112
        %5186 = vmatprep.subr.mxu0 %v5115
        %5187 = vmatpush1.msra.mxu0 %v5114
        %5188 = vmatprep.subr.mxu0 %v5117
        %5189 = vmatpush1.msra.mxu0 %v5116
        %5190 = vmatprep.subr.mxu0 %v5119
        %5191 = vmatpush1.msra.mxu0 %v5118
        %5192 = vmatprep.subr.mxu0 %v5121
        %5193 = vmatpush1.msra.mxu0 %v5120
        %5194 = vmatprep.subr.mxu0 %v5123
        %5195 = vmatpush1.msra.mxu0 %v5122
        %5196 = vmatprep.subr.mxu0 %v5125
        %5197 = vmatpush1.msra.mxu0 %v5124
        %5198 = vmatprep.subr.mxu0 %v5127
        %5199 = vmatpush1.msra.mxu0 %v5126
        %5200 = vmatprep.subr.mxu0 %v5129
        %5201 = vmatpush1.msra.mxu0 %v5128
        %5202 = vmatprep.subr.mxu0 0.0
        %5203 = vmatpush1.msra.mxu0 0.0
        %5204 = vmatprep.subr.mxu0 0.0
        %5205 = vmatpush1.msra.mxu0 0.0
        %5206 = vmatprep.subr.mxu0 0.0
        %5207 = vmatpush1.msra.mxu0 0.0
        %5208 = vmatprep.subr.mxu0 0.0
        %5209 = vmatpush1.msra.mxu0 0.0
        %5210 = vmatprep.subr.mxu0 0.0
        %5211 = vmatpush1.msra.mxu0 0.0
        %5212 = vmatprep.subr.mxu0 0.0
        %5213 = vmatpush1.msra.mxu0 0.0
        %5214 = vmatprep.subr.mxu0 0.0
        %5215 = vmatpush1.msra.mxu0 0.0
        %5216 = vmatprep.subr.mxu0 0.0
        %5217 = vmatpush1.msra.mxu0 0.0
        %5218 = vmatprep.subr.mxu0 0.0
        %5219 = vmatpush1.msra.mxu0 0.0
        %5220 = vmatprep.subr.mxu0 0.0
        %5221 = vmatpush1.msra.mxu0 0.0
        %5222 = vmatprep.subr.mxu0 0.0
        %5223 = vmatpush1.msra.mxu0 0.0
        %5224 = vmatprep.mubr.f32.mxu0 %v5131
        %5225 = vmatmul.mubr.f32.gmra.mrb[0].mxu0 %v5029
        %v5226 = vpop.f32.mrb[0].mxu0
        %v5227 = vadd.f32 0.0, %v5226
        %v5228 = vpop.f32.mrb[0].mxu0
        %v5229 = vadd.f32 0.0, %v5228
        %5230 = vmatprep.mubr.f32.mxu0 %v5134
        %5231 = vmatmul.mubr.f32.gmra.mrb[0].mxu0 %v5035
        %v5232 = vpop.f32.mrb[0].mxu0
        %v5233 = vadd.f32 0.0, %v5232
        %v5234 = vpop.f32.mrb[0].mxu0
        %v5235 = vadd.f32 0.0, %v5234
        %5236 = vmatprep.mubr.f32.mxu0 %v5137
        %5237 = vmatmul.mubr.f32.gmra.mrb[0].mxu0 %v5041
        %v5238 = vpop.f32.mrb[0].mxu0
        %v5239 = vadd.f32 0.0, %v5238
        %v5240 = vpop.f32.mrb[0].mxu0
        %v5241 = vadd.f32 0.0, %v5240
        %5242 = vmatprep.mubr.f32.mxu0 %v5140
        %5243 = vmatmul.mubr.f32.gmra.mrb[0].mxu0 %v5047
        %v5244 = vpop.f32.mrb[0].mxu0
        %v5245 = vadd.f32 0.0, %v5244
        %v5246 = vpop.f32.mrb[0].mxu0
        %v5247 = vadd.f32 0.0, %v5246
        %5248 = vmatprep.mubr.f32.mxu0 %v5143
        %5249 = vmatmul.mubr.f32.gmra.mrb[0].mxu0 %v5053
        %v5250 = vpop.f32.mrb[0].mxu0
        %v5251 = vadd.f32 0.0, %v5250
        %v5252 = vpop.f32.mrb[0].mxu0
        %v5253 = vadd.f32 0.0, %v5252
        %5254 = vmatprep.mubr.f32.mxu0 %v5146
        %5255 = vmatmul.mubr.f32.gmra.mrb[0].mxu0 %v5059
        %v5256 = vpop.f32.mrb[0].mxu0
        %v5257 = vadd.f32 0.0, %v5256
        %v5258 = vpop.f32.mrb[0].mxu0
        %v5259 = vadd.f32 0.0, %v5258
        %5260 = vmatprep.mubr.f32.mxu0 %v5149
        %5261 = vmatmul.mubr.f32.gmra.mrb[0].mxu0 %v5065
        %v5262 = vpop.f32.mrb[0].mxu0
        %v5263 = vadd.f32 0.0, %v5262
        %v5264 = vpop.f32.mrb[0].mxu0
        %v5265 = vadd.f32 0.0, %v5264
        %5266 = vmatprep.mubr.f32.mxu0 %v5152
        %5267 = vmatmul.mubr.f32.gmra.mrb[0].mxu0 %v5071
        %v5268 = vpop.f32.mrb[0].mxu0
        %v5269 = vadd.f32 0.0, %v5268
        %v5270 = vpop.f32.mrb[0].mxu0
        %v5271 = vadd.f32 0.0, %v5270
        %5272 = vmatprep.mubr.f32.mxu0 %v5155
        %5273 = vmatmul.mubr.f32.gmra.mrb[0].mxu0 %v5077
        %v5274 = vpop.f32.mrb[0].mxu0
        %v5275 = vadd.f32 0.0, %v5274
        %v5276 = vpop.f32.mrb[0].mxu0
        %v5277 = vadd.f32 0.0, %v5276
        %5278 = vmatprep.mubr.f32.mxu0 %v5158
        %5279 = vmatmul.mubr.f32.gmra.mrb[0].mxu0 %v5083
        %v5280 = vpop.f32.mrb[0].mxu0
        %v5281 = vadd.f32 0.0, %v5280
        %v5282 = vpop.f32.mrb[0].mxu0
        %v5283 = vadd.f32 0.0, %v5282
        %5284 = vdwg.mxu0
        %v5285 = vadd.f32 %v4891, %v5227
        %v5286 = vadd.f32 %v4892, %v5229
        %v5287 = vadd.f32 %v4893, %v5233
        %v5288 = vadd.f32 %v4894, %v5235
        %v5289 = vadd.f32 %v4895, %v5239
        %v5290 = vadd.f32 %v4896, %v5241
        %v5291 = vadd.f32 %v4897, %v5245
        %v5292 = vadd.f32 %v4898, %v5247
        %v5293 = vadd.f32 %v4899, %v5251
        %v5294 = vadd.f32 %v4900, %v5253
        %v5295 = vadd.f32 %v4901, %v5257
        %v5296 = vadd.f32 %v4902, %v5259
        %v5297 = vadd.f32 %v4903, %v5263
        %v5298 = vadd.f32 %v4904, %v5265
        %v5299 = vadd.f32 %v4905, %v5269
        %v5300 = vadd.f32 %v4906, %v5271
        %v5301 = vadd.f32 %v4907, %v5275
        %v5302 = vadd.f32 %v4908, %v5277
        %v5303 = vadd.f32 %v4909, %v5281
        %v5304 = vadd.f32 %v4910, %v5283
        %s5305 = scalar_lea.vmem [#allocation7], 640
        %v5306 = vld [vmem:[%s5305] sm:$0xff]
        %v5307 = vld [vmem:[%s5305 + $0x8] sm:$0xff]
        %v5308 = vld [vmem:[%s5305 + $0x10] sm:$0xff]
        %v5309 = vld [vmem:[%s5305 + $0x18] sm:$0xff]
        %v5310 = vld [vmem:[%s5305 + $0x20] sm:$0xff]
        %v5311 = vld [vmem:[%s5305 + $0x28] sm:$0xff]
        %v5312 = vld [vmem:[%s5305 + $0x30] sm:$0xff]
        %v5313 = vld [vmem:[%s5305 + $0x38] sm:$0xff]
        %v5314 = vld [vmem:[%s5305 + $0x40] sm:$0xff]
        %v5315 = vld [vmem:[%s5305 + $0x48] sm:$0xff]
        %v5316 = vld [vmem:[%s5305 + $0x50] sm:$0xff]
        %v5317 = vld [vmem:[%s5305 + $0x58] sm:$0xff]
        %v5318 = vld [vmem:[%s5305 + $0x60] sm:$0xff]
        %v5319 = vld [vmem:[%s5305 + $0x68] sm:$0xff]
        %v5320 = vld [vmem:[%s5305 + $0x70] sm:$0xff]
        %v5321 = vld [vmem:[%s5305 + $0x78] sm:$0xff]
        %v5322 = vld [vmem:[%s5305 + $0x80] sm:$0xff]
        %v5323 = vld [vmem:[%s5305 + $0x88] sm:$0xff]
        %v5324 = vld [vmem:[%s5305 + $0x90] sm:$0xff]
        %v5325 = vld [vmem:[%s5305 + $0x98] sm:$0xff]
        %v5327 = vsel %vm3789, %v5307, 0
        %v5330 = vsel %vm3789, %v5309, 0
        %v5333 = vsel %vm3789, %v5311, 0
        %v5336 = vsel %vm3789, %v5313, 0
        %v5339 = vsel %vm3789, %v5315, 0
        %v5342 = vsel %vm3789, %v5317, 0
        %v5345 = vsel %vm3789, %v5319, 0
        %v5348 = vsel %vm3789, %v5321, 0
        %v5351 = vsel %vm3789, %v5323, 0
        %v5354 = vsel %vm3789, %v5325, 0
        %5356 = vmatprep.subr.mxu0 %v3714
        %5357 = vmatpush1.msra.mxu0 %v3713
        %5358 = vmatprep.subr.mxu0 %v3716
        %5359 = vmatpush1.msra.mxu0 %v3715
        %5360 = vmatprep.subr.mxu0 %v3718
        %5361 = vmatpush1.msra.mxu0 %v3717
        %5362 = vmatprep.subr.mxu0 %v3720
        %5363 = vmatpush1.msra.mxu0 %v3719
        %5364 = vmatprep.subr.mxu0 %v3722
        %5365 = vmatpush1.msra.mxu0 %v3721
        %5366 = vmatprep.subr.mxu0 %v3724
        %5367 = vmatpush1.msra.mxu0 %v3723
        %5368 = vmatprep.subr.mxu0 %v3726
        %5369 = vmatpush1.msra.mxu0 %v3725
        %5370 = vmatprep.subr.mxu0 %v3728
        %5371 = vmatpush1.msra.mxu0 %v3727
        %5372 = vmatprep.subr.mxu0 %v3730
        %5373 = vmatpush1.msra.mxu0 %v3729
        %5374 = vmatprep.subr.mxu0 %v3732
        %5375 = vmatpush1.msra.mxu0 %v3731
        %5376 = vmatprep.subr.mxu0 %v3734
        %5377 = vmatpush1.msra.mxu0 %v3733
        %5378 = vmatprep.subr.mxu0 %v3736
        %5379 = vmatpush1.msra.mxu0 %v3735
        %5380 = vmatprep.subr.mxu0 %v3738
        %5381 = vmatpush1.msra.mxu0 %v3737
        %5382 = vmatprep.subr.mxu0 %v3740
        %5383 = vmatpush1.msra.mxu0 %v3739
        %5384 = vmatprep.subr.mxu0 %v3742
        %5385 = vmatpush1.msra.mxu0 %v3741
        %5386 = vmatprep.subr.mxu0 %v3744
        %5387 = vmatpush1.msra.mxu0 %v3743
        %5388 = vmatprep.subr.mxu0 %v3746
        %5389 = vmatpush1.msra.mxu0 %v3745
        %5390 = vmatprep.subr.mxu0 %v3748
        %5391 = vmatpush1.msra.mxu0 %v3747
        %5392 = vmatprep.subr.mxu0 %v3750
        %5393 = vmatpush1.msra.mxu0 %v3749
        %5394 = vmatprep.subr.mxu0 %v3752
        %5395 = vmatpush1.msra.mxu0 %v3751
        %5396 = vmatprep.subr.mxu0 %v3754
        %5397 = vmatpush1.msra.mxu0 %v3753
        %5398 = vmatprep.subr.mxu0 %v3756
        %5399 = vmatpush1.msra.mxu0 %v3755
        %5400 = vmatprep.subr.mxu0 %v3758
        %5401 = vmatpush1.msra.mxu0 %v3757
        %5402 = vmatprep.subr.mxu0 %v3760
        %5403 = vmatpush1.msra.mxu0 %v3759
        %5404 = vmatprep.subr.mxu0 %v3762
        %5405 = vmatpush1.msra.mxu0 %v3761
        %5406 = vmatprep.subr.mxu0 %v3764
        %5407 = vmatpush1.msra.mxu0 %v3763
        %5408 = vmatprep.subr.mxu0 %v3766
        %5409 = vmatpush1.msra.mxu0 %v3765
        %5410 = vmatprep.subr.mxu0 %v3768
        %5411 = vmatpush1.msra.mxu0 %v3767
        %5412 = vmatprep.subr.mxu0 0.0
        %5413 = vmatpush1.msra.mxu0 0.0
        %5414 = vmatprep.subr.mxu0 0.0
        %5415 = vmatpush1.msra.mxu0 0.0
        %5416 = vmatprep.subr.mxu0 0.0
        %5417 = vmatpush1.msra.mxu0 0.0
        %5418 = vmatprep.subr.mxu0 0.0
        %5419 = vmatpush1.msra.mxu0 0.0
        %5420 = vmatprep.mubr.f32.mxu0 %v5327
        %5421 = vmatmul.mubr.f32.gmra.mrb[0].mxu0 %v5306
        %v5422 = vpop.f32.mrb[0].mxu0
        %v5423 = vadd.f32 0.0, %v5422
        %v5424 = vpop.f32.mrb[0].mxu0
        %v5425 = vadd.f32 0.0, %v5424
        %5426 = vmatprep.mubr.f32.mxu0 %v5330
        %5427 = vmatmul.mubr.f32.gmra.mrb[0].mxu0 %v5308
        %v5428 = vpop.f32.mrb[0].mxu0
        %v5429 = vadd.f32 0.0, %v5428
        %v5430 = vpop.f32.mrb[0].mxu0
        %v5431 = vadd.f32 0.0, %v5430
        %5432 = vmatprep.mubr.f32.mxu0 %v5333
        %5433 = vmatmul.mubr.f32.gmra.mrb[0].mxu0 %v5310
        %v5434 = vpop.f32.mrb[0].mxu0
        %v5435 = vadd.f32 0.0, %v5434
        %v5436 = vpop.f32.mrb[0].mxu0
        %v5437 = vadd.f32 0.0, %v5436
        %5438 = vmatprep.mubr.f32.mxu0 %v5336
        %5439 = vmatmul.mubr.f32.gmra.mrb[0].mxu0 %v5312
        %v5440 = vpop.f32.mrb[0].mxu0
        %v5441 = vadd.f32 0.0, %v5440
        %v5442 = vpop.f32.mrb[0].mxu0
        %v5443 = vadd.f32 0.0, %v5442
        %5444 = vmatprep.mubr.f32.mxu0 %v5339
        %5445 = vmatmul.mubr.f32.gmra.mrb[0].mxu0 %v5314
        %v5446 = vpop.f32.mrb[0].mxu0
        %v5447 = vadd.f32 0.0, %v5446
        %v5448 = vpop.f32.mrb[0].mxu0
        %v5449 = vadd.f32 0.0, %v5448
        %5450 = vmatprep.mubr.f32.mxu0 %v5342
        %5451 = vmatmul.mubr.f32.gmra.mrb[0].mxu0 %v5316
        %v5452 = vpop.f32.mrb[0].mxu0
        %v5453 = vadd.f32 0.0, %v5452
        %v5454 = vpop.f32.mrb[0].mxu0
        %v5455 = vadd.f32 0.0, %v5454
        %5456 = vmatprep.mubr.f32.mxu0 %v5345
        %5457 = vmatmul.mubr.f32.gmra.mrb[0].mxu0 %v5318
        %v5458 = vpop.f32.mrb[0].mxu0
        %v5459 = vadd.f32 0.0, %v5458
        %v5460 = vpop.f32.mrb[0].mxu0
        %v5461 = vadd.f32 0.0, %v5460
        %5462 = vmatprep.mubr.f32.mxu0 %v5348
        %5463 = vmatmul.mubr.f32.gmra.mrb[0].mxu0 %v5320
        %v5464 = vpop.f32.mrb[0].mxu0
        %v5465 = vadd.f32 0.0, %v5464
        %v5466 = vpop.f32.mrb[0].mxu0
        %v5467 = vadd.f32 0.0, %v5466
        %5468 = vmatprep.mubr.f32.mxu0 %v5351
        %5469 = vmatmul.mubr.f32.gmra.mrb[0].mxu0 %v5322
        %v5470 = vpop.f32.mrb[0].mxu0
        %v5471 = vadd.f32 0.0, %v5470
        %v5472 = vpop.f32.mrb[0].mxu0
        %v5473 = vadd.f32 0.0, %v5472
        %5474 = vmatprep.mubr.f32.mxu0 %v5354
        %5475 = vmatmul.mubr.f32.gmra.mrb[0].mxu0 %v5324
        %v5476 = vpop.f32.mrb[0].mxu0
        %v5477 = vadd.f32 0.0, %v5476
        %v5478 = vpop.f32.mrb[0].mxu0
        %v5479 = vadd.f32 0.0, %v5478
        %5480 = vdwg.mxu0
        %s5481 = scalar_lea.vmem [#allocation9], 1344
        %v5482 = vld [vmem:[%s5481] sm:$0xff]
        %v5483 = vld [vmem:[%s5481 + $0x8] sm:$0xff]
        %v5484 = vld [vmem:[%s5481 + $0x10] sm:$0xff]
        %v5485 = vld [vmem:[%s5481 + $0x18] sm:$0xff]
        %v5486 = vld [vmem:[%s5481 + $0x20] sm:$0xff]
        %v5487 = vld [vmem:[%s5481 + $0x28] sm:$0xff]
        %v5488 = vld [vmem:[%s5481 + $0x30] sm:$0xff]
        %v5489 = vld [vmem:[%s5481 + $0x38] sm:$0xff]
        %v5490 = vld [vmem:[%s5481 + $0x40] sm:$0xff]
        %v5491 = vld [vmem:[%s5481 + $0x48] sm:$0xff]
        %v5492 = vld [vmem:[%s5481 + $0x50] sm:$0xff]
        %v5493 = vld [vmem:[%s5481 + $0x58] sm:$0xff]
        %v5494 = vld [vmem:[%s5481 + $0x60] sm:$0xff]
        %v5495 = vld [vmem:[%s5481 + $0x68] sm:$0xff]
        %v5496 = vld [vmem:[%s5481 + $0x70] sm:$0xff]
        %v5497 = vld [vmem:[%s5481 + $0x78] sm:$0xff]
        %v5498 = vld [vmem:[%s5481 + $0x80] sm:$0xff]
        %v5499 = vld [vmem:[%s5481 + $0x88] sm:$0xff]
        %v5500 = vld [vmem:[%s5481 + $0x90] sm:$0xff]
        %v5501 = vld [vmem:[%s5481 + $0x98] sm:$0xff]
        %v5502 = vld [vmem:[%s5481 + $0xa0] sm:$0xff]
        %v5503 = vld [vmem:[%s5481 + $0xa8] sm:$0xff]
        %v5504 = vld [vmem:[%s5481 + $0xb0] sm:$0xff]
        %v5505 = vld [vmem:[%s5481 + $0xb8] sm:$0xff]
        %v5506 = vld [vmem:[%s5481 + $0xc0] sm:$0xff]
        %v5507 = vld [vmem:[%s5481 + $0xc8] sm:$0xff]
        %v5508 = vld [vmem:[%s5481 + $0xd0] sm:$0xff]
        %v5509 = vld [vmem:[%s5481 + $0xd8] sm:$0xff]
        %v5510 = vld [vmem:[%s5481 + $0xe0] sm:$0xff]
        %v5511 = vld [vmem:[%s5481 + $0xe8] sm:$0xff]
        %v5512 = vld [vmem:[%s5481 + $0xf0] sm:$0xff]
        %v5513 = vld [vmem:[%s5481 + $0xf8] sm:$0xff]
        %v5514 = vld [vmem:[%s5481 + $0x100] sm:$0xff]
        %v5515 = vld [vmem:[%s5481 + $0x108] sm:$0xff]
        %v5516 = vld [vmem:[%s5481 + $0x110] sm:$0xff]
        %v5517 = vld [vmem:[%s5481 + $0x118] sm:$0xff]
        %v5518 = vld [vmem:[%s5481 + $0x120] sm:$0xff]
        %v5519 = vld [vmem:[%s5481 + $0x128] sm:$0xff]
        %v5520 = vld [vmem:[%s5481 + $0x130] sm:$0xff]
        %v5521 = vld [vmem:[%s5481 + $0x138] sm:$0xff]
        %v5522 = vld [vmem:[%s5481 + $0x140] sm:$0xff]
        %v5523 = vld [vmem:[%s5481 + $0x148] sm:$0xff]
        %v5525 = vsel %vm4206, %v5425, 0
        %v5528 = vsel %vm4206, %v5431, 0
        %v5531 = vsel %vm4206, %v5437, 0
        %v5534 = vsel %vm4206, %v5443, 0
        %v5537 = vsel %vm4206, %v5449, 0
        %v5540 = vsel %vm4206, %v5455, 0
        %v5543 = vsel %vm4206, %v5461, 0
        %v5546 = vsel %vm4206, %v5467, 0
        %v5549 = vsel %vm4206, %v5473, 0
        %v5552 = vsel %vm4206, %v5479, 0
        %5554 = vmatprep.subr.mxu0 %v5483
        %5555 = vmatpush1.msra.mxu0 %v5482
        %5556 = vmatprep.subr.mxu0 %v5485
        %5557 = vmatpush1.msra.mxu0 %v5484
        %5558 = vmatprep.subr.mxu0 %v5487
        %5559 = vmatpush1.msra.mxu0 %v5486
        %5560 = vmatprep.subr.mxu0 %v5489
        %5561 = vmatpush1.msra.mxu0 %v5488
        %5562 = vmatprep.subr.mxu0 %v5491
        %5563 = vmatpush1.msra.mxu0 %v5490
        %5564 = vmatprep.subr.mxu0 %v5493
        %5565 = vmatpush1.msra.mxu0 %v5492
        %5566 = vmatprep.subr.mxu0 %v5495
        %5567 = vmatpush1.msra.mxu0 %v5494
        %5568 = vmatprep.subr.mxu0 %v5497
        %5569 = vmatpush1.msra.mxu0 %v5496
        %5570 = vmatprep.subr.mxu0 %v5499
        %5571 = vmatpush1.msra.mxu0 %v5498
        %5572 = vmatprep.subr.mxu0 %v5501
        %5573 = vmatpush1.msra.mxu0 %v5500
        %5574 = vmatprep.subr.mxu0 %v5503
        %5575 = vmatpush1.msra.mxu0 %v5502
        %5576 = vmatprep.subr.mxu0 %v5505
        %5577 = vmatpush1.msra.mxu0 %v5504
        %5578 = vmatprep.subr.mxu0 %v5507
        %5579 = vmatpush1.msra.mxu0 %v5506
        %5580 = vmatprep.subr.mxu0 %v5509
        %5581 = vmatpush1.msra.mxu0 %v5508
        %5582 = vmatprep.subr.mxu0 %v5511
        %5583 = vmatpush1.msra.mxu0 %v5510
        %5584 = vmatprep.subr.mxu0 %v5513
        %5585 = vmatpush1.msra.mxu0 %v5512
        %5586 = vmatprep.subr.mxu0 %v5515
        %5587 = vmatpush1.msra.mxu0 %v5514
        %5588 = vmatprep.subr.mxu0 %v5517
        %5589 = vmatpush1.msra.mxu0 %v5516
        %5590 = vmatprep.subr.mxu0 %v5519
        %5591 = vmatpush1.msra.mxu0 %v5518
        %5592 = vmatprep.subr.mxu0 %v5521
        %5593 = vmatpush1.msra.mxu0 %v5520
        %5594 = vmatprep.subr.mxu0 %v5523
        %5595 = vmatpush1.msra.mxu0 %v5522
        %5596 = vmatprep.subr.mxu0 0.0
        %5597 = vmatpush1.msra.mxu0 0.0
        %5598 = vmatprep.subr.mxu0 0.0
        %5599 = vmatpush1.msra.mxu0 0.0
        %5600 = vmatprep.subr.mxu0 0.0
        %5601 = vmatpush1.msra.mxu0 0.0
        %5602 = vmatprep.subr.mxu0 0.0
        %5603 = vmatpush1.msra.mxu0 0.0
        %5604 = vmatprep.subr.mxu0 0.0
        %5605 = vmatpush1.msra.mxu0 0.0
        %5606 = vmatprep.subr.mxu0 0.0
        %5607 = vmatpush1.msra.mxu0 0.0
        %5608 = vmatprep.subr.mxu0 0.0
        %5609 = vmatpush1.msra.mxu0 0.0
        %5610 = vmatprep.subr.mxu0 0.0
        %5611 = vmatpush1.msra.mxu0 0.0
        %5612 = vmatprep.subr.mxu0 0.0
        %5613 = vmatpush1.msra.mxu0 0.0
        %5614 = vmatprep.subr.mxu0 0.0
        %5615 = vmatpush1.msra.mxu0 0.0
        %5616 = vmatprep.subr.mxu0 0.0
        %5617 = vmatpush1.msra.mxu0 0.0
        %5618 = vmatprep.mubr.f32.mxu0 %v5525
        %5619 = vmatmul.mubr.f32.gmra.mrb[0].mxu0 %v5423
        %v5620 = vpop.f32.mrb[0].mxu0
        %v5621 = vadd.f32 0.0, %v5620
        %v5622 = vpop.f32.mrb[0].mxu0
        %v5623 = vadd.f32 0.0, %v5622
        %5624 = vmatprep.mubr.f32.mxu0 %v5528
        %5625 = vmatmul.mubr.f32.gmra.mrb[0].mxu0 %v5429
        %v5626 = vpop.f32.mrb[0].mxu0
        %v5627 = vadd.f32 0.0, %v5626
        %v5628 = vpop.f32.mrb[0].mxu0
        %v5629 = vadd.f32 0.0, %v5628
        %5630 = vmatprep.mubr.f32.mxu0 %v5531
        %5631 = vmatmul.mubr.f32.gmra.mrb[0].mxu0 %v5435
        %v5632 = vpop.f32.mrb[0].mxu0
        %v5633 = vadd.f32 0.0, %v5632
        %v5634 = vpop.f32.mrb[0].mxu0
        %v5635 = vadd.f32 0.0, %v5634
        %5636 = vmatprep.mubr.f32.mxu0 %v5534
        %5637 = vmatmul.mubr.f32.gmra.mrb[0].mxu0 %v5441
        %v5638 = vpop.f32.mrb[0].mxu0
        %v5639 = vadd.f32 0.0, %v5638
        %v5640 = vpop.f32.mrb[0].mxu0
        %v5641 = vadd.f32 0.0, %v5640
        %5642 = vmatprep.mubr.f32.mxu0 %v5537
        %5643 = vmatmul.mubr.f32.gmra.mrb[0].mxu0 %v5447
        %v5644 = vpop.f32.mrb[0].mxu0
        %v5645 = vadd.f32 0.0, %v5644
        %v5646 = vpop.f32.mrb[0].mxu0
        %v5647 = vadd.f32 0.0, %v5646
        %5648 = vmatprep.mubr.f32.mxu0 %v5540
        %5649 = vmatmul.mubr.f32.gmra.mrb[0].mxu0 %v5453
        %v5650 = vpop.f32.mrb[0].mxu0
        %v5651 = vadd.f32 0.0, %v5650
        %v5652 = vpop.f32.mrb[0].mxu0
        %v5653 = vadd.f32 0.0, %v5652
        %5654 = vmatprep.mubr.f32.mxu0 %v5543
        %5655 = vmatmul.mubr.f32.gmra.mrb[0].mxu0 %v5459
        %v5656 = vpop.f32.mrb[0].mxu0
        %v5657 = vadd.f32 0.0, %v5656
        %v5658 = vpop.f32.mrb[0].mxu0
        %v5659 = vadd.f32 0.0, %v5658
        %5660 = vmatprep.mubr.f32.mxu0 %v5546
        %5661 = vmatmul.mubr.f32.gmra.mrb[0].mxu0 %v5465
        %v5662 = vpop.f32.mrb[0].mxu0
        %v5663 = vadd.f32 0.0, %v5662
        %v5664 = vpop.f32.mrb[0].mxu0
        %v5665 = vadd.f32 0.0, %v5664
        %5666 = vmatprep.mubr.f32.mxu0 %v5549
        %5667 = vmatmul.mubr.f32.gmra.mrb[0].mxu0 %v5471
        %v5668 = vpop.f32.mrb[0].mxu0
        %v5669 = vadd.f32 0.0, %v5668
        %v5670 = vpop.f32.mrb[0].mxu0
        %v5671 = vadd.f32 0.0, %v5670
        %5672 = vmatprep.mubr.f32.mxu0 %v5552
        %5673 = vmatmul.mubr.f32.gmra.mrb[0].mxu0 %v5477
        %v5674 = vpop.f32.mrb[0].mxu0
        %v5675 = vadd.f32 0.0, %v5674
        %v5676 = vpop.f32.mrb[0].mxu0
        %v5677 = vadd.f32 0.0, %v5676
        %5678 = vdwg.mxu0
        %v5679 = vadd.f32 %v5285, %v5621
        %v5680 = vadd.f32 %v5286, %v5623
        %v5681 = vadd.f32 %v5287, %v5627
        %v5682 = vadd.f32 %v5288, %v5629
        %v5683 = vadd.f32 %v5289, %v5633
        %v5684 = vadd.f32 %v5290, %v5635
        %v5685 = vadd.f32 %v5291, %v5639
        %v5686 = vadd.f32 %v5292, %v5641
        %v5687 = vadd.f32 %v5293, %v5645
        %v5688 = vadd.f32 %v5294, %v5647
        %v5689 = vadd.f32 %v5295, %v5651
        %v5690 = vadd.f32 %v5296, %v5653
        %v5691 = vadd.f32 %v5297, %v5657
        %v5692 = vadd.f32 %v5298, %v5659
        %v5693 = vadd.f32 %v5299, %v5663
        %v5694 = vadd.f32 %v5300, %v5665
        %v5695 = vadd.f32 %v5301, %v5669
        %v5696 = vadd.f32 %v5302, %v5671
        %v5697 = vadd.f32 %v5303, %v5675
        %v5698 = vadd.f32 %v5304, %v5677
        %v5699 = vlaneseq
        %v5700 = vshrl.u32 %v5699, 7
        %v5701 = vsub.s32 1, %v5700
        %v5702 = vrot.slane %v508, %v5701
        %v5703 = vlaneseq
        %v5704 = vshrl.u32 %v5703, 7
        %v5705 = vsub.s32 1, %v5704
        %v5706 = vrot.slane %v509, %v5705
        %v5707 = vadd.f32 %v5679, %v5702
        %v5708 = vadd.f32 %v5680, %v5706
        %v5709 = vadd.f32 %v5681, %v5702
        %v5710 = vadd.f32 %v5682, %v5706
        %v5711 = vadd.f32 %v5683, %v5702
        %v5712 = vadd.f32 %v5684, %v5706
        %v5713 = vadd.f32 %v5685, %v5702
        %v5714 = vadd.f32 %v5686, %v5706
        %v5715 = vadd.f32 %v5687, %v5702
        %v5716 = vadd.f32 %v5688, %v5706
        %v5717 = vadd.f32 %v5689, %v5702
        %v5718 = vadd.f32 %v5690, %v5706
        %v5719 = vadd.f32 %v5691, %v5702
        %v5720 = vadd.f32 %v5692, %v5706
        %v5721 = vadd.f32 %v5693, %v5702
        %v5722 = vadd.f32 %v5694, %v5706
        %v5723 = vadd.f32 %v5695, %v5702
        %v5724 = vadd.f32 %v5696, %v5706
        %v5725 = vadd.f32 %v5697, %v5702
        %v5726 = vadd.f32 %v5698, %v5706
        %v5727 = vmax.f32 %v5707, 0.0
        %v5728 = vmax.f32 %v5708, 0.0
        %v5729 = vmax.f32 %v5709, 0.0
        %v5730 = vmax.f32 %v5710, 0.0
        %v5731 = vmax.f32 %v5711, 0.0
        %v5732 = vmax.f32 %v5712, 0.0
        %v5733 = vmax.f32 %v5713, 0.0
        %v5734 = vmax.f32 %v5714, 0.0
        %v5735 = vmax.f32 %v5715, 0.0
        %v5736 = vmax.f32 %v5716, 0.0
        %v5737 = vmax.f32 %v5717, 0.0
        %v5738 = vmax.f32 %v5718, 0.0
        %v5739 = vmax.f32 %v5719, 0.0
        %v5740 = vmax.f32 %v5720, 0.0
        %v5741 = vmax.f32 %v5721, 0.0
        %v5742 = vmax.f32 %v5722, 0.0
        %v5743 = vmax.f32 %v5723, 0.0
        %v5744 = vmax.f32 %v5724, 0.0
        %v5745 = vmax.f32 %v5725, 0.0
        %v5746 = vmax.f32 %v5726, 0.0
        %v5747 = vld [vmem:[#allocation10] sm:$0xff]
        %vm5748 = vcmask 654336
        %v5750 = vsel %vm5748, %v5747, 0
        %5752 = vmatprep.subr.mxu0 %v5728
        %5753 = vmatpush1.msra.mxu0 %v5727
        %5754 = vmatprep.subr.mxu0 %v5730
        %5755 = vmatpush1.msra.mxu0 %v5729
        %5756 = vmatprep.subr.mxu0 %v5732
        %5757 = vmatpush1.msra.mxu0 %v5731
        %5758 = vmatprep.subr.mxu0 %v5734
        %5759 = vmatpush1.msra.mxu0 %v5733
        %5760 = vmatprep.subr.mxu0 %v5736
        %5761 = vmatpush1.msra.mxu0 %v5735
        %5762 = vmatprep.subr.mxu0 %v5738
        %5763 = vmatpush1.msra.mxu0 %v5737
        %5764 = vmatprep.subr.mxu0 %v5740
        %5765 = vmatpush1.msra.mxu0 %v5739
        %5766 = vmatprep.subr.mxu0 %v5742
        %5767 = vmatpush1.msra.mxu0 %v5741
        %5768 = vmatprep.subr.mxu0 %v5744
        %5769 = vmatpush1.msra.mxu0 %v5743
        %5770 = vmatprep.subr.mxu0 %v5746
        %5771 = vmatpush1.msra.mxu0 %v5745
        %5772 = vmatprep.subr.mxu0 0.0
        %5773 = vmatpush1.msra.mxu0 0.0
        %5774 = vmatprep.subr.mxu0 0.0
        %5775 = vmatpush1.msra.mxu0 0.0
        %5776 = vmatprep.subr.mxu0 0.0
        %5777 = vmatpush1.msra.mxu0 0.0
        %5778 = vmatprep.subr.mxu0 0.0
        %5779 = vmatpush1.msra.mxu0 0.0
        %5780 = vmatprep.subr.mxu0 0.0
        %5781 = vmatpush1.msra.mxu0 0.0
        %5782 = vmatprep.subr.mxu0 0.0
        %5783 = vmatpush1.msra.mxu0 0.0
        %5784 = vmatprep.subr.mxu0 0.0
        %5785 = vmatpush1.msra.mxu0 0.0
        %5786 = vmatprep.subr.mxu0 0.0
        %5787 = vmatpush1.msra.mxu0 0.0
        %5788 = vmatprep.subr.mxu0 0.0
        %5789 = vmatpush1.msra.mxu0 0.0
        %5790 = vmatprep.subr.mxu0 0.0
        %5791 = vmatpush1.msra.mxu0 0.0
        %5792 = vmatprep.subr.mxu0 0.0
        %5793 = vmatpush1.msra.mxu0 0.0
        %5794 = vmatprep.subr.mxu0 0.0
        %5795 = vmatpush1.msra.mxu0 0.0
        %5796 = vmatprep.subr.mxu0 0.0
        %5797 = vmatpush1.msra.mxu0 0.0
        %5798 = vmatprep.subr.mxu0 0.0
        %5799 = vmatpush1.msra.mxu0 0.0
        %5800 = vmatprep.subr.mxu0 0.0
        %5801 = vmatpush1.msra.mxu0 0.0
        %5802 = vmatprep.subr.mxu0 0.0
        %5803 = vmatpush1.msra.mxu0 0.0
        %5804 = vmatprep.subr.mxu0 0.0
        %5805 = vmatpush1.msra.mxu0 0.0
        %5806 = vmatprep.subr.mxu0 0.0
        %5807 = vmatpush1.msra.mxu0 0.0
        %5808 = vmatprep.subr.mxu0 0.0
        %5809 = vmatpush1.msra.mxu0 0.0
        %5810 = vmatprep.subr.mxu0 0.0
        %5811 = vmatpush1.msra.mxu0 0.0
        %5812 = vmatprep.subr.mxu0 0.0
        %5813 = vmatpush1.msra.mxu0 0.0
        %5814 = vmatprep.subr.mxu0 0.0
        %5815 = vmatpush1.msra.mxu0 0.0
        %5816 = vmatprep.mubr.f32.mxu0 0.0
        %5817 = vmatmul.mubr.f32.gmra.mrb[0].mxu0 %v5750
        %v5818 = vpop.f32.mrb[0].mxu0
        %v5819 = vadd.f32 0.0, %v5818
        %v5820 = vpop.f32.mrb[0].mxu0
        %v5821 = vadd.f32 0.0, %v5820
        %5822 = vdwg.mxu0
        %v5823 = vld [vmem:[#allocation12] sm:$0xff]
        %v5824 = vld [vmem:[#allocation12 + $0x8] sm:$0xff]
        %v5825 = vld [vmem:[#allocation12 + $0x10] sm:$0xff]
        %v5826 = vld [vmem:[#allocation12 + $0x18] sm:$0xff]
        %v5827 = vld [vmem:[#allocation12 + $0x20] sm:$0xff]
        %v5828 = vld [vmem:[#allocation12 + $0x28] sm:$0xff]
        %v5829 = vld [vmem:[#allocation12 + $0x30] sm:$0xff]
        %v5830 = vld [vmem:[#allocation12 + $0x38] sm:$0xff]
        %v5831 = vld [vmem:[#allocation12 + $0x40] sm:$0xff]
        %v5832 = vld [vmem:[#allocation12 + $0x48] sm:$0xff]
        %v5833 = vld [vmem:[#allocation12 + $0x50] sm:$0xff]
        %v5834 = vld [vmem:[#allocation12 + $0x58] sm:$0xff]
        %v5835 = vld [vmem:[#allocation12 + $0x60] sm:$0xff]
        %v5836 = vld [vmem:[#allocation12 + $0x68] sm:$0xff]
        %v5837 = vld [vmem:[#allocation12 + $0x70] sm:$0xff]
        %v5838 = vld [vmem:[#allocation12 + $0x78] sm:$0xff]
        %v5839 = vld [vmem:[#allocation12 + $0x80] sm:$0xff]
        %v5840 = vld [vmem:[#allocation12 + $0x88] sm:$0xff]
        %v5841 = vld [vmem:[#allocation12 + $0x90] sm:$0xff]
        %v5842 = vld [vmem:[#allocation12 + $0x98] sm:$0xff]
        %s5843 = scalar_lea.vmem [#allocation10], 8
        %v5844 = vld [vmem:[%s5843] sm:$0xff]
        %v5846 = vsel %vm5748, %v5844, 0
        %5848 = vmatprep.subr.mxu0 %v5728
        %5849 = vmatpush1.msra.mxu0 %v5727
        %5850 = vmatprep.subr.mxu0 %v5730
        %5851 = vmatpush1.msra.mxu0 %v5729
        %5852 = vmatprep.subr.mxu0 %v5732
        %5853 = vmatpush1.msra.mxu0 %v5731
        %5854 = vmatprep.subr.mxu0 %v5734
        %5855 = vmatpush1.msra.mxu0 %v5733
        %5856 = vmatprep.subr.mxu0 %v5736
        %5857 = vmatpush1.msra.mxu0 %v5735
        %5858 = vmatprep.subr.mxu0 %v5738
        %5859 = vmatpush1.msra.mxu0 %v5737
        %5860 = vmatprep.subr.mxu0 %v5740
        %5861 = vmatpush1.msra.mxu0 %v5739
        %5862 = vmatprep.subr.mxu0 %v5742
        %5863 = vmatpush1.msra.mxu0 %v5741
        %5864 = vmatprep.subr.mxu0 %v5744
        %5865 = vmatpush1.msra.mxu0 %v5743
        %5866 = vmatprep.subr.mxu0 %v5746
        %5867 = vmatpush1.msra.mxu0 %v5745
        %5868 = vmatprep.subr.mxu0 0.0
        %5869 = vmatpush1.msra.mxu0 0.0
        %5870 = vmatprep.subr.mxu0 0.0
        %5871 = vmatpush1.msra.mxu0 0.0
        %5872 = vmatprep.subr.mxu0 0.0
        %5873 = vmatpush1.msra.mxu0 0.0
        %5874 = vmatprep.subr.mxu0 0.0
        %5875 = vmatpush1.msra.mxu0 0.0
        %5876 = vmatprep.subr.mxu0 0.0
        %5877 = vmatpush1.msra.mxu0 0.0
        %5878 = vmatprep.subr.mxu0 0.0
        %5879 = vmatpush1.msra.mxu0 0.0
        %5880 = vmatprep.subr.mxu0 0.0
        %5881 = vmatpush1.msra.mxu0 0.0
        %5882 = vmatprep.subr.mxu0 0.0
        %5883 = vmatpush1.msra.mxu0 0.0
        %5884 = vmatprep.subr.mxu0 0.0
        %5885 = vmatpush1.msra.mxu0 0.0
        %5886 = vmatprep.subr.mxu0 0.0
        %5887 = vmatpush1.msra.mxu0 0.0
        %5888 = vmatprep.subr.mxu0 0.0
        %5889 = vmatpush1.msra.mxu0 0.0
        %5890 = vmatprep.subr.mxu0 0.0
        %5891 = vmatpush1.msra.mxu0 0.0
        %5892 = vmatprep.subr.mxu0 0.0
        %5893 = vmatpush1.msra.mxu0 0.0
        %5894 = vmatprep.subr.mxu0 0.0
        %5895 = vmatpush1.msra.mxu0 0.0
        %5896 = vmatprep.subr.mxu0 0.0
        %5897 = vmatpush1.msra.mxu0 0.0
        %5898 = vmatprep.subr.mxu0 0.0
        %5899 = vmatpush1.msra.mxu0 0.0
        %5900 = vmatprep.subr.mxu0 0.0
        %5901 = vmatpush1.msra.mxu0 0.0
        %5902 = vmatprep.subr.mxu0 0.0
        %5903 = vmatpush1.msra.mxu0 0.0
        %5904 = vmatprep.subr.mxu0 0.0
        %5905 = vmatpush1.msra.mxu0 0.0
        %5906 = vmatprep.subr.mxu0 0.0
        %5907 = vmatpush1.msra.mxu0 0.0
        %5908 = vmatprep.subr.mxu0 0.0
        %5909 = vmatpush1.msra.mxu0 0.0
        %5910 = vmatprep.subr.mxu0 0.0
        %5911 = vmatpush1.msra.mxu0 0.0
        %5912 = vmatprep.mubr.f32.mxu0 0.0
        %5913 = vmatmul.mubr.f32.gmra.mrb[0].mxu0 %v5846
        %v5914 = vpop.f32.mrb[0].mxu0
        %v5915 = vadd.f32 0.0, %v5914
        %v5916 = vpop.f32.mrb[0].mxu0
        %v5917 = vadd.f32 0.0, %v5916
        %5918 = vdwg.mxu0
        %s5919 = scalar_lea.vmem [#allocation12], 160
        %v5920 = vld [vmem:[%s5919] sm:$0xff]
        %v5921 = vld [vmem:[%s5919 + $0x8] sm:$0xff]
        %v5922 = vld [vmem:[%s5919 + $0x10] sm:$0xff]
        %v5923 = vld [vmem:[%s5919 + $0x18] sm:$0xff]
        %v5924 = vld [vmem:[%s5919 + $0x20] sm:$0xff]
        %v5925 = vld [vmem:[%s5919 + $0x28] sm:$0xff]
        %v5926 = vld [vmem:[%s5919 + $0x30] sm:$0xff]
        %v5927 = vld [vmem:[%s5919 + $0x38] sm:$0xff]
        %v5928 = vld [vmem:[%s5919 + $0x40] sm:$0xff]
        %v5929 = vld [vmem:[%s5919 + $0x48] sm:$0xff]
        %v5930 = vld [vmem:[%s5919 + $0x50] sm:$0xff]
        %v5931 = vld [vmem:[%s5919 + $0x58] sm:$0xff]
        %v5932 = vld [vmem:[%s5919 + $0x60] sm:$0xff]
        %v5933 = vld [vmem:[%s5919 + $0x68] sm:$0xff]
        %v5934 = vld [vmem:[%s5919 + $0x70] sm:$0xff]
        %v5935 = vld [vmem:[%s5919 + $0x78] sm:$0xff]
        %v5936 = vld [vmem:[%s5919 + $0x80] sm:$0xff]
        %v5937 = vld [vmem:[%s5919 + $0x88] sm:$0xff]
        %v5938 = vld [vmem:[%s5919 + $0x90] sm:$0xff]
        %v5939 = vld [vmem:[%s5919 + $0x98] sm:$0xff]
        %v5941 = vsel %vm1082, %v5917, 0
        %5943 = vmatprep.subr.mxu0 0.0
        %5944 = vmatpush1.msra.mxu0 %v5920
        %5945 = vmatprep.subr.mxu0 0.0
        %5946 = vmatpush1.msra.mxu0 %v5921
        %5947 = vmatprep.subr.mxu0 0.0
        %5948 = vmatpush1.msra.mxu0 %v5922
        %5949 = vmatprep.subr.mxu0 0.0
        %5950 = vmatpush1.msra.mxu0 %v5923
        %5951 = vmatprep.subr.mxu0 0.0
        %5952 = vmatpush1.msra.mxu0 %v5924
        %5953 = vmatprep.subr.mxu0 0.0
        %5954 = vmatpush1.msra.mxu0 %v5925
        %5955 = vmatprep.subr.mxu0 0.0
        %5956 = vmatpush1.msra.mxu0 %v5926
        %5957 = vmatprep.subr.mxu0 0.0
        %5958 = vmatpush1.msra.mxu0 %v5927
        %5959 = vmatprep.subr.mxu0 0.0
        %5960 = vmatpush1.msra.mxu0 %v5928
        %5961 = vmatprep.subr.mxu0 0.0
        %5962 = vmatpush1.msra.mxu0 %v5929
        %5963 = vmatprep.subr.mxu0 0.0
        %5964 = vmatpush1.msra.mxu0 %v5930
        %5965 = vmatprep.subr.mxu0 0.0
        %5966 = vmatpush1.msra.mxu0 %v5931
        %5967 = vmatprep.subr.mxu0 0.0
        %5968 = vmatpush1.msra.mxu0 %v5932
        %5969 = vmatprep.subr.mxu0 0.0
        %5970 = vmatpush1.msra.mxu0 %v5933
        %5971 = vmatprep.subr.mxu0 0.0
        %5972 = vmatpush1.msra.mxu0 %v5934
        %5973 = vmatprep.subr.mxu0 0.0
        %5974 = vmatpush1.msra.mxu0 %v5935
        %5975 = vmatprep.subr.mxu0 0.0
        %5976 = vmatpush1.msra.mxu0 %v5936
        %5977 = vmatprep.subr.mxu0 0.0
        %5978 = vmatpush1.msra.mxu0 %v5937
        %5979 = vmatprep.subr.mxu0 0.0
        %5980 = vmatpush1.msra.mxu0 %v5938
        %5981 = vmatprep.subr.mxu0 0.0
        %5982 = vmatpush1.msra.mxu0 %v5939
        %5983 = vmatprep.subr.mxu0 0.0
        %5984 = vmatpush1.msra.mxu0 0.0
        %5985 = vmatprep.subr.mxu0 0.0
        %5986 = vmatpush1.msra.mxu0 0.0
        %5987 = vmatprep.subr.mxu0 0.0
        %5988 = vmatpush1.msra.mxu0 0.0
        %5989 = vmatprep.subr.mxu0 0.0
        %5990 = vmatpush1.msra.mxu0 0.0
        %5991 = vmatprep.subr.mxu0 0.0
        %5992 = vmatpush1.msra.mxu0 0.0
        %5993 = vmatprep.subr.mxu0 0.0
        %5994 = vmatpush1.msra.mxu0 0.0
        %5995 = vmatprep.subr.mxu0 0.0
        %5996 = vmatpush1.msra.mxu0 0.0
        %5997 = vmatprep.subr.mxu0 0.0
        %5998 = vmatpush1.msra.mxu0 0.0
        %5999 = vmatprep.subr.mxu0 0.0
        %6000 = vmatpush1.msra.mxu0 0.0
        %6001 = vmatprep.subr.mxu0 0.0
        %6002 = vmatpush1.msra.mxu0 0.0
        %6003 = vmatprep.subr.mxu0 0.0
        %6004 = vmatpush1.msra.mxu0 0.0
        %6005 = vmatprep.subr.mxu0 0.0
        %6006 = vmatpush1.msra.mxu0 0.0
        %6007 = vmatprep.mubr.f32.mxu0 %v5941
        %6008 = vmatmul.mubr.f32.gmra.mrb[0].mxu0 %v5915
        %v6009 = vpop.f32.mrb[0].mxu0
        %v6010 = vadd.f32 0.0, %v6009
        %v6011 = vpop.f32.mrb[0].mxu0
        %6012 = vdwg.mxu0
        %v6014 = vsel %vm1082, %v5821, 0
        %6016 = vmatprep.subr.mxu0 0.0
        %6017 = vmatpush1.msra.mxu0 %v5823
        %6018 = vmatprep.subr.mxu0 0.0
        %6019 = vmatpush1.msra.mxu0 %v5824
        %6020 = vmatprep.subr.mxu0 0.0
        %6021 = vmatpush1.msra.mxu0 %v5825
        %6022 = vmatprep.subr.mxu0 0.0
        %6023 = vmatpush1.msra.mxu0 %v5826
        %6024 = vmatprep.subr.mxu0 0.0
        %6025 = vmatpush1.msra.mxu0 %v5827
        %6026 = vmatprep.subr.mxu0 0.0
        %6027 = vmatpush1.msra.mxu0 %v5828
        %6028 = vmatprep.subr.mxu0 0.0
        %6029 = vmatpush1.msra.mxu0 %v5829
        %6030 = vmatprep.subr.mxu0 0.0
        %6031 = vmatpush1.msra.mxu0 %v5830
        %6032 = vmatprep.subr.mxu0 0.0
        %6033 = vmatpush1.msra.mxu0 %v5831
        %6034 = vmatprep.subr.mxu0 0.0
        %6035 = vmatpush1.msra.mxu0 %v5832
        %6036 = vmatprep.subr.mxu0 0.0
        %6037 = vmatpush1.msra.mxu0 %v5833
        %6038 = vmatprep.subr.mxu0 0.0
        %6039 = vmatpush1.msra.mxu0 %v5834
        %6040 = vmatprep.subr.mxu0 0.0
        %6041 = vmatpush1.msra.mxu0 %v5835
        %6042 = vmatprep.subr.mxu0 0.0
        %6043 = vmatpush1.msra.mxu0 %v5836
        %6044 = vmatprep.subr.mxu0 0.0
        %6045 = vmatpush1.msra.mxu0 %v5837
        %6046 = vmatprep.subr.mxu0 0.0
        %6047 = vmatpush1.msra.mxu0 %v5838
        %6048 = vmatprep.subr.mxu0 0.0
        %6049 = vmatpush1.msra.mxu0 %v5839
        %6050 = vmatprep.subr.mxu0 0.0
        %6051 = vmatpush1.msra.mxu0 %v5840
        %6052 = vmatprep.subr.mxu0 0.0
        %6053 = vmatpush1.msra.mxu0 %v5841
        %6054 = vmatprep.subr.mxu0 0.0
        %6055 = vmatpush1.msra.mxu0 %v5842
        %6056 = vmatprep.subr.mxu0 0.0
        %6057 = vmatpush1.msra.mxu0 0.0
        %6058 = vmatprep.subr.mxu0 0.0
        %6059 = vmatpush1.msra.mxu0 0.0
        %6060 = vmatprep.subr.mxu0 0.0
        %6061 = vmatpush1.msra.mxu0 0.0
        %6062 = vmatprep.subr.mxu0 0.0
        %6063 = vmatpush1.msra.mxu0 0.0
        %6064 = vmatprep.subr.mxu0 0.0
        %6065 = vmatpush1.msra.mxu0 0.0
        %6066 = vmatprep.subr.mxu0 0.0
        %6067 = vmatpush1.msra.mxu0 0.0
        %6068 = vmatprep.subr.mxu0 0.0
        %6069 = vmatpush1.msra.mxu0 0.0
        %6070 = vmatprep.subr.mxu0 0.0
        %6071 = vmatpush1.msra.mxu0 0.0
        %6072 = vmatprep.subr.mxu0 0.0
        %6073 = vmatpush1.msra.mxu0 0.0
        %6074 = vmatprep.subr.mxu0 0.0
        %6075 = vmatpush1.msra.mxu0 0.0
        %6076 = vmatprep.subr.mxu0 0.0
        %6077 = vmatpush1.msra.mxu0 0.0
        %6078 = vmatprep.subr.mxu0 0.0
        %6079 = vmatpush1.msra.mxu0 0.0
        %6080 = vmatprep.mubr.f32.mxu0 %v6014
        %6081 = vmatmul.mubr.f32.gmra.mrb[0].mxu0 %v5819
        %v6082 = vpop.f32.mrb[0].mxu0
        %v6083 = vadd.f32 %v6010, %v6082
        %v6084 = vpop.f32.mrb[0].mxu0
        %6085 = vdwg.mxu0
        %s6086 = scalar_lea.vmem [#allocation10], 16
        %v6087 = vld [vmem:[%s6086] sm:$0xff]
        %v6089 = vsel %vm5748, %v6087, 0
        %6091 = vmatprep.subr.mxu0 %v5728
        %6092 = vmatpush1.msra.mxu0 %v5727
        %6093 = vmatprep.subr.mxu0 %v5730
        %6094 = vmatpush1.msra.mxu0 %v5729
        %6095 = vmatprep.subr.mxu0 %v5732
        %6096 = vmatpush1.msra.mxu0 %v5731
        %6097 = vmatprep.subr.mxu0 %v5734
        %6098 = vmatpush1.msra.mxu0 %v5733
        %6099 = vmatprep.subr.mxu0 %v5736
        %6100 = vmatpush1.msra.mxu0 %v5735
        %6101 = vmatprep.subr.mxu0 %v5738
        %6102 = vmatpush1.msra.mxu0 %v5737
        %6103 = vmatprep.subr.mxu0 %v5740
        %6104 = vmatpush1.msra.mxu0 %v5739
        %6105 = vmatprep.subr.mxu0 %v5742
        %6106 = vmatpush1.msra.mxu0 %v5741
        %6107 = vmatprep.subr.mxu0 %v5744
        %6108 = vmatpush1.msra.mxu0 %v5743
        %6109 = vmatprep.subr.mxu0 %v5746
        %6110 = vmatpush1.msra.mxu0 %v5745
        %6111 = vmatprep.subr.mxu0 0.0
        %6112 = vmatpush1.msra.mxu0 0.0
        %6113 = vmatprep.subr.mxu0 0.0
        %6114 = vmatpush1.msra.mxu0 0.0
        %6115 = vmatprep.subr.mxu0 0.0
        %6116 = vmatpush1.msra.mxu0 0.0
        %6117 = vmatprep.subr.mxu0 0.0
        %6118 = vmatpush1.msra.mxu0 0.0
        %6119 = vmatprep.subr.mxu0 0.0
        %6120 = vmatpush1.msra.mxu0 0.0
        %6121 = vmatprep.subr.mxu0 0.0
        %6122 = vmatpush1.msra.mxu0 0.0
        %6123 = vmatprep.subr.mxu0 0.0
        %6124 = vmatpush1.msra.mxu0 0.0
        %6125 = vmatprep.subr.mxu0 0.0
        %6126 = vmatpush1.msra.mxu0 0.0
        %6127 = vmatprep.subr.mxu0 0.0
        %6128 = vmatpush1.msra.mxu0 0.0
        %6129 = vmatprep.subr.mxu0 0.0
        %6130 = vmatpush1.msra.mxu0 0.0
        %6131 = vmatprep.subr.mxu0 0.0
        %6132 = vmatpush1.msra.mxu0 0.0
        %6133 = vmatprep.subr.mxu0 0.0
        %6134 = vmatpush1.msra.mxu0 0.0
        %6135 = vmatprep.subr.mxu0 0.0
        %6136 = vmatpush1.msra.mxu0 0.0
        %6137 = vmatprep.subr.mxu0 0.0
        %6138 = vmatpush1.msra.mxu0 0.0
        %6139 = vmatprep.subr.mxu0 0.0
        %6140 = vmatpush1.msra.mxu0 0.0
        %6141 = vmatprep.subr.mxu0 0.0
        %6142 = vmatpush1.msra.mxu0 0.0
        %6143 = vmatprep.subr.mxu0 0.0
        %6144 = vmatpush1.msra.mxu0 0.0
        %6145 = vmatprep.subr.mxu0 0.0
        %6146 = vmatpush1.msra.mxu0 0.0
        %6147 = vmatprep.subr.mxu0 0.0
        %6148 = vmatpush1.msra.mxu0 0.0
        %6149 = vmatprep.subr.mxu0 0.0
        %6150 = vmatpush1.msra.mxu0 0.0
        %6151 = vmatprep.subr.mxu0 0.0
        %6152 = vmatpush1.msra.mxu0 0.0
        %6153 = vmatprep.subr.mxu0 0.0
        %6154 = vmatpush1.msra.mxu0 0.0
        %6155 = vmatprep.mubr.f32.mxu0 0.0
        %6156 = vmatmul.mubr.f32.gmra.mrb[0].mxu0 %v6089
        %v6157 = vpop.f32.mrb[0].mxu0
        %v6158 = vadd.f32 0.0, %v6157
        %v6159 = vpop.f32.mrb[0].mxu0
        %v6160 = vadd.f32 0.0, %v6159
        %6161 = vdwg.mxu0
        %s6162 = scalar_lea.vmem [#allocation12], 320
        %v6163 = vld [vmem:[%s6162] sm:$0xff]
        %v6164 = vld [vmem:[%s6162 + $0x8] sm:$0xff]
        %v6165 = vld [vmem:[%s6162 + $0x10] sm:$0xff]
        %v6166 = vld [vmem:[%s6162 + $0x18] sm:$0xff]
        %v6167 = vld [vmem:[%s6162 + $0x20] sm:$0xff]
        %v6168 = vld [vmem:[%s6162 + $0x28] sm:$0xff]
        %v6169 = vld [vmem:[%s6162 + $0x30] sm:$0xff]
        %v6170 = vld [vmem:[%s6162 + $0x38] sm:$0xff]
        %v6171 = vld [vmem:[%s6162 + $0x40] sm:$0xff]
        %v6172 = vld [vmem:[%s6162 + $0x48] sm:$0xff]
        %v6173 = vld [vmem:[%s6162 + $0x50] sm:$0xff]
        %v6174 = vld [vmem:[%s6162 + $0x58] sm:$0xff]
        %v6175 = vld [vmem:[%s6162 + $0x60] sm:$0xff]
        %v6176 = vld [vmem:[%s6162 + $0x68] sm:$0xff]
        %v6177 = vld [vmem:[%s6162 + $0x70] sm:$0xff]
        %v6178 = vld [vmem:[%s6162 + $0x78] sm:$0xff]
        %v6179 = vld [vmem:[%s6162 + $0x80] sm:$0xff]
        %v6180 = vld [vmem:[%s6162 + $0x88] sm:$0xff]
        %v6181 = vld [vmem:[%s6162 + $0x90] sm:$0xff]
        %v6182 = vld [vmem:[%s6162 + $0x98] sm:$0xff]
        %v6184 = vsel %vm1082, %v6160, 0
        %6186 = vmatprep.subr.mxu0 0.0
        %6187 = vmatpush1.msra.mxu0 %v6163
        %6188 = vmatprep.subr.mxu0 0.0
        %6189 = vmatpush1.msra.mxu0 %v6164
        %6190 = vmatprep.subr.mxu0 0.0
        %6191 = vmatpush1.msra.mxu0 %v6165
        %6192 = vmatprep.subr.mxu0 0.0
        %6193 = vmatpush1.msra.mxu0 %v6166
        %6194 = vmatprep.subr.mxu0 0.0
        %6195 = vmatpush1.msra.mxu0 %v6167
        %6196 = vmatprep.subr.mxu0 0.0
        %6197 = vmatpush1.msra.mxu0 %v6168
        %6198 = vmatprep.subr.mxu0 0.0
        %6199 = vmatpush1.msra.mxu0 %v6169
        %6200 = vmatprep.subr.mxu0 0.0
        %6201 = vmatpush1.msra.mxu0 %v6170
        %6202 = vmatprep.subr.mxu0 0.0
        %6203 = vmatpush1.msra.mxu0 %v6171
        %6204 = vmatprep.subr.mxu0 0.0
        %6205 = vmatpush1.msra.mxu0 %v6172
        %6206 = vmatprep.subr.mxu0 0.0
        %6207 = vmatpush1.msra.mxu0 %v6173
        %6208 = vmatprep.subr.mxu0 0.0
        %6209 = vmatpush1.msra.mxu0 %v6174
        %6210 = vmatprep.subr.mxu0 0.0
        %6211 = vmatpush1.msra.mxu0 %v6175
        %6212 = vmatprep.subr.mxu0 0.0
        %6213 = vmatpush1.msra.mxu0 %v6176
        %6214 = vmatprep.subr.mxu0 0.0
        %6215 = vmatpush1.msra.mxu0 %v6177
        %6216 = vmatprep.subr.mxu0 0.0
        %6217 = vmatpush1.msra.mxu0 %v6178
        %6218 = vmatprep.subr.mxu0 0.0
        %6219 = vmatpush1.msra.mxu0 %v6179
        %6220 = vmatprep.subr.mxu0 0.0
        %6221 = vmatpush1.msra.mxu0 %v6180
        %6222 = vmatprep.subr.mxu0 0.0
        %6223 = vmatpush1.msra.mxu0 %v6181
        %6224 = vmatprep.subr.mxu0 0.0
        %6225 = vmatpush1.msra.mxu0 %v6182
        %6226 = vmatprep.subr.mxu0 0.0
        %6227 = vmatpush1.msra.mxu0 0.0
        %6228 = vmatprep.subr.mxu0 0.0
        %6229 = vmatpush1.msra.mxu0 0.0
        %6230 = vmatprep.subr.mxu0 0.0
        %6231 = vmatpush1.msra.mxu0 0.0
        %6232 = vmatprep.subr.mxu0 0.0
        %6233 = vmatpush1.msra.mxu0 0.0
        %6234 = vmatprep.subr.mxu0 0.0
        %6235 = vmatpush1.msra.mxu0 0.0
        %6236 = vmatprep.subr.mxu0 0.0
        %6237 = vmatpush1.msra.mxu0 0.0
        %6238 = vmatprep.subr.mxu0 0.0
        %6239 = vmatpush1.msra.mxu0 0.0
        %6240 = vmatprep.subr.mxu0 0.0
        %6241 = vmatpush1.msra.mxu0 0.0
        %6242 = vmatprep.subr.mxu0 0.0
        %6243 = vmatpush1.msra.mxu0 0.0
        %6244 = vmatprep.subr.mxu0 0.0
        %6245 = vmatpush1.msra.mxu0 0.0
        %6246 = vmatprep.subr.mxu0 0.0
        %6247 = vmatpush1.msra.mxu0 0.0
        %6248 = vmatprep.subr.mxu0 0.0
        %6249 = vmatpush1.msra.mxu0 0.0
        %6250 = vmatprep.mubr.f32.mxu0 %v6184
        %6251 = vmatmul.mubr.f32.gmra.mrb[0].mxu0 %v6158
        %v6252 = vpop.f32.mrb[0].mxu0
        %v6253 = vadd.f32 0.0, %v6252
        %v6254 = vpop.f32.mrb[0].mxu0
        %6255 = vdwg.mxu0
        %v6256 = vadd.f32 %v6083, %v6253
        %s6257 = scalar_lea.vmem [#allocation10], 24
        %v6258 = vld [vmem:[%s6257] sm:$0xff]
        %v6260 = vsel %vm5748, %v6258, 0
        %6262 = vmatprep.subr.mxu0 %v5728
        %6263 = vmatpush1.msra.mxu0 %v5727
        %6264 = vmatprep.subr.mxu0 %v5730
        %6265 = vmatpush1.msra.mxu0 %v5729
        %6266 = vmatprep.subr.mxu0 %v5732
        %6267 = vmatpush1.msra.mxu0 %v5731
        %6268 = vmatprep.subr.mxu0 %v5734
        %6269 = vmatpush1.msra.mxu0 %v5733
        %6270 = vmatprep.subr.mxu0 %v5736
        %6271 = vmatpush1.msra.mxu0 %v5735
        %6272 = vmatprep.subr.mxu0 %v5738
        %6273 = vmatpush1.msra.mxu0 %v5737
        %6274 = vmatprep.subr.mxu0 %v5740
        %6275 = vmatpush1.msra.mxu0 %v5739
        %6276 = vmatprep.subr.mxu0 %v5742
        %6277 = vmatpush1.msra.mxu0 %v5741
        %6278 = vmatprep.subr.mxu0 %v5744
        %6279 = vmatpush1.msra.mxu0 %v5743
        %6280 = vmatprep.subr.mxu0 %v5746
        %6281 = vmatpush1.msra.mxu0 %v5745
        %6282 = vmatprep.subr.mxu0 0.0
        %6283 = vmatpush1.msra.mxu0 0.0
        %6284 = vmatprep.subr.mxu0 0.0
        %6285 = vmatpush1.msra.mxu0 0.0
        %6286 = vmatprep.subr.mxu0 0.0
        %6287 = vmatpush1.msra.mxu0 0.0
        %6288 = vmatprep.subr.mxu0 0.0
        %6289 = vmatpush1.msra.mxu0 0.0
        %6290 = vmatprep.subr.mxu0 0.0
        %6291 = vmatpush1.msra.mxu0 0.0
        %6292 = vmatprep.subr.mxu0 0.0
        %6293 = vmatpush1.msra.mxu0 0.0
        %6294 = vmatprep.subr.mxu0 0.0
        %6295 = vmatpush1.msra.mxu0 0.0
        %6296 = vmatprep.subr.mxu0 0.0
        %6297 = vmatpush1.msra.mxu0 0.0
        %6298 = vmatprep.subr.mxu0 0.0
        %6299 = vmatpush1.msra.mxu0 0.0
        %6300 = vmatprep.subr.mxu0 0.0
        %6301 = vmatpush1.msra.mxu0 0.0
        %6302 = vmatprep.subr.mxu0 0.0
        %6303 = vmatpush1.msra.mxu0 0.0
        %6304 = vmatprep.subr.mxu0 0.0
        %6305 = vmatpush1.msra.mxu0 0.0
        %6306 = vmatprep.subr.mxu0 0.0
        %6307 = vmatpush1.msra.mxu0 0.0
        %6308 = vmatprep.subr.mxu0 0.0
        %6309 = vmatpush1.msra.mxu0 0.0
        %6310 = vmatprep.subr.mxu0 0.0
        %6311 = vmatpush1.msra.mxu0 0.0
        %6312 = vmatprep.subr.mxu0 0.0
        %6313 = vmatpush1.msra.mxu0 0.0
        %6314 = vmatprep.subr.mxu0 0.0
        %6315 = vmatpush1.msra.mxu0 0.0
        %6316 = vmatprep.subr.mxu0 0.0
        %6317 = vmatpush1.msra.mxu0 0.0
        %6318 = vmatprep.subr.mxu0 0.0
        %6319 = vmatpush1.msra.mxu0 0.0
        %6320 = vmatprep.subr.mxu0 0.0
        %6321 = vmatpush1.msra.mxu0 0.0
        %6322 = vmatprep.subr.mxu0 0.0
        %6323 = vmatpush1.msra.mxu0 0.0
        %6324 = vmatprep.subr.mxu0 0.0
        %6325 = vmatpush1.msra.mxu0 0.0
        %6326 = vmatprep.mubr.f32.mxu0 0.0
        %6327 = vmatmul.mubr.f32.gmra.mrb[0].mxu0 %v6260
        %v6328 = vpop.f32.mrb[0].mxu0
        %v6329 = vadd.f32 0.0, %v6328
        %v6330 = vpop.f32.mrb[0].mxu0
        %v6331 = vadd.f32 0.0, %v6330
        %6332 = vdwg.mxu0
        %s6333 = scalar_lea.vmem [#allocation12], 480
        %v6334 = vld [vmem:[%s6333] sm:$0xff]
        %v6335 = vld [vmem:[%s6333 + $0x8] sm:$0xff]
        %v6336 = vld [vmem:[%s6333 + $0x10] sm:$0xff]
        %v6337 = vld [vmem:[%s6333 + $0x18] sm:$0xff]
        %v6338 = vld [vmem:[%s6333 + $0x20] sm:$0xff]
        %v6339 = vld [vmem:[%s6333 + $0x28] sm:$0xff]
        %v6340 = vld [vmem:[%s6333 + $0x30] sm:$0xff]
        %v6341 = vld [vmem:[%s6333 + $0x38] sm:$0xff]
        %v6342 = vld [vmem:[%s6333 + $0x40] sm:$0xff]
        %v6343 = vld [vmem:[%s6333 + $0x48] sm:$0xff]
        %v6344 = vld [vmem:[%s6333 + $0x50] sm:$0xff]
        %v6345 = vld [vmem:[%s6333 + $0x58] sm:$0xff]
        %v6346 = vld [vmem:[%s6333 + $0x60] sm:$0xff]
        %v6347 = vld [vmem:[%s6333 + $0x68] sm:$0xff]
        %v6348 = vld [vmem:[%s6333 + $0x70] sm:$0xff]
        %v6349 = vld [vmem:[%s6333 + $0x78] sm:$0xff]
        %v6350 = vld [vmem:[%s6333 + $0x80] sm:$0xff]
        %v6351 = vld [vmem:[%s6333 + $0x88] sm:$0xff]
        %v6352 = vld [vmem:[%s6333 + $0x90] sm:$0xff]
        %v6353 = vld [vmem:[%s6333 + $0x98] sm:$0xff]
        %v6355 = vsel %vm1082, %v6331, 0
        %6357 = vmatprep.subr.mxu0 0.0
        %6358 = vmatpush1.msra.mxu0 %v6334
        %6359 = vmatprep.subr.mxu0 0.0
        %6360 = vmatpush1.msra.mxu0 %v6335
        %6361 = vmatprep.subr.mxu0 0.0
        %6362 = vmatpush1.msra.mxu0 %v6336
        %6363 = vmatprep.subr.mxu0 0.0
        %6364 = vmatpush1.msra.mxu0 %v6337
        %6365 = vmatprep.subr.mxu0 0.0
        %6366 = vmatpush1.msra.mxu0 %v6338
        %6367 = vmatprep.subr.mxu0 0.0
        %6368 = vmatpush1.msra.mxu0 %v6339
        %6369 = vmatprep.subr.mxu0 0.0
        %6370 = vmatpush1.msra.mxu0 %v6340
        %6371 = vmatprep.subr.mxu0 0.0
        %6372 = vmatpush1.msra.mxu0 %v6341
        %6373 = vmatprep.subr.mxu0 0.0
        %6374 = vmatpush1.msra.mxu0 %v6342
        %6375 = vmatprep.subr.mxu0 0.0
        %6376 = vmatpush1.msra.mxu0 %v6343
        %6377 = vmatprep.subr.mxu0 0.0
        %6378 = vmatpush1.msra.mxu0 %v6344
        %6379 = vmatprep.subr.mxu0 0.0
        %6380 = vmatpush1.msra.mxu0 %v6345
        %6381 = vmatprep.subr.mxu0 0.0
        %6382 = vmatpush1.msra.mxu0 %v6346
        %6383 = vmatprep.subr.mxu0 0.0
        %6384 = vmatpush1.msra.mxu0 %v6347
        %6385 = vmatprep.subr.mxu0 0.0
        %6386 = vmatpush1.msra.mxu0 %v6348
        %6387 = vmatprep.subr.mxu0 0.0
        %6388 = vmatpush1.msra.mxu0 %v6349
        %6389 = vmatprep.subr.mxu0 0.0
        %6390 = vmatpush1.msra.mxu0 %v6350
        %6391 = vmatprep.subr.mxu0 0.0
        %6392 = vmatpush1.msra.mxu0 %v6351
        %6393 = vmatprep.subr.mxu0 0.0
        %6394 = vmatpush1.msra.mxu0 %v6352
        %6395 = vmatprep.subr.mxu0 0.0
        %6396 = vmatpush1.msra.mxu0 %v6353
        %6397 = vmatprep.subr.mxu0 0.0
        %6398 = vmatpush1.msra.mxu0 0.0
        %6399 = vmatprep.subr.mxu0 0.0
        %6400 = vmatpush1.msra.mxu0 0.0
        %6401 = vmatprep.subr.mxu0 0.0
        %6402 = vmatpush1.msra.mxu0 0.0
        %6403 = vmatprep.subr.mxu0 0.0
        %6404 = vmatpush1.msra.mxu0 0.0
        %6405 = vmatprep.subr.mxu0 0.0
        %6406 = vmatpush1.msra.mxu0 0.0
        %6407 = vmatprep.subr.mxu0 0.0
        %6408 = vmatpush1.msra.mxu0 0.0
        %6409 = vmatprep.subr.mxu0 0.0
        %6410 = vmatpush1.msra.mxu0 0.0
        %6411 = vmatprep.subr.mxu0 0.0
        %6412 = vmatpush1.msra.mxu0 0.0
        %6413 = vmatprep.subr.mxu0 0.0
        %6414 = vmatpush1.msra.mxu0 0.0
        %6415 = vmatprep.subr.mxu0 0.0
        %6416 = vmatpush1.msra.mxu0 0.0
        %6417 = vmatprep.subr.mxu0 0.0
        %6418 = vmatpush1.msra.mxu0 0.0
        %6419 = vmatprep.subr.mxu0 0.0
        %6420 = vmatpush1.msra.mxu0 0.0
        %6421 = vmatprep.mubr.f32.mxu0 %v6355
        %6422 = vmatmul.mubr.f32.gmra.mrb[0].mxu0 %v6329
        %v6423 = vpop.f32.mrb[0].mxu0
        %v6424 = vadd.f32 0.0, %v6423
        %v6425 = vpop.f32.mrb[0].mxu0
        %6426 = vdwg.mxu0
        %v6427 = vadd.f32 %v6256, %v6424
        %s6428 = scalar_lea.vmem [#allocation10], 32
        %v6429 = vld [vmem:[%s6428] sm:$0xff]
        %v6431 = vsel %vm5748, %v6429, 0
        %6433 = vmatprep.subr.mxu0 %v5728
        %6434 = vmatpush1.msra.mxu0 %v5727
        %6435 = vmatprep.subr.mxu0 %v5730
        %6436 = vmatpush1.msra.mxu0 %v5729
        %6437 = vmatprep.subr.mxu0 %v5732
        %6438 = vmatpush1.msra.mxu0 %v5731
        %6439 = vmatprep.subr.mxu0 %v5734
        %6440 = vmatpush1.msra.mxu0 %v5733
        %6441 = vmatprep.subr.mxu0 %v5736
        %6442 = vmatpush1.msra.mxu0 %v5735
        %6443 = vmatprep.subr.mxu0 %v5738
        %6444 = vmatpush1.msra.mxu0 %v5737
        %6445 = vmatprep.subr.mxu0 %v5740
        %6446 = vmatpush1.msra.mxu0 %v5739
        %6447 = vmatprep.subr.mxu0 %v5742
        %6448 = vmatpush1.msra.mxu0 %v5741
        %6449 = vmatprep.subr.mxu0 %v5744
        %6450 = vmatpush1.msra.mxu0 %v5743
        %6451 = vmatprep.subr.mxu0 %v5746
        %6452 = vmatpush1.msra.mxu0 %v5745
        %6453 = vmatprep.subr.mxu0 0.0
        %6454 = vmatpush1.msra.mxu0 0.0
        %6455 = vmatprep.subr.mxu0 0.0
        %6456 = vmatpush1.msra.mxu0 0.0
        %6457 = vmatprep.subr.mxu0 0.0
        %6458 = vmatpush1.msra.mxu0 0.0
        %6459 = vmatprep.subr.mxu0 0.0
        %6460 = vmatpush1.msra.mxu0 0.0
        %6461 = vmatprep.subr.mxu0 0.0
        %6462 = vmatpush1.msra.mxu0 0.0
        %6463 = vmatprep.subr.mxu0 0.0
        %6464 = vmatpush1.msra.mxu0 0.0
        %6465 = vmatprep.subr.mxu0 0.0
        %6466 = vmatpush1.msra.mxu0 0.0
        %6467 = vmatprep.subr.mxu0 0.0
        %6468 = vmatpush1.msra.mxu0 0.0
        %6469 = vmatprep.subr.mxu0 0.0
        %6470 = vmatpush1.msra.mxu0 0.0
        %6471 = vmatprep.subr.mxu0 0.0
        %6472 = vmatpush1.msra.mxu0 0.0
        %6473 = vmatprep.subr.mxu0 0.0
        %6474 = vmatpush1.msra.mxu0 0.0
        %6475 = vmatprep.subr.mxu0 0.0
        %6476 = vmatpush1.msra.mxu0 0.0
        %6477 = vmatprep.subr.mxu0 0.0
        %6478 = vmatpush1.msra.mxu0 0.0
        %6479 = vmatprep.subr.mxu0 0.0
        %6480 = vmatpush1.msra.mxu0 0.0
        %6481 = vmatprep.subr.mxu0 0.0
        %6482 = vmatpush1.msra.mxu0 0.0
        %6483 = vmatprep.subr.mxu0 0.0
        %6484 = vmatpush1.msra.mxu0 0.0
        %6485 = vmatprep.subr.mxu0 0.0
        %6486 = vmatpush1.msra.mxu0 0.0
        %6487 = vmatprep.subr.mxu0 0.0
        %6488 = vmatpush1.msra.mxu0 0.0
        %6489 = vmatprep.subr.mxu0 0.0
        %6490 = vmatpush1.msra.mxu0 0.0
        %6491 = vmatprep.subr.mxu0 0.0
        %6492 = vmatpush1.msra.mxu0 0.0
        %6493 = vmatprep.subr.mxu0 0.0
        %6494 = vmatpush1.msra.mxu0 0.0
        %6495 = vmatprep.subr.mxu0 0.0
        %6496 = vmatpush1.msra.mxu0 0.0
        %6497 = vmatprep.mubr.f32.mxu0 0.0
        %6498 = vmatmul.mubr.f32.gmra.mrb[0].mxu0 %v6431
        %v6499 = vpop.f32.mrb[0].mxu0
        %v6500 = vadd.f32 0.0, %v6499
        %v6501 = vpop.f32.mrb[0].mxu0
        %v6502 = vadd.f32 0.0, %v6501
        %6503 = vdwg.mxu0
        %s6504 = scalar_lea.vmem [#allocation12], 640
        %v6505 = vld [vmem:[%s6504] sm:$0xff]
        %v6506 = vld [vmem:[%s6504 + $0x8] sm:$0xff]
        %v6507 = vld [vmem:[%s6504 + $0x10] sm:$0xff]
        %v6508 = vld [vmem:[%s6504 + $0x18] sm:$0xff]
        %v6509 = vld [vmem:[%s6504 + $0x20] sm:$0xff]
        %v6510 = vld [vmem:[%s6504 + $0x28] sm:$0xff]
        %v6511 = vld [vmem:[%s6504 + $0x30] sm:$0xff]
        %v6512 = vld [vmem:[%s6504 + $0x38] sm:$0xff]
        %v6513 = vld [vmem:[%s6504 + $0x40] sm:$0xff]
        %v6514 = vld [vmem:[%s6504 + $0x48] sm:$0xff]
        %v6515 = vld [vmem:[%s6504 + $0x50] sm:$0xff]
        %v6516 = vld [vmem:[%s6504 + $0x58] sm:$0xff]
        %v6517 = vld [vmem:[%s6504 + $0x60] sm:$0xff]
        %v6518 = vld [vmem:[%s6504 + $0x68] sm:$0xff]
        %v6519 = vld [vmem:[%s6504 + $0x70] sm:$0xff]
        %v6520 = vld [vmem:[%s6504 + $0x78] sm:$0xff]
        %v6521 = vld [vmem:[%s6504 + $0x80] sm:$0xff]
        %v6522 = vld [vmem:[%s6504 + $0x88] sm:$0xff]
        %v6523 = vld [vmem:[%s6504 + $0x90] sm:$0xff]
        %v6524 = vld [vmem:[%s6504 + $0x98] sm:$0xff]
        %v6526 = vsel %vm1082, %v6502, 0
        %6528 = vmatprep.subr.mxu0 0.0
        %6529 = vmatpush1.msra.mxu0 %v6505
        %6530 = vmatprep.subr.mxu0 0.0
        %6531 = vmatpush1.msra.mxu0 %v6506
        %6532 = vmatprep.subr.mxu0 0.0
        %6533 = vmatpush1.msra.mxu0 %v6507
        %6534 = vmatprep.subr.mxu0 0.0
        %6535 = vmatpush1.msra.mxu0 %v6508
        %6536 = vmatprep.subr.mxu0 0.0
        %6537 = vmatpush1.msra.mxu0 %v6509
        %6538 = vmatprep.subr.mxu0 0.0
        %6539 = vmatpush1.msra.mxu0 %v6510
        %6540 = vmatprep.subr.mxu0 0.0
        %6541 = vmatpush1.msra.mxu0 %v6511
        %6542 = vmatprep.subr.mxu0 0.0
        %6543 = vmatpush1.msra.mxu0 %v6512
        %6544 = vmatprep.subr.mxu0 0.0
        %6545 = vmatpush1.msra.mxu0 %v6513
        %6546 = vmatprep.subr.mxu0 0.0
        %6547 = vmatpush1.msra.mxu0 %v6514
        %6548 = vmatprep.subr.mxu0 0.0
        %6549 = vmatpush1.msra.mxu0 %v6515
        %6550 = vmatprep.subr.mxu0 0.0
        %6551 = vmatpush1.msra.mxu0 %v6516
        %6552 = vmatprep.subr.mxu0 0.0
        %6553 = vmatpush1.msra.mxu0 %v6517
        %6554 = vmatprep.subr.mxu0 0.0
        %6555 = vmatpush1.msra.mxu0 %v6518
        %6556 = vmatprep.subr.mxu0 0.0
        %6557 = vmatpush1.msra.mxu0 %v6519
        %6558 = vmatprep.subr.mxu0 0.0
        %6559 = vmatpush1.msra.mxu0 %v6520
        %6560 = vmatprep.subr.mxu0 0.0
        %6561 = vmatpush1.msra.mxu0 %v6521
        %6562 = vmatprep.subr.mxu0 0.0
        %6563 = vmatpush1.msra.mxu0 %v6522
        %6564 = vmatprep.subr.mxu0 0.0
        %6565 = vmatpush1.msra.mxu0 %v6523
        %6566 = vmatprep.subr.mxu0 0.0
        %6567 = vmatpush1.msra.mxu0 %v6524
        %6568 = vmatprep.subr.mxu0 0.0
        %6569 = vmatpush1.msra.mxu0 0.0
        %6570 = vmatprep.subr.mxu0 0.0
        %6571 = vmatpush1.msra.mxu0 0.0
        %6572 = vmatprep.subr.mxu0 0.0
        %6573 = vmatpush1.msra.mxu0 0.0
        %6574 = vmatprep.subr.mxu0 0.0
        %6575 = vmatpush1.msra.mxu0 0.0
        %6576 = vmatprep.subr.mxu0 0.0
        %6577 = vmatpush1.msra.mxu0 0.0
        %6578 = vmatprep.subr.mxu0 0.0
        %6579 = vmatpush1.msra.mxu0 0.0
        %6580 = vmatprep.subr.mxu0 0.0
        %6581 = vmatpush1.msra.mxu0 0.0
        %6582 = vmatprep.subr.mxu0 0.0
        %6583 = vmatpush1.msra.mxu0 0.0
        %6584 = vmatprep.subr.mxu0 0.0
        %6585 = vmatpush1.msra.mxu0 0.0
        %6586 = vmatprep.subr.mxu0 0.0
        %6587 = vmatpush1.msra.mxu0 0.0
        %6588 = vmatprep.subr.mxu0 0.0
        %6589 = vmatpush1.msra.mxu0 0.0
        %6590 = vmatprep.subr.mxu0 0.0
        %6591 = vmatpush1.msra.mxu0 0.0
        %6592 = vmatprep.mubr.f32.mxu0 %v6526
        %6593 = vmatmul.mubr.f32.gmra.mrb[0].mxu0 %v6500
        %v6594 = vpop.f32.mrb[0].mxu0
        %v6595 = vadd.f32 0.0, %v6594
        %v6596 = vpop.f32.mrb[0].mxu0
        %6597 = vdwg.mxu0
        %v6598 = vadd.f32 %v6427, %v6595
        %v6599 = vlaneseq
        %v6600 = vshrl.u32 %v6599, 7
        %v6601 = vsub.s32 2, %v6600
        %v6602 = vrot.slane %v508, %v6601
        %v6603 = vadd.f32 %v6598, %v6602
        %v6604 = vmax.f32 %v6603, 0.0
        %v6605 = vld [vmem:[#allocation15] sm:$0xff]
        %v6606 = vld [vmem:[#allocation15 + $0x8] sm:$0xff]
        %v6607 = vld [vmem:[#allocation15 + $0x10] sm:$0xff]
        %v6608 = vld [vmem:[#allocation15 + $0x18] sm:$0xff]
        %v6609 = vld [vmem:[#allocation15 + $0x20] sm:$0xff]
        %v6610 = vld [vmem:[#allocation15 + $0x28] sm:$0xff]
        %v6611 = vld [vmem:[#allocation15 + $0x30] sm:$0xff]
        %v6612 = vld [vmem:[#allocation15 + $0x38] sm:$0xff]
        %v6613 = vld [vmem:[#allocation15 + $0x40] sm:$0xff]
        %v6614 = vld [vmem:[#allocation15 + $0x48] sm:$0xff]
        %v6615 = vld [vmem:[#allocation15 + $0x50] sm:$0xff]
        %v6616 = vld [vmem:[#allocation15 + $0x58] sm:$0xff]
        %v6617 = vld [vmem:[#allocation15 + $0x60] sm:$0xff]
        %v6618 = vld [vmem:[#allocation15 + $0x68] sm:$0xff]
        %v6619 = vld [vmem:[#allocation15 + $0x70] sm:$0xff]
        %v6620 = vlaneseq
        %v6621 = vshrl.u32 %v6620, 7
        %v6622 = vsub.s32 3, %v6621
        %v6623 = vrot.slane %v508, %v6622
        %vm6624 = vcmask 982016
        %v6626 = vsel %vm6624, %v6604, 0
        %6628 = vmatprep.subr.mxu0 0.0
        %6629 = vmatpush1.msra.mxu0 %v6605
        %6630 = vmatprep.subr.mxu0 0.0
        %6631 = vmatpush1.msra.mxu0 %v6606
        %6632 = vmatprep.subr.mxu0 0.0
        %6633 = vmatpush1.msra.mxu0 %v6607
        %6634 = vmatprep.subr.mxu0 0.0
        %6635 = vmatpush1.msra.mxu0 %v6608
        %6636 = vmatprep.subr.mxu0 0.0
        %6637 = vmatpush1.msra.mxu0 %v6609
        %6638 = vmatprep.subr.mxu0 0.0
        %6639 = vmatpush1.msra.mxu0 %v6610
        %6640 = vmatprep.subr.mxu0 0.0
        %6641 = vmatpush1.msra.mxu0 %v6611
        %6642 = vmatprep.subr.mxu0 0.0
        %6643 = vmatpush1.msra.mxu0 %v6612
        %6644 = vmatprep.subr.mxu0 0.0
        %6645 = vmatpush1.msra.mxu0 %v6613
        %6646 = vmatprep.subr.mxu0 0.0
        %6647 = vmatpush1.msra.mxu0 %v6614
        %6648 = vmatprep.subr.mxu0 0.0
        %6649 = vmatpush1.msra.mxu0 %v6615
        %6650 = vmatprep.subr.mxu0 0.0
        %6651 = vmatpush1.msra.mxu0 %v6616
        %6652 = vmatprep.subr.mxu0 0.0
        %6653 = vmatpush1.msra.mxu0 %v6617
        %6654 = vmatprep.subr.mxu0 0.0
        %6655 = vmatpush1.msra.mxu0 %v6618
        %6656 = vmatprep.subr.mxu0 0.0
        %6657 = vmatpush1.msra.mxu0 %v6619
        %6658 = vmatprep.subr.mxu0 0.0
        %6659 = vmatpush1.msra.mxu0 0.0
        %6660 = vmatprep.subr.mxu0 0.0
        %6661 = vmatpush1.msra.mxu0 0.0
        %6662 = vmatprep.subr.mxu0 0.0
        %6663 = vmatpush1.msra.mxu0 0.0
        %6664 = vmatprep.subr.mxu0 0.0
        %6665 = vmatpush1.msra.mxu0 0.0
        %6666 = vmatprep.subr.mxu0 0.0
        %6667 = vmatpush1.msra.mxu0 0.0
        %6668 = vmatprep.subr.mxu0 0.0
        %6669 = vmatpush1.msra.mxu0 0.0
        %6670 = vmatprep.subr.mxu0 0.0
        %6671 = vmatpush1.msra.mxu0 0.0
        %6672 = vmatprep.subr.mxu0 0.0
        %6673 = vmatpush1.msra.mxu0 0.0
        %6674 = vmatprep.subr.mxu0 0.0
        %6675 = vmatpush1.msra.mxu0 0.0
        %6676 = vmatprep.subr.mxu0 0.0
        %6677 = vmatpush1.msra.mxu0 0.0
        %6678 = vmatprep.subr.mxu0 0.0
        %6679 = vmatpush1.msra.mxu0 0.0
        %6680 = vmatprep.subr.mxu0 0.0
        %6681 = vmatpush1.msra.mxu0 0.0
        %6682 = vmatprep.subr.mxu0 0.0
        %6683 = vmatpush1.msra.mxu0 0.0
        %6684 = vmatprep.subr.mxu0 0.0
        %6685 = vmatpush1.msra.mxu0 0.0
        %6686 = vmatprep.subr.mxu0 0.0
        %6687 = vmatpush1.msra.mxu0 0.0
        %6688 = vmatprep.subr.mxu0 0.0
        %6689 = vmatpush1.msra.mxu0 0.0
        %6690 = vmatprep.subr.mxu0 0.0
        %6691 = vmatpush1.msra.mxu0 0.0
        %6692 = vmatprep.mubr.f32.mxu0 0.0
        %6693 = vmatmul.mubr.f32.gmra.mrb[0].mxu0 %v6626
        %v6694 = vpop.f32.mrb[0].mxu0
        %v6695 = vadd.f32 %v6623, %v6694
        %v6696 = vpop.f32.mrb[0].mxu0
        %6697 = vdwg.mxu0
        %v6698 = vmax.f32 %v6695, 0.0
        %v6699 = vld [vmem:[#allocation16] sm:$0xff]
        %v6700 = vld [vmem:[#allocation16 + $0x8] sm:$0xff]
        %v6701 = vld [vmem:[#allocation16 + $0x10] sm:$0xff]
        %v6702 = vld [vmem:[#allocation16 + $0x18] sm:$0xff]
        %v6703 = vld [vmem:[#allocation16 + $0x20] sm:$0xff]
        %v6704 = vld [vmem:[#allocation16 + $0x28] sm:$0xff]
        %v6705 = vld [vmem:[#allocation16 + $0x30] sm:$0xff]
        %v6706 = vld [vmem:[#allocation16 + $0x38] sm:$0xff]
        %v6707 = vld [vmem:[#allocation16 + $0x40] sm:$0xff]
        %v6708 = vld [vmem:[#allocation16 + $0x48] sm:$0xff]
        %v6709 = vld [vmem:[#allocation16 + $0x50] sm:$0xf]
        %v6710 = vlaneseq
        %v6711 = vshrl.u32 %v6710, 7
        %v6712 = vsub.s32 4, %v6711
        %v6713 = vrot.slane %v508, %v6712
        %vm6714 = vcmask 687104
        %v6716 = vsel %vm6714, %v6698, 0
        %vm6718 = vcmask 1043456
        %v6720 = vsel %vm6718, %v6709, 0
        %6722 = vmatprep.subr.mxu0 0.0
        %6723 = vmatpush1.msra.mxu0 %v6699
        %6724 = vmatprep.subr.mxu0 0.0
        %6725 = vmatpush1.msra.mxu0 %v6700
        %6726 = vmatprep.subr.mxu0 0.0
        %6727 = vmatpush1.msra.mxu0 %v6701
        %6728 = vmatprep.subr.mxu0 0.0
        %6729 = vmatpush1.msra.mxu0 %v6702
        %6730 = vmatprep.subr.mxu0 0.0
        %6731 = vmatpush1.msra.mxu0 %v6703
        %6732 = vmatprep.subr.mxu0 0.0
        %6733 = vmatpush1.msra.mxu0 %v6704
        %6734 = vmatprep.subr.mxu0 0.0
        %6735 = vmatpush1.msra.mxu0 %v6705
        %6736 = vmatprep.subr.mxu0 0.0
        %6737 = vmatpush1.msra.mxu0 %v6706
        %6738 = vmatprep.subr.mxu0 0.0
        %6739 = vmatpush1.msra.mxu0 %v6707
        %6740 = vmatprep.subr.mxu0 0.0
        %6741 = vmatpush1.msra.mxu0 %v6708
        %6742 = vmatprep.subr.mxu0 0.0
        %6743 = vmatpush1.msra.mxu0 %v6720
        %6744 = vmatprep.subr.mxu0 0.0
        %6745 = vmatpush1.msra.mxu0 0.0
        %6746 = vmatprep.subr.mxu0 0.0
        %6747 = vmatpush1.msra.mxu0 0.0
        %6748 = vmatprep.subr.mxu0 0.0
        %6749 = vmatpush1.msra.mxu0 0.0
        %6750 = vmatprep.subr.mxu0 0.0
        %6751 = vmatpush1.msra.mxu0 0.0
        %6752 = vmatprep.subr.mxu0 0.0
        %6753 = vmatpush1.msra.mxu0 0.0
        %6754 = vmatprep.subr.mxu0 0.0
        %6755 = vmatpush1.msra.mxu0 0.0
        %6756 = vmatprep.subr.mxu0 0.0
        %6757 = vmatpush1.msra.mxu0 0.0
        %6758 = vmatprep.subr.mxu0 0.0
        %6759 = vmatpush1.msra.mxu0 0.0
        %6760 = vmatprep.subr.mxu0 0.0
        %6761 = vmatpush1.msra.mxu0 0.0
        %6762 = vmatprep.subr.mxu0 0.0
        %6763 = vmatpush1.msra.mxu0 0.0
        %6764 = vmatprep.subr.mxu0 0.0
        %6765 = vmatpush1.msra.mxu0 0.0
        %6766 = vmatprep.subr.mxu0 0.0
        %6767 = vmatpush1.msra.mxu0 0.0
        %6768 = vmatprep.subr.mxu0 0.0
        %6769 = vmatpush1.msra.mxu0 0.0
        %6770 = vmatprep.subr.mxu0 0.0
        %6771 = vmatpush1.msra.mxu0 0.0
        %6772 = vmatprep.subr.mxu0 0.0
        %6773 = vmatpush1.msra.mxu0 0.0
        %6774 = vmatprep.subr.mxu0 0.0
        %6775 = vmatpush1.msra.mxu0 0.0
        %6776 = vmatprep.subr.mxu0 0.0
        %6777 = vmatpush1.msra.mxu0 0.0
        %6778 = vmatprep.subr.mxu0 0.0
        %6779 = vmatpush1.msra.mxu0 0.0
        %6780 = vmatprep.subr.mxu0 0.0
        %6781 = vmatpush1.msra.mxu0 0.0
        %6782 = vmatprep.subr.mxu0 0.0
        %6783 = vmatpush1.msra.mxu0 0.0
        %6784 = vmatprep.subr.mxu0 0.0
        %6785 = vmatpush1.msra.mxu0 0.0
        %6786 = vmatprep.mubr.f32.mxu0 0.0
        %6787 = vmatmul.mubr.f32.gmra.mrb[0].mxu0 %v6716
        %v6788 = vpop.f32.mrb[0].mxu0
        %v6789 = vadd.f32 %v6713, %v6788
        %v6790 = vpop.f32.mrb[0].mxu0
        %6791 = vdwg.mxu0
        %vm6792 = vcmask 15360
        %6793 = vst.msk [vmem:[%s507] sm:$0xff] %vm6792, %v6789
        %p6794 = scmp.lt.s32.totalorder %s29, 1
        %s6795 = scalar_select %p6794, %s29, 1
        %s6796 = smul.addr %s6795, 8
        %s6797 = scalar_lea.vmem %s10, %s6796
        // Predicated region
        $region101: #{forward.1} parent=59 // pred_check
          %p6798 = pneg %p262
        $region102: #{forward.1} parent=59 // pred_check_branch
          %6800 = sbr.rel (%p6798) target = $region104
        $region103: #{forward.1} parent=59 // pred_region
          _
        $region104: #{forward.1} parent=59 // pred_fallthru
          _
      $region60: #{forward.1} parent=5 // pred_fallthru
        _
      %p6801 = scmp.le.s32.totalorder 2, %s24
      // Predicated region
      $region105: #{forward.1} parent=5 // pred_check
        %p6802 = pneg %p6801
      $region106: #{forward.1} parent=5 // pred_check_branch
        %6804 = sbr.rel (%p6802) target = $region108
      $region107: #{forward.1} parent=5 // pred_region
        %s6805 = ssub.s32 %s24, 2
        // Predicated region
        $region109: #{forward.1} parent=107 // pred_check
          %p6806 = pneg %p268
        $region110: #{forward.1} parent=107 // pred_check_branch
          %6808 = sbr.rel (%p6806) target = $region112
        $region111: #{forward.1} parent=107 // pred_region
          %p6809 = scmp.lt.s32.totalorder %s30, 1
          %s6810 = scalar_select %p6809, %s30, 1
          %s6811 = smul.addr %s6810, 8
          %s6812 = scalar_lea.vmem %s10, %s6811
        $region112: #{forward.1} parent=107 // pred_fallthru
          _
      $region108: #{forward.1} parent=5 // pred_fallthru
        _
    $region6: #{forward.1} parent=1 // loop_footer
      %s28 = sadd.s32 1, %s24
    $region7: #{forward.1} parent=1 // loop_footer_branch
      %23 = sbr.rel target = $region3
    $region8: #{forward.1} parent=1 // loop_exit
      _
    %6813 = vsyncpa [#allocation3], 1
    %s6814 = scalar_lea.sflag [#allocation3], 1
    %6815 = vsyncpa %s6814, 1
    %6816 = vsyncpa [#allocation5], 1
    %6817 = vsyncpa [#allocation8], 1
    %6818 = vsyncpa [#allocation11], 1
    %6819 = vsyncpa [#allocation14], 1
    %6820 = vsyncpa [#allocation17], 1

</llo_original>
